<compile_context>
chip_gen: v5e
topology: v5e:2x2
jax: 0.10.0
libtpu: 0.0.40
codegen_flags: <defaults>
</compile_context>

<pallas_src>
import functools

import jax
import jax.numpy as jnp
from jax import lax
from jax.experimental import pallas as pl
from jax.experimental.pallas import tpu as pltpu

LANE = 128


def _round_up(x, m):
    return ((x + m - 1) // m) * m


def _pad_to(a, shape):
    pads = [(0, t - s) for s, t in zip(a.shape, shape)]
    return jnp.pad(a, pads)


# ---------------- Pallas kernel ----------------

def _stream_logits(x_ref, lhs_ref, wc_ref, bc_ref, wh_ref, bh_ref, *, H, W):
    """One backbone stream for one batch element.

    x_ref  : (1, L, Ci)     bf16  halo-padded flat image, L = H*(W+1) + 2*(W+2)
    lhs_ref: (N, 9*Ci)      bf16  VMEM scratch for the stacked conv taps, N = H*(W+1)
    wc_ref : (9*Ci, F_pad)  bf16  conv taps stacked along K
    bc_ref : (1, F_pad)     f32
    wh_ref : (F_pad, C_pad) bf16  head weight
    bh_ref : (1, C_pad)     f32
    returns (1, C_pad) f32 stream logits (padded lanes are exactly 0).
    """
    Wp = W + 1
    N = H * Wp
    Ci = x_ref.shape[-1]

    # Stack the 9 shifted taps along K -> one (N, 9*Ci) @ (9*Ci, F_pad) matmul.
    # Every tap is a pure static slice of the halo-padded flat buffer; no masks.
    k = 0
    for dy in (-1, 0, 1):
        for dx in (-1, 0, 1):
            start = (Wp + 1) + dy * Wp + dx          # static offset, >= 0
            lhs_ref[:, k * Ci:(k + 1) * Ci] = x_ref[0, pl.ds(start, N), :]
            k += 1

    conv = jnp.dot(lhs_ref[...], wc_ref[...],
                   preferred_element_type=jnp.float32)        # (N, F_pad) f32
    feat = jnp.maximum(conv + bc_ref[...], 0.0)               # f32 elementwise

    # GAP + junk-column mask + 1/HW scale fused into one (1, N) MXU row-matmul.
    col = lax.broadcasted_iota(jnp.int32, (1, N), 1) % Wp
    gap = jnp.where(col < W, jnp.float32(1.0 / (H * W)),
                    jnp.float32(0.0)).astype(jnp.bfloat16)    # (1, N)
    pooled = jnp.dot(gap, feat.astype(jnp.bfloat16),
                     preferred_element_type=jnp.float32)      # (1, F_pad)

    return (jnp.dot(pooled.astype(jnp.bfloat16), wh_ref[...],
                    preferred_element_type=jnp.float32) + bh_ref[...])


def _joint_model_kernel(xr_ref, xo_ref,
                        wcr_ref, bcr_ref, whr_ref, bhr_ref,
                        wco_ref, bco_ref, who_ref, bho_ref,
                        w1r_ref, w1o_ref, b1_ref, w2_ref, b2_ref,
                        o_ref, lhs_r_ref, lhs_o_ref, *, H, W):
    """Fully fused JointModel_ONNX forward for one batch element."""
    l_rgb = _stream_logits(xr_ref, lhs_r_ref, wcr_ref, bcr_ref, whr_ref, bhr_ref,
                           H=H, W=W)                          # (1, C_pad)
    l_of = _stream_logits(xo_ref, lhs_o_ref, wco_ref, bco_ref, who_ref, bho_ref,
                          H=H, W=W)                           # (1, C_pad)

    # fc1 on the (implicitly concatenated) logits: W1 is split per stream so no
    # concatenated tensor is ever materialized. Then ReLU -> fc2.
    h = (jnp.dot(l_rgb.astype(jnp.bfloat16), w1r_ref[...],
                 preferred_element_type=jnp.float32)
         + jnp.dot(l_of.astype(jnp.bfloat16), w1o_ref[...],
                   preferred_element_type=jnp.float32)
         + b1_ref[...])
    h = jnp.maximum(h, 0.0)
    o_ref[0] = (jnp.dot(h.astype(jnp.bfloat16), w2_ref[...],
                        preferred_element_type=jnp.float32) + b2_ref[...])


# ---------------- wrappers ----------------

def _flatten_pad_input(x_nchw, c_in_pad):
    """NCHW -> flat NHWC bf16 with one zero column per row + top/bottom zero rows.

    Output shape: (B, H*(W+1) + 2*(W+2), c_in_pad). With this layout every 3x3
    tap of a 'same' conv is a static slice (out-of-bounds taps land on zeros).
    """
    B, C, H, W = x_nchw.shape
    x = jnp.transpose(x_nchw, (0, 2, 3, 1)).astype(jnp.bfloat16)    # (B,H,W,C)
    x = jnp.pad(x, ((0, 0), (0, 0), (0, 1), (0, c_in_pad - C)))     # (B,H,W+1,Cp)
    x = x.reshape(B, H * (W + 1), c_in_pad)
    x = jnp.pad(x, ((0, 0), (W + 2, W + 2), (0, 0)))                # halo rows
    return x


def joint_model_onnx_forward(x_rgb, x_of, p, *, nb_classes):
    """Full JointModel_ONNX forward in ONE pallas_call (grid over batch)."""
    B, _, H, W = x_rgb.shape
    assert x_of.shape[0] == B and x_of.shape[2:] == (H, W)

    cir = p["rgb_conv_w"].shape[0] // 9       # padded input channels per stream
    cio = p["of_conv_w"].shape[0] // 9
    C_pad = p["fc2_w"].shape[-1]
    N = H * (W + 1)

    xr = _flatten_pad_input(x_rgb, cir)       # (B, L, cir) bf16
    xo = _flatten_pad_input(x_of, cio)        # (B, L, cio) bf16
    L_r, L_o = xr.shape[1], xo.shape[1]

    kernel = functools.partial(_joint_model_kernel, H=H, W=W)
    weight_spec = lambda arr: pl.BlockSpec(arr.shape, lambda b: (0, 0))

    out = pl.pallas_call(
        kernel,
        out_shape=jax.ShapeDtypeStruct((B, 1, C_pad), jnp.float32),
        grid=(B,),
        in_specs=[
            pl.BlockSpec((1, L_r, cir), lambda b: (b, 0, 0)),
            pl.BlockSpec((1, L_o, cio), lambda b: (b, 0, 0)),
            weight_spec(p["rgb_conv_w"]),
            weight_spec(p["rgb_conv_b"]),
            weight_spec(p["rgb_head_w"]),
            weight_spec(p["rgb_head_b"]),
            weight_spec(p["of_conv_w"]),
            weight_spec(p["of_conv_b"]),
            weight_spec(p["of_head_w"]),
            weight_spec(p["of_head_b"]),
            weight_spec(p["fc1_w_rgb"]),
            weight_spec(p["fc1_w_of"]),
            weight_spec(p["fc1_b"]),
            weight_spec(p["fc2_w"]),
            weight_spec(p["fc2_b"]),
        ],
        out_specs=pl.BlockSpec((1, 1, C_pad), lambda b: (b, 0, 0)),
        scratch_shapes=[
            pltpu.VMEM((N, 9 * cir), jnp.bfloat16),
            pltpu.VMEM((N, 9 * cio), jnp.bfloat16),
        ],
        compiler_params=pltpu.CompilerParams(dimension_semantics=("parallel",)),
    )(xr, xo,
      p["rgb_conv_w"], p["rgb_conv_b"], p["rgb_head_w"], p["rgb_head_b"],
      p["of_conv_w"], p["of_conv_b"], p["of_head_w"], p["of_head_b"],
      p["fc1_w_rgb"], p["fc1_w_of"], p["fc1_b"], p["fc2_w"], p["fc2_b"])

    return out.reshape(B, C_pad)[:, :nb_classes]


def prepare_params(params, nb_classes):
    """One-time (load-time) weight prep: zero-pad feature/logit/hidden dims to
    128 lanes, pad input channels to a multiple of 8, stack conv taps along K,
    split fc1 by input half, and cast matmul weights to bf16 (biases stay f32).
    Zero padding keeps every padded lane exactly 0 end-to-end, so the first
    `nb_classes` output columns are numerically unchanged.

    NOTE: weight layouts here are (in, out); real PyTorch nn.Linear checkpoints
    are (out, in) and must be transposed before use.
    """
    feat = params["rgb_conv_w"].shape[-1]
    num_fc = params["fc1_w"].shape[-1]
    F_pad = _round_up(feat, LANE)
    C_pad = _round_up(nb_classes, LANE)
    FC_pad = _round_up(num_fc, LANE)

    def stream(prefix):
        cw = params[prefix + "_conv_w"]                       # (9, C_in, feat)
        ci_pad = _round_up(cw.shape[1], 8)
        cw = _pad_to(cw, (9, ci_pad, F_pad)).reshape(9 * ci_pad, F_pad)
        return {
            prefix + "_conv_w": cw.astype(jnp.bfloat16),
            prefix + "_conv_b": _pad_to(params[prefix + "_conv_b"], (F_pad,)).reshape(1, F_pad),
            prefix + "_head_w": _pad_to(params[prefix + "_head_w"], (F_pad, C_pad)).astype(jnp.bfloat16),
            prefix + "_head_b": _pad_to(params[prefix + "_head_b"], (C_pad,)).reshape(1, C_pad),
        }

    w1 = params["fc1_w"]                                      # (2*nb_classes, num_fc)
    out = {}
    out.update(stream("rgb"))
    out.update(stream("of"))
    out.update({
        # split fc1 by input half so the concat never needs to be materialized
        "fc1_w_rgb": _pad_to(w1[:nb_classes], (C_pad, FC_pad)).astype(jnp.bfloat16),
        "fc1_w_of": _pad_to(w1[nb_classes:], (C_pad, FC_pad)).astype(jnp.bfloat16),
        "fc1_b": _pad_to(params["fc1_b"], (FC_pad,)).reshape(1, FC_pad),
        "fc2_w": _pad_to(params["fc2_w"], (FC_pad, C_pad)).astype(jnp.bfloat16),
        "fc2_b": _pad_to(params["fc2_b"], (C_pad,)).reshape(1, C_pad),
    })
    return out


# ---------------- pure-JAX reference (f32) ----------------

def _reference_forward(x_rgb, x_of, raw, nb_classes):
    def stream(x_nchw, w9cf, cb, hw, hb):
        C, F = w9cf.shape[1], w9cf.shape[2]
        w = w9cf.reshape(3, 3, C, F)                          # HWIO, tap-major
        y = lax.conv_general_dilated(x_nchw, w, (1, 1), "SAME",
                                     dimension_numbers=("NCHW", "HWIO", "NHWC"))
        feat = jax.nn.relu(y + cb)                            # (B, H, W, F)
        pooled = feat.mean(axis=(1, 2))                       # GAP
        return pooled @ hw + hb

    lr = stream(x_rgb, raw["rgb_conv_w"], raw["rgb_conv_b"],
                raw["rgb_head_w"], raw["rgb_head_b"])
    lo = stream(x_of, raw["of_conv_w"], raw["of_conv_b"],
                raw["of_head_w"], raw["of_head_b"])
    x = jnp.concatenate([lr, lo], axis=1)
    h = jax.nn.relu(x @ raw["fc1_w"] + raw["fc1_b"])
    return h @ raw["fc2_w"] + raw["fc2_b"]


# ---------------- deterministic parameter init ----------------

def make_params(key, rgb_in_ch, of_in_ch, feat, nb_classes, num_fc):
    ks = jax.random.split(key, 10)
    scale = 0.2
    return {
        "rgb_conv_w": scale * jax.random.normal(ks[0], (9, rgb_in_ch, feat), jnp.float32),
        "rgb_conv_b": scale * jax.random.normal(ks[1], (feat,), jnp.float32),
        "rgb_head_w": scale * jax.random.normal(ks[2], (feat, nb_classes), jnp.float32),
        "rgb_head_b": scale * jax.random.normal(ks[3], (nb_classes,), jnp.float32),
        "of_conv_w": scale * jax.random.normal(ks[4], (9, of_in_ch, feat), jnp.float32),
        "of_conv_b": scale * jax.random.normal(ks[5], (feat,), jnp.float32),
        "of_head_w": scale * jax.random.normal(ks[6], (feat, nb_classes), jnp.float32),
        "of_head_b": scale * jax.random.normal(ks[7], (nb_classes,), jnp.float32),
        "fc1_w": scale * jax.random.normal(ks[8], (2 * nb_classes, num_fc), jnp.float32),
        "fc1_b": jnp.zeros((num_fc,), jnp.float32),
        "fc2_w": scale * jax.random.normal(ks[9], (num_fc, nb_classes), jnp.float32),
        "fc2_b": jnp.zeros((nb_classes,), jnp.float32),
    }


if __name__ == "__main__":
    # Module hyper-params (small): rgb_seq_length=2 -> 6 rgb channels,
    # of_seq_length=3 -> 6 flow channels, nb_classes=8, num_fc=64.
    B, H, W = 2, 16, 16
    rgb_seq_length, of_seq_length = 2, 3
    rgb_in_ch, of_in_ch = 3 * rgb_seq_length, 2 * of_seq_length
    nb_classes, num_fc, feat = 8, 64, 32

    key = jax.random.PRNGKey(0)
    k_rgb, k_of, k_par = jax.random.split(key, 3)
    x_rgb = jax.random.normal(k_rgb, (B, rgb_in_ch, H, W), jnp.float32)   # NCHW
    x_of = jax.random.normal(k_of, (B, of_in_ch, H, W), jnp.float32)      # NCHW
    raw_params = make_params(k_par, rgb_in_ch, of_in_ch, feat, nb_classes, num_fc)

    # Load-time weight prep (hoisted out of the forward path).
    params = prepare_params(raw_params, nb_classes)

    fwd = jax.jit(functools.partial(joint_model_onnx_forward, nb_classes=nb_classes))
    out = fwd(x_rgb, x_of, params)
    jax.block_until_ready(out)

    assert out.shape == (B, nb_classes) and out.dtype == jnp.float32
    assert bool(jnp.all(jnp.isfinite(out)))

    ref = _reference_forward(x_rgb, x_of, raw_params, nb_classes)
    # bf16 matmul operands => loose tolerance vs the f32 reference.
    assert bool(jnp.allclose(out, ref, atol=5e-2, rtol=5e-2)), (
        f"max abs err {float(jnp.max(jnp.abs(out - ref)))}")

    print("KERNEL_OK")
</pallas_src>

<mosaic_0001>
module attributes {stable_mosaic.version = 11 : i64} {
  func.func @_joint_model_kernel(%arg0: i32, %arg1: memref<1x308x8xbf16, #tpu.memory_space<vmem>>, %arg2: memref<1x308x8xbf16, #tpu.memory_space<vmem>>, %arg3: memref<72x128xbf16, #tpu.memory_space<vmem>>, %arg4: memref<1x128xf32, #tpu.memory_space<vmem>>, %arg5: memref<128x128xbf16, #tpu.memory_space<vmem>>, %arg6: memref<1x128xf32, #tpu.memory_space<vmem>>, %arg7: memref<72x128xbf16, #tpu.memory_space<vmem>>, %arg8: memref<1x128xf32, #tpu.memory_space<vmem>>, %arg9: memref<128x128xbf16, #tpu.memory_space<vmem>>, %arg10: memref<1x128xf32, #tpu.memory_space<vmem>>, %arg11: memref<128x128xbf16, #tpu.memory_space<vmem>>, %arg12: memref<128x128xbf16, #tpu.memory_space<vmem>>, %arg13: memref<1x128xf32, #tpu.memory_space<vmem>>, %arg14: memref<128x128xbf16, #tpu.memory_space<vmem>>, %arg15: memref<1x128xf32, #tpu.memory_space<vmem>>, %arg16: memref<1x1x128xf32, #tpu.memory_space<vmem>>, %arg17: memref<272x72xbf16, #tpu.memory_space<vmem>>, %arg18: memref<272x72xbf16, #tpu.memory_space<vmem>>) attributes {dimension_semantics = [#tpu.dimension_semantics<parallel>], iteration_bounds = array<i64: 2>, scalar_prefetch = 0 : i64, scratch_operands = 2 : i64, tpu.core_type = #tpu.core_type<tc>, window_params = [{transform_indices = @transform_0, window_bounds = array<i64: 1, 308, 8>}, {transform_indices = @transform_1, window_bounds = array<i64: 1, 308, 8>}, {pipeline_mode = #tpu.pipeline_mode<synchronous>, transform_indices = @transform_2, window_bounds = array<i64: 72, 128>}, {pipeline_mode = #tpu.pipeline_mode<synchronous>, transform_indices = @transform_3, window_bounds = array<i64: 1, 128>}, {pipeline_mode = #tpu.pipeline_mode<synchronous>, transform_indices = @transform_4, window_bounds = array<i64: 128, 128>}, {pipeline_mode = #tpu.pipeline_mode<synchronous>, transform_indices = @transform_5, window_bounds = array<i64: 1, 128>}, {pipeline_mode = #tpu.pipeline_mode<synchronous>, transform_indices = @transform_6, window_bounds = array<i64: 72, 128>}, {pipeline_mode = #tpu.pipeline_mode<synchronous>, transform_indices = @transform_7, window_bounds = array<i64: 1, 128>}, {pipeline_mode = #tpu.pipeline_mode<synchronous>, transform_indices = @transform_8, window_bounds = array<i64: 128, 128>}, {pipeline_mode = #tpu.pipeline_mode<synchronous>, transform_indices = @transform_9, window_bounds = array<i64: 1, 128>}, {pipeline_mode = #tpu.pipeline_mode<synchronous>, transform_indices = @transform_10, window_bounds = array<i64: 128, 128>}, {pipeline_mode = #tpu.pipeline_mode<synchronous>, transform_indices = @transform_11, window_bounds = array<i64: 128, 128>}, {pipeline_mode = #tpu.pipeline_mode<synchronous>, transform_indices = @transform_12, window_bounds = array<i64: 1, 128>}, {pipeline_mode = #tpu.pipeline_mode<synchronous>, transform_indices = @transform_13, window_bounds = array<i64: 128, 128>}, {pipeline_mode = #tpu.pipeline_mode<synchronous>, transform_indices = @transform_14, window_bounds = array<i64: 1, 128>}, {transform_indices = @transform_15, window_bounds = array<i64: 1, 1, 128>}]} {
    %c0 = arith.constant 0 : index
    %c0_0 = arith.constant 0 : index
    %c0_1 = arith.constant 0 : index
    %0 = vector.load %arg1[%c0, %c0_0, %c0_1] : memref<1x308x8xbf16, #tpu.memory_space<vmem>>, vector<1x272x8xbf16>
    %1 = vector.shape_cast %0 : vector<1x272x8xbf16> to vector<272x8xbf16>
    %c0_2 = arith.constant 0 : index
    %c0_3 = arith.constant 0 : index
    %2 = vector.load %arg17[%c0_2, %c0_3] : memref<272x72xbf16, #tpu.memory_space<vmem>>, vector<272x8xbf16>
    tpu.vector_store %arg17[%c0_2, %c0_3], %1 {strides = array<i32>} : memref<272x72xbf16, #tpu.memory_space<vmem>>, vector<272x8xbf16>,
    %c0_4 = arith.constant 0 : index
    %c1 = arith.constant 1 : index
    %c0_5 = arith.constant 0 : index
    %3 = vector.load %arg1[%c0_4, %c1, %c0_5] : memref<1x308x8xbf16, #tpu.memory_space<vmem>>, vector<1x272x8xbf16>
    %4 = vector.shape_cast %3 : vector<1x272x8xbf16> to vector<272x8xbf16>
    %c0_6 = arith.constant 0 : index
    %c8 = arith.constant 8 : index
    %5 = vector.load %arg17[%c0_6, %c8] : memref<272x72xbf16, #tpu.memory_space<vmem>>, vector<272x8xbf16>
    tpu.vector_store %arg17[%c0_6, %c8], %4 {strides = array<i32>} : memref<272x72xbf16, #tpu.memory_space<vmem>>, vector<272x8xbf16>,
    %c0_7 = arith.constant 0 : index
    %c2 = arith.constant 2 : index
    %c0_8 = arith.constant 0 : index
    %6 = vector.load %arg1[%c0_7, %c2, %c0_8] : memref<1x308x8xbf16, #tpu.memory_space<vmem>>, vector<1x272x8xbf16>
    %7 = vector.shape_cast %6 : vector<1x272x8xbf16> to vector<272x8xbf16>
    %c0_9 = arith.constant 0 : index
    %c16 = arith.constant 16 : index
    %8 = vector.load %arg17[%c0_9, %c16] : memref<272x72xbf16, #tpu.memory_space<vmem>>, vector<272x8xbf16>
    tpu.vector_store %arg17[%c0_9, %c16], %7 {strides = array<i32>} : memref<272x72xbf16, #tpu.memory_space<vmem>>, vector<272x8xbf16>,
    %c0_10 = arith.constant 0 : index
    %c17 = arith.constant 17 : index
    %c0_11 = arith.constant 0 : index
    %9 = vector.load %arg1[%c0_10, %c17, %c0_11] : memref<1x308x8xbf16, #tpu.memory_space<vmem>>, vector<1x272x8xbf16>
    %10 = vector.shape_cast %9 : vector<1x272x8xbf16> to vector<272x8xbf16>
    %c0_12 = arith.constant 0 : index
    %c24 = arith.constant 24 : index
    %11 = vector.load %arg17[%c0_12, %c24] : memref<272x72xbf16, #tpu.memory_space<vmem>>, vector<272x8xbf16>
    tpu.vector_store %arg17[%c0_12, %c24], %10 {strides = array<i32>} : memref<272x72xbf16, #tpu.memory_space<vmem>>, vector<272x8xbf16>,
    %c0_13 = arith.constant 0 : index
    %c18 = arith.constant 18 : index
    %c0_14 = arith.constant 0 : index
    %12 = vector.load %arg1[%c0_13, %c18, %c0_14] : memref<1x308x8xbf16, #tpu.memory_space<vmem>>, vector<1x272x8xbf16>
    %13 = vector.shape_cast %12 : vector<1x272x8xbf16> to vector<272x8xbf16>
    %c0_15 = arith.constant 0 : index
    %c32 = arith.constant 32 : index
    %14 = vector.load %arg17[%c0_15, %c32] : memref<272x72xbf16, #tpu.memory_space<vmem>>, vector<272x8xbf16>
    tpu.vector_store %arg17[%c0_15, %c32], %13 {strides = array<i32>} : memref<272x72xbf16, #tpu.memory_space<vmem>>, vector<272x8xbf16>,
    %c0_16 = arith.constant 0 : index
    %c19 = arith.constant 19 : index
    %c0_17 = arith.constant 0 : index
    %15 = vector.load %arg1[%c0_16, %c19, %c0_17] : memref<1x308x8xbf16, #tpu.memory_space<vmem>>, vector<1x272x8xbf16>
    %16 = vector.shape_cast %15 : vector<1x272x8xbf16> to vector<272x8xbf16>
    %c0_18 = arith.constant 0 : index
    %c40 = arith.constant 40 : index
    %17 = vector.load %arg17[%c0_18, %c40] : memref<272x72xbf16, #tpu.memory_space<vmem>>, vector<272x8xbf16>
    tpu.vector_store %arg17[%c0_18, %c40], %16 {strides = array<i32>} : memref<272x72xbf16, #tpu.memory_space<vmem>>, vector<272x8xbf16>,
    %c0_19 = arith.constant 0 : index
    %c34 = arith.constant 34 : index
    %c0_20 = arith.constant 0 : index
    %18 = vector.load %arg1[%c0_19, %c34, %c0_20] : memref<1x308x8xbf16, #tpu.memory_space<vmem>>, vector<1x272x8xbf16>
    %19 = vector.shape_cast %18 : vector<1x272x8xbf16> to vector<272x8xbf16>
    %c0_21 = arith.constant 0 : index
    %c48 = arith.constant 48 : index
    %20 = vector.load %arg17[%c0_21, %c48] : memref<272x72xbf16, #tpu.memory_space<vmem>>, vector<272x8xbf16>
    tpu.vector_store %arg17[%c0_21, %c48], %19 {strides = array<i32>} : memref<272x72xbf16, #tpu.memory_space<vmem>>, vector<272x8xbf16>,
    %c0_22 = arith.constant 0 : index
    %c35 = arith.constant 35 : index
    %c0_23 = arith.constant 0 : index
    %21 = vector.load %arg1[%c0_22, %c35, %c0_23] : memref<1x308x8xbf16, #tpu.memory_space<vmem>>, vector<1x272x8xbf16>
    %22 = vector.shape_cast %21 : vector<1x272x8xbf16> to vector<272x8xbf16>
    %c0_24 = arith.constant 0 : index
    %c56 = arith.constant 56 : index
    %23 = vector.load %arg17[%c0_24, %c56] : memref<272x72xbf16, #tpu.memory_space<vmem>>, vector<272x8xbf16>
    tpu.vector_store %arg17[%c0_24, %c56], %22 {strides = array<i32>} : memref<272x72xbf16, #tpu.memory_space<vmem>>, vector<272x8xbf16>,
    %c0_25 = arith.constant 0 : index
    %c36 = arith.constant 36 : index
    %c0_26 = arith.constant 0 : index
    %24 = vector.load %arg1[%c0_25, %c36, %c0_26] : memref<1x308x8xbf16, #tpu.memory_space<vmem>>, vector<1x272x8xbf16>
    %25 = vector.shape_cast %24 : vector<1x272x8xbf16> to vector<272x8xbf16>
    %c0_27 = arith.constant 0 : index
    %c64 = arith.constant 64 : index
    %26 = vector.load %arg17[%c0_27, %c64] : memref<272x72xbf16, #tpu.memory_space<vmem>>, vector<272x8xbf16>
    tpu.vector_store %arg17[%c0_27, %c64], %25 {strides = array<i32>} : memref<272x72xbf16, #tpu.memory_space<vmem>>, vector<272x8xbf16>,
    %c0_28 = arith.constant 0 : index
    %c0_29 = arith.constant 0 : index
    %27 = vector.load %arg17[%c0_28, %c0_29] : memref<272x72xbf16, #tpu.memory_space<vmem>>, vector<272x72xbf16>
    %c0_30 = arith.constant 0 : index
    %c0_31 = arith.constant 0 : index
    %28 = vector.load %arg3[%c0_30, %c0_31] : memref<72x128xbf16, #tpu.memory_space<vmem>>, vector<72x128xbf16>
    %cst = arith.constant dense<0.000000e+00> : vector<272x128xf32>
    %29 = tpu.matmul %27, %28, %cst {dimension_numbers = #tpu.dot_dimension_numbers<[1], [0], [0], [1], [0, 0, 1, 1], [], []>} : vector<272x72xbf16>, vector<72x128xbf16>, vector<272x128xf32> -> vector<272x128xf32>
    %c0_32 = arith.constant 0 : index
    %c0_33 = arith.constant 0 : index
    %30 = vector.load %arg4[%c0_32, %c0_33] : memref<1x128xf32, #tpu.memory_space<vmem>>, vector<1x128xf32>
    %31 = vector.broadcast %30 : vector<1x128xf32> to vector<272x128xf32>
    %32 = arith.addf %29, %31 : vector<272x128xf32>
    %cst_34 = arith.constant 0.000000e+00 : f32
    %33 = vector.broadcast %cst_34 : f32 to vector<272x128xf32>
    %34 = arith.maximumf %32, %33 : vector<272x128xf32>
    %35 = tpu.iota {dimensions = array<i32: 1>} : vector<1x272xi32>
    %c17_i32 = arith.constant 17 : i32
    %c0_i32 = arith.constant 0 : i32
    %36 = arith.cmpi eq, %c17_i32, %c0_i32 : i32
    %c1_i32 = arith.constant 1 : i32
    %37 = arith.select %36, %c1_i32, %c17_i32 : i32
    %38 = vector.broadcast %37 : i32 to vector<1x272xi32>
    %39 = arith.remsi %35, %38 : vector<1x272xi32>
    %c0_i32_35 = arith.constant 0 : i32
    %40 = vector.broadcast %c0_i32_35 : i32 to vector<1x272xi32>
    %41 = arith.cmpi ne, %39, %40 : vector<1x272xi32>
    %c0_i32_36 = arith.constant 0 : i32
    %42 = vector.broadcast %c0_i32_36 : i32 to vector<1x272xi32>
    %43 = arith.cmpi slt, %39, %42 : vector<1x272xi32>
    %c0_i32_37 = arith.constant 0 : i32
    %44 = arith.cmpi slt, %37, %c0_i32_37 : i32
    %45 = vector.broadcast %44 : i1 to vector<1x272xi1>
    %46 = vector.broadcast %45 : vector<1x272xi1> to vector<1x272xi1>
    %47 = arith.xori %43, %46 : vector<1x272xi1>
    %48 = arith.andi %47, %41 : vector<1x272xi1>
    %49 = vector.broadcast %37 : i32 to vector<1x272xi32>
    %50 = arith.addi %39, %49 : vector<1x272xi32>
    %51 = arith.select %48, %50, %39 : vector<1x272xi1>, vector<1x272xi32>
    %c16_i32 = arith.constant 16 : i32
    %52 = vector.broadcast %c16_i32 : i32 to vector<1x272xi32>
    %53 = arith.cmpi slt, %51, %52 : vector<1x272xi32>
    %cst_38 = arith.constant 3.906250e-03 : f32
    %cst_39 = arith.constant 0.000000e+00 : f32
    %54 = vector.broadcast %cst_38 : f32 to vector<1x272xf32>
    %55 = vector.broadcast %cst_39 : f32 to vector<1x272xf32>
    %56 = arith.select %53, %54, %55 : vector<1x272xi1>, vector<1x272xf32>
    %57 = arith.truncf %56 : vector<1x272xf32> to vector<1x272xbf16>
    %58 = arith.truncf %34 : vector<272x128xf32> to vector<272x128xbf16>
    %cst_40 = arith.constant dense<0.000000e+00> : vector<1x128xf32>
    %59 = tpu.matmul %57, %58, %cst_40 {dimension_numbers = #tpu.dot_dimension_numbers<[1], [0], [0], [1], [0, 0, 1, 1], [], []>} : vector<1x272xbf16>, vector<272x128xbf16>, vector<1x128xf32> -> vector<1x128xf32>
    %60 = arith.truncf %59 : vector<1x128xf32> to vector<1x128xbf16>
    %c0_41 = arith.constant 0 : index
    %c0_42 = arith.constant 0 : index
    %61 = vector.load %arg5[%c0_41, %c0_42] : memref<128x128xbf16, #tpu.memory_space<vmem>>, vector<128x128xbf16>
    %cst_43 = arith.constant dense<0.000000e+00> : vector<1x128xf32>
    %62 = tpu.matmul %60, %61, %cst_43 {dimension_numbers = #tpu.dot_dimension_numbers<[1], [0], [0], [1], [0, 0, 1, 1], [], []>} : vector<1x128xbf16>, vector<128x128xbf16>, vector<1x128xf32> -> vector<1x128xf32>
    %c0_44 = arith.constant 0 : index
    %c0_45 = arith.constant 0 : index
    %63 = vector.load %arg6[%c0_44, %c0_45] : memref<1x128xf32, #tpu.memory_space<vmem>>, vector<1x128xf32>
    %64 = arith.addf %62, %63 : vector<1x128xf32>
    %c0_46 = arith.constant 0 : index
    %c0_47 = arith.constant 0 : index
    %c0_48 = arith.constant 0 : index
    %65 = vector.load %arg2[%c0_46, %c0_47, %c0_48] : memref<1x308x8xbf16, #tpu.memory_space<vmem>>, vector<1x272x8xbf16>
    %66 = vector.shape_cast %65 : vector<1x272x8xbf16> to vector<272x8xbf16>
    %c0_49 = arith.constant 0 : index
    %c0_50 = arith.constant 0 : index
    %67 = vector.load %arg18[%c0_49, %c0_50] : memref<272x72xbf16, #tpu.memory_space<vmem>>, vector<272x8xbf16>
    tpu.vector_store %arg18[%c0_49, %c0_50], %66 {strides = array<i32>} : memref<272x72xbf16, #tpu.memory_space<vmem>>, vector<272x8xbf16>,
    %c0_51 = arith.constant 0 : index
    %c1_52 = arith.constant 1 : index
    %c0_53 = arith.constant 0 : index
    %68 = vector.load %arg2[%c0_51, %c1_52, %c0_53] : memref<1x308x8xbf16, #tpu.memory_space<vmem>>, vector<1x272x8xbf16>
    %69 = vector.shape_cast %68 : vector<1x272x8xbf16> to vector<272x8xbf16>
    %c0_54 = arith.constant 0 : index
    %c8_55 = arith.constant 8 : index
    %70 = vector.load %arg18[%c0_54, %c8_55] : memref<272x72xbf16, #tpu.memory_space<vmem>>, vector<272x8xbf16>
    tpu.vector_store %arg18[%c0_54, %c8_55], %69 {strides = array<i32>} : memref<272x72xbf16, #tpu.memory_space<vmem>>, vector<272x8xbf16>,
    %c0_56 = arith.constant 0 : index
    %c2_57 = arith.constant 2 : index
    %c0_58 = arith.constant 0 : index
    %71 = vector.load %arg2[%c0_56, %c2_57, %c0_58] : memref<1x308x8xbf16, #tpu.memory_space<vmem>>, vector<1x272x8xbf16>
    %72 = vector.shape_cast %71 : vector<1x272x8xbf16> to vector<272x8xbf16>
    %c0_59 = arith.constant 0 : index
    %c16_60 = arith.constant 16 : index
    %73 = vector.load %arg18[%c0_59, %c16_60] : memref<272x72xbf16, #tpu.memory_space<vmem>>, vector<272x8xbf16>
    tpu.vector_store %arg18[%c0_59, %c16_60], %72 {strides = array<i32>} : memref<272x72xbf16, #tpu.memory_space<vmem>>, vector<272x8xbf16>,
    %c0_61 = arith.constant 0 : index
    %c17_62 = arith.constant 17 : index
    %c0_63 = arith.constant 0 : index
    %74 = vector.load %arg2[%c0_61, %c17_62, %c0_63] : memref<1x308x8xbf16, #tpu.memory_space<vmem>>, vector<1x272x8xbf16>
    %75 = vector.shape_cast %74 : vector<1x272x8xbf16> to vector<272x8xbf16>
    %c0_64 = arith.constant 0 : index
    %c24_65 = arith.constant 24 : index
    %76 = vector.load %arg18[%c0_64, %c24_65] : memref<272x72xbf16, #tpu.memory_space<vmem>>, vector<272x8xbf16>
    tpu.vector_store %arg18[%c0_64, %c24_65], %75 {strides = array<i32>} : memref<272x72xbf16, #tpu.memory_space<vmem>>, vector<272x8xbf16>,
    %c0_66 = arith.constant 0 : index
    %c18_67 = arith.constant 18 : index
    %c0_68 = arith.constant 0 : index
    %77 = vector.load %arg2[%c0_66, %c18_67, %c0_68] : memref<1x308x8xbf16, #tpu.memory_space<vmem>>, vector<1x272x8xbf16>
    %78 = vector.shape_cast %77 : vector<1x272x8xbf16> to vector<272x8xbf16>
    %c0_69 = arith.constant 0 : index
    %c32_70 = arith.constant 32 : index
    %79 = vector.load %arg18[%c0_69, %c32_70] : memref<272x72xbf16, #tpu.memory_space<vmem>>, vector<272x8xbf16>
    tpu.vector_store %arg18[%c0_69, %c32_70], %78 {strides = array<i32>} : memref<272x72xbf16, #tpu.memory_space<vmem>>, vector<272x8xbf16>,
    %c0_71 = arith.constant 0 : index
    %c19_72 = arith.constant 19 : index
    %c0_73 = arith.constant 0 : index
    %80 = vector.load %arg2[%c0_71, %c19_72, %c0_73] : memref<1x308x8xbf16, #tpu.memory_space<vmem>>, vector<1x272x8xbf16>
    %81 = vector.shape_cast %80 : vector<1x272x8xbf16> to vector<272x8xbf16>
    %c0_74 = arith.constant 0 : index
    %c40_75 = arith.constant 40 : index
    %82 = vector.load %arg18[%c0_74, %c40_75] : memref<272x72xbf16, #tpu.memory_space<vmem>>, vector<272x8xbf16>
    tpu.vector_store %arg18[%c0_74, %c40_75], %81 {strides = array<i32>} : memref<272x72xbf16, #tpu.memory_space<vmem>>, vector<272x8xbf16>,
    %c0_76 = arith.constant 0 : index
    %c34_77 = arith.constant 34 : index
    %c0_78 = arith.constant 0 : index
    %83 = vector.load %arg2[%c0_76, %c34_77, %c0_78] : memref<1x308x8xbf16, #tpu.memory_space<vmem>>, vector<1x272x8xbf16>
    %84 = vector.shape_cast %83 : vector<1x272x8xbf16> to vector<272x8xbf16>
    %c0_79 = arith.constant 0 : index
    %c48_80 = arith.constant 48 : index
    %85 = vector.load %arg18[%c0_79, %c48_80] : memref<272x72xbf16, #tpu.memory_space<vmem>>, vector<272x8xbf16>
    tpu.vector_store %arg18[%c0_79, %c48_80], %84 {strides = array<i32>} : memref<272x72xbf16, #tpu.memory_space<vmem>>, vector<272x8xbf16>,
    %c0_81 = arith.constant 0 : index
    %c35_82 = arith.constant 35 : index
    %c0_83 = arith.constant 0 : index
    %86 = vector.load %arg2[%c0_81, %c35_82, %c0_83] : memref<1x308x8xbf16, #tpu.memory_space<vmem>>, vector<1x272x8xbf16>
    %87 = vector.shape_cast %86 : vector<1x272x8xbf16> to vector<272x8xbf16>
    %c0_84 = arith.constant 0 : index
    %c56_85 = arith.constant 56 : index
    %88 = vector.load %arg18[%c0_84, %c56_85] : memref<272x72xbf16, #tpu.memory_space<vmem>>, vector<272x8xbf16>
    tpu.vector_store %arg18[%c0_84, %c56_85], %87 {strides = array<i32>} : memref<272x72xbf16, #tpu.memory_space<vmem>>, vector<272x8xbf16>,
    %c0_86 = arith.constant 0 : index
    %c36_87 = arith.constant 36 : index
    %c0_88 = arith.constant 0 : index
    %89 = vector.load %arg2[%c0_86, %c36_87, %c0_88] : memref<1x308x8xbf16, #tpu.memory_space<vmem>>, vector<1x272x8xbf16>
    %90 = vector.shape_cast %89 : vector<1x272x8xbf16> to vector<272x8xbf16>
    %c0_89 = arith.constant 0 : index
    %c64_90 = arith.constant 64 : index
    %91 = vector.load %arg18[%c0_89, %c64_90] : memref<272x72xbf16, #tpu.memory_space<vmem>>, vector<272x8xbf16>
    tpu.vector_store %arg18[%c0_89, %c64_90], %90 {strides = array<i32>} : memref<272x72xbf16, #tpu.memory_space<vmem>>, vector<272x8xbf16>,
    %c0_91 = arith.constant 0 : index
    %c0_92 = arith.constant 0 : index
    %92 = vector.load %arg18[%c0_91, %c0_92] : memref<272x72xbf16, #tpu.memory_space<vmem>>, vector<272x72xbf16>
    %c0_93 = arith.constant 0 : index
    %c0_94 = arith.constant 0 : index
    %93 = vector.load %arg7[%c0_93, %c0_94] : memref<72x128xbf16, #tpu.memory_space<vmem>>, vector<72x128xbf16>
    %cst_95 = arith.constant dense<0.000000e+00> : vector<272x128xf32>
    %94 = tpu.matmul %92, %93, %cst_95 {dimension_numbers = #tpu.dot_dimension_numbers<[1], [0], [0], [1], [0, 0, 1, 1], [], []>} : vector<272x72xbf16>, vector<72x128xbf16>, vector<272x128xf32> -> vector<272x128xf32>
    %c0_96 = arith.constant 0 : index
    %c0_97 = arith.constant 0 : index
    %95 = vector.load %arg8[%c0_96, %c0_97] : memref<1x128xf32, #tpu.memory_space<vmem>>, vector<1x128xf32>
    %96 = vector.broadcast %95 : vector<1x128xf32> to vector<272x128xf32>
    %97 = arith.addf %94, %96 : vector<272x128xf32>
    %cst_98 = arith.constant 0.000000e+00 : f32
    %98 = vector.broadcast %cst_98 : f32 to vector<272x128xf32>
    %99 = arith.maximumf %97, %98 : vector<272x128xf32>
    %100 = tpu.iota {dimensions = array<i32: 1>} : vector<1x272xi32>
    %c17_i32_99 = arith.constant 17 : i32
    %c0_i32_100 = arith.constant 0 : i32
    %101 = arith.cmpi eq, %c17_i32_99, %c0_i32_100 : i32
    %c1_i32_101 = arith.constant 1 : i32
    %102 = arith.select %101, %c1_i32_101, %c17_i32_99 : i32
    %103 = vector.broadcast %102 : i32 to vector<1x272xi32>
    %104 = arith.remsi %100, %103 : vector<1x272xi32>
    %c0_i32_102 = arith.constant 0 : i32
    %105 = vector.broadcast %c0_i32_102 : i32 to vector<1x272xi32>
    %106 = arith.cmpi ne, %104, %105 : vector<1x272xi32>
    %c0_i32_103 = arith.constant 0 : i32
    %107 = vector.broadcast %c0_i32_103 : i32 to vector<1x272xi32>
    %108 = arith.cmpi slt, %104, %107 : vector<1x272xi32>
    %c0_i32_104 = arith.constant 0 : i32
    %109 = arith.cmpi slt, %102, %c0_i32_104 : i32
    %110 = vector.broadcast %109 : i1 to vector<1x272xi1>
    %111 = vector.broadcast %110 : vector<1x272xi1> to vector<1x272xi1>
    %112 = arith.xori %108, %111 : vector<1x272xi1>
    %113 = arith.andi %112, %106 : vector<1x272xi1>
    %114 = vector.broadcast %102 : i32 to vector<1x272xi32>
    %115 = arith.addi %104, %114 : vector<1x272xi32>
    %116 = arith.select %113, %115, %104 : vector<1x272xi1>, vector<1x272xi32>
    %c16_i32_105 = arith.constant 16 : i32
    %117 = vector.broadcast %c16_i32_105 : i32 to vector<1x272xi32>
    %118 = arith.cmpi slt, %116, %117 : vector<1x272xi32>
    %cst_106 = arith.constant 3.906250e-03 : f32
    %cst_107 = arith.constant 0.000000e+00 : f32
    %119 = vector.broadcast %cst_106 : f32 to vector<1x272xf32>
    %120 = vector.broadcast %cst_107 : f32 to vector<1x272xf32>
    %121 = arith.select %118, %119, %120 : vector<1x272xi1>, vector<1x272xf32>
    %122 = arith.truncf %121 : vector<1x272xf32> to vector<1x272xbf16>
    %123 = arith.truncf %99 : vector<272x128xf32> to vector<272x128xbf16>
    %cst_108 = arith.constant dense<0.000000e+00> : vector<1x128xf32>
    %124 = tpu.matmul %122, %123, %cst_108 {dimension_numbers = #tpu.dot_dimension_numbers<[1], [0], [0], [1], [0, 0, 1, 1], [], []>} : vector<1x272xbf16>, vector<272x128xbf16>, vector<1x128xf32> -> vector<1x128xf32>
    %125 = arith.truncf %124 : vector<1x128xf32> to vector<1x128xbf16>
    %c0_109 = arith.constant 0 : index
    %c0_110 = arith.constant 0 : index
    %126 = vector.load %arg9[%c0_109, %c0_110] : memref<128x128xbf16, #tpu.memory_space<vmem>>, vector<128x128xbf16>
    %cst_111 = arith.constant dense<0.000000e+00> : vector<1x128xf32>
    %127 = tpu.matmul %125, %126, %cst_111 {dimension_numbers = #tpu.dot_dimension_numbers<[1], [0], [0], [1], [0, 0, 1, 1], [], []>} : vector<1x128xbf16>, vector<128x128xbf16>, vector<1x128xf32> -> vector<1x128xf32>
    %c0_112 = arith.constant 0 : index
    %c0_113 = arith.constant 0 : index
    %128 = vector.load %arg10[%c0_112, %c0_113] : memref<1x128xf32, #tpu.memory_space<vmem>>, vector<1x128xf32>
    %129 = arith.addf %127, %128 : vector<1x128xf32>
    %130 = arith.truncf %64 : vector<1x128xf32> to vector<1x128xbf16>
    %c0_114 = arith.constant 0 : index
    %c0_115 = arith.constant 0 : index
    %131 = vector.load %arg11[%c0_114, %c0_115] : memref<128x128xbf16, #tpu.memory_space<vmem>>, vector<128x128xbf16>
    %cst_116 = arith.constant dense<0.000000e+00> : vector<1x128xf32>
    %132 = tpu.matmul %130, %131, %cst_116 {dimension_numbers = #tpu.dot_dimension_numbers<[1], [0], [0], [1], [0, 0, 1, 1], [], []>} : vector<1x128xbf16>, vector<128x128xbf16>, vector<1x128xf32> -> vector<1x128xf32>
    %133 = arith.truncf %129 : vector<1x128xf32> to vector<1x128xbf16>
    %c0_117 = arith.constant 0 : index
    %c0_118 = arith.constant 0 : index
    %134 = vector.load %arg12[%c0_117, %c0_118] : memref<128x128xbf16, #tpu.memory_space<vmem>>, vector<128x128xbf16>
    %cst_119 = arith.constant dense<0.000000e+00> : vector<1x128xf32>
    %135 = tpu.matmul %133, %134, %cst_119 {dimension_numbers = #tpu.dot_dimension_numbers<[1], [0], [0], [1], [0, 0, 1, 1], [], []>} : vector<1x128xbf16>, vector<128x128xbf16>, vector<1x128xf32> -> vector<1x128xf32>
    %136 = arith.addf %132, %135 : vector<1x128xf32>
    %c0_120 = arith.constant 0 : index
    %c0_121 = arith.constant 0 : index
    %137 = vector.load %arg13[%c0_120, %c0_121] : memref<1x128xf32, #tpu.memory_space<vmem>>, vector<1x128xf32>
    %138 = arith.addf %136, %137 : vector<1x128xf32>
    %cst_122 = arith.constant 0.000000e+00 : f32
    %139 = vector.broadcast %cst_122 : f32 to vector<1x128xf32>
    %140 = arith.maximumf %138, %139 : vector<1x128xf32>
    %141 = arith.truncf %140 : vector<1x128xf32> to vector<1x128xbf16>
    %c0_123 = arith.constant 0 : index
    %c0_124 = arith.constant 0 : index
    %142 = vector.load %arg14[%c0_123, %c0_124] : memref<128x128xbf16, #tpu.memory_space<vmem>>, vector<128x128xbf16>
    %cst_125 = arith.constant dense<0.000000e+00> : vector<1x128xf32>
    %143 = tpu.matmul %141, %142, %cst_125 {dimension_numbers = #tpu.dot_dimension_numbers<[1], [0], [0], [1], [0, 0, 1, 1], [], []>} : vector<1x128xbf16>, vector<128x128xbf16>, vector<1x128xf32> -> vector<1x128xf32>
    %c0_126 = arith.constant 0 : index
    %c0_127 = arith.constant 0 : index
    %144 = vector.load %arg15[%c0_126, %c0_127] : memref<1x128xf32, #tpu.memory_space<vmem>>, vector<1x128xf32>
    %145 = arith.addf %143, %144 : vector<1x128xf32>
    %c0_128 = arith.constant 0 : index
    %c0_129 = arith.constant 0 : index
    %c0_130 = arith.constant 0 : index
    %146 = vector.load %arg16[%c0_128, %c0_129, %c0_130] : memref<1x1x128xf32, #tpu.memory_space<vmem>>, vector<1x1x128xf32>
    %147 = vector.shape_cast %146 : vector<1x1x128xf32> to vector<1x128xf32>
    %148 = vector.shape_cast %145 : vector<1x128xf32> to vector<1x1x128xf32>
    tpu.vector_store %arg16[%c0_128, %c0_129, %c0_130], %148 {strides = array<i32>} : memref<1x1x128xf32, #tpu.memory_space<vmem>>, vector<1x1x128xf32>,
    return
  }
  func.func @transform_0(%arg0: i32) -> (i32, i32, i32) {
    %c0_i32 = arith.constant 0 : i32
    %c0_i32_0 = arith.constant 0 : i32
    %c0_i32_1 = arith.constant 0 : i32
    return %arg0, %c0_i32, %c0_i32_0 : i32, i32, i32
  }
  func.func @transform_1(%arg0: i32) -> (i32, i32, i32) {
    %c0_i32 = arith.constant 0 : i32
    %c0_i32_0 = arith.constant 0 : i32
    %c0_i32_1 = arith.constant 0 : i32
    return %arg0, %c0_i32, %c0_i32_0 : i32, i32, i32
  }
  func.func @transform_2(%arg0: i32) -> (i32, i32) {
    %c0_i32 = arith.constant 0 : i32
    %c0_i32_0 = arith.constant 0 : i32
    %c0_i32_1 = arith.constant 0 : i32
    return %c0_i32, %c0_i32_0 : i32, i32
  }
  func.func @transform_3(%arg0: i32) -> (i32, i32) {
    %c0_i32 = arith.constant 0 : i32
    %c0_i32_0 = arith.constant 0 : i32
    %c0_i32_1 = arith.constant 0 : i32
    return %c0_i32, %c0_i32_0 : i32, i32
  }
  func.func @transform_4(%arg0: i32) -> (i32, i32) {
    %c0_i32 = arith.constant 0 : i32
    %c0_i32_0 = arith.constant 0 : i32
    %c0_i32_1 = arith.constant 0 : i32
    return %c0_i32, %c0_i32_0 : i32, i32
  }
  func.func @transform_5(%arg0: i32) -> (i32, i32) {
    %c0_i32 = arith.constant 0 : i32
    %c0_i32_0 = arith.constant 0 : i32
    %c0_i32_1 = arith.constant 0 : i32
    return %c0_i32, %c0_i32_0 : i32, i32
  }
  func.func @transform_6(%arg0: i32) -> (i32, i32) {
    %c0_i32 = arith.constant 0 : i32
    %c0_i32_0 = arith.constant 0 : i32
    %c0_i32_1 = arith.constant 0 : i32
    return %c0_i32, %c0_i32_0 : i32, i32
  }
  func.func @transform_7(%arg0: i32) -> (i32, i32) {
    %c0_i32 = arith.constant 0 : i32
    %c0_i32_0 = arith.constant 0 : i32
    %c0_i32_1 = arith.constant 0 : i32
    return %c0_i32, %c0_i32_0 : i32, i32
  }
  func.func @transform_8(%arg0: i32) -> (i32, i32) {
    %c0_i32 = arith.constant 0 : i32
    %c0_i32_0 = arith.constant 0 : i32
    %c0_i32_1 = arith.constant 0 : i32
    return %c0_i32, %c0_i32_0 : i32, i32
  }
  func.func @transform_9(%arg0: i32) -> (i32, i32) {
    %c0_i32 = arith.constant 0 : i32
    %c0_i32_0 = arith.constant 0 : i32
    %c0_i32_1 = arith.constant 0 : i32
    return %c0_i32, %c0_i32_0 : i32, i32
  }
  func.func @transform_10(%arg0: i32) -> (i32, i32) {
    %c0_i32 = arith.constant 0 : i32
    %c0_i32_0 = arith.constant 0 : i32
    %c0_i32_1 = arith.constant 0 : i32
    return %c0_i32, %c0_i32_0 : i32, i32
  }
  func.func @transform_11(%arg0: i32) -> (i32, i32) {
    %c0_i32 = arith.constant 0 : i32
    %c0_i32_0 = arith.constant 0 : i32
    %c0_i32_1 = arith.constant 0 : i32
    return %c0_i32, %c0_i32_0 : i32, i32
  }
  func.func @transform_12(%arg0: i32) -> (i32, i32) {
    %c0_i32 = arith.constant 0 : i32
    %c0_i32_0 = arith.constant 0 : i32
    %c0_i32_1 = arith.constant 0 : i32
    return %c0_i32, %c0_i32_0 : i32, i32
  }
  func.func @transform_13(%arg0: i32) -> (i32, i32) {
    %c0_i32 = arith.constant 0 : i32
    %c0_i32_0 = arith.constant 0 : i32
    %c0_i32_1 = arith.constant 0 : i32
    return %c0_i32, %c0_i32_0 : i32, i32
  }
  func.func @transform_14(%arg0: i32) -> (i32, i32) {
    %c0_i32 = arith.constant 0 : i32
    %c0_i32_0 = arith.constant 0 : i32
    %c0_i32_1 = arith.constant 0 : i32
    return %c0_i32, %c0_i32_0 : i32, i32
  }
  func.func @transform_15(%arg0: i32) -> (i32, i32, i32) {
    %c0_i32 = arith.constant 0 : i32
    %c0_i32_0 = arith.constant 0 : i32
    %c0_i32_1 = arith.constant 0 : i32
    return %arg0, %c0_i32, %c0_i32_0 : i32, i32, i32
  }
}

</mosaic_0001>

<llo_original>
// kernel: joint_model_onnx_forward.1
$region0: #{joint_model_onnx_forward.1}
  #allocation0 [shape = 'u32[]', space=smem, size = 0x4, offset = 0x4, fixed_abs, tag = 'smem constant byte address 0x4 - core index']
  #allocation1 [shape = 'u32[72,128]{1,0:T(1,128)}', space=vmem, size = 0x9000, scoped, tag = 'internal scratch']
  #allocation2 [shape = 'bf16[272,72]{1,0:T(8,128)(2,1)}', space=vmem, size = 0x11000, scoped, tag = 'scratch operand']
  #allocation3 [shape = 'bf16[272,72]{1,0:T(8,128)(2,1)}', space=vmem, size = 0x11000, scoped, tag = 'scratch operand']
  %s0 = inlined_call_operand.vmem [shape: bf16[2,308,8], index: 0, kind: input, shape index: {}]
  %s1 = inlined_call_operand.vmem [shape: bf16[2,308,8], index: 1, kind: input, shape index: {}]
  %s2 = inlined_call_operand.vmem [shape: bf16[72,128], index: 2, kind: input, shape index: {}]
  %s3 = inlined_call_operand.vmem [shape: f32[1,128], index: 3, kind: input, shape index: {}]
  %s4 = inlined_call_operand.vmem [shape: bf16[128,128], index: 4, kind: input, shape index: {}]
  %s5 = inlined_call_operand.vmem [shape: f32[1,128], index: 5, kind: input, shape index: {}]
  %s6 = inlined_call_operand.vmem [shape: bf16[72,128], index: 6, kind: input, shape index: {}]
  %s7 = inlined_call_operand.vmem [shape: f32[1,128], index: 7, kind: input, shape index: {}]
  %s8 = inlined_call_operand.vmem [shape: bf16[128,128], index: 8, kind: input, shape index: {}]
  %s9 = inlined_call_operand.vmem [shape: f32[1,128], index: 9, kind: input, shape index: {}]
  %s10 = inlined_call_operand.vmem [shape: bf16[128,128], index: 10, kind: input, shape index: {}]
  %s11 = inlined_call_operand.vmem [shape: bf16[128,128], index: 11, kind: input, shape index: {}]
  %s12 = inlined_call_operand.vmem [shape: f32[1,128], index: 12, kind: input, shape index: {}]
  %s13 = inlined_call_operand.vmem [shape: bf16[128,128], index: 13, kind: input, shape index: {}]
  %s14 = inlined_call_operand.vmem [shape: f32[1,128], index: 14, kind: input, shape index: {}]
  %s15 = inlined_call_operand.hbm [shape: f32[2,1,128], index: 15, kind: output, shape index: {}]
  %s16 = sld [smem:[#allocation0]]
  $region93: #{joint_model_onnx_forward.1} parent=0
    _
  %s18 = ssub.s32 1, %s16
  %s19 = scalar_select 0, %s18, %s16
  $region1: #{joint_model_onnx_forward.1} parent=0
    #allocation4 [shape = 'u8[1024]{0}', space=vmem, size = 0x400, scoped, tag = 'output window, operand 0']
    #allocation5 [shape = 's32[2]{0}', space=sflag, size = 0x8, scoped, tag = 'scoped memory for joint_model_onnx_forward.1']
    %20 = vsyncpa [#allocation5], 0
    %s21 = scalar_lea.sflag [#allocation5], 1
    %22 = vsyncpa %s21, 0
    loop: start=0, step=1, limit=4
    $region2: #{joint_model_onnx_forward.1} parent=1 // loop_pre_header
      _
    $region3: #{joint_model_onnx_forward.1} parent=1 // loop_header
      %s24 = sphi 0, %s28
      %p25 = scmp.ge.s32.totalorder %s24, 4
      %s34 = sphi 0, %s36
      %s37 = sphi 0, %s34
      %s38 = sphi 0, %s37
      %s54 = sphi 0, %s38
      %s60 = sphi 0, %s62
      %s63 = sphi 0, %s60
      %s64 = sphi 0, %s63
      %s80 = sphi 0, %s64
      %s84 = sphi 0, %s84
      %s86 = sphi 0, %s84
      %s87 = sphi 0, %s86
      %s101 = sphi 0, %s87
      %s105 = sphi 0, %s105
      %s107 = sphi 0, %s105
      %s108 = sphi 0, %s107
      %s122 = sphi 0, %s108
      %s126 = sphi 0, %s126
      %s128 = sphi 0, %s126
      %s129 = sphi 0, %s128
      %s143 = sphi 0, %s129
      %s147 = sphi 0, %s147
      %s149 = sphi 0, %s147
      %s150 = sphi 0, %s149
      %s164 = sphi 0, %s150
      %s168 = sphi 0, %s168
      %s170 = sphi 0, %s168
      %s171 = sphi 0, %s170
      %s185 = sphi 0, %s171
      %s189 = sphi 0, %s189
      %s191 = sphi 0, %s189
      %s192 = sphi 0, %s191
      %s206 = sphi 0, %s192
      %s210 = sphi 0, %s210
      %s212 = sphi 0, %s210
      %s213 = sphi 0, %s212
      %s227 = sphi 0, %s213
      %s231 = sphi 0, %s231
      %s233 = sphi 0, %s231
      %s234 = sphi 0, %s233
      %s248 = sphi 0, %s234
      %s252 = sphi 0, %s252
      %s254 = sphi 0, %s252
      %s255 = sphi 0, %s254
      %s269 = sphi 0, %s255
      %s273 = sphi 0, %s273
      %s275 = sphi 0, %s273
      %s276 = sphi 0, %s275
      %s290 = sphi 0, %s276
      %s294 = sphi 0, %s294
      %s296 = sphi 0, %s294
      %s297 = sphi 0, %s296
      %s311 = sphi 0, %s297
      %s315 = sphi 0, %s315
      %s317 = sphi 0, %s315
      %s318 = sphi 0, %s317
      %s332 = sphi 0, %s318
      %s336 = sphi 0, %s336
      %s338 = sphi 0, %s336
      %s339 = sphi 0, %s338
      %s353 = sphi 0, %s339
      %s359 = sphi 0, %s361
      %s362 = sphi 0, %s359
      %s363 = sphi 0, %s362
      %s379 = sphi 0, %s363
    $region4: #{joint_model_onnx_forward.1} parent=1 // loop_header_branch
      %27 = sbr.rel (%p25) target = $region8
    $region5: #{joint_model_onnx_forward.1} parent=1 // loop_body
      %s29 = ssub.s32 %s24, 1
      %s30 = ssub.s32 %s24, 2
      %s31 = sadd.s32 %s24, 1
      %s32 = ssub.s32 %s24, %s31
      %p33 = scmp.eq.s32.totalorder %s32, 0
      %s35 = sadd.s32 %s34, 1
      %s36 = scalar_select %p33, %s34, %s35
      %p39 = pneg %p33
      %p40 = scmp.eq.s32.totalorder %s24, 1
      %p41 = por %p39, %p40
      %p42 = scmp.ne.s32.totalorder %s34, %s37
      %p43 = scmp.eq.s32.totalorder %s24, 0
      %p44 = por %p42, %p43
      %p45 = scmp.ne.s32.totalorder %s34, %s37
      %p46 = scmp.eq.s32.totalorder %s29, 1
      %p47 = por %p45, %p46
      %p48 = scmp.ne.s32.totalorder %s37, %s38
      %p49 = scmp.eq.s32.totalorder %s29, 0
      %p50 = por %p48, %p49
      %p51 = scmp.ne.s32.totalorder %s37, %s38
      %p52 = scmp.eq.s32.totalorder %s30, 1
      %p53 = por %p51, %p52
      %p55 = scmp.ne.s32.totalorder %s38, %s54
      %p56 = scmp.eq.s32.totalorder %s30, 0
      %p57 = por %p55, %p56
      %s58 = ssub.s32 %s24, %s31
      %p59 = scmp.eq.s32.totalorder %s58, 0
      %s61 = sadd.s32 %s60, 1
      %s62 = scalar_select %p59, %s60, %s61
      %p65 = pneg %p59
      %p66 = scmp.eq.s32.totalorder %s24, 1
      %p67 = por %p65, %p66
      %p68 = scmp.ne.s32.totalorder %s60, %s63
      %p69 = scmp.eq.s32.totalorder %s24, 0
      %p70 = por %p68, %p69
      %p71 = scmp.ne.s32.totalorder %s60, %s63
      %p72 = scmp.eq.s32.totalorder %s29, 1
      %p73 = por %p71, %p72
      %p74 = scmp.ne.s32.totalorder %s63, %s64
      %p75 = scmp.eq.s32.totalorder %s29, 0
      %p76 = por %p74, %p75
      %p77 = scmp.ne.s32.totalorder %s63, %s64
      %p78 = scmp.eq.s32.totalorder %s30, 1
      %p79 = por %p77, %p78
      %p81 = scmp.ne.s32.totalorder %s64, %s80
      %p82 = scmp.eq.s32.totalorder %s30, 0
      %p83 = por %p81, %p82
      %s85 = sadd.s32 %s84, 1
      %p88 = scmp.eq.s32.totalorder %s24, 1
      %p89 = scmp.ne.s32.totalorder %s84, %s86
      %p90 = scmp.eq.s32.totalorder %s24, 0
      %p91 = por %p89, %p90
      %p92 = scmp.ne.s32.totalorder %s84, %s86
      %p93 = scmp.eq.s32.totalorder %s29, 1
      %p94 = por %p92, %p93
      %p95 = scmp.ne.s32.totalorder %s86, %s87
      %p96 = scmp.eq.s32.totalorder %s29, 0
      %p97 = por %p95, %p96
      %p98 = scmp.ne.s32.totalorder %s86, %s87
      %p99 = scmp.eq.s32.totalorder %s30, 1
      %p100 = por %p98, %p99
      %p102 = scmp.ne.s32.totalorder %s87, %s101
      %p103 = scmp.eq.s32.totalorder %s30, 0
      %p104 = por %p102, %p103
      %s106 = sadd.s32 %s105, 1
      %p109 = scmp.eq.s32.totalorder %s24, 1
      %p110 = scmp.ne.s32.totalorder %s105, %s107
      %p111 = scmp.eq.s32.totalorder %s24, 0
      %p112 = por %p110, %p111
      %p113 = scmp.ne.s32.totalorder %s105, %s107
      %p114 = scmp.eq.s32.totalorder %s29, 1
      %p115 = por %p113, %p114
      %p116 = scmp.ne.s32.totalorder %s107, %s108
      %p117 = scmp.eq.s32.totalorder %s29, 0
      %p118 = por %p116, %p117
      %p119 = scmp.ne.s32.totalorder %s107, %s108
      %p120 = scmp.eq.s32.totalorder %s30, 1
      %p121 = por %p119, %p120
      %p123 = scmp.ne.s32.totalorder %s108, %s122
      %p124 = scmp.eq.s32.totalorder %s30, 0
      %p125 = por %p123, %p124
      %s127 = sadd.s32 %s126, 1
      %p130 = scmp.eq.s32.totalorder %s24, 1
      %p131 = scmp.ne.s32.totalorder %s126, %s128
      %p132 = scmp.eq.s32.totalorder %s24, 0
      %p133 = por %p131, %p132
      %p134 = scmp.ne.s32.totalorder %s126, %s128
      %p135 = scmp.eq.s32.totalorder %s29, 1
      %p136 = por %p134, %p135
      %p137 = scmp.ne.s32.totalorder %s128, %s129
      %p138 = scmp.eq.s32.totalorder %s29, 0
      %p139 = por %p137, %p138
      %p140 = scmp.ne.s32.totalorder %s128, %s129
      %p141 = scmp.eq.s32.totalorder %s30, 1
      %p142 = por %p140, %p141
      %p144 = scmp.ne.s32.totalorder %s129, %s143
      %p145 = scmp.eq.s32.totalorder %s30, 0
      %p146 = por %p144, %p145
      %s148 = sadd.s32 %s147, 1
      %p151 = scmp.eq.s32.totalorder %s24, 1
      %p152 = scmp.ne.s32.totalorder %s147, %s149
      %p153 = scmp.eq.s32.totalorder %s24, 0
      %p154 = por %p152, %p153
      %p155 = scmp.ne.s32.totalorder %s147, %s149
      %p156 = scmp.eq.s32.totalorder %s29, 1
      %p157 = por %p155, %p156
      %p158 = scmp.ne.s32.totalorder %s149, %s150
      %p159 = scmp.eq.s32.totalorder %s29, 0
      %p160 = por %p158, %p159
      %p161 = scmp.ne.s32.totalorder %s149, %s150
      %p162 = scmp.eq.s32.totalorder %s30, 1
      %p163 = por %p161, %p162
      %p165 = scmp.ne.s32.totalorder %s150, %s164
      %p166 = scmp.eq.s32.totalorder %s30, 0
      %p167 = por %p165, %p166
      %s169 = sadd.s32 %s168, 1
      %p172 = scmp.eq.s32.totalorder %s24, 1
      %p173 = scmp.ne.s32.totalorder %s168, %s170
      %p174 = scmp.eq.s32.totalorder %s24, 0
      %p175 = por %p173, %p174
      %p176 = scmp.ne.s32.totalorder %s168, %s170
      %p177 = scmp.eq.s32.totalorder %s29, 1
      %p178 = por %p176, %p177
      %p179 = scmp.ne.s32.totalorder %s170, %s171
      %p180 = scmp.eq.s32.totalorder %s29, 0
      %p181 = por %p179, %p180
      %p182 = scmp.ne.s32.totalorder %s170, %s171
      %p183 = scmp.eq.s32.totalorder %s30, 1
      %p184 = por %p182, %p183
      %p186 = scmp.ne.s32.totalorder %s171, %s185
      %p187 = scmp.eq.s32.totalorder %s30, 0
      %p188 = por %p186, %p187
      %s190 = sadd.s32 %s189, 1
      %p193 = scmp.eq.s32.totalorder %s24, 1
      %p194 = scmp.ne.s32.totalorder %s189, %s191
      %p195 = scmp.eq.s32.totalorder %s24, 0
      %p196 = por %p194, %p195
      %p197 = scmp.ne.s32.totalorder %s189, %s191
      %p198 = scmp.eq.s32.totalorder %s29, 1
      %p199 = por %p197, %p198
      %p200 = scmp.ne.s32.totalorder %s191, %s192
      %p201 = scmp.eq.s32.totalorder %s29, 0
      %p202 = por %p200, %p201
      %p203 = scmp.ne.s32.totalorder %s191, %s192
      %p204 = scmp.eq.s32.totalorder %s30, 1
      %p205 = por %p203, %p204
      %p207 = scmp.ne.s32.totalorder %s192, %s206
      %p208 = scmp.eq.s32.totalorder %s30, 0
      %p209 = por %p207, %p208
      %s211 = sadd.s32 %s210, 1
      %p214 = scmp.eq.s32.totalorder %s24, 1
      %p215 = scmp.ne.s32.totalorder %s210, %s212
      %p216 = scmp.eq.s32.totalorder %s24, 0
      %p217 = por %p215, %p216
      %p218 = scmp.ne.s32.totalorder %s210, %s212
      %p219 = scmp.eq.s32.totalorder %s29, 1
      %p220 = por %p218, %p219
      %p221 = scmp.ne.s32.totalorder %s212, %s213
      %p222 = scmp.eq.s32.totalorder %s29, 0
      %p223 = por %p221, %p222
      %p224 = scmp.ne.s32.totalorder %s212, %s213
      %p225 = scmp.eq.s32.totalorder %s30, 1
      %p226 = por %p224, %p225
      %p228 = scmp.ne.s32.totalorder %s213, %s227
      %p229 = scmp.eq.s32.totalorder %s30, 0
      %p230 = por %p228, %p229
      %s232 = sadd.s32 %s231, 1
      %p235 = scmp.eq.s32.totalorder %s24, 1
      %p236 = scmp.ne.s32.totalorder %s231, %s233
      %p237 = scmp.eq.s32.totalorder %s24, 0
      %p238 = por %p236, %p237
      %p239 = scmp.ne.s32.totalorder %s231, %s233
      %p240 = scmp.eq.s32.totalorder %s29, 1
      %p241 = por %p239, %p240
      %p242 = scmp.ne.s32.totalorder %s233, %s234
      %p243 = scmp.eq.s32.totalorder %s29, 0
      %p244 = por %p242, %p243
      %p245 = scmp.ne.s32.totalorder %s233, %s234
      %p246 = scmp.eq.s32.totalorder %s30, 1
      %p247 = por %p245, %p246
      %p249 = scmp.ne.s32.totalorder %s234, %s248
      %p250 = scmp.eq.s32.totalorder %s30, 0
      %p251 = por %p249, %p250
      %s253 = sadd.s32 %s252, 1
      %p256 = scmp.eq.s32.totalorder %s24, 1
      %p257 = scmp.ne.s32.totalorder %s252, %s254
      %p258 = scmp.eq.s32.totalorder %s24, 0
      %p259 = por %p257, %p258
      %p260 = scmp.ne.s32.totalorder %s252, %s254
      %p261 = scmp.eq.s32.totalorder %s29, 1
      %p262 = por %p260, %p261
      %p263 = scmp.ne.s32.totalorder %s254, %s255
      %p264 = scmp.eq.s32.totalorder %s29, 0
      %p265 = por %p263, %p264
      %p266 = scmp.ne.s32.totalorder %s254, %s255
      %p267 = scmp.eq.s32.totalorder %s30, 1
      %p268 = por %p266, %p267
      %p270 = scmp.ne.s32.totalorder %s255, %s269
      %p271 = scmp.eq.s32.totalorder %s30, 0
      %p272 = por %p270, %p271
      %s274 = sadd.s32 %s273, 1
      %p277 = scmp.eq.s32.totalorder %s24, 1
      %p278 = scmp.ne.s32.totalorder %s273, %s275
      %p279 = scmp.eq.s32.totalorder %s24, 0
      %p280 = por %p278, %p279
      %p281 = scmp.ne.s32.totalorder %s273, %s275
      %p282 = scmp.eq.s32.totalorder %s29, 1
      %p283 = por %p281, %p282
      %p284 = scmp.ne.s32.totalorder %s275, %s276
      %p285 = scmp.eq.s32.totalorder %s29, 0
      %p286 = por %p284, %p285
      %p287 = scmp.ne.s32.totalorder %s275, %s276
      %p288 = scmp.eq.s32.totalorder %s30, 1
      %p289 = por %p287, %p288
      %p291 = scmp.ne.s32.totalorder %s276, %s290
      %p292 = scmp.eq.s32.totalorder %s30, 0
      %p293 = por %p291, %p292
      %s295 = sadd.s32 %s294, 1
      %p298 = scmp.eq.s32.totalorder %s24, 1
      %p299 = scmp.ne.s32.totalorder %s294, %s296
      %p300 = scmp.eq.s32.totalorder %s24, 0
      %p301 = por %p299, %p300
      %p302 = scmp.ne.s32.totalorder %s294, %s296
      %p303 = scmp.eq.s32.totalorder %s29, 1
      %p304 = por %p302, %p303
      %p305 = scmp.ne.s32.totalorder %s296, %s297
      %p306 = scmp.eq.s32.totalorder %s29, 0
      %p307 = por %p305, %p306
      %p308 = scmp.ne.s32.totalorder %s296, %s297
      %p309 = scmp.eq.s32.totalorder %s30, 1
      %p310 = por %p308, %p309
      %p312 = scmp.ne.s32.totalorder %s297, %s311
      %p313 = scmp.eq.s32.totalorder %s30, 0
      %p314 = por %p312, %p313
      %s316 = sadd.s32 %s315, 1
      %p319 = scmp.eq.s32.totalorder %s24, 1
      %p320 = scmp.ne.s32.totalorder %s315, %s317
      %p321 = scmp.eq.s32.totalorder %s24, 0
      %p322 = por %p320, %p321
      %p323 = scmp.ne.s32.totalorder %s315, %s317
      %p324 = scmp.eq.s32.totalorder %s29, 1
      %p325 = por %p323, %p324
      %p326 = scmp.ne.s32.totalorder %s317, %s318
      %p327 = scmp.eq.s32.totalorder %s29, 0
      %p328 = por %p326, %p327
      %p329 = scmp.ne.s32.totalorder %s317, %s318
      %p330 = scmp.eq.s32.totalorder %s30, 1
      %p331 = por %p329, %p330
      %p333 = scmp.ne.s32.totalorder %s318, %s332
      %p334 = scmp.eq.s32.totalorder %s30, 0
      %p335 = por %p333, %p334
      %s337 = sadd.s32 %s336, 1
      %p340 = scmp.eq.s32.totalorder %s24, 1
      %p341 = scmp.ne.s32.totalorder %s336, %s338
      %p342 = scmp.eq.s32.totalorder %s24, 0
      %p343 = por %p341, %p342
      %p344 = scmp.ne.s32.totalorder %s336, %s338
      %p345 = scmp.eq.s32.totalorder %s29, 1
      %p346 = por %p344, %p345
      %p347 = scmp.ne.s32.totalorder %s338, %s339
      %p348 = scmp.eq.s32.totalorder %s29, 0
      %p349 = por %p347, %p348
      %p350 = scmp.ne.s32.totalorder %s338, %s339
      %p351 = scmp.eq.s32.totalorder %s30, 1
      %p352 = por %p350, %p351
      %p354 = scmp.ne.s32.totalorder %s339, %s353
      %p355 = scmp.eq.s32.totalorder %s30, 0
      %p356 = por %p354, %p355
      %s357 = ssub.s32 %s24, %s31
      %p358 = scmp.eq.s32.totalorder %s357, 0
      %s360 = sadd.s32 %s359, 1
      %s361 = scalar_select %p358, %s359, %s360
      %p364 = pneg %p358
      %p365 = scmp.eq.s32.totalorder %s24, 1
      %p366 = por %p364, %p365
      %p367 = scmp.ne.s32.totalorder %s359, %s362
      %p368 = scmp.eq.s32.totalorder %s24, 0
      %p369 = por %p367, %p368
      %p370 = scmp.ne.s32.totalorder %s359, %s362
      %p371 = scmp.eq.s32.totalorder %s29, 1
      %p372 = por %p370, %p371
      %p373 = scmp.ne.s32.totalorder %s362, %s363
      %p374 = scmp.eq.s32.totalorder %s29, 0
      %p375 = por %p373, %p374
      %p376 = scmp.ne.s32.totalorder %s362, %s363
      %p377 = scmp.eq.s32.totalorder %s30, 1
      %p378 = por %p376, %p377
      %p380 = scmp.ne.s32.totalorder %s363, %s379
      %p381 = scmp.eq.s32.totalorder %s30, 0
      %p382 = por %p380, %p381
      %p383 = scmp.le.s32.totalorder 1, %s24
      %p384 = scmp.lt.s32.totalorder %s24, 3
      %p385 = pnand %p383, %p384
      %p386 = pneg %p385
      // Predicated region
      $region9: #{joint_model_onnx_forward.1} parent=5 // pred_check
        _
      $region10: #{joint_model_onnx_forward.1} parent=5 // pred_check_branch
        %388 = sbr.rel (%p385) target = $region12
      $region11: #{joint_model_onnx_forward.1} parent=5 // pred_region
        %s389 = ssub.s32 %s24, 1
        // Predicated region
        $region13: #{joint_model_onnx_forward.1} parent=11 // pred_check
          %p390 = pneg %p97
        $region14: #{joint_model_onnx_forward.1} parent=11 // pred_check_branch
          %392 = sbr.rel (%p390) target = $region16
        $region15: #{joint_model_onnx_forward.1} parent=11 // pred_region
          _
        $region16: #{joint_model_onnx_forward.1} parent=11 // pred_fallthru
          _
        // Predicated region
        $region17: #{joint_model_onnx_forward.1} parent=11 // pred_check
          %p393 = pneg %p118
        $region18: #{joint_model_onnx_forward.1} parent=11 // pred_check_branch
          %395 = sbr.rel (%p393) target = $region20
        $region19: #{joint_model_onnx_forward.1} parent=11 // pred_region
          _
        $region20: #{joint_model_onnx_forward.1} parent=11 // pred_fallthru
          _
        // Predicated region
        $region21: #{joint_model_onnx_forward.1} parent=11 // pred_check
          %p396 = pneg %p139
        $region22: #{joint_model_onnx_forward.1} parent=11 // pred_check_branch
          %398 = sbr.rel (%p396) target = $region24
        $region23: #{joint_model_onnx_forward.1} parent=11 // pred_region
          _
        $region24: #{joint_model_onnx_forward.1} parent=11 // pred_fallthru
          _
        // Predicated region
        $region25: #{joint_model_onnx_forward.1} parent=11 // pred_check
          %p399 = pneg %p160
        $region26: #{joint_model_onnx_forward.1} parent=11 // pred_check_branch
          %401 = sbr.rel (%p399) target = $region28
        $region27: #{joint_model_onnx_forward.1} parent=11 // pred_region
          _
        $region28: #{joint_model_onnx_forward.1} parent=11 // pred_fallthru
          _
        // Predicated region
        $region29: #{joint_model_onnx_forward.1} parent=11 // pred_check
          %p402 = pneg %p181
        $region30: #{joint_model_onnx_forward.1} parent=11 // pred_check_branch
          %404 = sbr.rel (%p402) target = $region32
        $region31: #{joint_model_onnx_forward.1} parent=11 // pred_region
          _
        $region32: #{joint_model_onnx_forward.1} parent=11 // pred_fallthru
          _
        // Predicated region
        $region33: #{joint_model_onnx_forward.1} parent=11 // pred_check
          %p405 = pneg %p202
        $region34: #{joint_model_onnx_forward.1} parent=11 // pred_check_branch
          %407 = sbr.rel (%p405) target = $region36
        $region35: #{joint_model_onnx_forward.1} parent=11 // pred_region
          _
        $region36: #{joint_model_onnx_forward.1} parent=11 // pred_fallthru
          _
        // Predicated region
        $region37: #{joint_model_onnx_forward.1} parent=11 // pred_check
          %p408 = pneg %p223
        $region38: #{joint_model_onnx_forward.1} parent=11 // pred_check_branch
          %410 = sbr.rel (%p408) target = $region40
        $region39: #{joint_model_onnx_forward.1} parent=11 // pred_region
          _
        $region40: #{joint_model_onnx_forward.1} parent=11 // pred_fallthru
          _
        // Predicated region
        $region41: #{joint_model_onnx_forward.1} parent=11 // pred_check
          %p411 = pneg %p244
        $region42: #{joint_model_onnx_forward.1} parent=11 // pred_check_branch
          %413 = sbr.rel (%p411) target = $region44
        $region43: #{joint_model_onnx_forward.1} parent=11 // pred_region
          _
        $region44: #{joint_model_onnx_forward.1} parent=11 // pred_fallthru
          _
        // Predicated region
        $region45: #{joint_model_onnx_forward.1} parent=11 // pred_check
          %p414 = pneg %p265
        $region46: #{joint_model_onnx_forward.1} parent=11 // pred_check_branch
          %416 = sbr.rel (%p414) target = $region48
        $region47: #{joint_model_onnx_forward.1} parent=11 // pred_region
          _
        $region48: #{joint_model_onnx_forward.1} parent=11 // pred_fallthru
          _
        // Predicated region
        $region49: #{joint_model_onnx_forward.1} parent=11 // pred_check
          %p417 = pneg %p286
        $region50: #{joint_model_onnx_forward.1} parent=11 // pred_check_branch
          %419 = sbr.rel (%p417) target = $region52
        $region51: #{joint_model_onnx_forward.1} parent=11 // pred_region
          _
        $region52: #{joint_model_onnx_forward.1} parent=11 // pred_fallthru
          _
        // Predicated region
        $region53: #{joint_model_onnx_forward.1} parent=11 // pred_check
          %p420 = pneg %p307
        $region54: #{joint_model_onnx_forward.1} parent=11 // pred_check_branch
          %422 = sbr.rel (%p420) target = $region56
        $region55: #{joint_model_onnx_forward.1} parent=11 // pred_region
          _
        $region56: #{joint_model_onnx_forward.1} parent=11 // pred_fallthru
          _
        // Predicated region
        $region57: #{joint_model_onnx_forward.1} parent=11 // pred_check
          %p423 = pneg %p328
        $region58: #{joint_model_onnx_forward.1} parent=11 // pred_check_branch
          %425 = sbr.rel (%p423) target = $region60
        $region59: #{joint_model_onnx_forward.1} parent=11 // pred_region
          _
        $region60: #{joint_model_onnx_forward.1} parent=11 // pred_fallthru
          _
        // Predicated region
        $region61: #{joint_model_onnx_forward.1} parent=11 // pred_check
          %p426 = pneg %p349
        $region62: #{joint_model_onnx_forward.1} parent=11 // pred_check_branch
          %428 = sbr.rel (%p426) target = $region64
        $region63: #{joint_model_onnx_forward.1} parent=11 // pred_region
          _
        $region64: #{joint_model_onnx_forward.1} parent=11 // pred_fallthru
          _
      $region12: #{joint_model_onnx_forward.1} parent=5 // pred_fallthru
        _
      %p429 = scmp.lt.s32.totalorder %s24, 2
      // Predicated region
      $region65: #{joint_model_onnx_forward.1} parent=5 // pred_check
        %p430 = pneg %p429
      $region66: #{joint_model_onnx_forward.1} parent=5 // pred_check_branch
        %432 = sbr.rel (%p430) target = $region68
      $region67: #{joint_model_onnx_forward.1} parent=5 // pred_region
        // Predicated region
        $region69: #{joint_model_onnx_forward.1} parent=67 // pred_check
          %p433 = pneg %p44
        $region70: #{joint_model_onnx_forward.1} parent=67 // pred_check_branch
          %435 = sbr.rel (%p433) target = $region72
        $region71: #{joint_model_onnx_forward.1} parent=67 // pred_region
          %p436 = scmp.lt.s32.totalorder %s24, 1
          %s437 = scalar_select %p436, %s24, 1
          %s438 = smul.addr %s437, 39
          %s439 = smul.addr %s438, 4
          %s440 = scalar_lea.vmem %s0, %s439
        $region72: #{joint_model_onnx_forward.1} parent=67 // pred_fallthru
          _
        // Predicated region
        $region73: #{joint_model_onnx_forward.1} parent=67 // pred_check
          %p441 = pneg %p70
        $region74: #{joint_model_onnx_forward.1} parent=67 // pred_check_branch
          %443 = sbr.rel (%p441) target = $region76
        $region75: #{joint_model_onnx_forward.1} parent=67 // pred_region
          %p444 = scmp.lt.s32.totalorder %s24, 1
          %s445 = scalar_select %p444, %s24, 1
          %s446 = smul.addr %s445, 39
          %s447 = smul.addr %s446, 4
          %s448 = scalar_lea.vmem %s1, %s447
        $region76: #{joint_model_onnx_forward.1} parent=67 // pred_fallthru
          _
      $region68: #{joint_model_onnx_forward.1} parent=5 // pred_fallthru
        _
      %p449 = scmp.le.s32.totalorder 1, %s24
      %p450 = scmp.lt.s32.totalorder %s24, 3
      %p451 = pnand %p449, %p450
      %p452 = pneg %p451
      // Predicated region
      $region77: #{joint_model_onnx_forward.1} parent=5 // pred_check
        _
      $region78: #{joint_model_onnx_forward.1} parent=5 // pred_check_branch
        %454 = sbr.rel (%p451) target = $region80
      $region79: #{joint_model_onnx_forward.1} parent=5 // pred_region
        %s455 = ssub.s32 %s24, 1
        %p456 = scmp.lt.s32.totalorder %s29, 1
        %s457 = scalar_select %p456, %s29, 1
        %s458 = smul.addr %s457, 39
        %s459 = smul.addr %s458, 4
        %s460 = scalar_lea.vmem %s0, %s459
        %p461 = pneg %p50
        %p462 = pneg %p47
        %p463 = scmp.lt.s32.totalorder %s29, 1
        %s464 = scalar_select %p463, %s29, 1
        %s465 = smul.addr %s464, 39
        %s466 = smul.addr %s465, 4
        %s467 = scalar_lea.vmem %s1, %s466
        %p468 = pneg %p76
        %p469 = pneg %p73
        %p470 = pneg %p97
        %p471 = pneg %p94
        %p472 = pneg %p118
        %p473 = pneg %p115
        %p474 = pneg %p139
        %p475 = pneg %p136
        %p476 = pneg %p160
        %p477 = pneg %p157
        %p478 = pneg %p181
        %p479 = pneg %p178
        %p480 = pneg %p202
        %p481 = pneg %p199
        %p482 = pneg %p223
        %p483 = pneg %p220
        %p484 = pneg %p244
        %p485 = pneg %p241
        %p486 = pneg %p265
        %p487 = pneg %p262
        %p488 = pneg %p286
        %p489 = pneg %p283
        %p490 = pneg %p307
        %p491 = pneg %p304
        %p492 = pneg %p328
        %p493 = pneg %p325
        %p494 = pneg %p349
        %p495 = pneg %p346
        %p496 = pneg %p375
        %p497 = pneg %p372
        %s498 = sand.u32 %s362, 1
        %s499 = scalar_lea.sflag [#allocation5], %s498
        %s500 = sand.u32 %s362, 1
        %s501 = scalar_lea.vmem [#allocation4], %s500
        %p502 = scmp.lt.s32.totalorder %s29, 1
        %s503 = scalar_select %p502, %s29, 1
        %s504 = smul.addr %s503, 39
        %s505 = smul.addr %s504, 4
        %s506 = scalar_lea.vmem %s0, %s505
        %p507 = scmp.lt.s32.totalorder %s29, 1
        %s508 = scalar_select %p507, %s29, 1
        %s509 = smul.addr %s508, 39
        %s510 = smul.addr %s509, 4
        %s511 = scalar_lea.vmem %s1, %s510
        %v513 = vld [vmem:[%s506] sm:$0xf]
        %v514 = vld [vmem:[%s506 + $0x4] sm:$0xf]
        %v515 = vld [vmem:[%s506 + $0x8] sm:$0xf]
        %v516 = vld [vmem:[%s506 + $0xc] sm:$0xf]
        %v517 = vld [vmem:[%s506 + $0x10] sm:$0xf]
        %v518 = vld [vmem:[%s506 + $0x14] sm:$0xf]
        %v519 = vld [vmem:[%s506 + $0x18] sm:$0xf]
        %v520 = vld [vmem:[%s506 + $0x1c] sm:$0xf]
        %v521 = vld [vmem:[%s506 + $0x20] sm:$0xf]
        %v522 = vld [vmem:[%s506 + $0x24] sm:$0xf]
        %v523 = vld [vmem:[%s506 + $0x28] sm:$0xf]
        %v524 = vld [vmem:[%s506 + $0x2c] sm:$0xf]
        %v525 = vld [vmem:[%s506 + $0x30] sm:$0xf]
        %v526 = vld [vmem:[%s506 + $0x34] sm:$0xf]
        %v527 = vld [vmem:[%s506 + $0x38] sm:$0xf]
        %v528 = vld [vmem:[%s506 + $0x3c] sm:$0xf]
        %v529 = vld [vmem:[%s506 + $0x40] sm:$0xf]
        %v530 = vld [vmem:[%s506 + $0x44] sm:$0xf]
        %v531 = vld [vmem:[%s506 + $0x48] sm:$0xf]
        %v532 = vld [vmem:[%s506 + $0x4c] sm:$0xf]
        %v533 = vld [vmem:[%s506 + $0x50] sm:$0xf]
        %v534 = vld [vmem:[%s506 + $0x54] sm:$0xf]
        %v535 = vld [vmem:[%s506 + $0x58] sm:$0xf]
        %v536 = vld [vmem:[%s506 + $0x5c] sm:$0xf]
        %v537 = vld [vmem:[%s506 + $0x60] sm:$0xf]
        %v538 = vld [vmem:[%s506 + $0x64] sm:$0xf]
        %v539 = vld [vmem:[%s506 + $0x68] sm:$0xf]
        %v540 = vld [vmem:[%s506 + $0x6c] sm:$0xf]
        %v541 = vld [vmem:[%s506 + $0x70] sm:$0xf]
        %v542 = vld [vmem:[%s506 + $0x74] sm:$0xf]
        %v543 = vld [vmem:[%s506 + $0x78] sm:$0xf]
        %v544 = vld [vmem:[%s506 + $0x7c] sm:$0xf]
        %v545 = vld [vmem:[%s506 + $0x80] sm:$0xf]
        %v546 = vld [vmem:[%s506 + $0x84] sm:$0xf]
        %vm547 = vcmask 60416
        %548 = vst.msk [vmem:[#allocation2] sm:$0xf] %vm547, %v513
        %549 = vst.msk [vmem:[#allocation2 + $0x4] sm:$0xf] %vm547, %v514
        %550 = vst.msk [vmem:[#allocation2 + $0x8] sm:$0xf] %vm547, %v515
        %551 = vst.msk [vmem:[#allocation2 + $0xc] sm:$0xf] %vm547, %v516
        %552 = vst.msk [vmem:[#allocation2 + $0x10] sm:$0xf] %vm547, %v517
        %553 = vst.msk [vmem:[#allocation2 + $0x14] sm:$0xf] %vm547, %v518
        %554 = vst.msk [vmem:[#allocation2 + $0x18] sm:$0xf] %vm547, %v519
        %555 = vst.msk [vmem:[#allocation2 + $0x1c] sm:$0xf] %vm547, %v520
        %556 = vst.msk [vmem:[#allocation2 + $0x20] sm:$0xf] %vm547, %v521
        %557 = vst.msk [vmem:[#allocation2 + $0x24] sm:$0xf] %vm547, %v522
        %558 = vst.msk [vmem:[#allocation2 + $0x28] sm:$0xf] %vm547, %v523
        %559 = vst.msk [vmem:[#allocation2 + $0x2c] sm:$0xf] %vm547, %v524
        %560 = vst.msk [vmem:[#allocation2 + $0x30] sm:$0xf] %vm547, %v525
        %561 = vst.msk [vmem:[#allocation2 + $0x34] sm:$0xf] %vm547, %v526
        %562 = vst.msk [vmem:[#allocation2 + $0x38] sm:$0xf] %vm547, %v527
        %563 = vst.msk [vmem:[#allocation2 + $0x3c] sm:$0xf] %vm547, %v528
        %564 = vst.msk [vmem:[#allocation2 + $0x40] sm:$0xf] %vm547, %v529
        %565 = vst.msk [vmem:[#allocation2 + $0x44] sm:$0xf] %vm547, %v530
        %566 = vst.msk [vmem:[#allocation2 + $0x48] sm:$0xf] %vm547, %v531
        %567 = vst.msk [vmem:[#allocation2 + $0x4c] sm:$0xf] %vm547, %v532
        %568 = vst.msk [vmem:[#allocation2 + $0x50] sm:$0xf] %vm547, %v533
        %569 = vst.msk [vmem:[#allocation2 + $0x54] sm:$0xf] %vm547, %v534
        %570 = vst.msk [vmem:[#allocation2 + $0x58] sm:$0xf] %vm547, %v535
        %571 = vst.msk [vmem:[#allocation2 + $0x5c] sm:$0xf] %vm547, %v536
        %572 = vst.msk [vmem:[#allocation2 + $0x60] sm:$0xf] %vm547, %v537
        %573 = vst.msk [vmem:[#allocation2 + $0x64] sm:$0xf] %vm547, %v538
        %574 = vst.msk [vmem:[#allocation2 + $0x68] sm:$0xf] %vm547, %v539
        %575 = vst.msk [vmem:[#allocation2 + $0x6c] sm:$0xf] %vm547, %v540
        %576 = vst.msk [vmem:[#allocation2 + $0x70] sm:$0xf] %vm547, %v541
        %577 = vst.msk [vmem:[#allocation2 + $0x74] sm:$0xf] %vm547, %v542
        %578 = vst.msk [vmem:[#allocation2 + $0x78] sm:$0xf] %vm547, %v543
        %579 = vst.msk [vmem:[#allocation2 + $0x7c] sm:$0xf] %vm547, %v544
        %580 = vst.msk [vmem:[#allocation2 + $0x80] sm:$0xf] %vm547, %v545
        %581 = vst.msk [vmem:[#allocation2 + $0x84] sm:$0xf] %vm547, %v546
        %v582 = vld [vmem:[%s506] sm:$0xf]
        %v583 = vld [vmem:[%s506 + $0x4] sm:$0xf]
        %v584 = vld [vmem:[%s506 + $0x8] sm:$0xf]
        %v585 = vld [vmem:[%s506 + $0xc] sm:$0xf]
        %v586 = vld [vmem:[%s506 + $0x10] sm:$0xf]
        %v587 = vld [vmem:[%s506 + $0x14] sm:$0xf]
        %v588 = vld [vmem:[%s506 + $0x18] sm:$0xf]
        %v589 = vld [vmem:[%s506 + $0x1c] sm:$0xf]
        %v590 = vld [vmem:[%s506 + $0x20] sm:$0xf]
        %v591 = vld [vmem:[%s506 + $0x24] sm:$0xf]
        %v592 = vld [vmem:[%s506 + $0x28] sm:$0xf]
        %v593 = vld [vmem:[%s506 + $0x2c] sm:$0xf]
        %v594 = vld [vmem:[%s506 + $0x30] sm:$0xf]
        %v595 = vld [vmem:[%s506 + $0x34] sm:$0xf]
        %v596 = vld [vmem:[%s506 + $0x38] sm:$0xf]
        %v597 = vld [vmem:[%s506 + $0x3c] sm:$0xf]
        %v598 = vld [vmem:[%s506 + $0x40] sm:$0xf]
        %v599 = vld [vmem:[%s506 + $0x44] sm:$0xf]
        %v600 = vld [vmem:[%s506 + $0x48] sm:$0xf]
        %v601 = vld [vmem:[%s506 + $0x4c] sm:$0xf]
        %v602 = vld [vmem:[%s506 + $0x50] sm:$0xf]
        %v603 = vld [vmem:[%s506 + $0x54] sm:$0xf]
        %v604 = vld [vmem:[%s506 + $0x58] sm:$0xf]
        %v605 = vld [vmem:[%s506 + $0x5c] sm:$0xf]
        %v606 = vld [vmem:[%s506 + $0x60] sm:$0xf]
        %v607 = vld [vmem:[%s506 + $0x64] sm:$0xf]
        %v608 = vld [vmem:[%s506 + $0x68] sm:$0xf]
        %v609 = vld [vmem:[%s506 + $0x6c] sm:$0xf]
        %v610 = vld [vmem:[%s506 + $0x70] sm:$0xf]
        %v611 = vld [vmem:[%s506 + $0x74] sm:$0xf]
        %v612 = vld [vmem:[%s506 + $0x78] sm:$0xf]
        %v613 = vld [vmem:[%s506 + $0x7c] sm:$0xf]
        %v614 = vld [vmem:[%s506 + $0x80] sm:$0xf]
        %v615 = vld [vmem:[%s506 + $0x84] sm:$0xf]
        %v616 = vld [vmem:[%s506 + $0x88] sm:$0x1]
        %vm617 = vsmask.f32 3328
        %vm618 = vsmask.f32 7440
        %vm619 = vmor %vm617, %vm618
        %v621 = vshrl.u32 %v582, 16
        %v623 = vrot.slane %v621, 4
        %v624 = vshll.u32 %v582, 16
        %v626 = vrot.slane %v624, 5
        %v627 = vor.u32 %v623, %v626
        %v628 = vrot.slane %v627, 4
        %v630 = vshll.u32 %v583, 16
        %v632 = vrot.slane %v630, 5
        %v633 = vsel %vm619, %v628, %v632
        %v634 = vshrl.u32 %v583, 16
        %v636 = vrot.slane %v634, 4
        %v637 = vor.u32 %v636, %v632
        %v638 = vrot.slane %v637, 4
        %v640 = vshll.u32 %v584, 16
        %v642 = vrot.slane %v640, 5
        %v643 = vsel %vm619, %v638, %v642
        %v644 = vshrl.u32 %v584, 16
        %v646 = vrot.slane %v644, 4
        %v647 = vor.u32 %v646, %v642
        %v648 = vrot.slane %v647, 4
        %v650 = vshll.u32 %v585, 16
        %v652 = vrot.slane %v650, 5
        %v653 = vsel %vm619, %v648, %v652
        %v654 = vshrl.u32 %v585, 16
        %v656 = vrot.slane %v654, 4
        %v657 = vor.u32 %v656, %v652
        %v658 = vrot.slane %v657, 4
        %v660 = vshll.u32 %v586, 16
        %v662 = vrot.slane %v660, 5
        %v663 = vsel %vm619, %v658, %v662
        %v664 = vshrl.u32 %v586, 16
        %v666 = vrot.slane %v664, 4
        %v667 = vor.u32 %v666, %v662
        %v668 = vrot.slane %v667, 4
        %v670 = vshll.u32 %v587, 16
        %v672 = vrot.slane %v670, 5
        %v673 = vsel %vm619, %v668, %v672
        %v674 = vshrl.u32 %v587, 16
        %v676 = vrot.slane %v674, 4
        %v677 = vor.u32 %v676, %v672
        %v678 = vrot.slane %v677, 4
        %v680 = vshll.u32 %v588, 16
        %v682 = vrot.slane %v680, 5
        %v683 = vsel %vm619, %v678, %v682
        %v684 = vshrl.u32 %v588, 16
        %v686 = vrot.slane %v684, 4
        %v687 = vor.u32 %v686, %v682
        %v688 = vrot.slane %v687, 4
        %v690 = vshll.u32 %v589, 16
        %v692 = vrot.slane %v690, 5
        %v693 = vsel %vm619, %v688, %v692
        %v694 = vshrl.u32 %v589, 16
        %v696 = vrot.slane %v694, 4
        %v697 = vor.u32 %v696, %v692
        %v698 = vrot.slane %v697, 4
        %v700 = vshll.u32 %v590, 16
        %v702 = vrot.slane %v700, 5
        %v703 = vsel %vm619, %v698, %v702
        %v704 = vshrl.u32 %v590, 16
        %v706 = vrot.slane %v704, 4
        %v707 = vor.u32 %v706, %v702
        %v708 = vrot.slane %v707, 4
        %v710 = vshll.u32 %v591, 16
        %v712 = vrot.slane %v710, 5
        %v713 = vsel %vm619, %v708, %v712
        %v714 = vshrl.u32 %v591, 16
        %v716 = vrot.slane %v714, 4
        %v717 = vor.u32 %v716, %v712
        %v718 = vrot.slane %v717, 4
        %v720 = vshll.u32 %v592, 16
        %v722 = vrot.slane %v720, 5
        %v723 = vsel %vm619, %v718, %v722
        %v724 = vshrl.u32 %v592, 16
        %v726 = vrot.slane %v724, 4
        %v727 = vor.u32 %v726, %v722
        %v728 = vrot.slane %v727, 4
        %v730 = vshll.u32 %v593, 16
        %v732 = vrot.slane %v730, 5
        %v733 = vsel %vm619, %v728, %v732
        %v734 = vshrl.u32 %v593, 16
        %v736 = vrot.slane %v734, 4
        %v737 = vor.u32 %v736, %v732
        %v738 = vrot.slane %v737, 4
        %v740 = vshll.u32 %v594, 16
        %v742 = vrot.slane %v740, 5
        %v743 = vsel %vm619, %v738, %v742
        %v744 = vshrl.u32 %v594, 16
        %v746 = vrot.slane %v744, 4
        %v747 = vor.u32 %v746, %v742
        %v748 = vrot.slane %v747, 4
        %v750 = vshll.u32 %v595, 16
        %v752 = vrot.slane %v750, 5
        %v753 = vsel %vm619, %v748, %v752
        %v754 = vshrl.u32 %v595, 16
        %v756 = vrot.slane %v754, 4
        %v757 = vor.u32 %v756, %v752
        %v758 = vrot.slane %v757, 4
        %v760 = vshll.u32 %v596, 16
        %v762 = vrot.slane %v760, 5
        %v763 = vsel %vm619, %v758, %v762
        %v764 = vshrl.u32 %v596, 16
        %v766 = vrot.slane %v764, 4
        %v767 = vor.u32 %v766, %v762
        %v768 = vrot.slane %v767, 4
        %v770 = vshll.u32 %v597, 16
        %v772 = vrot.slane %v770, 5
        %v773 = vsel %vm619, %v768, %v772
        %v774 = vshrl.u32 %v597, 16
        %v776 = vrot.slane %v774, 4
        %v777 = vor.u32 %v776, %v772
        %v778 = vrot.slane %v777, 4
        %v780 = vshll.u32 %v598, 16
        %v782 = vrot.slane %v780, 5
        %v783 = vsel %vm619, %v778, %v782
        %v784 = vshrl.u32 %v598, 16
        %v786 = vrot.slane %v784, 4
        %v787 = vor.u32 %v786, %v782
        %v788 = vrot.slane %v787, 4
        %v790 = vshll.u32 %v599, 16
        %v792 = vrot.slane %v790, 5
        %v793 = vsel %vm619, %v788, %v792
        %v794 = vshrl.u32 %v599, 16
        %v796 = vrot.slane %v794, 4
        %v797 = vor.u32 %v796, %v792
        %v798 = vrot.slane %v797, 4
        %v800 = vshll.u32 %v600, 16
        %v802 = vrot.slane %v800, 5
        %v803 = vsel %vm619, %v798, %v802
        %v804 = vshrl.u32 %v600, 16
        %v806 = vrot.slane %v804, 4
        %v807 = vor.u32 %v806, %v802
        %v808 = vrot.slane %v807, 4
        %v810 = vshll.u32 %v601, 16
        %v812 = vrot.slane %v810, 5
        %v813 = vsel %vm619, %v808, %v812
        %v814 = vshrl.u32 %v601, 16
        %v816 = vrot.slane %v814, 4
        %v817 = vor.u32 %v816, %v812
        %v818 = vrot.slane %v817, 4
        %v820 = vshll.u32 %v602, 16
        %v822 = vrot.slane %v820, 5
        %v823 = vsel %vm619, %v818, %v822
        %v824 = vshrl.u32 %v602, 16
        %v826 = vrot.slane %v824, 4
        %v827 = vor.u32 %v826, %v822
        %v828 = vrot.slane %v827, 4
        %v830 = vshll.u32 %v603, 16
        %v832 = vrot.slane %v830, 5
        %v833 = vsel %vm619, %v828, %v832
        %v834 = vshrl.u32 %v603, 16
        %v836 = vrot.slane %v834, 4
        %v837 = vor.u32 %v836, %v832
        %v838 = vrot.slane %v837, 4
        %v840 = vshll.u32 %v604, 16
        %v842 = vrot.slane %v840, 5
        %v843 = vsel %vm619, %v838, %v842
        %v844 = vshrl.u32 %v604, 16
        %v846 = vrot.slane %v844, 4
        %v847 = vor.u32 %v846, %v842
        %v848 = vrot.slane %v847, 4
        %v850 = vshll.u32 %v605, 16
        %v852 = vrot.slane %v850, 5
        %v853 = vsel %vm619, %v848, %v852
        %v854 = vshrl.u32 %v605, 16
        %v856 = vrot.slane %v854, 4
        %v857 = vor.u32 %v856, %v852
        %v858 = vrot.slane %v857, 4
        %v860 = vshll.u32 %v606, 16
        %v862 = vrot.slane %v860, 5
        %v863 = vsel %vm619, %v858, %v862
        %v864 = vshrl.u32 %v606, 16
        %v866 = vrot.slane %v864, 4
        %v867 = vor.u32 %v866, %v862
        %v868 = vrot.slane %v867, 4
        %v870 = vshll.u32 %v607, 16
        %v872 = vrot.slane %v870, 5
        %v873 = vsel %vm619, %v868, %v872
        %v874 = vshrl.u32 %v607, 16
        %v876 = vrot.slane %v874, 4
        %v877 = vor.u32 %v876, %v872
        %v878 = vrot.slane %v877, 4
        %v880 = vshll.u32 %v608, 16
        %v882 = vrot.slane %v880, 5
        %v883 = vsel %vm619, %v878, %v882
        %v884 = vshrl.u32 %v608, 16
        %v886 = vrot.slane %v884, 4
        %v887 = vor.u32 %v886, %v882
        %v888 = vrot.slane %v887, 4
        %v890 = vshll.u32 %v609, 16
        %v892 = vrot.slane %v890, 5
        %v893 = vsel %vm619, %v888, %v892
        %v894 = vshrl.u32 %v609, 16
        %v896 = vrot.slane %v894, 4
        %v897 = vor.u32 %v896, %v892
        %v898 = vrot.slane %v897, 4
        %v900 = vshll.u32 %v610, 16
        %v902 = vrot.slane %v900, 5
        %v903 = vsel %vm619, %v898, %v902
        %v904 = vshrl.u32 %v610, 16
        %v906 = vrot.slane %v904, 4
        %v907 = vor.u32 %v906, %v902
        %v908 = vrot.slane %v907, 4
        %v910 = vshll.u32 %v611, 16
        %v912 = vrot.slane %v910, 5
        %v913 = vsel %vm619, %v908, %v912
        %v914 = vshrl.u32 %v611, 16
        %v916 = vrot.slane %v914, 4
        %v917 = vor.u32 %v916, %v912
        %v918 = vrot.slane %v917, 4
        %v920 = vshll.u32 %v612, 16
        %v922 = vrot.slane %v920, 5
        %v923 = vsel %vm619, %v918, %v922
        %v924 = vshrl.u32 %v612, 16
        %v926 = vrot.slane %v924, 4
        %v927 = vor.u32 %v926, %v922
        %v928 = vrot.slane %v927, 4
        %v930 = vshll.u32 %v613, 16
        %v932 = vrot.slane %v930, 5
        %v933 = vsel %vm619, %v928, %v932
        %v934 = vshrl.u32 %v613, 16
        %v936 = vrot.slane %v934, 4
        %v937 = vor.u32 %v936, %v932
        %v938 = vrot.slane %v937, 4
        %v940 = vshll.u32 %v614, 16
        %v942 = vrot.slane %v940, 5
        %v943 = vsel %vm619, %v938, %v942
        %v944 = vshrl.u32 %v614, 16
        %v946 = vrot.slane %v944, 4
        %v947 = vor.u32 %v946, %v942
        %v948 = vrot.slane %v947, 4
        %v950 = vshll.u32 %v615, 16
        %v952 = vrot.slane %v950, 5
        %v953 = vsel %vm619, %v948, %v952
        %v954 = vshrl.u32 %v615, 16
        %v956 = vrot.slane %v954, 4
        %v957 = vor.u32 %v956, %v952
        %v958 = vrot.slane %v957, 4
        %v960 = vshll.u32 %v616, 16
        %v962 = vrot.slane %v960, 5
        %v963 = vsel %vm619, %v958, %v962
        %964 = vrot.lane.b32.xlu0 %v633, 8
        %v965 = vpop.permute.xlu0 %964
        %966 = vrot.lane.b32.xlu0 %v643, 8
        %v967 = vpop.permute.xlu0 %966
        %968 = vrot.lane.b32.xlu0 %v653, 8
        %v969 = vpop.permute.xlu0 %968
        %970 = vrot.lane.b32.xlu0 %v663, 8
        %v971 = vpop.permute.xlu0 %970
        %972 = vrot.lane.b32.xlu0 %v673, 8
        %v973 = vpop.permute.xlu0 %972
        %974 = vrot.lane.b32.xlu0 %v683, 8
        %v975 = vpop.permute.xlu0 %974
        %976 = vrot.lane.b32.xlu0 %v693, 8
        %v977 = vpop.permute.xlu0 %976
        %978 = vrot.lane.b32.xlu0 %v703, 8
        %v979 = vpop.permute.xlu0 %978
        %980 = vrot.lane.b32.xlu0 %v713, 8
        %v981 = vpop.permute.xlu0 %980
        %982 = vrot.lane.b32.xlu0 %v723, 8
        %v983 = vpop.permute.xlu0 %982
        %984 = vrot.lane.b32.xlu0 %v733, 8
        %v985 = vpop.permute.xlu0 %984
        %986 = vrot.lane.b32.xlu0 %v743, 8
        %v987 = vpop.permute.xlu0 %986
        %988 = vrot.lane.b32.xlu0 %v753, 8
        %v989 = vpop.permute.xlu0 %988
        %990 = vrot.lane.b32.xlu0 %v763, 8
        %v991 = vpop.permute.xlu0 %990
        %992 = vrot.lane.b32.xlu0 %v773, 8
        %v993 = vpop.permute.xlu0 %992
        %994 = vrot.lane.b32.xlu0 %v783, 8
        %v995 = vpop.permute.xlu0 %994
        %996 = vrot.lane.b32.xlu0 %v793, 8
        %v997 = vpop.permute.xlu0 %996
        %998 = vrot.lane.b32.xlu0 %v803, 8
        %v999 = vpop.permute.xlu0 %998
        %1000 = vrot.lane.b32.xlu0 %v813, 8
        %v1001 = vpop.permute.xlu0 %1000
        %1002 = vrot.lane.b32.xlu0 %v823, 8
        %v1003 = vpop.permute.xlu0 %1002
        %1004 = vrot.lane.b32.xlu0 %v833, 8
        %v1005 = vpop.permute.xlu0 %1004
        %1006 = vrot.lane.b32.xlu0 %v843, 8
        %v1007 = vpop.permute.xlu0 %1006
        %1008 = vrot.lane.b32.xlu0 %v853, 8
        %v1009 = vpop.permute.xlu0 %1008
        %1010 = vrot.lane.b32.xlu0 %v863, 8
        %v1011 = vpop.permute.xlu0 %1010
        %1012 = vrot.lane.b32.xlu0 %v873, 8
        %v1013 = vpop.permute.xlu0 %1012
        %1014 = vrot.lane.b32.xlu0 %v883, 8
        %v1015 = vpop.permute.xlu0 %1014
        %1016 = vrot.lane.b32.xlu0 %v893, 8
        %v1017 = vpop.permute.xlu0 %1016
        %1018 = vrot.lane.b32.xlu0 %v903, 8
        %v1019 = vpop.permute.xlu0 %1018
        %1020 = vrot.lane.b32.xlu0 %v913, 8
        %v1021 = vpop.permute.xlu0 %1020
        %1022 = vrot.lane.b32.xlu0 %v923, 8
        %v1023 = vpop.permute.xlu0 %1022
        %1024 = vrot.lane.b32.xlu0 %v933, 8
        %v1025 = vpop.permute.xlu0 %1024
        %1026 = vrot.lane.b32.xlu0 %v943, 8
        %v1027 = vpop.permute.xlu0 %1026
        %1028 = vrot.lane.b32.xlu0 %v953, 8
        %v1029 = vpop.permute.xlu0 %1028
        %1030 = vrot.lane.b32.xlu0 %v963, 8
        %v1031 = vpop.permute.xlu0 %1030
        %vm1066 = vcmask 126016
        %1067 = vst.msk [vmem:[#allocation2] sm:$0xf] %vm1066, %v965
        %1068 = vst.msk [vmem:[#allocation2 + $0x4] sm:$0xf] %vm1066, %v967
        %1069 = vst.msk [vmem:[#allocation2 + $0x8] sm:$0xf] %vm1066, %v969
        %1070 = vst.msk [vmem:[#allocation2 + $0xc] sm:$0xf] %vm1066, %v971
        %1071 = vst.msk [vmem:[#allocation2 + $0x10] sm:$0xf] %vm1066, %v973
        %1072 = vst.msk [vmem:[#allocation2 + $0x14] sm:$0xf] %vm1066, %v975
        %1073 = vst.msk [vmem:[#allocation2 + $0x18] sm:$0xf] %vm1066, %v977
        %1074 = vst.msk [vmem:[#allocation2 + $0x1c] sm:$0xf] %vm1066, %v979
        %1075 = vst.msk [vmem:[#allocation2 + $0x20] sm:$0xf] %vm1066, %v981
        %1076 = vst.msk [vmem:[#allocation2 + $0x24] sm:$0xf] %vm1066, %v983
        %1077 = vst.msk [vmem:[#allocation2 + $0x28] sm:$0xf] %vm1066, %v985
        %1078 = vst.msk [vmem:[#allocation2 + $0x2c] sm:$0xf] %vm1066, %v987
        %1079 = vst.msk [vmem:[#allocation2 + $0x30] sm:$0xf] %vm1066, %v989
        %1080 = vst.msk [vmem:[#allocation2 + $0x34] sm:$0xf] %vm1066, %v991
        %1081 = vst.msk [vmem:[#allocation2 + $0x38] sm:$0xf] %vm1066, %v993
        %1082 = vst.msk [vmem:[#allocation2 + $0x3c] sm:$0xf] %vm1066, %v995
        %1083 = vst.msk [vmem:[#allocation2 + $0x40] sm:$0xf] %vm1066, %v997
        %1084 = vst.msk [vmem:[#allocation2 + $0x44] sm:$0xf] %vm1066, %v999
        %1085 = vst.msk [vmem:[#allocation2 + $0x48] sm:$0xf] %vm1066, %v1001
        %1086 = vst.msk [vmem:[#allocation2 + $0x4c] sm:$0xf] %vm1066, %v1003
        %1087 = vst.msk [vmem:[#allocation2 + $0x50] sm:$0xf] %vm1066, %v1005
        %1088 = vst.msk [vmem:[#allocation2 + $0x54] sm:$0xf] %vm1066, %v1007
        %1089 = vst.msk [vmem:[#allocation2 + $0x58] sm:$0xf] %vm1066, %v1009
        %1090 = vst.msk [vmem:[#allocation2 + $0x5c] sm:$0xf] %vm1066, %v1011
        %1091 = vst.msk [vmem:[#allocation2 + $0x60] sm:$0xf] %vm1066, %v1013
        %1092 = vst.msk [vmem:[#allocation2 + $0x64] sm:$0xf] %vm1066, %v1015
        %1093 = vst.msk [vmem:[#allocation2 + $0x68] sm:$0xf] %vm1066, %v1017
        %1094 = vst.msk [vmem:[#allocation2 + $0x6c] sm:$0xf] %vm1066, %v1019
        %1095 = vst.msk [vmem:[#allocation2 + $0x70] sm:$0xf] %vm1066, %v1021
        %1096 = vst.msk [vmem:[#allocation2 + $0x74] sm:$0xf] %vm1066, %v1023
        %1097 = vst.msk [vmem:[#allocation2 + $0x78] sm:$0xf] %vm1066, %v1025
        %1098 = vst.msk [vmem:[#allocation2 + $0x7c] sm:$0xf] %vm1066, %v1027
        %1099 = vst.msk [vmem:[#allocation2 + $0x80] sm:$0xf] %vm1066, %v1029
        %1100 = vst.msk [vmem:[#allocation2 + $0x84] sm:$0xf] %vm1066, %v1031
        %v1101 = vld [vmem:[%s506] sm:$0xe]
        %v1102 = vld [vmem:[%s506 + $0x4] sm:$0xf]
        %v1103 = vld [vmem:[%s506 + $0x8] sm:$0xf]
        %v1104 = vld [vmem:[%s506 + $0xc] sm:$0xf]
        %v1105 = vld [vmem:[%s506 + $0x10] sm:$0xf]
        %v1106 = vld [vmem:[%s506 + $0x14] sm:$0xf]
        %v1107 = vld [vmem:[%s506 + $0x18] sm:$0xf]
        %v1108 = vld [vmem:[%s506 + $0x1c] sm:$0xf]
        %v1109 = vld [vmem:[%s506 + $0x20] sm:$0xf]
        %v1110 = vld [vmem:[%s506 + $0x24] sm:$0xf]
        %v1111 = vld [vmem:[%s506 + $0x28] sm:$0xf]
        %v1112 = vld [vmem:[%s506 + $0x2c] sm:$0xf]
        %v1113 = vld [vmem:[%s506 + $0x30] sm:$0xf]
        %v1114 = vld [vmem:[%s506 + $0x34] sm:$0xf]
        %v1115 = vld [vmem:[%s506 + $0x38] sm:$0xf]
        %v1116 = vld [vmem:[%s506 + $0x3c] sm:$0xf]
        %v1117 = vld [vmem:[%s506 + $0x40] sm:$0xf]
        %v1118 = vld [vmem:[%s506 + $0x44] sm:$0xf]
        %v1119 = vld [vmem:[%s506 + $0x48] sm:$0xf]
        %v1120 = vld [vmem:[%s506 + $0x4c] sm:$0xf]
        %v1121 = vld [vmem:[%s506 + $0x50] sm:$0xf]
        %v1122 = vld [vmem:[%s506 + $0x54] sm:$0xf]
        %v1123 = vld [vmem:[%s506 + $0x58] sm:$0xf]
        %v1124 = vld [vmem:[%s506 + $0x5c] sm:$0xf]
        %v1125 = vld [vmem:[%s506 + $0x60] sm:$0xf]
        %v1126 = vld [vmem:[%s506 + $0x64] sm:$0xf]
        %v1127 = vld [vmem:[%s506 + $0x68] sm:$0xf]
        %v1128 = vld [vmem:[%s506 + $0x6c] sm:$0xf]
        %v1129 = vld [vmem:[%s506 + $0x70] sm:$0xf]
        %v1130 = vld [vmem:[%s506 + $0x74] sm:$0xf]
        %v1131 = vld [vmem:[%s506 + $0x78] sm:$0xf]
        %v1132 = vld [vmem:[%s506 + $0x7c] sm:$0xf]
        %v1133 = vld [vmem:[%s506 + $0x80] sm:$0xf]
        %v1134 = vld [vmem:[%s506 + $0x84] sm:$0xf]
        %v1135 = vld [vmem:[%s506 + $0x88] sm:$0x1]
        %vm1171 = vcmask 1042432
        %vm1172 = vcmask 1046532
        %vm1173 = vmor %vm1171, %vm1172
        %v1174 = vrot.slane %v1101, 5
        %v1175 = vrot.slane %v1174, 4
        %v1176 = vrot.slane %v1102, 5
        %v1177 = vsel %vm1173, %v1175, %v1176
        %v1178 = vrot.slane %v1176, 4
        %v1179 = vrot.slane %v1103, 5
        %v1180 = vsel %vm1173, %v1178, %v1179
        %v1181 = vrot.slane %v1179, 4
        %v1182 = vrot.slane %v1104, 5
        %v1183 = vsel %vm1173, %v1181, %v1182
        %v1184 = vrot.slane %v1182, 4
        %v1185 = vrot.slane %v1105, 5
        %v1186 = vsel %vm1173, %v1184, %v1185
        %v1187 = vrot.slane %v1185, 4
        %v1188 = vrot.slane %v1106, 5
        %v1189 = vsel %vm1173, %v1187, %v1188
        %v1190 = vrot.slane %v1188, 4
        %v1191 = vrot.slane %v1107, 5
        %v1192 = vsel %vm1173, %v1190, %v1191
        %v1193 = vrot.slane %v1191, 4
        %v1194 = vrot.slane %v1108, 5
        %v1195 = vsel %vm1173, %v1193, %v1194
        %v1196 = vrot.slane %v1194, 4
        %v1197 = vrot.slane %v1109, 5
        %v1198 = vsel %vm1173, %v1196, %v1197
        %v1199 = vrot.slane %v1197, 4
        %v1200 = vrot.slane %v1110, 5
        %v1201 = vsel %vm1173, %v1199, %v1200
        %v1202 = vrot.slane %v1200, 4
        %v1203 = vrot.slane %v1111, 5
        %v1204 = vsel %vm1173, %v1202, %v1203
        %v1205 = vrot.slane %v1203, 4
        %v1206 = vrot.slane %v1112, 5
        %v1207 = vsel %vm1173, %v1205, %v1206
        %v1208 = vrot.slane %v1206, 4
        %v1209 = vrot.slane %v1113, 5
        %v1210 = vsel %vm1173, %v1208, %v1209
        %v1211 = vrot.slane %v1209, 4
        %v1212 = vrot.slane %v1114, 5
        %v1213 = vsel %vm1173, %v1211, %v1212
        %v1214 = vrot.slane %v1212, 4
        %v1215 = vrot.slane %v1115, 5
        %v1216 = vsel %vm1173, %v1214, %v1215
        %v1217 = vrot.slane %v1215, 4
        %v1218 = vrot.slane %v1116, 5
        %v1219 = vsel %vm1173, %v1217, %v1218
        %v1220 = vrot.slane %v1218, 4
        %v1221 = vrot.slane %v1117, 5
        %v1222 = vsel %vm1173, %v1220, %v1221
        %v1223 = vrot.slane %v1221, 4
        %v1224 = vrot.slane %v1118, 5
        %v1225 = vsel %vm1173, %v1223, %v1224
        %v1226 = vrot.slane %v1224, 4
        %v1227 = vrot.slane %v1119, 5
        %v1228 = vsel %vm1173, %v1226, %v1227
        %v1229 = vrot.slane %v1227, 4
        %v1230 = vrot.slane %v1120, 5
        %v1231 = vsel %vm1173, %v1229, %v1230
        %v1232 = vrot.slane %v1230, 4
        %v1233 = vrot.slane %v1121, 5
        %v1234 = vsel %vm1173, %v1232, %v1233
        %v1235 = vrot.slane %v1233, 4
        %v1236 = vrot.slane %v1122, 5
        %v1237 = vsel %vm1173, %v1235, %v1236
        %v1238 = vrot.slane %v1236, 4
        %v1239 = vrot.slane %v1123, 5
        %v1240 = vsel %vm1173, %v1238, %v1239
        %v1241 = vrot.slane %v1239, 4
        %v1242 = vrot.slane %v1124, 5
        %v1243 = vsel %vm1173, %v1241, %v1242
        %v1244 = vrot.slane %v1242, 4
        %v1245 = vrot.slane %v1125, 5
        %v1246 = vsel %vm1173, %v1244, %v1245
        %v1247 = vrot.slane %v1245, 4
        %v1248 = vrot.slane %v1126, 5
        %v1249 = vsel %vm1173, %v1247, %v1248
        %v1250 = vrot.slane %v1248, 4
        %v1251 = vrot.slane %v1127, 5
        %v1252 = vsel %vm1173, %v1250, %v1251
        %v1253 = vrot.slane %v1251, 4
        %v1254 = vrot.slane %v1128, 5
        %v1255 = vsel %vm1173, %v1253, %v1254
        %v1256 = vrot.slane %v1254, 4
        %v1257 = vrot.slane %v1129, 5
        %v1258 = vsel %vm1173, %v1256, %v1257
        %v1259 = vrot.slane %v1257, 4
        %v1260 = vrot.slane %v1130, 5
        %v1261 = vsel %vm1173, %v1259, %v1260
        %v1262 = vrot.slane %v1260, 4
        %v1263 = vrot.slane %v1131, 5
        %v1264 = vsel %vm1173, %v1262, %v1263
        %v1265 = vrot.slane %v1263, 4
        %v1266 = vrot.slane %v1132, 5
        %v1267 = vsel %vm1173, %v1265, %v1266
        %v1268 = vrot.slane %v1266, 4
        %v1269 = vrot.slane %v1133, 5
        %v1270 = vsel %vm1173, %v1268, %v1269
        %v1271 = vrot.slane %v1269, 4
        %v1272 = vrot.slane %v1134, 5
        %v1273 = vsel %vm1173, %v1271, %v1272
        %v1274 = vrot.slane %v1272, 4
        %v1275 = vrot.slane %v1135, 5
        %v1276 = vsel %vm1173, %v1274, %v1275
        %1277 = vrot.lane.b32.xlu0 %v1177, 16
        %v1278 = vpop.permute.xlu0 %1277
        %1279 = vrot.lane.b32.xlu0 %v1180, 16
        %v1280 = vpop.permute.xlu0 %1279
        %1281 = vrot.lane.b32.xlu0 %v1183, 16
        %v1282 = vpop.permute.xlu0 %1281
        %1283 = vrot.lane.b32.xlu0 %v1186, 16
        %v1284 = vpop.permute.xlu0 %1283
        %1285 = vrot.lane.b32.xlu0 %v1189, 16
        %v1286 = vpop.permute.xlu0 %1285
        %1287 = vrot.lane.b32.xlu0 %v1192, 16
        %v1288 = vpop.permute.xlu0 %1287
        %1289 = vrot.lane.b32.xlu0 %v1195, 16
        %v1290 = vpop.permute.xlu0 %1289
        %1291 = vrot.lane.b32.xlu0 %v1198, 16
        %v1292 = vpop.permute.xlu0 %1291
        %1293 = vrot.lane.b32.xlu0 %v1201, 16
        %v1294 = vpop.permute.xlu0 %1293
        %1295 = vrot.lane.b32.xlu0 %v1204, 16
        %v1296 = vpop.permute.xlu0 %1295
        %1297 = vrot.lane.b32.xlu0 %v1207, 16
        %v1298 = vpop.permute.xlu0 %1297
        %1299 = vrot.lane.b32.xlu0 %v1210, 16
        %v1300 = vpop.permute.xlu0 %1299
        %1301 = vrot.lane.b32.xlu0 %v1213, 16
        %v1302 = vpop.permute.xlu0 %1301
        %1303 = vrot.lane.b32.xlu0 %v1216, 16
        %v1304 = vpop.permute.xlu0 %1303
        %1305 = vrot.lane.b32.xlu0 %v1219, 16
        %v1306 = vpop.permute.xlu0 %1305
        %1307 = vrot.lane.b32.xlu0 %v1222, 16
        %v1308 = vpop.permute.xlu0 %1307
        %1309 = vrot.lane.b32.xlu0 %v1225, 16
        %v1310 = vpop.permute.xlu0 %1309
        %1311 = vrot.lane.b32.xlu0 %v1228, 16
        %v1312 = vpop.permute.xlu0 %1311
        %1313 = vrot.lane.b32.xlu0 %v1231, 16
        %v1314 = vpop.permute.xlu0 %1313
        %1315 = vrot.lane.b32.xlu0 %v1234, 16
        %v1316 = vpop.permute.xlu0 %1315
        %1317 = vrot.lane.b32.xlu0 %v1237, 16
        %v1318 = vpop.permute.xlu0 %1317
        %1319 = vrot.lane.b32.xlu0 %v1240, 16
        %v1320 = vpop.permute.xlu0 %1319
        %1321 = vrot.lane.b32.xlu0 %v1243, 16
        %v1322 = vpop.permute.xlu0 %1321
        %1323 = vrot.lane.b32.xlu0 %v1246, 16
        %v1324 = vpop.permute.xlu0 %1323
        %1325 = vrot.lane.b32.xlu0 %v1249, 16
        %v1326 = vpop.permute.xlu0 %1325
        %1327 = vrot.lane.b32.xlu0 %v1252, 16
        %v1328 = vpop.permute.xlu0 %1327
        %1329 = vrot.lane.b32.xlu0 %v1255, 16
        %v1330 = vpop.permute.xlu0 %1329
        %1331 = vrot.lane.b32.xlu0 %v1258, 16
        %v1332 = vpop.permute.xlu0 %1331
        %1333 = vrot.lane.b32.xlu0 %v1261, 16
        %v1334 = vpop.permute.xlu0 %1333
        %1335 = vrot.lane.b32.xlu0 %v1264, 16
        %v1336 = vpop.permute.xlu0 %1335
        %1337 = vrot.lane.b32.xlu0 %v1267, 16
        %v1338 = vpop.permute.xlu0 %1337
        %1339 = vrot.lane.b32.xlu0 %v1270, 16
        %v1340 = vpop.permute.xlu0 %1339
        %1341 = vrot.lane.b32.xlu0 %v1273, 16
        %v1342 = vpop.permute.xlu0 %1341
        %1343 = vrot.lane.b32.xlu0 %v1276, 16
        %v1344 = vpop.permute.xlu0 %1343
        %vm1379 = vcmask 191616
        %1380 = vst.msk [vmem:[#allocation2] sm:$0xf] %vm1379, %v1278
        %1381 = vst.msk [vmem:[#allocation2 + $0x4] sm:$0xf] %vm1379, %v1280
        %1382 = vst.msk [vmem:[#allocation2 + $0x8] sm:$0xf] %vm1379, %v1282
        %1383 = vst.msk [vmem:[#allocation2 + $0xc] sm:$0xf] %vm1379, %v1284
        %1384 = vst.msk [vmem:[#allocation2 + $0x10] sm:$0xf] %vm1379, %v1286
        %1385 = vst.msk [vmem:[#allocation2 + $0x14] sm:$0xf] %vm1379, %v1288
        %1386 = vst.msk [vmem:[#allocation2 + $0x18] sm:$0xf] %vm1379, %v1290
        %1387 = vst.msk [vmem:[#allocation2 + $0x1c] sm:$0xf] %vm1379, %v1292
        %1388 = vst.msk [vmem:[#allocation2 + $0x20] sm:$0xf] %vm1379, %v1294
        %1389 = vst.msk [vmem:[#allocation2 + $0x24] sm:$0xf] %vm1379, %v1296
        %1390 = vst.msk [vmem:[#allocation2 + $0x28] sm:$0xf] %vm1379, %v1298
        %1391 = vst.msk [vmem:[#allocation2 + $0x2c] sm:$0xf] %vm1379, %v1300
        %1392 = vst.msk [vmem:[#allocation2 + $0x30] sm:$0xf] %vm1379, %v1302
        %1393 = vst.msk [vmem:[#allocation2 + $0x34] sm:$0xf] %vm1379, %v1304
        %1394 = vst.msk [vmem:[#allocation2 + $0x38] sm:$0xf] %vm1379, %v1306
        %1395 = vst.msk [vmem:[#allocation2 + $0x3c] sm:$0xf] %vm1379, %v1308
        %1396 = vst.msk [vmem:[#allocation2 + $0x40] sm:$0xf] %vm1379, %v1310
        %1397 = vst.msk [vmem:[#allocation2 + $0x44] sm:$0xf] %vm1379, %v1312
        %1398 = vst.msk [vmem:[#allocation2 + $0x48] sm:$0xf] %vm1379, %v1314
        %1399 = vst.msk [vmem:[#allocation2 + $0x4c] sm:$0xf] %vm1379, %v1316
        %1400 = vst.msk [vmem:[#allocation2 + $0x50] sm:$0xf] %vm1379, %v1318
        %1401 = vst.msk [vmem:[#allocation2 + $0x54] sm:$0xf] %vm1379, %v1320
        %1402 = vst.msk [vmem:[#allocation2 + $0x58] sm:$0xf] %vm1379, %v1322
        %1403 = vst.msk [vmem:[#allocation2 + $0x5c] sm:$0xf] %vm1379, %v1324
        %1404 = vst.msk [vmem:[#allocation2 + $0x60] sm:$0xf] %vm1379, %v1326
        %1405 = vst.msk [vmem:[#allocation2 + $0x64] sm:$0xf] %vm1379, %v1328
        %1406 = vst.msk [vmem:[#allocation2 + $0x68] sm:$0xf] %vm1379, %v1330
        %1407 = vst.msk [vmem:[#allocation2 + $0x6c] sm:$0xf] %vm1379, %v1332
        %1408 = vst.msk [vmem:[#allocation2 + $0x70] sm:$0xf] %vm1379, %v1334
        %1409 = vst.msk [vmem:[#allocation2 + $0x74] sm:$0xf] %vm1379, %v1336
        %1410 = vst.msk [vmem:[#allocation2 + $0x78] sm:$0xf] %vm1379, %v1338
        %1411 = vst.msk [vmem:[#allocation2 + $0x7c] sm:$0xf] %vm1379, %v1340
        %1412 = vst.msk [vmem:[#allocation2 + $0x80] sm:$0xf] %vm1379, %v1342
        %1413 = vst.msk [vmem:[#allocation2 + $0x84] sm:$0xf] %vm1379, %v1344
        %v1414 = vld [vmem:[%s506 + $0x8] sm:$0xf]
        %v1415 = vld [vmem:[%s506 + $0xc] sm:$0xf]
        %v1416 = vld [vmem:[%s506 + $0x10] sm:$0xf]
        %v1417 = vld [vmem:[%s506 + $0x14] sm:$0xf]
        %v1418 = vld [vmem:[%s506 + $0x18] sm:$0xf]
        %v1419 = vld [vmem:[%s506 + $0x1c] sm:$0xf]
        %v1420 = vld [vmem:[%s506 + $0x20] sm:$0xf]
        %v1421 = vld [vmem:[%s506 + $0x24] sm:$0xf]
        %v1422 = vld [vmem:[%s506 + $0x28] sm:$0xf]
        %v1423 = vld [vmem:[%s506 + $0x2c] sm:$0xf]
        %v1424 = vld [vmem:[%s506 + $0x30] sm:$0xf]
        %v1425 = vld [vmem:[%s506 + $0x34] sm:$0xf]
        %v1426 = vld [vmem:[%s506 + $0x38] sm:$0xf]
        %v1427 = vld [vmem:[%s506 + $0x3c] sm:$0xf]
        %v1428 = vld [vmem:[%s506 + $0x40] sm:$0xf]
        %v1429 = vld [vmem:[%s506 + $0x44] sm:$0xf]
        %v1430 = vld [vmem:[%s506 + $0x48] sm:$0xf]
        %v1431 = vld [vmem:[%s506 + $0x4c] sm:$0xf]
        %v1432 = vld [vmem:[%s506 + $0x50] sm:$0xf]
        %v1433 = vld [vmem:[%s506 + $0x54] sm:$0xf]
        %v1434 = vld [vmem:[%s506 + $0x58] sm:$0xf]
        %v1435 = vld [vmem:[%s506 + $0x5c] sm:$0xf]
        %v1436 = vld [vmem:[%s506 + $0x60] sm:$0xf]
        %v1437 = vld [vmem:[%s506 + $0x64] sm:$0xf]
        %v1438 = vld [vmem:[%s506 + $0x68] sm:$0xf]
        %v1439 = vld [vmem:[%s506 + $0x6c] sm:$0xf]
        %v1440 = vld [vmem:[%s506 + $0x70] sm:$0xf]
        %v1441 = vld [vmem:[%s506 + $0x74] sm:$0xf]
        %v1442 = vld [vmem:[%s506 + $0x78] sm:$0xf]
        %v1443 = vld [vmem:[%s506 + $0x7c] sm:$0xf]
        %v1444 = vld [vmem:[%s506 + $0x80] sm:$0xf]
        %v1445 = vld [vmem:[%s506 + $0x84] sm:$0xf]
        %v1446 = vld [vmem:[%s506 + $0x88] sm:$0xf]
        %v1447 = vld [vmem:[%s506 + $0x8c] sm:$0xf]
        %v1448 = vld [vmem:[%s506 + $0x90] sm:$0x1]
        %v1450 = vshrl.u32 %v1414, 16
        %v1452 = vrot.slane %v1450, 4
        %v1453 = vshll.u32 %v1414, 16
        %v1455 = vrot.slane %v1453, 5
        %v1456 = vor.u32 %v1452, %v1455
        %v1457 = vrot.slane %v1456, 4
        %v1459 = vshll.u32 %v1415, 16
        %v1461 = vrot.slane %v1459, 5
        %v1462 = vsel %vm619, %v1457, %v1461
        %v1463 = vshrl.u32 %v1415, 16
        %v1465 = vrot.slane %v1463, 4
        %v1466 = vor.u32 %v1465, %v1461
        %v1467 = vrot.slane %v1466, 4
        %v1469 = vshll.u32 %v1416, 16
        %v1471 = vrot.slane %v1469, 5
        %v1472 = vsel %vm619, %v1467, %v1471
        %v1473 = vshrl.u32 %v1416, 16
        %v1475 = vrot.slane %v1473, 4
        %v1476 = vor.u32 %v1475, %v1471
        %v1477 = vrot.slane %v1476, 4
        %v1479 = vshll.u32 %v1417, 16
        %v1481 = vrot.slane %v1479, 5
        %v1482 = vsel %vm619, %v1477, %v1481
        %v1483 = vshrl.u32 %v1417, 16
        %v1485 = vrot.slane %v1483, 4
        %v1486 = vor.u32 %v1485, %v1481
        %v1487 = vrot.slane %v1486, 4
        %v1489 = vshll.u32 %v1418, 16
        %v1491 = vrot.slane %v1489, 5
        %v1492 = vsel %vm619, %v1487, %v1491
        %v1493 = vshrl.u32 %v1418, 16
        %v1495 = vrot.slane %v1493, 4
        %v1496 = vor.u32 %v1495, %v1491
        %v1497 = vrot.slane %v1496, 4
        %v1499 = vshll.u32 %v1419, 16
        %v1501 = vrot.slane %v1499, 5
        %v1502 = vsel %vm619, %v1497, %v1501
        %v1503 = vshrl.u32 %v1419, 16
        %v1505 = vrot.slane %v1503, 4
        %v1506 = vor.u32 %v1505, %v1501
        %v1507 = vrot.slane %v1506, 4
        %v1509 = vshll.u32 %v1420, 16
        %v1511 = vrot.slane %v1509, 5
        %v1512 = vsel %vm619, %v1507, %v1511
        %v1513 = vshrl.u32 %v1420, 16
        %v1515 = vrot.slane %v1513, 4
        %v1516 = vor.u32 %v1515, %v1511
        %v1517 = vrot.slane %v1516, 4
        %v1519 = vshll.u32 %v1421, 16
        %v1521 = vrot.slane %v1519, 5
        %v1522 = vsel %vm619, %v1517, %v1521
        %v1523 = vshrl.u32 %v1421, 16
        %v1525 = vrot.slane %v1523, 4
        %v1526 = vor.u32 %v1525, %v1521
        %v1527 = vrot.slane %v1526, 4
        %v1529 = vshll.u32 %v1422, 16
        %v1531 = vrot.slane %v1529, 5
        %v1532 = vsel %vm619, %v1527, %v1531
        %v1533 = vshrl.u32 %v1422, 16
        %v1535 = vrot.slane %v1533, 4
        %v1536 = vor.u32 %v1535, %v1531
        %v1537 = vrot.slane %v1536, 4
        %v1539 = vshll.u32 %v1423, 16
        %v1541 = vrot.slane %v1539, 5
        %v1542 = vsel %vm619, %v1537, %v1541
        %v1543 = vshrl.u32 %v1423, 16
        %v1545 = vrot.slane %v1543, 4
        %v1546 = vor.u32 %v1545, %v1541
        %v1547 = vrot.slane %v1546, 4
        %v1549 = vshll.u32 %v1424, 16
        %v1551 = vrot.slane %v1549, 5
        %v1552 = vsel %vm619, %v1547, %v1551
        %v1553 = vshrl.u32 %v1424, 16
        %v1555 = vrot.slane %v1553, 4
        %v1556 = vor.u32 %v1555, %v1551
        %v1557 = vrot.slane %v1556, 4
        %v1559 = vshll.u32 %v1425, 16
        %v1561 = vrot.slane %v1559, 5
        %v1562 = vsel %vm619, %v1557, %v1561
        %v1563 = vshrl.u32 %v1425, 16
        %v1565 = vrot.slane %v1563, 4
        %v1566 = vor.u32 %v1565, %v1561
        %v1567 = vrot.slane %v1566, 4
        %v1569 = vshll.u32 %v1426, 16
        %v1571 = vrot.slane %v1569, 5
        %v1572 = vsel %vm619, %v1567, %v1571
        %v1573 = vshrl.u32 %v1426, 16
        %v1575 = vrot.slane %v1573, 4
        %v1576 = vor.u32 %v1575, %v1571
        %v1577 = vrot.slane %v1576, 4
        %v1579 = vshll.u32 %v1427, 16
        %v1581 = vrot.slane %v1579, 5
        %v1582 = vsel %vm619, %v1577, %v1581
        %v1583 = vshrl.u32 %v1427, 16
        %v1585 = vrot.slane %v1583, 4
        %v1586 = vor.u32 %v1585, %v1581
        %v1587 = vrot.slane %v1586, 4
        %v1589 = vshll.u32 %v1428, 16
        %v1591 = vrot.slane %v1589, 5
        %v1592 = vsel %vm619, %v1587, %v1591
        %v1593 = vshrl.u32 %v1428, 16
        %v1595 = vrot.slane %v1593, 4
        %v1596 = vor.u32 %v1595, %v1591
        %v1597 = vrot.slane %v1596, 4
        %v1599 = vshll.u32 %v1429, 16
        %v1601 = vrot.slane %v1599, 5
        %v1602 = vsel %vm619, %v1597, %v1601
        %v1603 = vshrl.u32 %v1429, 16
        %v1605 = vrot.slane %v1603, 4
        %v1606 = vor.u32 %v1605, %v1601
        %v1607 = vrot.slane %v1606, 4
        %v1609 = vshll.u32 %v1430, 16
        %v1611 = vrot.slane %v1609, 5
        %v1612 = vsel %vm619, %v1607, %v1611
        %v1613 = vshrl.u32 %v1430, 16
        %v1615 = vrot.slane %v1613, 4
        %v1616 = vor.u32 %v1615, %v1611
        %v1617 = vrot.slane %v1616, 4
        %v1619 = vshll.u32 %v1431, 16
        %v1621 = vrot.slane %v1619, 5
        %v1622 = vsel %vm619, %v1617, %v1621
        %v1623 = vshrl.u32 %v1431, 16
        %v1625 = vrot.slane %v1623, 4
        %v1626 = vor.u32 %v1625, %v1621
        %v1627 = vrot.slane %v1626, 4
        %v1629 = vshll.u32 %v1432, 16
        %v1631 = vrot.slane %v1629, 5
        %v1632 = vsel %vm619, %v1627, %v1631
        %v1633 = vshrl.u32 %v1432, 16
        %v1635 = vrot.slane %v1633, 4
        %v1636 = vor.u32 %v1635, %v1631
        %v1637 = vrot.slane %v1636, 4
        %v1639 = vshll.u32 %v1433, 16
        %v1641 = vrot.slane %v1639, 5
        %v1642 = vsel %vm619, %v1637, %v1641
        %v1643 = vshrl.u32 %v1433, 16
        %v1645 = vrot.slane %v1643, 4
        %v1646 = vor.u32 %v1645, %v1641
        %v1647 = vrot.slane %v1646, 4
        %v1649 = vshll.u32 %v1434, 16
        %v1651 = vrot.slane %v1649, 5
        %v1652 = vsel %vm619, %v1647, %v1651
        %v1653 = vshrl.u32 %v1434, 16
        %v1655 = vrot.slane %v1653, 4
        %v1656 = vor.u32 %v1655, %v1651
        %v1657 = vrot.slane %v1656, 4
        %v1659 = vshll.u32 %v1435, 16
        %v1661 = vrot.slane %v1659, 5
        %v1662 = vsel %vm619, %v1657, %v1661
        %v1663 = vshrl.u32 %v1435, 16
        %v1665 = vrot.slane %v1663, 4
        %v1666 = vor.u32 %v1665, %v1661
        %v1667 = vrot.slane %v1666, 4
        %v1669 = vshll.u32 %v1436, 16
        %v1671 = vrot.slane %v1669, 5
        %v1672 = vsel %vm619, %v1667, %v1671
        %v1673 = vshrl.u32 %v1436, 16
        %v1675 = vrot.slane %v1673, 4
        %v1676 = vor.u32 %v1675, %v1671
        %v1677 = vrot.slane %v1676, 4
        %v1679 = vshll.u32 %v1437, 16
        %v1681 = vrot.slane %v1679, 5
        %v1682 = vsel %vm619, %v1677, %v1681
        %v1683 = vshrl.u32 %v1437, 16
        %v1685 = vrot.slane %v1683, 4
        %v1686 = vor.u32 %v1685, %v1681
        %v1687 = vrot.slane %v1686, 4
        %v1689 = vshll.u32 %v1438, 16
        %v1691 = vrot.slane %v1689, 5
        %v1692 = vsel %vm619, %v1687, %v1691
        %v1693 = vshrl.u32 %v1438, 16
        %v1695 = vrot.slane %v1693, 4
        %v1696 = vor.u32 %v1695, %v1691
        %v1697 = vrot.slane %v1696, 4
        %v1699 = vshll.u32 %v1439, 16
        %v1701 = vrot.slane %v1699, 5
        %v1702 = vsel %vm619, %v1697, %v1701
        %v1703 = vshrl.u32 %v1439, 16
        %v1705 = vrot.slane %v1703, 4
        %v1706 = vor.u32 %v1705, %v1701
        %v1707 = vrot.slane %v1706, 4
        %v1709 = vshll.u32 %v1440, 16
        %v1711 = vrot.slane %v1709, 5
        %v1712 = vsel %vm619, %v1707, %v1711
        %v1713 = vshrl.u32 %v1440, 16
        %v1715 = vrot.slane %v1713, 4
        %v1716 = vor.u32 %v1715, %v1711
        %v1717 = vrot.slane %v1716, 4
        %v1719 = vshll.u32 %v1441, 16
        %v1721 = vrot.slane %v1719, 5
        %v1722 = vsel %vm619, %v1717, %v1721
        %v1723 = vshrl.u32 %v1441, 16
        %v1725 = vrot.slane %v1723, 4
        %v1726 = vor.u32 %v1725, %v1721
        %v1727 = vrot.slane %v1726, 4
        %v1729 = vshll.u32 %v1442, 16
        %v1731 = vrot.slane %v1729, 5
        %v1732 = vsel %vm619, %v1727, %v1731
        %v1733 = vshrl.u32 %v1442, 16
        %v1735 = vrot.slane %v1733, 4
        %v1736 = vor.u32 %v1735, %v1731
        %v1737 = vrot.slane %v1736, 4
        %v1739 = vshll.u32 %v1443, 16
        %v1741 = vrot.slane %v1739, 5
        %v1742 = vsel %vm619, %v1737, %v1741
        %v1743 = vshrl.u32 %v1443, 16
        %v1745 = vrot.slane %v1743, 4
        %v1746 = vor.u32 %v1745, %v1741
        %v1747 = vrot.slane %v1746, 4
        %v1749 = vshll.u32 %v1444, 16
        %v1751 = vrot.slane %v1749, 5
        %v1752 = vsel %vm619, %v1747, %v1751
        %v1753 = vshrl.u32 %v1444, 16
        %v1755 = vrot.slane %v1753, 4
        %v1756 = vor.u32 %v1755, %v1751
        %v1757 = vrot.slane %v1756, 4
        %v1759 = vshll.u32 %v1445, 16
        %v1761 = vrot.slane %v1759, 5
        %v1762 = vsel %vm619, %v1757, %v1761
        %v1763 = vshrl.u32 %v1445, 16
        %v1765 = vrot.slane %v1763, 4
        %v1766 = vor.u32 %v1765, %v1761
        %v1767 = vrot.slane %v1766, 4
        %v1769 = vshll.u32 %v1446, 16
        %v1771 = vrot.slane %v1769, 5
        %v1772 = vsel %vm619, %v1767, %v1771
        %v1773 = vshrl.u32 %v1446, 16
        %v1775 = vrot.slane %v1773, 4
        %v1776 = vor.u32 %v1775, %v1771
        %v1777 = vrot.slane %v1776, 4
        %v1779 = vshll.u32 %v1447, 16
        %v1781 = vrot.slane %v1779, 5
        %v1782 = vsel %vm619, %v1777, %v1781
        %v1783 = vshrl.u32 %v1447, 16
        %v1785 = vrot.slane %v1783, 4
        %v1786 = vor.u32 %v1785, %v1781
        %v1787 = vrot.slane %v1786, 4
        %v1789 = vshll.u32 %v1448, 16
        %v1791 = vrot.slane %v1789, 5
        %v1792 = vsel %vm619, %v1787, %v1791
        %1793 = vrot.lane.b32.xlu0 %v1462, 24
        %v1794 = vpop.permute.xlu0 %1793
        %1795 = vrot.lane.b32.xlu0 %v1472, 24
        %v1796 = vpop.permute.xlu0 %1795
        %1797 = vrot.lane.b32.xlu0 %v1482, 24
        %v1798 = vpop.permute.xlu0 %1797
        %1799 = vrot.lane.b32.xlu0 %v1492, 24
        %v1800 = vpop.permute.xlu0 %1799
        %1801 = vrot.lane.b32.xlu0 %v1502, 24
        %v1802 = vpop.permute.xlu0 %1801
        %1803 = vrot.lane.b32.xlu0 %v1512, 24
        %v1804 = vpop.permute.xlu0 %1803
        %1805 = vrot.lane.b32.xlu0 %v1522, 24
        %v1806 = vpop.permute.xlu0 %1805
        %1807 = vrot.lane.b32.xlu0 %v1532, 24
        %v1808 = vpop.permute.xlu0 %1807
        %1809 = vrot.lane.b32.xlu0 %v1542, 24
        %v1810 = vpop.permute.xlu0 %1809
        %1811 = vrot.lane.b32.xlu0 %v1552, 24
        %v1812 = vpop.permute.xlu0 %1811
        %1813 = vrot.lane.b32.xlu0 %v1562, 24
        %v1814 = vpop.permute.xlu0 %1813
        %1815 = vrot.lane.b32.xlu0 %v1572, 24
        %v1816 = vpop.permute.xlu0 %1815
        %1817 = vrot.lane.b32.xlu0 %v1582, 24
        %v1818 = vpop.permute.xlu0 %1817
        %1819 = vrot.lane.b32.xlu0 %v1592, 24
        %v1820 = vpop.permute.xlu0 %1819
        %1821 = vrot.lane.b32.xlu0 %v1602, 24
        %v1822 = vpop.permute.xlu0 %1821
        %1823 = vrot.lane.b32.xlu0 %v1612, 24
        %v1824 = vpop.permute.xlu0 %1823
        %1825 = vrot.lane.b32.xlu0 %v1622, 24
        %v1826 = vpop.permute.xlu0 %1825
        %1827 = vrot.lane.b32.xlu0 %v1632, 24
        %v1828 = vpop.permute.xlu0 %1827
        %1829 = vrot.lane.b32.xlu0 %v1642, 24
        %v1830 = vpop.permute.xlu0 %1829
        %1831 = vrot.lane.b32.xlu0 %v1652, 24
        %v1832 = vpop.permute.xlu0 %1831
        %1833 = vrot.lane.b32.xlu0 %v1662, 24
        %v1834 = vpop.permute.xlu0 %1833
        %1835 = vrot.lane.b32.xlu0 %v1672, 24
        %v1836 = vpop.permute.xlu0 %1835
        %1837 = vrot.lane.b32.xlu0 %v1682, 24
        %v1838 = vpop.permute.xlu0 %1837
        %1839 = vrot.lane.b32.xlu0 %v1692, 24
        %v1840 = vpop.permute.xlu0 %1839
        %1841 = vrot.lane.b32.xlu0 %v1702, 24
        %v1842 = vpop.permute.xlu0 %1841
        %1843 = vrot.lane.b32.xlu0 %v1712, 24
        %v1844 = vpop.permute.xlu0 %1843
        %1845 = vrot.lane.b32.xlu0 %v1722, 24
        %v1846 = vpop.permute.xlu0 %1845
        %1847 = vrot.lane.b32.xlu0 %v1732, 24
        %v1848 = vpop.permute.xlu0 %1847
        %1849 = vrot.lane.b32.xlu0 %v1742, 24
        %v1850 = vpop.permute.xlu0 %1849
        %1851 = vrot.lane.b32.xlu0 %v1752, 24
        %v1852 = vpop.permute.xlu0 %1851
        %1853 = vrot.lane.b32.xlu0 %v1762, 24
        %v1854 = vpop.permute.xlu0 %1853
        %1855 = vrot.lane.b32.xlu0 %v1772, 24
        %v1856 = vpop.permute.xlu0 %1855
        %1857 = vrot.lane.b32.xlu0 %v1782, 24
        %v1858 = vpop.permute.xlu0 %1857
        %1859 = vrot.lane.b32.xlu0 %v1792, 24
        %v1860 = vpop.permute.xlu0 %1859
        %vm1895 = vcmask 257216
        %1896 = vst.msk [vmem:[#allocation2] sm:$0xf] %vm1895, %v1794
        %1897 = vst.msk [vmem:[#allocation2 + $0x4] sm:$0xf] %vm1895, %v1796
        %1898 = vst.msk [vmem:[#allocation2 + $0x8] sm:$0xf] %vm1895, %v1798
        %1899 = vst.msk [vmem:[#allocation2 + $0xc] sm:$0xf] %vm1895, %v1800
        %1900 = vst.msk [vmem:[#allocation2 + $0x10] sm:$0xf] %vm1895, %v1802
        %1901 = vst.msk [vmem:[#allocation2 + $0x14] sm:$0xf] %vm1895, %v1804
        %1902 = vst.msk [vmem:[#allocation2 + $0x18] sm:$0xf] %vm1895, %v1806
        %1903 = vst.msk [vmem:[#allocation2 + $0x1c] sm:$0xf] %vm1895, %v1808
        %1904 = vst.msk [vmem:[#allocation2 + $0x20] sm:$0xf] %vm1895, %v1810
        %1905 = vst.msk [vmem:[#allocation2 + $0x24] sm:$0xf] %vm1895, %v1812
        %1906 = vst.msk [vmem:[#allocation2 + $0x28] sm:$0xf] %vm1895, %v1814
        %1907 = vst.msk [vmem:[#allocation2 + $0x2c] sm:$0xf] %vm1895, %v1816
        %1908 = vst.msk [vmem:[#allocation2 + $0x30] sm:$0xf] %vm1895, %v1818
        %1909 = vst.msk [vmem:[#allocation2 + $0x34] sm:$0xf] %vm1895, %v1820
        %1910 = vst.msk [vmem:[#allocation2 + $0x38] sm:$0xf] %vm1895, %v1822
        %1911 = vst.msk [vmem:[#allocation2 + $0x3c] sm:$0xf] %vm1895, %v1824
        %1912 = vst.msk [vmem:[#allocation2 + $0x40] sm:$0xf] %vm1895, %v1826
        %1913 = vst.msk [vmem:[#allocation2 + $0x44] sm:$0xf] %vm1895, %v1828
        %1914 = vst.msk [vmem:[#allocation2 + $0x48] sm:$0xf] %vm1895, %v1830
        %1915 = vst.msk [vmem:[#allocation2 + $0x4c] sm:$0xf] %vm1895, %v1832
        %1916 = vst.msk [vmem:[#allocation2 + $0x50] sm:$0xf] %vm1895, %v1834
        %1917 = vst.msk [vmem:[#allocation2 + $0x54] sm:$0xf] %vm1895, %v1836
        %1918 = vst.msk [vmem:[#allocation2 + $0x58] sm:$0xf] %vm1895, %v1838
        %1919 = vst.msk [vmem:[#allocation2 + $0x5c] sm:$0xf] %vm1895, %v1840
        %1920 = vst.msk [vmem:[#allocation2 + $0x60] sm:$0xf] %vm1895, %v1842
        %1921 = vst.msk [vmem:[#allocation2 + $0x64] sm:$0xf] %vm1895, %v1844
        %1922 = vst.msk [vmem:[#allocation2 + $0x68] sm:$0xf] %vm1895, %v1846
        %1923 = vst.msk [vmem:[#allocation2 + $0x6c] sm:$0xf] %vm1895, %v1848
        %1924 = vst.msk [vmem:[#allocation2 + $0x70] sm:$0xf] %vm1895, %v1850
        %1925 = vst.msk [vmem:[#allocation2 + $0x74] sm:$0xf] %vm1895, %v1852
        %1926 = vst.msk [vmem:[#allocation2 + $0x78] sm:$0xf] %vm1895, %v1854
        %1927 = vst.msk [vmem:[#allocation2 + $0x7c] sm:$0xf] %vm1895, %v1856
        %1928 = vst.msk [vmem:[#allocation2 + $0x80] sm:$0xf] %vm1895, %v1858
        %1929 = vst.msk [vmem:[#allocation2 + $0x84] sm:$0xf] %vm1895, %v1860
        %v1930 = vld [vmem:[%s506 + $0x8] sm:$0xe]
        %v1931 = vld [vmem:[%s506 + $0xc] sm:$0xf]
        %v1932 = vld [vmem:[%s506 + $0x10] sm:$0xf]
        %v1933 = vld [vmem:[%s506 + $0x14] sm:$0xf]
        %v1934 = vld [vmem:[%s506 + $0x18] sm:$0xf]
        %v1935 = vld [vmem:[%s506 + $0x1c] sm:$0xf]
        %v1936 = vld [vmem:[%s506 + $0x20] sm:$0xf]
        %v1937 = vld [vmem:[%s506 + $0x24] sm:$0xf]
        %v1938 = vld [vmem:[%s506 + $0x28] sm:$0xf]
        %v1939 = vld [vmem:[%s506 + $0x2c] sm:$0xf]
        %v1940 = vld [vmem:[%s506 + $0x30] sm:$0xf]
        %v1941 = vld [vmem:[%s506 + $0x34] sm:$0xf]
        %v1942 = vld [vmem:[%s506 + $0x38] sm:$0xf]
        %v1943 = vld [vmem:[%s506 + $0x3c] sm:$0xf]
        %v1944 = vld [vmem:[%s506 + $0x40] sm:$0xf]
        %v1945 = vld [vmem:[%s506 + $0x44] sm:$0xf]
        %v1946 = vld [vmem:[%s506 + $0x48] sm:$0xf]
        %v1947 = vld [vmem:[%s506 + $0x4c] sm:$0xf]
        %v1948 = vld [vmem:[%s506 + $0x50] sm:$0xf]
        %v1949 = vld [vmem:[%s506 + $0x54] sm:$0xf]
        %v1950 = vld [vmem:[%s506 + $0x58] sm:$0xf]
        %v1951 = vld [vmem:[%s506 + $0x5c] sm:$0xf]
        %v1952 = vld [vmem:[%s506 + $0x60] sm:$0xf]
        %v1953 = vld [vmem:[%s506 + $0x64] sm:$0xf]
        %v1954 = vld [vmem:[%s506 + $0x68] sm:$0xf]
        %v1955 = vld [vmem:[%s506 + $0x6c] sm:$0xf]
        %v1956 = vld [vmem:[%s506 + $0x70] sm:$0xf]
        %v1957 = vld [vmem:[%s506 + $0x74] sm:$0xf]
        %v1958 = vld [vmem:[%s506 + $0x78] sm:$0xf]
        %v1959 = vld [vmem:[%s506 + $0x7c] sm:$0xf]
        %v1960 = vld [vmem:[%s506 + $0x80] sm:$0xf]
        %v1961 = vld [vmem:[%s506 + $0x84] sm:$0xf]
        %v1962 = vld [vmem:[%s506 + $0x88] sm:$0xf]
        %v1963 = vld [vmem:[%s506 + $0x8c] sm:$0xf]
        %v1964 = vld [vmem:[%s506 + $0x90] sm:$0x1]
        %v2000 = vrot.slane %v1930, 5
        %v2001 = vrot.slane %v2000, 4
        %v2002 = vrot.slane %v1931, 5
        %v2003 = vsel %vm1173, %v2001, %v2002
        %v2004 = vrot.slane %v2002, 4
        %v2005 = vrot.slane %v1932, 5
        %v2006 = vsel %vm1173, %v2004, %v2005
        %v2007 = vrot.slane %v2005, 4
        %v2008 = vrot.slane %v1933, 5
        %v2009 = vsel %vm1173, %v2007, %v2008
        %v2010 = vrot.slane %v2008, 4
        %v2011 = vrot.slane %v1934, 5
        %v2012 = vsel %vm1173, %v2010, %v2011
        %v2013 = vrot.slane %v2011, 4
        %v2014 = vrot.slane %v1935, 5
        %v2015 = vsel %vm1173, %v2013, %v2014
        %v2016 = vrot.slane %v2014, 4
        %v2017 = vrot.slane %v1936, 5
        %v2018 = vsel %vm1173, %v2016, %v2017
        %v2019 = vrot.slane %v2017, 4
        %v2020 = vrot.slane %v1937, 5
        %v2021 = vsel %vm1173, %v2019, %v2020
        %v2022 = vrot.slane %v2020, 4
        %v2023 = vrot.slane %v1938, 5
        %v2024 = vsel %vm1173, %v2022, %v2023
        %v2025 = vrot.slane %v2023, 4
        %v2026 = vrot.slane %v1939, 5
        %v2027 = vsel %vm1173, %v2025, %v2026
        %v2028 = vrot.slane %v2026, 4
        %v2029 = vrot.slane %v1940, 5
        %v2030 = vsel %vm1173, %v2028, %v2029
        %v2031 = vrot.slane %v2029, 4
        %v2032 = vrot.slane %v1941, 5
        %v2033 = vsel %vm1173, %v2031, %v2032
        %v2034 = vrot.slane %v2032, 4
        %v2035 = vrot.slane %v1942, 5
        %v2036 = vsel %vm1173, %v2034, %v2035
        %v2037 = vrot.slane %v2035, 4
        %v2038 = vrot.slane %v1943, 5
        %v2039 = vsel %vm1173, %v2037, %v2038
        %v2040 = vrot.slane %v2038, 4
        %v2041 = vrot.slane %v1944, 5
        %v2042 = vsel %vm1173, %v2040, %v2041
        %v2043 = vrot.slane %v2041, 4
        %v2044 = vrot.slane %v1945, 5
        %v2045 = vsel %vm1173, %v2043, %v2044
        %v2046 = vrot.slane %v2044, 4
        %v2047 = vrot.slane %v1946, 5
        %v2048 = vsel %vm1173, %v2046, %v2047
        %v2049 = vrot.slane %v2047, 4
        %v2050 = vrot.slane %v1947, 5
        %v2051 = vsel %vm1173, %v2049, %v2050
        %v2052 = vrot.slane %v2050, 4
        %v2053 = vrot.slane %v1948, 5
        %v2054 = vsel %vm1173, %v2052, %v2053
        %v2055 = vrot.slane %v2053, 4
        %v2056 = vrot.slane %v1949, 5
        %v2057 = vsel %vm1173, %v2055, %v2056
        %v2058 = vrot.slane %v2056, 4
        %v2059 = vrot.slane %v1950, 5
        %v2060 = vsel %vm1173, %v2058, %v2059
        %v2061 = vrot.slane %v2059, 4
        %v2062 = vrot.slane %v1951, 5
        %v2063 = vsel %vm1173, %v2061, %v2062
        %v2064 = vrot.slane %v2062, 4
        %v2065 = vrot.slane %v1952, 5
        %v2066 = vsel %vm1173, %v2064, %v2065
        %v2067 = vrot.slane %v2065, 4
        %v2068 = vrot.slane %v1953, 5
        %v2069 = vsel %vm1173, %v2067, %v2068
        %v2070 = vrot.slane %v2068, 4
        %v2071 = vrot.slane %v1954, 5
        %v2072 = vsel %vm1173, %v2070, %v2071
        %v2073 = vrot.slane %v2071, 4
        %v2074 = vrot.slane %v1955, 5
        %v2075 = vsel %vm1173, %v2073, %v2074
        %v2076 = vrot.slane %v2074, 4
        %v2077 = vrot.slane %v1956, 5
        %v2078 = vsel %vm1173, %v2076, %v2077
        %v2079 = vrot.slane %v2077, 4
        %v2080 = vrot.slane %v1957, 5
        %v2081 = vsel %vm1173, %v2079, %v2080
        %v2082 = vrot.slane %v2080, 4
        %v2083 = vrot.slane %v1958, 5
        %v2084 = vsel %vm1173, %v2082, %v2083
        %v2085 = vrot.slane %v2083, 4
        %v2086 = vrot.slane %v1959, 5
        %v2087 = vsel %vm1173, %v2085, %v2086
        %v2088 = vrot.slane %v2086, 4
        %v2089 = vrot.slane %v1960, 5
        %v2090 = vsel %vm1173, %v2088, %v2089
        %v2091 = vrot.slane %v2089, 4
        %v2092 = vrot.slane %v1961, 5
        %v2093 = vsel %vm1173, %v2091, %v2092
        %v2094 = vrot.slane %v2092, 4
        %v2095 = vrot.slane %v1962, 5
        %v2096 = vsel %vm1173, %v2094, %v2095
        %v2097 = vrot.slane %v2095, 4
        %v2098 = vrot.slane %v1963, 5
        %v2099 = vsel %vm1173, %v2097, %v2098
        %v2100 = vrot.slane %v2098, 4
        %v2101 = vrot.slane %v1964, 5
        %v2102 = vsel %vm1173, %v2100, %v2101
        %2103 = vrot.lane.b32.xlu0 %v2003, 32
        %v2104 = vpop.permute.xlu0 %2103
        %2105 = vrot.lane.b32.xlu0 %v2006, 32
        %v2106 = vpop.permute.xlu0 %2105
        %2107 = vrot.lane.b32.xlu0 %v2009, 32
        %v2108 = vpop.permute.xlu0 %2107
        %2109 = vrot.lane.b32.xlu0 %v2012, 32
        %v2110 = vpop.permute.xlu0 %2109
        %2111 = vrot.lane.b32.xlu0 %v2015, 32
        %v2112 = vpop.permute.xlu0 %2111
        %2113 = vrot.lane.b32.xlu0 %v2018, 32
        %v2114 = vpop.permute.xlu0 %2113
        %2115 = vrot.lane.b32.xlu0 %v2021, 32
        %v2116 = vpop.permute.xlu0 %2115
        %2117 = vrot.lane.b32.xlu0 %v2024, 32
        %v2118 = vpop.permute.xlu0 %2117
        %2119 = vrot.lane.b32.xlu0 %v2027, 32
        %v2120 = vpop.permute.xlu0 %2119
        %2121 = vrot.lane.b32.xlu0 %v2030, 32
        %v2122 = vpop.permute.xlu0 %2121
        %2123 = vrot.lane.b32.xlu0 %v2033, 32
        %v2124 = vpop.permute.xlu0 %2123
        %2125 = vrot.lane.b32.xlu0 %v2036, 32
        %v2126 = vpop.permute.xlu0 %2125
        %2127 = vrot.lane.b32.xlu0 %v2039, 32
        %v2128 = vpop.permute.xlu0 %2127
        %2129 = vrot.lane.b32.xlu0 %v2042, 32
        %v2130 = vpop.permute.xlu0 %2129
        %2131 = vrot.lane.b32.xlu0 %v2045, 32
        %v2132 = vpop.permute.xlu0 %2131
        %2133 = vrot.lane.b32.xlu0 %v2048, 32
        %v2134 = vpop.permute.xlu0 %2133
        %2135 = vrot.lane.b32.xlu0 %v2051, 32
        %v2136 = vpop.permute.xlu0 %2135
        %2137 = vrot.lane.b32.xlu0 %v2054, 32
        %v2138 = vpop.permute.xlu0 %2137
        %2139 = vrot.lane.b32.xlu0 %v2057, 32
        %v2140 = vpop.permute.xlu0 %2139
        %2141 = vrot.lane.b32.xlu0 %v2060, 32
        %v2142 = vpop.permute.xlu0 %2141
        %2143 = vrot.lane.b32.xlu0 %v2063, 32
        %v2144 = vpop.permute.xlu0 %2143
        %2145 = vrot.lane.b32.xlu0 %v2066, 32
        %v2146 = vpop.permute.xlu0 %2145
        %2147 = vrot.lane.b32.xlu0 %v2069, 32
        %v2148 = vpop.permute.xlu0 %2147
        %2149 = vrot.lane.b32.xlu0 %v2072, 32
        %v2150 = vpop.permute.xlu0 %2149
        %2151 = vrot.lane.b32.xlu0 %v2075, 32
        %v2152 = vpop.permute.xlu0 %2151
        %2153 = vrot.lane.b32.xlu0 %v2078, 32
        %v2154 = vpop.permute.xlu0 %2153
        %2155 = vrot.lane.b32.xlu0 %v2081, 32
        %v2156 = vpop.permute.xlu0 %2155
        %2157 = vrot.lane.b32.xlu0 %v2084, 32
        %v2158 = vpop.permute.xlu0 %2157
        %2159 = vrot.lane.b32.xlu0 %v2087, 32
        %v2160 = vpop.permute.xlu0 %2159
        %2161 = vrot.lane.b32.xlu0 %v2090, 32
        %v2162 = vpop.permute.xlu0 %2161
        %2163 = vrot.lane.b32.xlu0 %v2093, 32
        %v2164 = vpop.permute.xlu0 %2163
        %2165 = vrot.lane.b32.xlu0 %v2096, 32
        %v2166 = vpop.permute.xlu0 %2165
        %2167 = vrot.lane.b32.xlu0 %v2099, 32
        %v2168 = vpop.permute.xlu0 %2167
        %2169 = vrot.lane.b32.xlu0 %v2102, 32
        %v2170 = vpop.permute.xlu0 %2169
        %vm2205 = vcmask 322816
        %2206 = vst.msk [vmem:[#allocation2] sm:$0xf] %vm2205, %v2104
        %2207 = vst.msk [vmem:[#allocation2 + $0x4] sm:$0xf] %vm2205, %v2106
        %2208 = vst.msk [vmem:[#allocation2 + $0x8] sm:$0xf] %vm2205, %v2108
        %2209 = vst.msk [vmem:[#allocation2 + $0xc] sm:$0xf] %vm2205, %v2110
        %2210 = vst.msk [vmem:[#allocation2 + $0x10] sm:$0xf] %vm2205, %v2112
        %2211 = vst.msk [vmem:[#allocation2 + $0x14] sm:$0xf] %vm2205, %v2114
        %2212 = vst.msk [vmem:[#allocation2 + $0x18] sm:$0xf] %vm2205, %v2116
        %2213 = vst.msk [vmem:[#allocation2 + $0x1c] sm:$0xf] %vm2205, %v2118
        %2214 = vst.msk [vmem:[#allocation2 + $0x20] sm:$0xf] %vm2205, %v2120
        %2215 = vst.msk [vmem:[#allocation2 + $0x24] sm:$0xf] %vm2205, %v2122
        %2216 = vst.msk [vmem:[#allocation2 + $0x28] sm:$0xf] %vm2205, %v2124
        %2217 = vst.msk [vmem:[#allocation2 + $0x2c] sm:$0xf] %vm2205, %v2126
        %2218 = vst.msk [vmem:[#allocation2 + $0x30] sm:$0xf] %vm2205, %v2128
        %2219 = vst.msk [vmem:[#allocation2 + $0x34] sm:$0xf] %vm2205, %v2130
        %2220 = vst.msk [vmem:[#allocation2 + $0x38] sm:$0xf] %vm2205, %v2132
        %2221 = vst.msk [vmem:[#allocation2 + $0x3c] sm:$0xf] %vm2205, %v2134
        %2222 = vst.msk [vmem:[#allocation2 + $0x40] sm:$0xf] %vm2205, %v2136
        %2223 = vst.msk [vmem:[#allocation2 + $0x44] sm:$0xf] %vm2205, %v2138
        %2224 = vst.msk [vmem:[#allocation2 + $0x48] sm:$0xf] %vm2205, %v2140
        %2225 = vst.msk [vmem:[#allocation2 + $0x4c] sm:$0xf] %vm2205, %v2142
        %2226 = vst.msk [vmem:[#allocation2 + $0x50] sm:$0xf] %vm2205, %v2144
        %2227 = vst.msk [vmem:[#allocation2 + $0x54] sm:$0xf] %vm2205, %v2146
        %2228 = vst.msk [vmem:[#allocation2 + $0x58] sm:$0xf] %vm2205, %v2148
        %2229 = vst.msk [vmem:[#allocation2 + $0x5c] sm:$0xf] %vm2205, %v2150
        %2230 = vst.msk [vmem:[#allocation2 + $0x60] sm:$0xf] %vm2205, %v2152
        %2231 = vst.msk [vmem:[#allocation2 + $0x64] sm:$0xf] %vm2205, %v2154
        %2232 = vst.msk [vmem:[#allocation2 + $0x68] sm:$0xf] %vm2205, %v2156
        %2233 = vst.msk [vmem:[#allocation2 + $0x6c] sm:$0xf] %vm2205, %v2158
        %2234 = vst.msk [vmem:[#allocation2 + $0x70] sm:$0xf] %vm2205, %v2160
        %2235 = vst.msk [vmem:[#allocation2 + $0x74] sm:$0xf] %vm2205, %v2162
        %2236 = vst.msk [vmem:[#allocation2 + $0x78] sm:$0xf] %vm2205, %v2164
        %2237 = vst.msk [vmem:[#allocation2 + $0x7c] sm:$0xf] %vm2205, %v2166
        %2238 = vst.msk [vmem:[#allocation2 + $0x80] sm:$0xf] %vm2205, %v2168
        %2239 = vst.msk [vmem:[#allocation2 + $0x84] sm:$0xf] %vm2205, %v2170
        %v2240 = vld [vmem:[%s506 + $0x8] sm:$0xe]
        %v2241 = vld [vmem:[%s506 + $0xc] sm:$0xf]
        %v2242 = vld [vmem:[%s506 + $0x10] sm:$0xf]
        %v2243 = vld [vmem:[%s506 + $0x14] sm:$0xf]
        %v2244 = vld [vmem:[%s506 + $0x18] sm:$0xf]
        %v2245 = vld [vmem:[%s506 + $0x1c] sm:$0xf]
        %v2246 = vld [vmem:[%s506 + $0x20] sm:$0xf]
        %v2247 = vld [vmem:[%s506 + $0x24] sm:$0xf]
        %v2248 = vld [vmem:[%s506 + $0x28] sm:$0xf]
        %v2249 = vld [vmem:[%s506 + $0x2c] sm:$0xf]
        %v2250 = vld [vmem:[%s506 + $0x30] sm:$0xf]
        %v2251 = vld [vmem:[%s506 + $0x34] sm:$0xf]
        %v2252 = vld [vmem:[%s506 + $0x38] sm:$0xf]
        %v2253 = vld [vmem:[%s506 + $0x3c] sm:$0xf]
        %v2254 = vld [vmem:[%s506 + $0x40] sm:$0xf]
        %v2255 = vld [vmem:[%s506 + $0x44] sm:$0xf]
        %v2256 = vld [vmem:[%s506 + $0x48] sm:$0xf]
        %v2257 = vld [vmem:[%s506 + $0x4c] sm:$0xf]
        %v2258 = vld [vmem:[%s506 + $0x50] sm:$0xf]
        %v2259 = vld [vmem:[%s506 + $0x54] sm:$0xf]
        %v2260 = vld [vmem:[%s506 + $0x58] sm:$0xf]
        %v2261 = vld [vmem:[%s506 + $0x5c] sm:$0xf]
        %v2262 = vld [vmem:[%s506 + $0x60] sm:$0xf]
        %v2263 = vld [vmem:[%s506 + $0x64] sm:$0xf]
        %v2264 = vld [vmem:[%s506 + $0x68] sm:$0xf]
        %v2265 = vld [vmem:[%s506 + $0x6c] sm:$0xf]
        %v2266 = vld [vmem:[%s506 + $0x70] sm:$0xf]
        %v2267 = vld [vmem:[%s506 + $0x74] sm:$0xf]
        %v2268 = vld [vmem:[%s506 + $0x78] sm:$0xf]
        %v2269 = vld [vmem:[%s506 + $0x7c] sm:$0xf]
        %v2270 = vld [vmem:[%s506 + $0x80] sm:$0xf]
        %v2271 = vld [vmem:[%s506 + $0x84] sm:$0xf]
        %v2272 = vld [vmem:[%s506 + $0x88] sm:$0xf]
        %v2273 = vld [vmem:[%s506 + $0x8c] sm:$0xf]
        %v2274 = vld [vmem:[%s506 + $0x90] sm:$0x3]
        %vm2275 = vsmask.f32 2304
        %vm2276 = vsmask.f32 6416
        %vm2277 = vmor %vm2275, %vm2276
        %v2279 = vshrl.u32 %v2240, 16
        %v2281 = vrot.slane %v2279, 5
        %v2282 = vshll.u32 %v2240, 16
        %v2284 = vrot.slane %v2282, 6
        %v2285 = vor.u32 %v2281, %v2284
        %v2286 = vrot.slane %v2285, 4
        %v2288 = vshrl.u32 %v2241, 16
        %v2290 = vrot.slane %v2288, 5
        %v2291 = vshll.u32 %v2241, 16
        %v2293 = vrot.slane %v2291, 6
        %v2294 = vor.u32 %v2290, %v2293
        %v2295 = vsel %vm2277, %v2286, %v2294
        %v2296 = vrot.slane %v2294, 4
        %v2298 = vshrl.u32 %v2242, 16
        %v2300 = vrot.slane %v2298, 5
        %v2301 = vshll.u32 %v2242, 16
        %v2303 = vrot.slane %v2301, 6
        %v2304 = vor.u32 %v2300, %v2303
        %v2305 = vsel %vm2277, %v2296, %v2304
        %v2306 = vrot.slane %v2304, 4
        %v2308 = vshrl.u32 %v2243, 16
        %v2310 = vrot.slane %v2308, 5
        %v2311 = vshll.u32 %v2243, 16
        %v2313 = vrot.slane %v2311, 6
        %v2314 = vor.u32 %v2310, %v2313
        %v2315 = vsel %vm2277, %v2306, %v2314
        %v2316 = vrot.slane %v2314, 4
        %v2318 = vshrl.u32 %v2244, 16
        %v2320 = vrot.slane %v2318, 5
        %v2321 = vshll.u32 %v2244, 16
        %v2323 = vrot.slane %v2321, 6
        %v2324 = vor.u32 %v2320, %v2323
        %v2325 = vsel %vm2277, %v2316, %v2324
        %v2326 = vrot.slane %v2324, 4
        %v2328 = vshrl.u32 %v2245, 16
        %v2330 = vrot.slane %v2328, 5
        %v2331 = vshll.u32 %v2245, 16
        %v2333 = vrot.slane %v2331, 6
        %v2334 = vor.u32 %v2330, %v2333
        %v2335 = vsel %vm2277, %v2326, %v2334
        %v2336 = vrot.slane %v2334, 4
        %v2338 = vshrl.u32 %v2246, 16
        %v2340 = vrot.slane %v2338, 5
        %v2341 = vshll.u32 %v2246, 16
        %v2343 = vrot.slane %v2341, 6
        %v2344 = vor.u32 %v2340, %v2343
        %v2345 = vsel %vm2277, %v2336, %v2344
        %v2346 = vrot.slane %v2344, 4
        %v2348 = vshrl.u32 %v2247, 16
        %v2350 = vrot.slane %v2348, 5
        %v2351 = vshll.u32 %v2247, 16
        %v2353 = vrot.slane %v2351, 6
        %v2354 = vor.u32 %v2350, %v2353
        %v2355 = vsel %vm2277, %v2346, %v2354
        %v2356 = vrot.slane %v2354, 4
        %v2358 = vshrl.u32 %v2248, 16
        %v2360 = vrot.slane %v2358, 5
        %v2361 = vshll.u32 %v2248, 16
        %v2363 = vrot.slane %v2361, 6
        %v2364 = vor.u32 %v2360, %v2363
        %v2365 = vsel %vm2277, %v2356, %v2364
        %v2366 = vrot.slane %v2364, 4
        %v2368 = vshrl.u32 %v2249, 16
        %v2370 = vrot.slane %v2368, 5
        %v2371 = vshll.u32 %v2249, 16
        %v2373 = vrot.slane %v2371, 6
        %v2374 = vor.u32 %v2370, %v2373
        %v2375 = vsel %vm2277, %v2366, %v2374
        %v2376 = vrot.slane %v2374, 4
        %v2378 = vshrl.u32 %v2250, 16
        %v2380 = vrot.slane %v2378, 5
        %v2381 = vshll.u32 %v2250, 16
        %v2383 = vrot.slane %v2381, 6
        %v2384 = vor.u32 %v2380, %v2383
        %v2385 = vsel %vm2277, %v2376, %v2384
        %v2386 = vrot.slane %v2384, 4
        %v2388 = vshrl.u32 %v2251, 16
        %v2390 = vrot.slane %v2388, 5
        %v2391 = vshll.u32 %v2251, 16
        %v2393 = vrot.slane %v2391, 6
        %v2394 = vor.u32 %v2390, %v2393
        %v2395 = vsel %vm2277, %v2386, %v2394
        %v2396 = vrot.slane %v2394, 4
        %v2398 = vshrl.u32 %v2252, 16
        %v2400 = vrot.slane %v2398, 5
        %v2401 = vshll.u32 %v2252, 16
        %v2403 = vrot.slane %v2401, 6
        %v2404 = vor.u32 %v2400, %v2403
        %v2405 = vsel %vm2277, %v2396, %v2404
        %v2406 = vrot.slane %v2404, 4
        %v2408 = vshrl.u32 %v2253, 16
        %v2410 = vrot.slane %v2408, 5
        %v2411 = vshll.u32 %v2253, 16
        %v2413 = vrot.slane %v2411, 6
        %v2414 = vor.u32 %v2410, %v2413
        %v2415 = vsel %vm2277, %v2406, %v2414
        %v2416 = vrot.slane %v2414, 4
        %v2418 = vshrl.u32 %v2254, 16
        %v2420 = vrot.slane %v2418, 5
        %v2421 = vshll.u32 %v2254, 16
        %v2423 = vrot.slane %v2421, 6
        %v2424 = vor.u32 %v2420, %v2423
        %v2425 = vsel %vm2277, %v2416, %v2424
        %v2426 = vrot.slane %v2424, 4
        %v2428 = vshrl.u32 %v2255, 16
        %v2430 = vrot.slane %v2428, 5
        %v2431 = vshll.u32 %v2255, 16
        %v2433 = vrot.slane %v2431, 6
        %v2434 = vor.u32 %v2430, %v2433
        %v2435 = vsel %vm2277, %v2426, %v2434
        %v2436 = vrot.slane %v2434, 4
        %v2438 = vshrl.u32 %v2256, 16
        %v2440 = vrot.slane %v2438, 5
        %v2441 = vshll.u32 %v2256, 16
        %v2443 = vrot.slane %v2441, 6
        %v2444 = vor.u32 %v2440, %v2443
        %v2445 = vsel %vm2277, %v2436, %v2444
        %v2446 = vrot.slane %v2444, 4
        %v2448 = vshrl.u32 %v2257, 16
        %v2450 = vrot.slane %v2448, 5
        %v2451 = vshll.u32 %v2257, 16
        %v2453 = vrot.slane %v2451, 6
        %v2454 = vor.u32 %v2450, %v2453
        %v2455 = vsel %vm2277, %v2446, %v2454
        %v2456 = vrot.slane %v2454, 4
        %v2458 = vshrl.u32 %v2258, 16
        %v2460 = vrot.slane %v2458, 5
        %v2461 = vshll.u32 %v2258, 16
        %v2463 = vrot.slane %v2461, 6
        %v2464 = vor.u32 %v2460, %v2463
        %v2465 = vsel %vm2277, %v2456, %v2464
        %v2466 = vrot.slane %v2464, 4
        %v2468 = vshrl.u32 %v2259, 16
        %v2470 = vrot.slane %v2468, 5
        %v2471 = vshll.u32 %v2259, 16
        %v2473 = vrot.slane %v2471, 6
        %v2474 = vor.u32 %v2470, %v2473
        %v2475 = vsel %vm2277, %v2466, %v2474
        %v2476 = vrot.slane %v2474, 4
        %v2478 = vshrl.u32 %v2260, 16
        %v2480 = vrot.slane %v2478, 5
        %v2481 = vshll.u32 %v2260, 16
        %v2483 = vrot.slane %v2481, 6
        %v2484 = vor.u32 %v2480, %v2483
        %v2485 = vsel %vm2277, %v2476, %v2484
        %v2486 = vrot.slane %v2484, 4
        %v2488 = vshrl.u32 %v2261, 16
        %v2490 = vrot.slane %v2488, 5
        %v2491 = vshll.u32 %v2261, 16
        %v2493 = vrot.slane %v2491, 6
        %v2494 = vor.u32 %v2490, %v2493
        %v2495 = vsel %vm2277, %v2486, %v2494
        %v2496 = vrot.slane %v2494, 4
        %v2498 = vshrl.u32 %v2262, 16
        %v2500 = vrot.slane %v2498, 5
        %v2501 = vshll.u32 %v2262, 16
        %v2503 = vrot.slane %v2501, 6
        %v2504 = vor.u32 %v2500, %v2503
        %v2505 = vsel %vm2277, %v2496, %v2504
        %v2506 = vrot.slane %v2504, 4
        %v2508 = vshrl.u32 %v2263, 16
        %v2510 = vrot.slane %v2508, 5
        %v2511 = vshll.u32 %v2263, 16
        %v2513 = vrot.slane %v2511, 6
        %v2514 = vor.u32 %v2510, %v2513
        %v2515 = vsel %vm2277, %v2506, %v2514
        %v2516 = vrot.slane %v2514, 4
        %v2518 = vshrl.u32 %v2264, 16
        %v2520 = vrot.slane %v2518, 5
        %v2521 = vshll.u32 %v2264, 16
        %v2523 = vrot.slane %v2521, 6
        %v2524 = vor.u32 %v2520, %v2523
        %v2525 = vsel %vm2277, %v2516, %v2524
        %v2526 = vrot.slane %v2524, 4
        %v2528 = vshrl.u32 %v2265, 16
        %v2530 = vrot.slane %v2528, 5
        %v2531 = vshll.u32 %v2265, 16
        %v2533 = vrot.slane %v2531, 6
        %v2534 = vor.u32 %v2530, %v2533
        %v2535 = vsel %vm2277, %v2526, %v2534
        %v2536 = vrot.slane %v2534, 4
        %v2538 = vshrl.u32 %v2266, 16
        %v2540 = vrot.slane %v2538, 5
        %v2541 = vshll.u32 %v2266, 16
        %v2543 = vrot.slane %v2541, 6
        %v2544 = vor.u32 %v2540, %v2543
        %v2545 = vsel %vm2277, %v2536, %v2544
        %v2546 = vrot.slane %v2544, 4
        %v2548 = vshrl.u32 %v2267, 16
        %v2550 = vrot.slane %v2548, 5
        %v2551 = vshll.u32 %v2267, 16
        %v2553 = vrot.slane %v2551, 6
        %v2554 = vor.u32 %v2550, %v2553
        %v2555 = vsel %vm2277, %v2546, %v2554
        %v2556 = vrot.slane %v2554, 4
        %v2558 = vshrl.u32 %v2268, 16
        %v2560 = vrot.slane %v2558, 5
        %v2561 = vshll.u32 %v2268, 16
        %v2563 = vrot.slane %v2561, 6
        %v2564 = vor.u32 %v2560, %v2563
        %v2565 = vsel %vm2277, %v2556, %v2564
        %v2566 = vrot.slane %v2564, 4
        %v2568 = vshrl.u32 %v2269, 16
        %v2570 = vrot.slane %v2568, 5
        %v2571 = vshll.u32 %v2269, 16
        %v2573 = vrot.slane %v2571, 6
        %v2574 = vor.u32 %v2570, %v2573
        %v2575 = vsel %vm2277, %v2566, %v2574
        %v2576 = vrot.slane %v2574, 4
        %v2578 = vshrl.u32 %v2270, 16
        %v2580 = vrot.slane %v2578, 5
        %v2581 = vshll.u32 %v2270, 16
        %v2583 = vrot.slane %v2581, 6
        %v2584 = vor.u32 %v2580, %v2583
        %v2585 = vsel %vm2277, %v2576, %v2584
        %v2586 = vrot.slane %v2584, 4
        %v2588 = vshrl.u32 %v2271, 16
        %v2590 = vrot.slane %v2588, 5
        %v2591 = vshll.u32 %v2271, 16
        %v2593 = vrot.slane %v2591, 6
        %v2594 = vor.u32 %v2590, %v2593
        %v2595 = vsel %vm2277, %v2586, %v2594
        %v2596 = vrot.slane %v2594, 4
        %v2598 = vshrl.u32 %v2272, 16
        %v2600 = vrot.slane %v2598, 5
        %v2601 = vshll.u32 %v2272, 16
        %v2603 = vrot.slane %v2601, 6
        %v2604 = vor.u32 %v2600, %v2603
        %v2605 = vsel %vm2277, %v2596, %v2604
        %v2606 = vrot.slane %v2604, 4
        %v2608 = vshrl.u32 %v2273, 16
        %v2610 = vrot.slane %v2608, 5
        %v2611 = vshll.u32 %v2273, 16
        %v2613 = vrot.slane %v2611, 6
        %v2614 = vor.u32 %v2610, %v2613
        %v2615 = vsel %vm2277, %v2606, %v2614
        %v2616 = vrot.slane %v2614, 4
        %v2618 = vshrl.u32 %v2274, 16
        %v2620 = vrot.slane %v2618, 5
        %v2621 = vshll.u32 %v2274, 16
        %v2623 = vrot.slane %v2621, 6
        %v2624 = vor.u32 %v2620, %v2623
        %v2625 = vsel %vm2277, %v2616, %v2624
        %2626 = vrot.lane.b32.xlu0 %v2295, 40
        %v2627 = vpop.permute.xlu0 %2626
        %2628 = vrot.lane.b32.xlu0 %v2305, 40
        %v2629 = vpop.permute.xlu0 %2628
        %2630 = vrot.lane.b32.xlu0 %v2315, 40
        %v2631 = vpop.permute.xlu0 %2630
        %2632 = vrot.lane.b32.xlu0 %v2325, 40
        %v2633 = vpop.permute.xlu0 %2632
        %2634 = vrot.lane.b32.xlu0 %v2335, 40
        %v2635 = vpop.permute.xlu0 %2634
        %2636 = vrot.lane.b32.xlu0 %v2345, 40
        %v2637 = vpop.permute.xlu0 %2636
        %2638 = vrot.lane.b32.xlu0 %v2355, 40
        %v2639 = vpop.permute.xlu0 %2638
        %2640 = vrot.lane.b32.xlu0 %v2365, 40
        %v2641 = vpop.permute.xlu0 %2640
        %2642 = vrot.lane.b32.xlu0 %v2375, 40
        %v2643 = vpop.permute.xlu0 %2642
        %2644 = vrot.lane.b32.xlu0 %v2385, 40
        %v2645 = vpop.permute.xlu0 %2644
        %2646 = vrot.lane.b32.xlu0 %v2395, 40
        %v2647 = vpop.permute.xlu0 %2646
        %2648 = vrot.lane.b32.xlu0 %v2405, 40
        %v2649 = vpop.permute.xlu0 %2648
        %2650 = vrot.lane.b32.xlu0 %v2415, 40
        %v2651 = vpop.permute.xlu0 %2650
        %2652 = vrot.lane.b32.xlu0 %v2425, 40
        %v2653 = vpop.permute.xlu0 %2652
        %2654 = vrot.lane.b32.xlu0 %v2435, 40
        %v2655 = vpop.permute.xlu0 %2654
        %2656 = vrot.lane.b32.xlu0 %v2445, 40
        %v2657 = vpop.permute.xlu0 %2656
        %2658 = vrot.lane.b32.xlu0 %v2455, 40
        %v2659 = vpop.permute.xlu0 %2658
        %2660 = vrot.lane.b32.xlu0 %v2465, 40
        %v2661 = vpop.permute.xlu0 %2660
        %2662 = vrot.lane.b32.xlu0 %v2475, 40
        %v2663 = vpop.permute.xlu0 %2662
        %2664 = vrot.lane.b32.xlu0 %v2485, 40
        %v2665 = vpop.permute.xlu0 %2664
        %2666 = vrot.lane.b32.xlu0 %v2495, 40
        %v2667 = vpop.permute.xlu0 %2666
        %2668 = vrot.lane.b32.xlu0 %v2505, 40
        %v2669 = vpop.permute.xlu0 %2668
        %2670 = vrot.lane.b32.xlu0 %v2515, 40
        %v2671 = vpop.permute.xlu0 %2670
        %2672 = vrot.lane.b32.xlu0 %v2525, 40
        %v2673 = vpop.permute.xlu0 %2672
        %2674 = vrot.lane.b32.xlu0 %v2535, 40
        %v2675 = vpop.permute.xlu0 %2674
        %2676 = vrot.lane.b32.xlu0 %v2545, 40
        %v2677 = vpop.permute.xlu0 %2676
        %2678 = vrot.lane.b32.xlu0 %v2555, 40
        %v2679 = vpop.permute.xlu0 %2678
        %2680 = vrot.lane.b32.xlu0 %v2565, 40
        %v2681 = vpop.permute.xlu0 %2680
        %2682 = vrot.lane.b32.xlu0 %v2575, 40
        %v2683 = vpop.permute.xlu0 %2682
        %2684 = vrot.lane.b32.xlu0 %v2585, 40
        %v2685 = vpop.permute.xlu0 %2684
        %2686 = vrot.lane.b32.xlu0 %v2595, 40
        %v2687 = vpop.permute.xlu0 %2686
        %2688 = vrot.lane.b32.xlu0 %v2605, 40
        %v2689 = vpop.permute.xlu0 %2688
        %2690 = vrot.lane.b32.xlu0 %v2615, 40
        %v2691 = vpop.permute.xlu0 %2690
        %2692 = vrot.lane.b32.xlu0 %v2625, 40
        %v2693 = vpop.permute.xlu0 %2692
        %vm2728 = vcmask 388416
        %2729 = vst.msk [vmem:[#allocation2] sm:$0xf] %vm2728, %v2627
        %2730 = vst.msk [vmem:[#allocation2 + $0x4] sm:$0xf] %vm2728, %v2629
        %2731 = vst.msk [vmem:[#allocation2 + $0x8] sm:$0xf] %vm2728, %v2631
        %2732 = vst.msk [vmem:[#allocation2 + $0xc] sm:$0xf] %vm2728, %v2633
        %2733 = vst.msk [vmem:[#allocation2 + $0x10] sm:$0xf] %vm2728, %v2635
        %2734 = vst.msk [vmem:[#allocation2 + $0x14] sm:$0xf] %vm2728, %v2637
        %2735 = vst.msk [vmem:[#allocation2 + $0x18] sm:$0xf] %vm2728, %v2639
        %2736 = vst.msk [vmem:[#allocation2 + $0x1c] sm:$0xf] %vm2728, %v2641
        %2737 = vst.msk [vmem:[#allocation2 + $0x20] sm:$0xf] %vm2728, %v2643
        %2738 = vst.msk [vmem:[#allocation2 + $0x24] sm:$0xf] %vm2728, %v2645
        %2739 = vst.msk [vmem:[#allocation2 + $0x28] sm:$0xf] %vm2728, %v2647
        %2740 = vst.msk [vmem:[#allocation2 + $0x2c] sm:$0xf] %vm2728, %v2649
        %2741 = vst.msk [vmem:[#allocation2 + $0x30] sm:$0xf] %vm2728, %v2651
        %2742 = vst.msk [vmem:[#allocation2 + $0x34] sm:$0xf] %vm2728, %v2653
        %2743 = vst.msk [vmem:[#allocation2 + $0x38] sm:$0xf] %vm2728, %v2655
        %2744 = vst.msk [vmem:[#allocation2 + $0x3c] sm:$0xf] %vm2728, %v2657
        %2745 = vst.msk [vmem:[#allocation2 + $0x40] sm:$0xf] %vm2728, %v2659
        %2746 = vst.msk [vmem:[#allocation2 + $0x44] sm:$0xf] %vm2728, %v2661
        %2747 = vst.msk [vmem:[#allocation2 + $0x48] sm:$0xf] %vm2728, %v2663
        %2748 = vst.msk [vmem:[#allocation2 + $0x4c] sm:$0xf] %vm2728, %v2665
        %2749 = vst.msk [vmem:[#allocation2 + $0x50] sm:$0xf] %vm2728, %v2667
        %2750 = vst.msk [vmem:[#allocation2 + $0x54] sm:$0xf] %vm2728, %v2669
        %2751 = vst.msk [vmem:[#allocation2 + $0x58] sm:$0xf] %vm2728, %v2671
        %2752 = vst.msk [vmem:[#allocation2 + $0x5c] sm:$0xf] %vm2728, %v2673
        %2753 = vst.msk [vmem:[#allocation2 + $0x60] sm:$0xf] %vm2728, %v2675
        %2754 = vst.msk [vmem:[#allocation2 + $0x64] sm:$0xf] %vm2728, %v2677
        %2755 = vst.msk [vmem:[#allocation2 + $0x68] sm:$0xf] %vm2728, %v2679
        %2756 = vst.msk [vmem:[#allocation2 + $0x6c] sm:$0xf] %vm2728, %v2681
        %2757 = vst.msk [vmem:[#allocation2 + $0x70] sm:$0xf] %vm2728, %v2683
        %2758 = vst.msk [vmem:[#allocation2 + $0x74] sm:$0xf] %vm2728, %v2685
        %2759 = vst.msk [vmem:[#allocation2 + $0x78] sm:$0xf] %vm2728, %v2687
        %2760 = vst.msk [vmem:[#allocation2 + $0x7c] sm:$0xf] %vm2728, %v2689
        %2761 = vst.msk [vmem:[#allocation2 + $0x80] sm:$0xf] %vm2728, %v2691
        %2762 = vst.msk [vmem:[#allocation2 + $0x84] sm:$0xf] %vm2728, %v2693
        %v2763 = vld [vmem:[%s506 + $0x10] sm:$0xe]
        %v2764 = vld [vmem:[%s506 + $0x14] sm:$0xf]
        %v2765 = vld [vmem:[%s506 + $0x18] sm:$0xf]
        %v2766 = vld [vmem:[%s506 + $0x1c] sm:$0xf]
        %v2767 = vld [vmem:[%s506 + $0x20] sm:$0xf]
        %v2768 = vld [vmem:[%s506 + $0x24] sm:$0xf]
        %v2769 = vld [vmem:[%s506 + $0x28] sm:$0xf]
        %v2770 = vld [vmem:[%s506 + $0x2c] sm:$0xf]
        %v2771 = vld [vmem:[%s506 + $0x30] sm:$0xf]
        %v2772 = vld [vmem:[%s506 + $0x34] sm:$0xf]
        %v2773 = vld [vmem:[%s506 + $0x38] sm:$0xf]
        %v2774 = vld [vmem:[%s506 + $0x3c] sm:$0xf]
        %v2775 = vld [vmem:[%s506 + $0x40] sm:$0xf]
        %v2776 = vld [vmem:[%s506 + $0x44] sm:$0xf]
        %v2777 = vld [vmem:[%s506 + $0x48] sm:$0xf]
        %v2778 = vld [vmem:[%s506 + $0x4c] sm:$0xf]
        %v2779 = vld [vmem:[%s506 + $0x50] sm:$0xf]
        %v2780 = vld [vmem:[%s506 + $0x54] sm:$0xf]
        %v2781 = vld [vmem:[%s506 + $0x58] sm:$0xf]
        %v2782 = vld [vmem:[%s506 + $0x5c] sm:$0xf]
        %v2783 = vld [vmem:[%s506 + $0x60] sm:$0xf]
        %v2784 = vld [vmem:[%s506 + $0x64] sm:$0xf]
        %v2785 = vld [vmem:[%s506 + $0x68] sm:$0xf]
        %v2786 = vld [vmem:[%s506 + $0x6c] sm:$0xf]
        %v2787 = vld [vmem:[%s506 + $0x70] sm:$0xf]
        %v2788 = vld [vmem:[%s506 + $0x74] sm:$0xf]
        %v2789 = vld [vmem:[%s506 + $0x78] sm:$0xf]
        %v2790 = vld [vmem:[%s506 + $0x7c] sm:$0xf]
        %v2791 = vld [vmem:[%s506 + $0x80] sm:$0xf]
        %v2792 = vld [vmem:[%s506 + $0x84] sm:$0xf]
        %v2793 = vld [vmem:[%s506 + $0x88] sm:$0xf]
        %v2794 = vld [vmem:[%s506 + $0x8c] sm:$0xf]
        %v2795 = vld [vmem:[%s506 + $0x90] sm:$0xf]
        %v2796 = vld [vmem:[%s506 + $0x94] sm:$0xf]
        %v2797 = vld [vmem:[%s506 + $0x98] sm:$0x1]
        %v2833 = vrot.slane %v2763, 5
        %v2834 = vrot.slane %v2833, 4
        %v2835 = vrot.slane %v2764, 5
        %v2836 = vsel %vm1173, %v2834, %v2835
        %v2837 = vrot.slane %v2835, 4
        %v2838 = vrot.slane %v2765, 5
        %v2839 = vsel %vm1173, %v2837, %v2838
        %v2840 = vrot.slane %v2838, 4
        %v2841 = vrot.slane %v2766, 5
        %v2842 = vsel %vm1173, %v2840, %v2841
        %v2843 = vrot.slane %v2841, 4
        %v2844 = vrot.slane %v2767, 5
        %v2845 = vsel %vm1173, %v2843, %v2844
        %v2846 = vrot.slane %v2844, 4
        %v2847 = vrot.slane %v2768, 5
        %v2848 = vsel %vm1173, %v2846, %v2847
        %v2849 = vrot.slane %v2847, 4
        %v2850 = vrot.slane %v2769, 5
        %v2851 = vsel %vm1173, %v2849, %v2850
        %v2852 = vrot.slane %v2850, 4
        %v2853 = vrot.slane %v2770, 5
        %v2854 = vsel %vm1173, %v2852, %v2853
        %v2855 = vrot.slane %v2853, 4
        %v2856 = vrot.slane %v2771, 5
        %v2857 = vsel %vm1173, %v2855, %v2856
        %v2858 = vrot.slane %v2856, 4
        %v2859 = vrot.slane %v2772, 5
        %v2860 = vsel %vm1173, %v2858, %v2859
        %v2861 = vrot.slane %v2859, 4
        %v2862 = vrot.slane %v2773, 5
        %v2863 = vsel %vm1173, %v2861, %v2862
        %v2864 = vrot.slane %v2862, 4
        %v2865 = vrot.slane %v2774, 5
        %v2866 = vsel %vm1173, %v2864, %v2865
        %v2867 = vrot.slane %v2865, 4
        %v2868 = vrot.slane %v2775, 5
        %v2869 = vsel %vm1173, %v2867, %v2868
        %v2870 = vrot.slane %v2868, 4
        %v2871 = vrot.slane %v2776, 5
        %v2872 = vsel %vm1173, %v2870, %v2871
        %v2873 = vrot.slane %v2871, 4
        %v2874 = vrot.slane %v2777, 5
        %v2875 = vsel %vm1173, %v2873, %v2874
        %v2876 = vrot.slane %v2874, 4
        %v2877 = vrot.slane %v2778, 5
        %v2878 = vsel %vm1173, %v2876, %v2877
        %v2879 = vrot.slane %v2877, 4
        %v2880 = vrot.slane %v2779, 5
        %v2881 = vsel %vm1173, %v2879, %v2880
        %v2882 = vrot.slane %v2880, 4
        %v2883 = vrot.slane %v2780, 5
        %v2884 = vsel %vm1173, %v2882, %v2883
        %v2885 = vrot.slane %v2883, 4
        %v2886 = vrot.slane %v2781, 5
        %v2887 = vsel %vm1173, %v2885, %v2886
        %v2888 = vrot.slane %v2886, 4
        %v2889 = vrot.slane %v2782, 5
        %v2890 = vsel %vm1173, %v2888, %v2889
        %v2891 = vrot.slane %v2889, 4
        %v2892 = vrot.slane %v2783, 5
        %v2893 = vsel %vm1173, %v2891, %v2892
        %v2894 = vrot.slane %v2892, 4
        %v2895 = vrot.slane %v2784, 5
        %v2896 = vsel %vm1173, %v2894, %v2895
        %v2897 = vrot.slane %v2895, 4
        %v2898 = vrot.slane %v2785, 5
        %v2899 = vsel %vm1173, %v2897, %v2898
        %v2900 = vrot.slane %v2898, 4
        %v2901 = vrot.slane %v2786, 5
        %v2902 = vsel %vm1173, %v2900, %v2901
        %v2903 = vrot.slane %v2901, 4
        %v2904 = vrot.slane %v2787, 5
        %v2905 = vsel %vm1173, %v2903, %v2904
        %v2906 = vrot.slane %v2904, 4
        %v2907 = vrot.slane %v2788, 5
        %v2908 = vsel %vm1173, %v2906, %v2907
        %v2909 = vrot.slane %v2907, 4
        %v2910 = vrot.slane %v2789, 5
        %v2911 = vsel %vm1173, %v2909, %v2910
        %v2912 = vrot.slane %v2910, 4
        %v2913 = vrot.slane %v2790, 5
        %v2914 = vsel %vm1173, %v2912, %v2913
        %v2915 = vrot.slane %v2913, 4
        %v2916 = vrot.slane %v2791, 5
        %v2917 = vsel %vm1173, %v2915, %v2916
        %v2918 = vrot.slane %v2916, 4
        %v2919 = vrot.slane %v2792, 5
        %v2920 = vsel %vm1173, %v2918, %v2919
        %v2921 = vrot.slane %v2919, 4
        %v2922 = vrot.slane %v2793, 5
        %v2923 = vsel %vm1173, %v2921, %v2922
        %v2924 = vrot.slane %v2922, 4
        %v2925 = vrot.slane %v2794, 5
        %v2926 = vsel %vm1173, %v2924, %v2925
        %v2927 = vrot.slane %v2925, 4
        %v2928 = vrot.slane %v2795, 5
        %v2929 = vsel %vm1173, %v2927, %v2928
        %v2930 = vrot.slane %v2928, 4
        %v2931 = vrot.slane %v2796, 5
        %v2932 = vsel %vm1173, %v2930, %v2931
        %v2933 = vrot.slane %v2931, 4
        %v2934 = vrot.slane %v2797, 5
        %v2935 = vsel %vm1173, %v2933, %v2934
        %2936 = vrot.lane.b32.xlu0 %v2836, 48
        %v2937 = vpop.permute.xlu0 %2936
        %2938 = vrot.lane.b32.xlu0 %v2839, 48
        %v2939 = vpop.permute.xlu0 %2938
        %2940 = vrot.lane.b32.xlu0 %v2842, 48
        %v2941 = vpop.permute.xlu0 %2940
        %2942 = vrot.lane.b32.xlu0 %v2845, 48
        %v2943 = vpop.permute.xlu0 %2942
        %2944 = vrot.lane.b32.xlu0 %v2848, 48
        %v2945 = vpop.permute.xlu0 %2944
        %2946 = vrot.lane.b32.xlu0 %v2851, 48
        %v2947 = vpop.permute.xlu0 %2946
        %2948 = vrot.lane.b32.xlu0 %v2854, 48
        %v2949 = vpop.permute.xlu0 %2948
        %2950 = vrot.lane.b32.xlu0 %v2857, 48
        %v2951 = vpop.permute.xlu0 %2950
        %2952 = vrot.lane.b32.xlu0 %v2860, 48
        %v2953 = vpop.permute.xlu0 %2952
        %2954 = vrot.lane.b32.xlu0 %v2863, 48
        %v2955 = vpop.permute.xlu0 %2954
        %2956 = vrot.lane.b32.xlu0 %v2866, 48
        %v2957 = vpop.permute.xlu0 %2956
        %2958 = vrot.lane.b32.xlu0 %v2869, 48
        %v2959 = vpop.permute.xlu0 %2958
        %2960 = vrot.lane.b32.xlu0 %v2872, 48
        %v2961 = vpop.permute.xlu0 %2960
        %2962 = vrot.lane.b32.xlu0 %v2875, 48
        %v2963 = vpop.permute.xlu0 %2962
        %2964 = vrot.lane.b32.xlu0 %v2878, 48
        %v2965 = vpop.permute.xlu0 %2964
        %2966 = vrot.lane.b32.xlu0 %v2881, 48
        %v2967 = vpop.permute.xlu0 %2966
        %2968 = vrot.lane.b32.xlu0 %v2884, 48
        %v2969 = vpop.permute.xlu0 %2968
        %2970 = vrot.lane.b32.xlu0 %v2887, 48
        %v2971 = vpop.permute.xlu0 %2970
        %2972 = vrot.lane.b32.xlu0 %v2890, 48
        %v2973 = vpop.permute.xlu0 %2972
        %2974 = vrot.lane.b32.xlu0 %v2893, 48
        %v2975 = vpop.permute.xlu0 %2974
        %2976 = vrot.lane.b32.xlu0 %v2896, 48
        %v2977 = vpop.permute.xlu0 %2976
        %2978 = vrot.lane.b32.xlu0 %v2899, 48
        %v2979 = vpop.permute.xlu0 %2978
        %2980 = vrot.lane.b32.xlu0 %v2902, 48
        %v2981 = vpop.permute.xlu0 %2980
        %2982 = vrot.lane.b32.xlu0 %v2905, 48
        %v2983 = vpop.permute.xlu0 %2982
        %2984 = vrot.lane.b32.xlu0 %v2908, 48
        %v2985 = vpop.permute.xlu0 %2984
        %2986 = vrot.lane.b32.xlu0 %v2911, 48
        %v2987 = vpop.permute.xlu0 %2986
        %2988 = vrot.lane.b32.xlu0 %v2914, 48
        %v2989 = vpop.permute.xlu0 %2988
        %2990 = vrot.lane.b32.xlu0 %v2917, 48
        %v2991 = vpop.permute.xlu0 %2990
        %2992 = vrot.lane.b32.xlu0 %v2920, 48
        %v2993 = vpop.permute.xlu0 %2992
        %2994 = vrot.lane.b32.xlu0 %v2923, 48
        %v2995 = vpop.permute.xlu0 %2994
        %2996 = vrot.lane.b32.xlu0 %v2926, 48
        %v2997 = vpop.permute.xlu0 %2996
        %2998 = vrot.lane.b32.xlu0 %v2929, 48
        %v2999 = vpop.permute.xlu0 %2998
        %3000 = vrot.lane.b32.xlu0 %v2932, 48
        %v3001 = vpop.permute.xlu0 %3000
        %3002 = vrot.lane.b32.xlu0 %v2935, 48
        %v3003 = vpop.permute.xlu0 %3002
        %vm3038 = vcmask 454016
        %3039 = vst.msk [vmem:[#allocation2] sm:$0xf] %vm3038, %v2937
        %3040 = vst.msk [vmem:[#allocation2 + $0x4] sm:$0xf] %vm3038, %v2939
        %3041 = vst.msk [vmem:[#allocation2 + $0x8] sm:$0xf] %vm3038, %v2941
        %3042 = vst.msk [vmem:[#allocation2 + $0xc] sm:$0xf] %vm3038, %v2943
        %3043 = vst.msk [vmem:[#allocation2 + $0x10] sm:$0xf] %vm3038, %v2945
        %3044 = vst.msk [vmem:[#allocation2 + $0x14] sm:$0xf] %vm3038, %v2947
        %3045 = vst.msk [vmem:[#allocation2 + $0x18] sm:$0xf] %vm3038, %v2949
        %3046 = vst.msk [vmem:[#allocation2 + $0x1c] sm:$0xf] %vm3038, %v2951
        %3047 = vst.msk [vmem:[#allocation2 + $0x20] sm:$0xf] %vm3038, %v2953
        %3048 = vst.msk [vmem:[#allocation2 + $0x24] sm:$0xf] %vm3038, %v2955
        %3049 = vst.msk [vmem:[#allocation2 + $0x28] sm:$0xf] %vm3038, %v2957
        %3050 = vst.msk [vmem:[#allocation2 + $0x2c] sm:$0xf] %vm3038, %v2959
        %3051 = vst.msk [vmem:[#allocation2 + $0x30] sm:$0xf] %vm3038, %v2961
        %3052 = vst.msk [vmem:[#allocation2 + $0x34] sm:$0xf] %vm3038, %v2963
        %3053 = vst.msk [vmem:[#allocation2 + $0x38] sm:$0xf] %vm3038, %v2965
        %3054 = vst.msk [vmem:[#allocation2 + $0x3c] sm:$0xf] %vm3038, %v2967
        %3055 = vst.msk [vmem:[#allocation2 + $0x40] sm:$0xf] %vm3038, %v2969
        %3056 = vst.msk [vmem:[#allocation2 + $0x44] sm:$0xf] %vm3038, %v2971
        %3057 = vst.msk [vmem:[#allocation2 + $0x48] sm:$0xf] %vm3038, %v2973
        %3058 = vst.msk [vmem:[#allocation2 + $0x4c] sm:$0xf] %vm3038, %v2975
        %3059 = vst.msk [vmem:[#allocation2 + $0x50] sm:$0xf] %vm3038, %v2977
        %3060 = vst.msk [vmem:[#allocation2 + $0x54] sm:$0xf] %vm3038, %v2979
        %3061 = vst.msk [vmem:[#allocation2 + $0x58] sm:$0xf] %vm3038, %v2981
        %3062 = vst.msk [vmem:[#allocation2 + $0x5c] sm:$0xf] %vm3038, %v2983
        %3063 = vst.msk [vmem:[#allocation2 + $0x60] sm:$0xf] %vm3038, %v2985
        %3064 = vst.msk [vmem:[#allocation2 + $0x64] sm:$0xf] %vm3038, %v2987
        %3065 = vst.msk [vmem:[#allocation2 + $0x68] sm:$0xf] %vm3038, %v2989
        %3066 = vst.msk [vmem:[#allocation2 + $0x6c] sm:$0xf] %vm3038, %v2991
        %3067 = vst.msk [vmem:[#allocation2 + $0x70] sm:$0xf] %vm3038, %v2993
        %3068 = vst.msk [vmem:[#allocation2 + $0x74] sm:$0xf] %vm3038, %v2995
        %3069 = vst.msk [vmem:[#allocation2 + $0x78] sm:$0xf] %vm3038, %v2997
        %3070 = vst.msk [vmem:[#allocation2 + $0x7c] sm:$0xf] %vm3038, %v2999
        %3071 = vst.msk [vmem:[#allocation2 + $0x80] sm:$0xf] %vm3038, %v3001
        %3072 = vst.msk [vmem:[#allocation2 + $0x84] sm:$0xf] %vm3038, %v3003
        %v3073 = vld [vmem:[%s506 + $0x10] sm:$0xe]
        %v3074 = vld [vmem:[%s506 + $0x14] sm:$0xf]
        %v3075 = vld [vmem:[%s506 + $0x18] sm:$0xf]
        %v3076 = vld [vmem:[%s506 + $0x1c] sm:$0xf]
        %v3077 = vld [vmem:[%s506 + $0x20] sm:$0xf]
        %v3078 = vld [vmem:[%s506 + $0x24] sm:$0xf]
        %v3079 = vld [vmem:[%s506 + $0x28] sm:$0xf]
        %v3080 = vld [vmem:[%s506 + $0x2c] sm:$0xf]
        %v3081 = vld [vmem:[%s506 + $0x30] sm:$0xf]
        %v3082 = vld [vmem:[%s506 + $0x34] sm:$0xf]
        %v3083 = vld [vmem:[%s506 + $0x38] sm:$0xf]
        %v3084 = vld [vmem:[%s506 + $0x3c] sm:$0xf]
        %v3085 = vld [vmem:[%s506 + $0x40] sm:$0xf]
        %v3086 = vld [vmem:[%s506 + $0x44] sm:$0xf]
        %v3087 = vld [vmem:[%s506 + $0x48] sm:$0xf]
        %v3088 = vld [vmem:[%s506 + $0x4c] sm:$0xf]
        %v3089 = vld [vmem:[%s506 + $0x50] sm:$0xf]
        %v3090 = vld [vmem:[%s506 + $0x54] sm:$0xf]
        %v3091 = vld [vmem:[%s506 + $0x58] sm:$0xf]
        %v3092 = vld [vmem:[%s506 + $0x5c] sm:$0xf]
        %v3093 = vld [vmem:[%s506 + $0x60] sm:$0xf]
        %v3094 = vld [vmem:[%s506 + $0x64] sm:$0xf]
        %v3095 = vld [vmem:[%s506 + $0x68] sm:$0xf]
        %v3096 = vld [vmem:[%s506 + $0x6c] sm:$0xf]
        %v3097 = vld [vmem:[%s506 + $0x70] sm:$0xf]
        %v3098 = vld [vmem:[%s506 + $0x74] sm:$0xf]
        %v3099 = vld [vmem:[%s506 + $0x78] sm:$0xf]
        %v3100 = vld [vmem:[%s506 + $0x7c] sm:$0xf]
        %v3101 = vld [vmem:[%s506 + $0x80] sm:$0xf]
        %v3102 = vld [vmem:[%s506 + $0x84] sm:$0xf]
        %v3103 = vld [vmem:[%s506 + $0x88] sm:$0xf]
        %v3104 = vld [vmem:[%s506 + $0x8c] sm:$0xf]
        %v3105 = vld [vmem:[%s506 + $0x90] sm:$0xf]
        %v3106 = vld [vmem:[%s506 + $0x94] sm:$0xf]
        %v3107 = vld [vmem:[%s506 + $0x98] sm:$0x3]
        %v3109 = vshrl.u32 %v3073, 16
        %v3111 = vrot.slane %v3109, 5
        %v3112 = vshll.u32 %v3073, 16
        %v3114 = vrot.slane %v3112, 6
        %v3115 = vor.u32 %v3111, %v3114
        %v3116 = vrot.slane %v3115, 4
        %v3118 = vshrl.u32 %v3074, 16
        %v3120 = vrot.slane %v3118, 5
        %v3121 = vshll.u32 %v3074, 16
        %v3123 = vrot.slane %v3121, 6
        %v3124 = vor.u32 %v3120, %v3123
        %v3125 = vsel %vm2277, %v3116, %v3124
        %v3126 = vrot.slane %v3124, 4
        %v3128 = vshrl.u32 %v3075, 16
        %v3130 = vrot.slane %v3128, 5
        %v3131 = vshll.u32 %v3075, 16
        %v3133 = vrot.slane %v3131, 6
        %v3134 = vor.u32 %v3130, %v3133
        %v3135 = vsel %vm2277, %v3126, %v3134
        %v3136 = vrot.slane %v3134, 4
        %v3138 = vshrl.u32 %v3076, 16
        %v3140 = vrot.slane %v3138, 5
        %v3141 = vshll.u32 %v3076, 16
        %v3143 = vrot.slane %v3141, 6
        %v3144 = vor.u32 %v3140, %v3143
        %v3145 = vsel %vm2277, %v3136, %v3144
        %v3146 = vrot.slane %v3144, 4
        %v3148 = vshrl.u32 %v3077, 16
        %v3150 = vrot.slane %v3148, 5
        %v3151 = vshll.u32 %v3077, 16
        %v3153 = vrot.slane %v3151, 6
        %v3154 = vor.u32 %v3150, %v3153
        %v3155 = vsel %vm2277, %v3146, %v3154
        %v3156 = vrot.slane %v3154, 4
        %v3158 = vshrl.u32 %v3078, 16
        %v3160 = vrot.slane %v3158, 5
        %v3161 = vshll.u32 %v3078, 16
        %v3163 = vrot.slane %v3161, 6
        %v3164 = vor.u32 %v3160, %v3163
        %v3165 = vsel %vm2277, %v3156, %v3164
        %v3166 = vrot.slane %v3164, 4
        %v3168 = vshrl.u32 %v3079, 16
        %v3170 = vrot.slane %v3168, 5
        %v3171 = vshll.u32 %v3079, 16
        %v3173 = vrot.slane %v3171, 6
        %v3174 = vor.u32 %v3170, %v3173
        %v3175 = vsel %vm2277, %v3166, %v3174
        %v3176 = vrot.slane %v3174, 4
        %v3178 = vshrl.u32 %v3080, 16
        %v3180 = vrot.slane %v3178, 5
        %v3181 = vshll.u32 %v3080, 16
        %v3183 = vrot.slane %v3181, 6
        %v3184 = vor.u32 %v3180, %v3183
        %v3185 = vsel %vm2277, %v3176, %v3184
        %v3186 = vrot.slane %v3184, 4
        %v3188 = vshrl.u32 %v3081, 16
        %v3190 = vrot.slane %v3188, 5
        %v3191 = vshll.u32 %v3081, 16
        %v3193 = vrot.slane %v3191, 6
        %v3194 = vor.u32 %v3190, %v3193
        %v3195 = vsel %vm2277, %v3186, %v3194
        %v3196 = vrot.slane %v3194, 4
        %v3198 = vshrl.u32 %v3082, 16
        %v3200 = vrot.slane %v3198, 5
        %v3201 = vshll.u32 %v3082, 16
        %v3203 = vrot.slane %v3201, 6
        %v3204 = vor.u32 %v3200, %v3203
        %v3205 = vsel %vm2277, %v3196, %v3204
        %v3206 = vrot.slane %v3204, 4
        %v3208 = vshrl.u32 %v3083, 16
        %v3210 = vrot.slane %v3208, 5
        %v3211 = vshll.u32 %v3083, 16
        %v3213 = vrot.slane %v3211, 6
        %v3214 = vor.u32 %v3210, %v3213
        %v3215 = vsel %vm2277, %v3206, %v3214
        %v3216 = vrot.slane %v3214, 4
        %v3218 = vshrl.u32 %v3084, 16
        %v3220 = vrot.slane %v3218, 5
        %v3221 = vshll.u32 %v3084, 16
        %v3223 = vrot.slane %v3221, 6
        %v3224 = vor.u32 %v3220, %v3223
        %v3225 = vsel %vm2277, %v3216, %v3224
        %v3226 = vrot.slane %v3224, 4
        %v3228 = vshrl.u32 %v3085, 16
        %v3230 = vrot.slane %v3228, 5
        %v3231 = vshll.u32 %v3085, 16
        %v3233 = vrot.slane %v3231, 6
        %v3234 = vor.u32 %v3230, %v3233
        %v3235 = vsel %vm2277, %v3226, %v3234
        %v3236 = vrot.slane %v3234, 4
        %v3238 = vshrl.u32 %v3086, 16
        %v3240 = vrot.slane %v3238, 5
        %v3241 = vshll.u32 %v3086, 16
        %v3243 = vrot.slane %v3241, 6
        %v3244 = vor.u32 %v3240, %v3243
        %v3245 = vsel %vm2277, %v3236, %v3244
        %v3246 = vrot.slane %v3244, 4
        %v3248 = vshrl.u32 %v3087, 16
        %v3250 = vrot.slane %v3248, 5
        %v3251 = vshll.u32 %v3087, 16
        %v3253 = vrot.slane %v3251, 6
        %v3254 = vor.u32 %v3250, %v3253
        %v3255 = vsel %vm2277, %v3246, %v3254
        %v3256 = vrot.slane %v3254, 4
        %v3258 = vshrl.u32 %v3088, 16
        %v3260 = vrot.slane %v3258, 5
        %v3261 = vshll.u32 %v3088, 16
        %v3263 = vrot.slane %v3261, 6
        %v3264 = vor.u32 %v3260, %v3263
        %v3265 = vsel %vm2277, %v3256, %v3264
        %v3266 = vrot.slane %v3264, 4
        %v3268 = vshrl.u32 %v3089, 16
        %v3270 = vrot.slane %v3268, 5
        %v3271 = vshll.u32 %v3089, 16
        %v3273 = vrot.slane %v3271, 6
        %v3274 = vor.u32 %v3270, %v3273
        %v3275 = vsel %vm2277, %v3266, %v3274
        %v3276 = vrot.slane %v3274, 4
        %v3278 = vshrl.u32 %v3090, 16
        %v3280 = vrot.slane %v3278, 5
        %v3281 = vshll.u32 %v3090, 16
        %v3283 = vrot.slane %v3281, 6
        %v3284 = vor.u32 %v3280, %v3283
        %v3285 = vsel %vm2277, %v3276, %v3284
        %v3286 = vrot.slane %v3284, 4
        %v3288 = vshrl.u32 %v3091, 16
        %v3290 = vrot.slane %v3288, 5
        %v3291 = vshll.u32 %v3091, 16
        %v3293 = vrot.slane %v3291, 6
        %v3294 = vor.u32 %v3290, %v3293
        %v3295 = vsel %vm2277, %v3286, %v3294
        %v3296 = vrot.slane %v3294, 4
        %v3298 = vshrl.u32 %v3092, 16
        %v3300 = vrot.slane %v3298, 5
        %v3301 = vshll.u32 %v3092, 16
        %v3303 = vrot.slane %v3301, 6
        %v3304 = vor.u32 %v3300, %v3303
        %v3305 = vsel %vm2277, %v3296, %v3304
        %v3306 = vrot.slane %v3304, 4
        %v3308 = vshrl.u32 %v3093, 16
        %v3310 = vrot.slane %v3308, 5
        %v3311 = vshll.u32 %v3093, 16
        %v3313 = vrot.slane %v3311, 6
        %v3314 = vor.u32 %v3310, %v3313
        %v3315 = vsel %vm2277, %v3306, %v3314
        %v3316 = vrot.slane %v3314, 4
        %v3318 = vshrl.u32 %v3094, 16
        %v3320 = vrot.slane %v3318, 5
        %v3321 = vshll.u32 %v3094, 16
        %v3323 = vrot.slane %v3321, 6
        %v3324 = vor.u32 %v3320, %v3323
        %v3325 = vsel %vm2277, %v3316, %v3324
        %v3326 = vrot.slane %v3324, 4
        %v3328 = vshrl.u32 %v3095, 16
        %v3330 = vrot.slane %v3328, 5
        %v3331 = vshll.u32 %v3095, 16
        %v3333 = vrot.slane %v3331, 6
        %v3334 = vor.u32 %v3330, %v3333
        %v3335 = vsel %vm2277, %v3326, %v3334
        %v3336 = vrot.slane %v3334, 4
        %v3338 = vshrl.u32 %v3096, 16
        %v3340 = vrot.slane %v3338, 5
        %v3341 = vshll.u32 %v3096, 16
        %v3343 = vrot.slane %v3341, 6
        %v3344 = vor.u32 %v3340, %v3343
        %v3345 = vsel %vm2277, %v3336, %v3344
        %v3346 = vrot.slane %v3344, 4
        %v3348 = vshrl.u32 %v3097, 16
        %v3350 = vrot.slane %v3348, 5
        %v3351 = vshll.u32 %v3097, 16
        %v3353 = vrot.slane %v3351, 6
        %v3354 = vor.u32 %v3350, %v3353
        %v3355 = vsel %vm2277, %v3346, %v3354
        %v3356 = vrot.slane %v3354, 4
        %v3358 = vshrl.u32 %v3098, 16
        %v3360 = vrot.slane %v3358, 5
        %v3361 = vshll.u32 %v3098, 16
        %v3363 = vrot.slane %v3361, 6
        %v3364 = vor.u32 %v3360, %v3363
        %v3365 = vsel %vm2277, %v3356, %v3364
        %v3366 = vrot.slane %v3364, 4
        %v3368 = vshrl.u32 %v3099, 16
        %v3370 = vrot.slane %v3368, 5
        %v3371 = vshll.u32 %v3099, 16
        %v3373 = vrot.slane %v3371, 6
        %v3374 = vor.u32 %v3370, %v3373
        %v3375 = vsel %vm2277, %v3366, %v3374
        %v3376 = vrot.slane %v3374, 4
        %v3378 = vshrl.u32 %v3100, 16
        %v3380 = vrot.slane %v3378, 5
        %v3381 = vshll.u32 %v3100, 16
        %v3383 = vrot.slane %v3381, 6
        %v3384 = vor.u32 %v3380, %v3383
        %v3385 = vsel %vm2277, %v3376, %v3384
        %v3386 = vrot.slane %v3384, 4
        %v3388 = vshrl.u32 %v3101, 16
        %v3390 = vrot.slane %v3388, 5
        %v3391 = vshll.u32 %v3101, 16
        %v3393 = vrot.slane %v3391, 6
        %v3394 = vor.u32 %v3390, %v3393
        %v3395 = vsel %vm2277, %v3386, %v3394
        %v3396 = vrot.slane %v3394, 4
        %v3398 = vshrl.u32 %v3102, 16
        %v3400 = vrot.slane %v3398, 5
        %v3401 = vshll.u32 %v3102, 16
        %v3403 = vrot.slane %v3401, 6
        %v3404 = vor.u32 %v3400, %v3403
        %v3405 = vsel %vm2277, %v3396, %v3404
        %v3406 = vrot.slane %v3404, 4
        %v3408 = vshrl.u32 %v3103, 16
        %v3410 = vrot.slane %v3408, 5
        %v3411 = vshll.u32 %v3103, 16
        %v3413 = vrot.slane %v3411, 6
        %v3414 = vor.u32 %v3410, %v3413
        %v3415 = vsel %vm2277, %v3406, %v3414
        %v3416 = vrot.slane %v3414, 4
        %v3418 = vshrl.u32 %v3104, 16
        %v3420 = vrot.slane %v3418, 5
        %v3421 = vshll.u32 %v3104, 16
        %v3423 = vrot.slane %v3421, 6
        %v3424 = vor.u32 %v3420, %v3423
        %v3425 = vsel %vm2277, %v3416, %v3424
        %v3426 = vrot.slane %v3424, 4
        %v3428 = vshrl.u32 %v3105, 16
        %v3430 = vrot.slane %v3428, 5
        %v3431 = vshll.u32 %v3105, 16
        %v3433 = vrot.slane %v3431, 6
        %v3434 = vor.u32 %v3430, %v3433
        %v3435 = vsel %vm2277, %v3426, %v3434
        %v3436 = vrot.slane %v3434, 4
        %v3438 = vshrl.u32 %v3106, 16
        %v3440 = vrot.slane %v3438, 5
        %v3441 = vshll.u32 %v3106, 16
        %v3443 = vrot.slane %v3441, 6
        %v3444 = vor.u32 %v3440, %v3443
        %v3445 = vsel %vm2277, %v3436, %v3444
        %v3446 = vrot.slane %v3444, 4
        %v3448 = vshrl.u32 %v3107, 16
        %v3450 = vrot.slane %v3448, 5
        %v3451 = vshll.u32 %v3107, 16
        %v3453 = vrot.slane %v3451, 6
        %v3454 = vor.u32 %v3450, %v3453
        %v3455 = vsel %vm2277, %v3446, %v3454
        %3456 = vrot.lane.b32.xlu0 %v3125, 56
        %v3457 = vpop.permute.xlu0 %3456
        %3458 = vrot.lane.b32.xlu0 %v3135, 56
        %v3459 = vpop.permute.xlu0 %3458
        %3460 = vrot.lane.b32.xlu0 %v3145, 56
        %v3461 = vpop.permute.xlu0 %3460
        %3462 = vrot.lane.b32.xlu0 %v3155, 56
        %v3463 = vpop.permute.xlu0 %3462
        %3464 = vrot.lane.b32.xlu0 %v3165, 56
        %v3465 = vpop.permute.xlu0 %3464
        %3466 = vrot.lane.b32.xlu0 %v3175, 56
        %v3467 = vpop.permute.xlu0 %3466
        %3468 = vrot.lane.b32.xlu0 %v3185, 56
        %v3469 = vpop.permute.xlu0 %3468
        %3470 = vrot.lane.b32.xlu0 %v3195, 56
        %v3471 = vpop.permute.xlu0 %3470
        %3472 = vrot.lane.b32.xlu0 %v3205, 56
        %v3473 = vpop.permute.xlu0 %3472
        %3474 = vrot.lane.b32.xlu0 %v3215, 56
        %v3475 = vpop.permute.xlu0 %3474
        %3476 = vrot.lane.b32.xlu0 %v3225, 56
        %v3477 = vpop.permute.xlu0 %3476
        %3478 = vrot.lane.b32.xlu0 %v3235, 56
        %v3479 = vpop.permute.xlu0 %3478
        %3480 = vrot.lane.b32.xlu0 %v3245, 56
        %v3481 = vpop.permute.xlu0 %3480
        %3482 = vrot.lane.b32.xlu0 %v3255, 56
        %v3483 = vpop.permute.xlu0 %3482
        %3484 = vrot.lane.b32.xlu0 %v3265, 56
        %v3485 = vpop.permute.xlu0 %3484
        %3486 = vrot.lane.b32.xlu0 %v3275, 56
        %v3487 = vpop.permute.xlu0 %3486
        %3488 = vrot.lane.b32.xlu0 %v3285, 56
        %v3489 = vpop.permute.xlu0 %3488
        %3490 = vrot.lane.b32.xlu0 %v3295, 56
        %v3491 = vpop.permute.xlu0 %3490
        %3492 = vrot.lane.b32.xlu0 %v3305, 56
        %v3493 = vpop.permute.xlu0 %3492
        %3494 = vrot.lane.b32.xlu0 %v3315, 56
        %v3495 = vpop.permute.xlu0 %3494
        %3496 = vrot.lane.b32.xlu0 %v3325, 56
        %v3497 = vpop.permute.xlu0 %3496
        %3498 = vrot.lane.b32.xlu0 %v3335, 56
        %v3499 = vpop.permute.xlu0 %3498
        %3500 = vrot.lane.b32.xlu0 %v3345, 56
        %v3501 = vpop.permute.xlu0 %3500
        %3502 = vrot.lane.b32.xlu0 %v3355, 56
        %v3503 = vpop.permute.xlu0 %3502
        %3504 = vrot.lane.b32.xlu0 %v3365, 56
        %v3505 = vpop.permute.xlu0 %3504
        %3506 = vrot.lane.b32.xlu0 %v3375, 56
        %v3507 = vpop.permute.xlu0 %3506
        %3508 = vrot.lane.b32.xlu0 %v3385, 56
        %v3509 = vpop.permute.xlu0 %3508
        %3510 = vrot.lane.b32.xlu0 %v3395, 56
        %v3511 = vpop.permute.xlu0 %3510
        %3512 = vrot.lane.b32.xlu0 %v3405, 56
        %v3513 = vpop.permute.xlu0 %3512
        %3514 = vrot.lane.b32.xlu0 %v3415, 56
        %v3515 = vpop.permute.xlu0 %3514
        %3516 = vrot.lane.b32.xlu0 %v3425, 56
        %v3517 = vpop.permute.xlu0 %3516
        %3518 = vrot.lane.b32.xlu0 %v3435, 56
        %v3519 = vpop.permute.xlu0 %3518
        %3520 = vrot.lane.b32.xlu0 %v3445, 56
        %v3521 = vpop.permute.xlu0 %3520
        %3522 = vrot.lane.b32.xlu0 %v3455, 56
        %v3523 = vpop.permute.xlu0 %3522
        %vm3558 = vcmask 519616
        %3559 = vst.msk [vmem:[#allocation2] sm:$0xf] %vm3558, %v3457
        %3560 = vst.msk [vmem:[#allocation2 + $0x4] sm:$0xf] %vm3558, %v3459
        %3561 = vst.msk [vmem:[#allocation2 + $0x8] sm:$0xf] %vm3558, %v3461
        %3562 = vst.msk [vmem:[#allocation2 + $0xc] sm:$0xf] %vm3558, %v3463
        %3563 = vst.msk [vmem:[#allocation2 + $0x10] sm:$0xf] %vm3558, %v3465
        %3564 = vst.msk [vmem:[#allocation2 + $0x14] sm:$0xf] %vm3558, %v3467
        %3565 = vst.msk [vmem:[#allocation2 + $0x18] sm:$0xf] %vm3558, %v3469
        %3566 = vst.msk [vmem:[#allocation2 + $0x1c] sm:$0xf] %vm3558, %v3471
        %3567 = vst.msk [vmem:[#allocation2 + $0x20] sm:$0xf] %vm3558, %v3473
        %3568 = vst.msk [vmem:[#allocation2 + $0x24] sm:$0xf] %vm3558, %v3475
        %3569 = vst.msk [vmem:[#allocation2 + $0x28] sm:$0xf] %vm3558, %v3477
        %3570 = vst.msk [vmem:[#allocation2 + $0x2c] sm:$0xf] %vm3558, %v3479
        %3571 = vst.msk [vmem:[#allocation2 + $0x30] sm:$0xf] %vm3558, %v3481
        %3572 = vst.msk [vmem:[#allocation2 + $0x34] sm:$0xf] %vm3558, %v3483
        %3573 = vst.msk [vmem:[#allocation2 + $0x38] sm:$0xf] %vm3558, %v3485
        %3574 = vst.msk [vmem:[#allocation2 + $0x3c] sm:$0xf] %vm3558, %v3487
        %3575 = vst.msk [vmem:[#allocation2 + $0x40] sm:$0xf] %vm3558, %v3489
        %3576 = vst.msk [vmem:[#allocation2 + $0x44] sm:$0xf] %vm3558, %v3491
        %3577 = vst.msk [vmem:[#allocation2 + $0x48] sm:$0xf] %vm3558, %v3493
        %3578 = vst.msk [vmem:[#allocation2 + $0x4c] sm:$0xf] %vm3558, %v3495
        %3579 = vst.msk [vmem:[#allocation2 + $0x50] sm:$0xf] %vm3558, %v3497
        %3580 = vst.msk [vmem:[#allocation2 + $0x54] sm:$0xf] %vm3558, %v3499
        %3581 = vst.msk [vmem:[#allocation2 + $0x58] sm:$0xf] %vm3558, %v3501
        %3582 = vst.msk [vmem:[#allocation2 + $0x5c] sm:$0xf] %vm3558, %v3503
        %3583 = vst.msk [vmem:[#allocation2 + $0x60] sm:$0xf] %vm3558, %v3505
        %3584 = vst.msk [vmem:[#allocation2 + $0x64] sm:$0xf] %vm3558, %v3507
        %3585 = vst.msk [vmem:[#allocation2 + $0x68] sm:$0xf] %vm3558, %v3509
        %3586 = vst.msk [vmem:[#allocation2 + $0x6c] sm:$0xf] %vm3558, %v3511
        %3587 = vst.msk [vmem:[#allocation2 + $0x70] sm:$0xf] %vm3558, %v3513
        %3588 = vst.msk [vmem:[#allocation2 + $0x74] sm:$0xf] %vm3558, %v3515
        %3589 = vst.msk [vmem:[#allocation2 + $0x78] sm:$0xf] %vm3558, %v3517
        %3590 = vst.msk [vmem:[#allocation2 + $0x7c] sm:$0xf] %vm3558, %v3519
        %3591 = vst.msk [vmem:[#allocation2 + $0x80] sm:$0xf] %vm3558, %v3521
        %3592 = vst.msk [vmem:[#allocation2 + $0x84] sm:$0xf] %vm3558, %v3523
        %v3593 = vld [vmem:[%s506 + $0x10] sm:$0xc]
        %v3594 = vld [vmem:[%s506 + $0x14] sm:$0xf]
        %v3595 = vld [vmem:[%s506 + $0x18] sm:$0xf]
        %v3596 = vld [vmem:[%s506 + $0x1c] sm:$0xf]
        %v3597 = vld [vmem:[%s506 + $0x20] sm:$0xf]
        %v3598 = vld [vmem:[%s506 + $0x24] sm:$0xf]
        %v3599 = vld [vmem:[%s506 + $0x28] sm:$0xf]
        %v3600 = vld [vmem:[%s506 + $0x2c] sm:$0xf]
        %v3601 = vld [vmem:[%s506 + $0x30] sm:$0xf]
        %v3602 = vld [vmem:[%s506 + $0x34] sm:$0xf]
        %v3603 = vld [vmem:[%s506 + $0x38] sm:$0xf]
        %v3604 = vld [vmem:[%s506 + $0x3c] sm:$0xf]
        %v3605 = vld [vmem:[%s506 + $0x40] sm:$0xf]
        %v3606 = vld [vmem:[%s506 + $0x44] sm:$0xf]
        %v3607 = vld [vmem:[%s506 + $0x48] sm:$0xf]
        %v3608 = vld [vmem:[%s506 + $0x4c] sm:$0xf]
        %v3609 = vld [vmem:[%s506 + $0x50] sm:$0xf]
        %v3610 = vld [vmem:[%s506 + $0x54] sm:$0xf]
        %v3611 = vld [vmem:[%s506 + $0x58] sm:$0xf]
        %v3612 = vld [vmem:[%s506 + $0x5c] sm:$0xf]
        %v3613 = vld [vmem:[%s506 + $0x60] sm:$0xf]
        %v3614 = vld [vmem:[%s506 + $0x64] sm:$0xf]
        %v3615 = vld [vmem:[%s506 + $0x68] sm:$0xf]
        %v3616 = vld [vmem:[%s506 + $0x6c] sm:$0xf]
        %v3617 = vld [vmem:[%s506 + $0x70] sm:$0xf]
        %v3618 = vld [vmem:[%s506 + $0x74] sm:$0xf]
        %v3619 = vld [vmem:[%s506 + $0x78] sm:$0xf]
        %v3620 = vld [vmem:[%s506 + $0x7c] sm:$0xf]
        %v3621 = vld [vmem:[%s506 + $0x80] sm:$0xf]
        %v3622 = vld [vmem:[%s506 + $0x84] sm:$0xf]
        %v3623 = vld [vmem:[%s506 + $0x88] sm:$0xf]
        %v3624 = vld [vmem:[%s506 + $0x8c] sm:$0xf]
        %v3625 = vld [vmem:[%s506 + $0x90] sm:$0xf]
        %v3626 = vld [vmem:[%s506 + $0x94] sm:$0xf]
        %v3627 = vld [vmem:[%s506 + $0x98] sm:$0x3]
        %vm3663 = vcmask 1041408
        %vm3664 = vcmask 1045508
        %vm3665 = vmor %vm3663, %vm3664
        %v3666 = vrot.slane %v3593, 6
        %v3667 = vrot.slane %v3666, 4
        %v3668 = vrot.slane %v3594, 6
        %v3669 = vsel %vm3665, %v3667, %v3668
        %v3670 = vrot.slane %v3668, 4
        %v3671 = vrot.slane %v3595, 6
        %v3672 = vsel %vm3665, %v3670, %v3671
        %v3673 = vrot.slane %v3671, 4
        %v3674 = vrot.slane %v3596, 6
        %v3675 = vsel %vm3665, %v3673, %v3674
        %v3676 = vrot.slane %v3674, 4
        %v3677 = vrot.slane %v3597, 6
        %v3678 = vsel %vm3665, %v3676, %v3677
        %v3679 = vrot.slane %v3677, 4
        %v3680 = vrot.slane %v3598, 6
        %v3681 = vsel %vm3665, %v3679, %v3680
        %v3682 = vrot.slane %v3680, 4
        %v3683 = vrot.slane %v3599, 6
        %v3684 = vsel %vm3665, %v3682, %v3683
        %v3685 = vrot.slane %v3683, 4
        %v3686 = vrot.slane %v3600, 6
        %v3687 = vsel %vm3665, %v3685, %v3686
        %v3688 = vrot.slane %v3686, 4
        %v3689 = vrot.slane %v3601, 6
        %v3690 = vsel %vm3665, %v3688, %v3689
        %v3691 = vrot.slane %v3689, 4
        %v3692 = vrot.slane %v3602, 6
        %v3693 = vsel %vm3665, %v3691, %v3692
        %v3694 = vrot.slane %v3692, 4
        %v3695 = vrot.slane %v3603, 6
        %v3696 = vsel %vm3665, %v3694, %v3695
        %v3697 = vrot.slane %v3695, 4
        %v3698 = vrot.slane %v3604, 6
        %v3699 = vsel %vm3665, %v3697, %v3698
        %v3700 = vrot.slane %v3698, 4
        %v3701 = vrot.slane %v3605, 6
        %v3702 = vsel %vm3665, %v3700, %v3701
        %v3703 = vrot.slane %v3701, 4
        %v3704 = vrot.slane %v3606, 6
        %v3705 = vsel %vm3665, %v3703, %v3704
        %v3706 = vrot.slane %v3704, 4
        %v3707 = vrot.slane %v3607, 6
        %v3708 = vsel %vm3665, %v3706, %v3707
        %v3709 = vrot.slane %v3707, 4
        %v3710 = vrot.slane %v3608, 6
        %v3711 = vsel %vm3665, %v3709, %v3710
        %v3712 = vrot.slane %v3710, 4
        %v3713 = vrot.slane %v3609, 6
        %v3714 = vsel %vm3665, %v3712, %v3713
        %v3715 = vrot.slane %v3713, 4
        %v3716 = vrot.slane %v3610, 6
        %v3717 = vsel %vm3665, %v3715, %v3716
        %v3718 = vrot.slane %v3716, 4
        %v3719 = vrot.slane %v3611, 6
        %v3720 = vsel %vm3665, %v3718, %v3719
        %v3721 = vrot.slane %v3719, 4
        %v3722 = vrot.slane %v3612, 6
        %v3723 = vsel %vm3665, %v3721, %v3722
        %v3724 = vrot.slane %v3722, 4
        %v3725 = vrot.slane %v3613, 6
        %v3726 = vsel %vm3665, %v3724, %v3725
        %v3727 = vrot.slane %v3725, 4
        %v3728 = vrot.slane %v3614, 6
        %v3729 = vsel %vm3665, %v3727, %v3728
        %v3730 = vrot.slane %v3728, 4
        %v3731 = vrot.slane %v3615, 6
        %v3732 = vsel %vm3665, %v3730, %v3731
        %v3733 = vrot.slane %v3731, 4
        %v3734 = vrot.slane %v3616, 6
        %v3735 = vsel %vm3665, %v3733, %v3734
        %v3736 = vrot.slane %v3734, 4
        %v3737 = vrot.slane %v3617, 6
        %v3738 = vsel %vm3665, %v3736, %v3737
        %v3739 = vrot.slane %v3737, 4
        %v3740 = vrot.slane %v3618, 6
        %v3741 = vsel %vm3665, %v3739, %v3740
        %v3742 = vrot.slane %v3740, 4
        %v3743 = vrot.slane %v3619, 6
        %v3744 = vsel %vm3665, %v3742, %v3743
        %v3745 = vrot.slane %v3743, 4
        %v3746 = vrot.slane %v3620, 6
        %v3747 = vsel %vm3665, %v3745, %v3746
        %v3748 = vrot.slane %v3746, 4
        %v3749 = vrot.slane %v3621, 6
        %v3750 = vsel %vm3665, %v3748, %v3749
        %v3751 = vrot.slane %v3749, 4
        %v3752 = vrot.slane %v3622, 6
        %v3753 = vsel %vm3665, %v3751, %v3752
        %v3754 = vrot.slane %v3752, 4
        %v3755 = vrot.slane %v3623, 6
        %v3756 = vsel %vm3665, %v3754, %v3755
        %v3757 = vrot.slane %v3755, 4
        %v3758 = vrot.slane %v3624, 6
        %v3759 = vsel %vm3665, %v3757, %v3758
        %v3760 = vrot.slane %v3758, 4
        %v3761 = vrot.slane %v3625, 6
        %v3762 = vsel %vm3665, %v3760, %v3761
        %v3763 = vrot.slane %v3761, 4
        %v3764 = vrot.slane %v3626, 6
        %v3765 = vsel %vm3665, %v3763, %v3764
        %v3766 = vrot.slane %v3764, 4
        %v3767 = vrot.slane %v3627, 6
        %v3768 = vsel %vm3665, %v3766, %v3767
        %3769 = vrot.lane.b32.xlu0 %v3669, 64
        %v3770 = vpop.permute.xlu0 %3769
        %3771 = vrot.lane.b32.xlu0 %v3672, 64
        %v3772 = vpop.permute.xlu0 %3771
        %3773 = vrot.lane.b32.xlu0 %v3675, 64
        %v3774 = vpop.permute.xlu0 %3773
        %3775 = vrot.lane.b32.xlu0 %v3678, 64
        %v3776 = vpop.permute.xlu0 %3775
        %3777 = vrot.lane.b32.xlu0 %v3681, 64
        %v3778 = vpop.permute.xlu0 %3777
        %3779 = vrot.lane.b32.xlu0 %v3684, 64
        %v3780 = vpop.permute.xlu0 %3779
        %3781 = vrot.lane.b32.xlu0 %v3687, 64
        %v3782 = vpop.permute.xlu0 %3781
        %3783 = vrot.lane.b32.xlu0 %v3690, 64
        %v3784 = vpop.permute.xlu0 %3783
        %3785 = vrot.lane.b32.xlu0 %v3693, 64
        %v3786 = vpop.permute.xlu0 %3785
        %3787 = vrot.lane.b32.xlu0 %v3696, 64
        %v3788 = vpop.permute.xlu0 %3787
        %3789 = vrot.lane.b32.xlu0 %v3699, 64
        %v3790 = vpop.permute.xlu0 %3789
        %3791 = vrot.lane.b32.xlu0 %v3702, 64
        %v3792 = vpop.permute.xlu0 %3791
        %3793 = vrot.lane.b32.xlu0 %v3705, 64
        %v3794 = vpop.permute.xlu0 %3793
        %3795 = vrot.lane.b32.xlu0 %v3708, 64
        %v3796 = vpop.permute.xlu0 %3795
        %3797 = vrot.lane.b32.xlu0 %v3711, 64
        %v3798 = vpop.permute.xlu0 %3797
        %3799 = vrot.lane.b32.xlu0 %v3714, 64
        %v3800 = vpop.permute.xlu0 %3799
        %3801 = vrot.lane.b32.xlu0 %v3717, 64
        %v3802 = vpop.permute.xlu0 %3801
        %3803 = vrot.lane.b32.xlu0 %v3720, 64
        %v3804 = vpop.permute.xlu0 %3803
        %3805 = vrot.lane.b32.xlu0 %v3723, 64
        %v3806 = vpop.permute.xlu0 %3805
        %3807 = vrot.lane.b32.xlu0 %v3726, 64
        %v3808 = vpop.permute.xlu0 %3807
        %3809 = vrot.lane.b32.xlu0 %v3729, 64
        %v3810 = vpop.permute.xlu0 %3809
        %3811 = vrot.lane.b32.xlu0 %v3732, 64
        %v3812 = vpop.permute.xlu0 %3811
        %3813 = vrot.lane.b32.xlu0 %v3735, 64
        %v3814 = vpop.permute.xlu0 %3813
        %3815 = vrot.lane.b32.xlu0 %v3738, 64
        %v3816 = vpop.permute.xlu0 %3815
        %3817 = vrot.lane.b32.xlu0 %v3741, 64
        %v3818 = vpop.permute.xlu0 %3817
        %3819 = vrot.lane.b32.xlu0 %v3744, 64
        %v3820 = vpop.permute.xlu0 %3819
        %3821 = vrot.lane.b32.xlu0 %v3747, 64
        %v3822 = vpop.permute.xlu0 %3821
        %3823 = vrot.lane.b32.xlu0 %v3750, 64
        %v3824 = vpop.permute.xlu0 %3823
        %3825 = vrot.lane.b32.xlu0 %v3753, 64
        %v3826 = vpop.permute.xlu0 %3825
        %3827 = vrot.lane.b32.xlu0 %v3756, 64
        %v3828 = vpop.permute.xlu0 %3827
        %3829 = vrot.lane.b32.xlu0 %v3759, 64
        %v3830 = vpop.permute.xlu0 %3829
        %3831 = vrot.lane.b32.xlu0 %v3762, 64
        %v3832 = vpop.permute.xlu0 %3831
        %3833 = vrot.lane.b32.xlu0 %v3765, 64
        %v3834 = vpop.permute.xlu0 %3833
        %3835 = vrot.lane.b32.xlu0 %v3768, 64
        %v3836 = vpop.permute.xlu0 %3835
        %vm3871 = vcmask 585216
        %3872 = vst.msk [vmem:[#allocation2] sm:$0xf] %vm3871, %v3770
        %3873 = vst.msk [vmem:[#allocation2 + $0x4] sm:$0xf] %vm3871, %v3772
        %3874 = vst.msk [vmem:[#allocation2 + $0x8] sm:$0xf] %vm3871, %v3774
        %3875 = vst.msk [vmem:[#allocation2 + $0xc] sm:$0xf] %vm3871, %v3776
        %3876 = vst.msk [vmem:[#allocation2 + $0x10] sm:$0xf] %vm3871, %v3778
        %3877 = vst.msk [vmem:[#allocation2 + $0x14] sm:$0xf] %vm3871, %v3780
        %3878 = vst.msk [vmem:[#allocation2 + $0x18] sm:$0xf] %vm3871, %v3782
        %3879 = vst.msk [vmem:[#allocation2 + $0x1c] sm:$0xf] %vm3871, %v3784
        %3880 = vst.msk [vmem:[#allocation2 + $0x20] sm:$0xf] %vm3871, %v3786
        %3881 = vst.msk [vmem:[#allocation2 + $0x24] sm:$0xf] %vm3871, %v3788
        %3882 = vst.msk [vmem:[#allocation2 + $0x28] sm:$0xf] %vm3871, %v3790
        %3883 = vst.msk [vmem:[#allocation2 + $0x2c] sm:$0xf] %vm3871, %v3792
        %3884 = vst.msk [vmem:[#allocation2 + $0x30] sm:$0xf] %vm3871, %v3794
        %3885 = vst.msk [vmem:[#allocation2 + $0x34] sm:$0xf] %vm3871, %v3796
        %3886 = vst.msk [vmem:[#allocation2 + $0x38] sm:$0xf] %vm3871, %v3798
        %3887 = vst.msk [vmem:[#allocation2 + $0x3c] sm:$0xf] %vm3871, %v3800
        %3888 = vst.msk [vmem:[#allocation2 + $0x40] sm:$0xf] %vm3871, %v3802
        %3889 = vst.msk [vmem:[#allocation2 + $0x44] sm:$0xf] %vm3871, %v3804
        %3890 = vst.msk [vmem:[#allocation2 + $0x48] sm:$0xf] %vm3871, %v3806
        %3891 = vst.msk [vmem:[#allocation2 + $0x4c] sm:$0xf] %vm3871, %v3808
        %3892 = vst.msk [vmem:[#allocation2 + $0x50] sm:$0xf] %vm3871, %v3810
        %3893 = vst.msk [vmem:[#allocation2 + $0x54] sm:$0xf] %vm3871, %v3812
        %3894 = vst.msk [vmem:[#allocation2 + $0x58] sm:$0xf] %vm3871, %v3814
        %3895 = vst.msk [vmem:[#allocation2 + $0x5c] sm:$0xf] %vm3871, %v3816
        %3896 = vst.msk [vmem:[#allocation2 + $0x60] sm:$0xf] %vm3871, %v3818
        %3897 = vst.msk [vmem:[#allocation2 + $0x64] sm:$0xf] %vm3871, %v3820
        %3898 = vst.msk [vmem:[#allocation2 + $0x68] sm:$0xf] %vm3871, %v3822
        %3899 = vst.msk [vmem:[#allocation2 + $0x6c] sm:$0xf] %vm3871, %v3824
        %3900 = vst.msk [vmem:[#allocation2 + $0x70] sm:$0xf] %vm3871, %v3826
        %3901 = vst.msk [vmem:[#allocation2 + $0x74] sm:$0xf] %vm3871, %v3828
        %3902 = vst.msk [vmem:[#allocation2 + $0x78] sm:$0xf] %vm3871, %v3830
        %3903 = vst.msk [vmem:[#allocation2 + $0x7c] sm:$0xf] %vm3871, %v3832
        %3904 = vst.msk [vmem:[#allocation2 + $0x80] sm:$0xf] %vm3871, %v3834
        %3905 = vst.msk [vmem:[#allocation2 + $0x84] sm:$0xf] %vm3871, %v3836
        %v3906 = vld [vmem:[#allocation2] sm:$0xf]
        %v3907 = vld [vmem:[#allocation2 + $0x4] sm:$0xf]
        %v3908 = vld [vmem:[#allocation2 + $0x8] sm:$0xf]
        %v3909 = vld [vmem:[#allocation2 + $0xc] sm:$0xf]
        %v3910 = vld [vmem:[#allocation2 + $0x10] sm:$0xf]
        %v3911 = vld [vmem:[#allocation2 + $0x14] sm:$0xf]
        %v3912 = vld [vmem:[#allocation2 + $0x18] sm:$0xf]
        %v3913 = vld [vmem:[#allocation2 + $0x1c] sm:$0xf]
        %v3914 = vld [vmem:[#allocation2 + $0x20] sm:$0xf]
        %v3915 = vld [vmem:[#allocation2 + $0x24] sm:$0xf]
        %v3916 = vld [vmem:[#allocation2 + $0x28] sm:$0xf]
        %v3917 = vld [vmem:[#allocation2 + $0x2c] sm:$0xf]
        %v3918 = vld [vmem:[#allocation2 + $0x30] sm:$0xf]
        %v3919 = vld [vmem:[#allocation2 + $0x34] sm:$0xf]
        %v3920 = vld [vmem:[#allocation2 + $0x38] sm:$0xf]
        %v3921 = vld [vmem:[#allocation2 + $0x3c] sm:$0xf]
        %v3922 = vld [vmem:[#allocation2 + $0x40] sm:$0xf]
        %v3923 = vld [vmem:[#allocation2 + $0x44] sm:$0xf]
        %v3924 = vld [vmem:[#allocation2 + $0x48] sm:$0xf]
        %v3925 = vld [vmem:[#allocation2 + $0x4c] sm:$0xf]
        %v3926 = vld [vmem:[#allocation2 + $0x50] sm:$0xf]
        %v3927 = vld [vmem:[#allocation2 + $0x54] sm:$0xf]
        %v3928 = vld [vmem:[#allocation2 + $0x58] sm:$0xf]
        %v3929 = vld [vmem:[#allocation2 + $0x5c] sm:$0xf]
        %v3930 = vld [vmem:[#allocation2 + $0x60] sm:$0xf]
        %v3931 = vld [vmem:[#allocation2 + $0x64] sm:$0xf]
        %v3932 = vld [vmem:[#allocation2 + $0x68] sm:$0xf]
        %v3933 = vld [vmem:[#allocation2 + $0x6c] sm:$0xf]
        %v3934 = vld [vmem:[#allocation2 + $0x70] sm:$0xf]
        %v3935 = vld [vmem:[#allocation2 + $0x74] sm:$0xf]
        %v3936 = vld [vmem:[#allocation2 + $0x78] sm:$0xf]
        %v3937 = vld [vmem:[#allocation2 + $0x7c] sm:$0xf]
        %v3938 = vld [vmem:[#allocation2 + $0x80] sm:$0xf]
        %v3939 = vld [vmem:[#allocation2 + $0x84] sm:$0xf]
        %v3940 = vld [vmem:[%s2] sm:$0xf]
        %v3941 = vld [vmem:[%s2 + $0x4] sm:$0xf]
        %v3942 = vld [vmem:[%s2 + $0x8] sm:$0xf]
        %v3943 = vld [vmem:[%s2 + $0xc] sm:$0xf]
        %v3944 = vld [vmem:[%s2 + $0x10] sm:$0xf]
        %v3945 = vld [vmem:[%s2 + $0x14] sm:$0xf]
        %v3946 = vld [vmem:[%s2 + $0x18] sm:$0xf]
        %v3947 = vld [vmem:[%s2 + $0x1c] sm:$0xf]
        %v3948 = vld [vmem:[%s2 + $0x20] sm:$0xf]
        %v3949 = vld [vmem:[%s3] sm:$0x1]
        %v3951 = vperm.slane %v3949, 0
        %v3987 = vunpack.c.l.b16 %v3906
        %v3988 = vunpack.c.l.b16 %v3907
        %v3989 = vunpack.c.l.b16 %v3908
        %v3990 = vunpack.c.l.b16 %v3909
        %v3991 = vunpack.c.l.b16 %v3910
        %v3992 = vunpack.c.l.b16 %v3911
        %v3993 = vunpack.c.l.b16 %v3912
        %v3994 = vunpack.c.l.b16 %v3913
        %v3995 = vunpack.c.l.b16 %v3914
        %v3996 = vunpack.c.l.b16 %v3915
        %v3997 = vunpack.c.l.b16 %v3916
        %v3998 = vunpack.c.l.b16 %v3917
        %v3999 = vunpack.c.l.b16 %v3918
        %v4000 = vunpack.c.l.b16 %v3919
        %v4001 = vunpack.c.l.b16 %v3920
        %v4002 = vunpack.c.l.b16 %v3921
        %v4003 = vunpack.c.l.b16 %v3922
        %v4004 = vunpack.c.l.b16 %v3923
        %v4005 = vunpack.c.l.b16 %v3924
        %v4006 = vunpack.c.l.b16 %v3925
        %v4007 = vunpack.c.l.b16 %v3926
        %v4008 = vunpack.c.l.b16 %v3927
        %v4009 = vunpack.c.l.b16 %v3928
        %v4010 = vunpack.c.l.b16 %v3929
        %v4011 = vunpack.c.l.b16 %v3930
        %v4012 = vunpack.c.l.b16 %v3931
        %v4013 = vunpack.c.l.b16 %v3932
        %v4014 = vunpack.c.l.b16 %v3933
        %v4015 = vunpack.c.l.b16 %v3934
        %v4016 = vunpack.c.l.b16 %v3935
        %v4017 = vunpack.c.l.b16 %v3936
        %v4018 = vunpack.c.l.b16 %v3937
        %v4019 = vunpack.c.l.b16 %v3938
        %v4020 = vunpack.c.l.b16 %v3939
        %v4021 = vpack.c.b16 %v3988, %v3987
        %v4022 = vpack.c.b16 %v3990, %v3989
        %v4023 = vpack.c.b16 %v3992, %v3991
        %v4024 = vpack.c.b16 %v3994, %v3993
        %v4025 = vpack.c.b16 %v3996, %v3995
        %v4026 = vpack.c.b16 %v3998, %v3997
        %v4027 = vpack.c.b16 %v4000, %v3999
        %v4028 = vpack.c.b16 %v4002, %v4001
        %v4029 = vpack.c.b16 %v4004, %v4003
        %v4030 = vpack.c.b16 %v4006, %v4005
        %v4031 = vpack.c.b16 %v4008, %v4007
        %v4032 = vpack.c.b16 %v4010, %v4009
        %v4033 = vpack.c.b16 %v4012, %v4011
        %v4034 = vpack.c.b16 %v4014, %v4013
        %v4035 = vpack.c.b16 %v4016, %v4015
        %v4036 = vpack.c.b16 %v4018, %v4017
        %v4037 = vpack.c.b16 %v4020, %v4019
        %v4047 = vunpack.c.l.b16 %v3940
        %v4048 = vunpack.c.l.b16 %v3941
        %v4049 = vunpack.c.l.b16 %v3942
        %v4050 = vunpack.c.l.b16 %v3943
        %v4051 = vunpack.c.l.b16 %v3944
        %v4052 = vunpack.c.l.b16 %v3945
        %v4053 = vunpack.c.l.b16 %v3946
        %v4054 = vunpack.c.l.b16 %v3947
        %v4055 = vunpack.c.l.b16 %v3948
        %v4056 = vpack.c.b16 %v4048, %v4047
        %v4057 = vpack.c.b16 %v4050, %v4049
        %v4058 = vpack.c.b16 %v4052, %v4051
        %v4059 = vpack.c.b16 %v4054, %v4053
        %v4060 = vpack.c.b16 %v4055, %v4055
        %vm4065 = vcmask 588800
        %v4067 = vsel %vm4065, %v4021, 0
        %v4070 = vsel %vm4065, %v4022, 0
        %v4073 = vsel %vm4065, %v4023, 0
        %v4076 = vsel %vm4065, %v4024, 0
        %v4079 = vsel %vm4065, %v4025, 0
        %v4082 = vsel %vm4065, %v4026, 0
        %v4085 = vsel %vm4065, %v4027, 0
        %v4088 = vsel %vm4065, %v4028, 0
        %v4091 = vsel %vm4065, %v4029, 0
        %v4094 = vsel %vm4065, %v4030, 0
        %v4097 = vsel %vm4065, %v4031, 0
        %v4100 = vsel %vm4065, %v4032, 0
        %v4103 = vsel %vm4065, %v4033, 0
        %v4106 = vsel %vm4065, %v4034, 0
        %v4109 = vsel %vm4065, %v4035, 0
        %v4112 = vsel %vm4065, %v4036, 0
        %v4115 = vsel %vm4065, %v4037, 0
        %vm4117 = vcmask 1043456
        %v4119 = vsel %vm4117, %v4060, 0
        %4121 = vmatpush.bf16.msra.mxu0 0
        %4122 = vmatpush.bf16.msra.mxu0 0
        %4123 = vmatpush.bf16.msra.mxu0 0
        %4124 = vmatpush.bf16.msra.mxu0 %v4119
        %4125 = vmatpush.bf16.msra.mxu0 %v4059
        %4126 = vmatpush.bf16.msra.mxu0 %v4058
        %4127 = vmatpush.bf16.msra.mxu0 %v4057
        %4128 = vmatpush.bf16.msra.mxu0 %v4056
        %4129 = vmatmul.bf16.gmra.mxu0 %v4067
        %v4130 = vpop.f32.mrf.mxu0
        %v4131 = vadd.f32 %v3951, %v4130
        %v4132 = vpop.f32.mrf.mxu0
        %v4133 = vadd.f32 %v3951, %v4132
        %4134 = vmatmul.bf16.gmra.mxu0 %v4070
        %v4135 = vpop.f32.mrf.mxu0
        %v4136 = vadd.f32 %v3951, %v4135
        %v4137 = vpop.f32.mrf.mxu0
        %v4138 = vadd.f32 %v3951, %v4137
        %4139 = vmatmul.bf16.gmra.mxu0 %v4073
        %v4140 = vpop.f32.mrf.mxu0
        %v4141 = vadd.f32 %v3951, %v4140
        %v4142 = vpop.f32.mrf.mxu0
        %v4143 = vadd.f32 %v3951, %v4142
        %4144 = vmatmul.bf16.gmra.mxu0 %v4076
        %v4145 = vpop.f32.mrf.mxu0
        %v4146 = vadd.f32 %v3951, %v4145
        %v4147 = vpop.f32.mrf.mxu0
        %v4148 = vadd.f32 %v3951, %v4147
        %4149 = vmatmul.bf16.gmra.mxu0 %v4079
        %v4150 = vpop.f32.mrf.mxu0
        %v4151 = vadd.f32 %v3951, %v4150
        %v4152 = vpop.f32.mrf.mxu0
        %v4153 = vadd.f32 %v3951, %v4152
        %4154 = vmatmul.bf16.gmra.mxu0 %v4082
        %v4155 = vpop.f32.mrf.mxu0
        %v4156 = vadd.f32 %v3951, %v4155
        %v4157 = vpop.f32.mrf.mxu0
        %v4158 = vadd.f32 %v3951, %v4157
        %4159 = vmatmul.bf16.gmra.mxu0 %v4085
        %v4160 = vpop.f32.mrf.mxu0
        %v4161 = vadd.f32 %v3951, %v4160
        %v4162 = vpop.f32.mrf.mxu0
        %v4163 = vadd.f32 %v3951, %v4162
        %4164 = vmatmul.bf16.gmra.mxu0 %v4088
        %v4165 = vpop.f32.mrf.mxu0
        %v4166 = vadd.f32 %v3951, %v4165
        %v4167 = vpop.f32.mrf.mxu0
        %v4168 = vadd.f32 %v3951, %v4167
        %4169 = vmatmul.bf16.gmra.mxu0 %v4091
        %v4170 = vpop.f32.mrf.mxu0
        %v4171 = vadd.f32 %v3951, %v4170
        %v4172 = vpop.f32.mrf.mxu0
        %v4173 = vadd.f32 %v3951, %v4172
        %4174 = vmatmul.bf16.gmra.mxu0 %v4094
        %v4175 = vpop.f32.mrf.mxu0
        %v4176 = vadd.f32 %v3951, %v4175
        %v4177 = vpop.f32.mrf.mxu0
        %v4178 = vadd.f32 %v3951, %v4177
        %4179 = vmatmul.bf16.gmra.mxu0 %v4097
        %v4180 = vpop.f32.mrf.mxu0
        %v4181 = vadd.f32 %v3951, %v4180
        %v4182 = vpop.f32.mrf.mxu0
        %v4183 = vadd.f32 %v3951, %v4182
        %4184 = vmatmul.bf16.gmra.mxu0 %v4100
        %v4185 = vpop.f32.mrf.mxu0
        %v4186 = vadd.f32 %v3951, %v4185
        %v4187 = vpop.f32.mrf.mxu0
        %v4188 = vadd.f32 %v3951, %v4187
        %4189 = vmatmul.bf16.gmra.mxu0 %v4103
        %v4190 = vpop.f32.mrf.mxu0
        %v4191 = vadd.f32 %v3951, %v4190
        %v4192 = vpop.f32.mrf.mxu0
        %v4193 = vadd.f32 %v3951, %v4192
        %4194 = vmatmul.bf16.gmra.mxu0 %v4106
        %v4195 = vpop.f32.mrf.mxu0
        %v4196 = vadd.f32 %v3951, %v4195
        %v4197 = vpop.f32.mrf.mxu0
        %v4198 = vadd.f32 %v3951, %v4197
        %4199 = vmatmul.bf16.gmra.mxu0 %v4109
        %v4200 = vpop.f32.mrf.mxu0
        %v4201 = vadd.f32 %v3951, %v4200
        %v4202 = vpop.f32.mrf.mxu0
        %v4203 = vadd.f32 %v3951, %v4202
        %4204 = vmatmul.bf16.gmra.mxu0 %v4112
        %v4205 = vpop.f32.mrf.mxu0
        %v4206 = vadd.f32 %v3951, %v4205
        %v4207 = vpop.f32.mrf.mxu0
        %v4208 = vadd.f32 %v3951, %v4207
        %4209 = vmatmul.bf16.gmra.mxu0 %v4115
        %v4210 = vpop.f32.mrf.mxu0
        %v4211 = vadd.f32 %v3951, %v4210
        %v4212 = vpop.f32.mrf.mxu0
        %v4213 = vadd.f32 %v3951, %v4212
        %4214 = vdwg.mxu0
        %v4215 = vmax.f32 %v4131, 0.0
        %v4216 = vmax.f32 %v4133, 0.0
        %v4217 = vmax.f32 %v4136, 0.0
        %v4218 = vmax.f32 %v4138, 0.0
        %v4219 = vmax.f32 %v4141, 0.0
        %v4220 = vmax.f32 %v4143, 0.0
        %v4221 = vmax.f32 %v4146, 0.0
        %v4222 = vmax.f32 %v4148, 0.0
        %v4223 = vmax.f32 %v4151, 0.0
        %v4224 = vmax.f32 %v4153, 0.0
        %v4225 = vmax.f32 %v4156, 0.0
        %v4226 = vmax.f32 %v4158, 0.0
        %v4227 = vmax.f32 %v4161, 0.0
        %v4228 = vmax.f32 %v4163, 0.0
        %v4229 = vmax.f32 %v4166, 0.0
        %v4230 = vmax.f32 %v4168, 0.0
        %v4231 = vmax.f32 %v4171, 0.0
        %v4232 = vmax.f32 %v4173, 0.0
        %v4233 = vmax.f32 %v4176, 0.0
        %v4234 = vmax.f32 %v4178, 0.0
        %v4235 = vmax.f32 %v4181, 0.0
        %v4236 = vmax.f32 %v4183, 0.0
        %v4237 = vmax.f32 %v4186, 0.0
        %v4238 = vmax.f32 %v4188, 0.0
        %v4239 = vmax.f32 %v4191, 0.0
        %v4240 = vmax.f32 %v4193, 0.0
        %v4241 = vmax.f32 %v4196, 0.0
        %v4242 = vmax.f32 %v4198, 0.0
        %v4243 = vmax.f32 %v4201, 0.0
        %v4244 = vmax.f32 %v4203, 0.0
        %v4245 = vmax.f32 %v4206, 0.0
        %v4246 = vmax.f32 %v4208, 0.0
        %v4247 = vmax.f32 %v4211, 0.0
        %v4248 = vmax.f32 %v4213, 0.0
        %v4249 = vlaneseq
        %v4250 = vand.u32 %v4249, 127
        %v4251 = vadd.s32 %v4250, 128
        %v4252 = vadd.s32 %v4250, 256
        %vm4253 = vcmp.lt.s32.totalorder %v4250, 0
        %v4254 = vsub.s32 0, %v4250
        %v4255 = vsel %vm4253, %v4254, %v4250
        %v4256 = vand.u32 %v4255, 65535
        %v4257 = vshrl.u32 %v4255, 16
        %v4259 = vmul.u32 %v4256, 61681
        %v4260 = vmul.u32 %v4256, 61680
        %v4261 = vmul.u32 %v4257, 61681
        %v4262 = vmul.u32 %v4257, 61680
        %v4263 = vshll.u32 %v4260, 16
        %v4264 = vshrl.u32 %v4260, 16
        %v4265 = vshll.u32 %v4261, 16
        %v4266 = vshrl.u32 %v4261, 16
        %vm4267 = vc.u32 %v4259, %v4263
        %v4268 = vsel %vm4267, 1, 0
        %v4269 = vadd.s32 %v4259, %v4263
        %v4270 = vadd.s32 %v4262, %v4268
        %vm4271 = vc.u32 %v4269, %v4265
        %v4272 = vsel %vm4271, 1, 0
        %v4273 = vadd.s32 %v4269, %v4265
        %v4274 = vadd.s32 %v4270, %v4272
        %v4275 = vadd.s32 %v4274, %v4264
        %v4276 = vadd.s32 %v4275, %v4266
        %v4277 = vshrl.u32 %v4276, 4
        %v4278 = vmul.u32 %v4277, 17
        %v4279 = vsub.s32 %v4255, %v4278
        %v4280 = vsub.s32 0, %v4279
        %v4281 = vsel %vm4253, %v4280, %v4279
        %vm4282 = vcmp.lt.s32.totalorder %v4251, 0
        %v4283 = vsub.s32 0, %v4251
        %v4284 = vsel %vm4282, %v4283, %v4251
        %v4285 = vand.u32 %v4284, 65535
        %v4286 = vshrl.u32 %v4284, 16
        %v4288 = vmul.u32 %v4285, 61681
        %v4289 = vmul.u32 %v4285, 61680
        %v4290 = vmul.u32 %v4286, 61681
        %v4291 = vmul.u32 %v4286, 61680
        %v4292 = vshll.u32 %v4289, 16
        %v4293 = vshrl.u32 %v4289, 16
        %v4294 = vshll.u32 %v4290, 16
        %v4295 = vshrl.u32 %v4290, 16
        %vm4296 = vc.u32 %v4288, %v4292
        %v4297 = vsel %vm4296, 1, 0
        %v4298 = vadd.s32 %v4288, %v4292
        %v4299 = vadd.s32 %v4291, %v4297
        %vm4300 = vc.u32 %v4298, %v4294
        %v4301 = vsel %vm4300, 1, 0
        %v4302 = vadd.s32 %v4298, %v4294
        %v4303 = vadd.s32 %v4299, %v4301
        %v4304 = vadd.s32 %v4303, %v4293
        %v4305 = vadd.s32 %v4304, %v4295
        %v4306 = vshrl.u32 %v4305, 4
        %v4307 = vmul.u32 %v4306, 17
        %v4308 = vsub.s32 %v4284, %v4307
        %v4309 = vsub.s32 0, %v4308
        %v4310 = vsel %vm4282, %v4309, %v4308
        %vm4311 = vcmp.lt.s32.totalorder %v4252, 0
        %v4312 = vsub.s32 0, %v4252
        %v4313 = vsel %vm4311, %v4312, %v4252
        %v4314 = vand.u32 %v4313, 65535
        %v4315 = vshrl.u32 %v4313, 16
        %v4317 = vmul.u32 %v4314, 61681
        %v4318 = vmul.u32 %v4314, 61680
        %v4319 = vmul.u32 %v4315, 61681
        %v4320 = vmul.u32 %v4315, 61680
        %v4321 = vshll.u32 %v4318, 16
        %v4322 = vshrl.u32 %v4318, 16
        %v4323 = vshll.u32 %v4319, 16
        %v4324 = vshrl.u32 %v4319, 16
        %vm4325 = vc.u32 %v4317, %v4321
        %v4326 = vsel %vm4325, 1, 0
        %v4327 = vadd.s32 %v4317, %v4321
        %v4328 = vadd.s32 %v4320, %v4326
        %vm4329 = vc.u32 %v4327, %v4323
        %v4330 = vsel %vm4329, 1, 0
        %v4331 = vadd.s32 %v4327, %v4323
        %v4332 = vadd.s32 %v4328, %v4330
        %v4333 = vadd.s32 %v4332, %v4322
        %v4334 = vadd.s32 %v4333, %v4324
        %v4335 = vshrl.u32 %v4334, 4
        %v4336 = vmul.u32 %v4335, 17
        %v4337 = vsub.s32 %v4313, %v4336
        %v4338 = vsub.s32 0, %v4337
        %v4339 = vsel %vm4311, %v4338, %v4337
        %vm4340 = vcmp.ne.s32.totalorder %v4281, 0
        %vm4341 = vcmp.ne.s32.totalorder %v4310, 0
        %vm4342 = vcmp.ne.s32.totalorder %v4339, 0
        %vm4343 = vcmp.lt.s32.totalorder %v4281, 0
        %vm4344 = vcmp.lt.s32.totalorder %v4310, 0
        %vm4345 = vcmp.lt.s32.totalorder %v4339, 0
        %vm4346 = vmand %vm4343, %vm4340
        %vm4347 = vmand %vm4344, %vm4341
        %vm4348 = vmand %vm4345, %vm4342
        %v4349 = vadd.s32 %v4281, 17
        %v4350 = vadd.s32 %v4310, 17
        %v4351 = vadd.s32 %v4339, 17
        %v4352 = vsel %vm4346, %v4349, %v4281
        %v4353 = vsel %vm4347, %v4350, %v4310
        %v4354 = vsel %vm4348, %v4351, %v4339
        %vm4355 = vcmp.lt.s32.totalorder %v4352, 16
        %vm4356 = vcmp.lt.s32.totalorder %v4353, 16
        %vm4357 = vcmp.lt.s32.totalorder %v4354, 16
        %v4358 = vsel %vm4355, 0.00390625, 0.0
        %v4359 = vsel %vm4356, 0.00390625, 0.0
        %v4360 = vsel %vm4357, 0.00390625, 0.0
        %v4361 = vpack.c.bf16 %v4358, %v4358
        %v4362 = vpack.c.bf16 %v4359, %v4359
        %v4363 = vpack.c.bf16 %v4360, %v4360
        %v4364 = vpack.c.bf16 %v4216, %v4215
        %v4365 = vpack.c.bf16 %v4218, %v4217
        %v4366 = vpack.c.bf16 %v4220, %v4219
        %v4367 = vpack.c.bf16 %v4222, %v4221
        %v4368 = vpack.c.bf16 %v4224, %v4223
        %v4369 = vpack.c.bf16 %v4226, %v4225
        %v4370 = vpack.c.bf16 %v4228, %v4227
        %v4371 = vpack.c.bf16 %v4230, %v4229
        %v4372 = vpack.c.bf16 %v4232, %v4231
        %v4373 = vpack.c.bf16 %v4234, %v4233
        %v4374 = vpack.c.bf16 %v4236, %v4235
        %v4375 = vpack.c.bf16 %v4238, %v4237
        %v4376 = vpack.c.bf16 %v4240, %v4239
        %v4377 = vpack.c.bf16 %v4242, %v4241
        %v4378 = vpack.c.bf16 %v4244, %v4243
        %v4379 = vpack.c.bf16 %v4246, %v4245
        %v4380 = vpack.c.bf16 %v4248, %v4247
        %vm4381 = vcmask 130048
        %v4383 = vsel %vm4381, %v4363, 0
        %4385 = vmatpush.bf16.msra.mxu0 %v4371
        %4386 = vmatpush.bf16.msra.mxu0 %v4370
        %4387 = vmatpush.bf16.msra.mxu0 %v4369
        %4388 = vmatpush.bf16.msra.mxu0 %v4368
        %4389 = vmatpush.bf16.msra.mxu0 %v4367
        %4390 = vmatpush.bf16.msra.mxu0 %v4366
        %4391 = vmatpush.bf16.msra.mxu0 %v4365
        %4392 = vmatpush.bf16.msra.mxu0 %v4364
        %4393 = vmatmul.bf16.gmra.mxu0 %v4361
        %v4394 = vpop.f32.mrf.mxu0
        %v4395 = vadd.f32 0.0, %v4394
        %v4396 = vpop.f32.mrf.mxu0
        %4397 = vdwg.mxu0
        %4398 = vmatpush.bf16.msra.mxu0 %v4379
        %4399 = vmatpush.bf16.msra.mxu0 %v4378
        %4400 = vmatpush.bf16.msra.mxu0 %v4377
        %4401 = vmatpush.bf16.msra.mxu0 %v4376
        %4402 = vmatpush.bf16.msra.mxu0 %v4375
        %4403 = vmatpush.bf16.msra.mxu0 %v4374
        %4404 = vmatpush.bf16.msra.mxu0 %v4373
        %4405 = vmatpush.bf16.msra.mxu0 %v4372
        %4406 = vmatmul.bf16.gmra.mxu0 %v4362
        %v4407 = vpop.f32.mrf.mxu0
        %v4408 = vadd.f32 %v4395, %v4407
        %v4409 = vpop.f32.mrf.mxu0
        %4410 = vdwg.mxu0
        %4411 = vmatpush.bf16.msra.mxu0 0
        %4412 = vmatpush.bf16.msra.mxu0 0
        %4413 = vmatpush.bf16.msra.mxu0 0
        %4414 = vmatpush.bf16.msra.mxu0 0
        %4415 = vmatpush.bf16.msra.mxu0 0
        %4416 = vmatpush.bf16.msra.mxu0 0
        %4417 = vmatpush.bf16.msra.mxu0 0
        %4418 = vmatpush.bf16.msra.mxu0 %v4380
        %4419 = vmatmul.bf16.gmra.mxu0 %v4383
        %v4420 = vpop.f32.mrf.mxu0
        %v4421 = vadd.f32 %v4408, %v4420
        %v4422 = vpop.f32.mrf.mxu0
        %4423 = vdwg.mxu0
        %v4424 = vpack.c.bf16 %v4421, %v4421
        %v4425 = vld [vmem:[%s4] sm:$0xf]
        %v4426 = vld [vmem:[%s4 + $0x4] sm:$0xf]
        %v4427 = vld [vmem:[%s4 + $0x8] sm:$0xf]
        %v4428 = vld [vmem:[%s4 + $0xc] sm:$0xf]
        %v4429 = vld [vmem:[%s4 + $0x10] sm:$0xf]
        %v4430 = vld [vmem:[%s4 + $0x14] sm:$0xf]
        %v4431 = vld [vmem:[%s4 + $0x18] sm:$0xf]
        %v4432 = vld [vmem:[%s4 + $0x1c] sm:$0xf]
        %v4433 = vld [vmem:[%s4 + $0x20] sm:$0xf]
        %v4434 = vld [vmem:[%s4 + $0x24] sm:$0xf]
        %v4435 = vld [vmem:[%s4 + $0x28] sm:$0xf]
        %v4436 = vld [vmem:[%s4 + $0x2c] sm:$0xf]
        %v4437 = vld [vmem:[%s4 + $0x30] sm:$0xf]
        %v4438 = vld [vmem:[%s4 + $0x34] sm:$0xf]
        %v4439 = vld [vmem:[%s4 + $0x38] sm:$0xf]
        %v4440 = vld [vmem:[%s4 + $0x3c] sm:$0xf]
        %v4441 = vld [vmem:[%s5] sm:$0x1]
        %v4458 = vunpack.c.l.b16 %v4425
        %v4459 = vunpack.c.l.b16 %v4426
        %v4460 = vunpack.c.l.b16 %v4427
        %v4461 = vunpack.c.l.b16 %v4428
        %v4462 = vunpack.c.l.b16 %v4429
        %v4463 = vunpack.c.l.b16 %v4430
        %v4464 = vunpack.c.l.b16 %v4431
        %v4465 = vunpack.c.l.b16 %v4432
        %v4466 = vunpack.c.l.b16 %v4433
        %v4467 = vunpack.c.l.b16 %v4434
        %v4468 = vunpack.c.l.b16 %v4435
        %v4469 = vunpack.c.l.b16 %v4436
        %v4470 = vunpack.c.l.b16 %v4437
        %v4471 = vunpack.c.l.b16 %v4438
        %v4472 = vunpack.c.l.b16 %v4439
        %v4473 = vunpack.c.l.b16 %v4440
        %v4474 = vpack.c.b16 %v4459, %v4458
        %v4475 = vpack.c.b16 %v4461, %v4460
        %v4476 = vpack.c.b16 %v4463, %v4462
        %v4477 = vpack.c.b16 %v4465, %v4464
        %v4478 = vpack.c.b16 %v4467, %v4466
        %v4479 = vpack.c.b16 %v4469, %v4468
        %v4480 = vpack.c.b16 %v4471, %v4470
        %v4481 = vpack.c.b16 %v4473, %v4472
        %4490 = vmatpush.bf16.msra.mxu0 %v4481
        %4491 = vmatpush.bf16.msra.mxu0 %v4480
        %4492 = vmatpush.bf16.msra.mxu0 %v4479
        %4493 = vmatpush.bf16.msra.mxu0 %v4478
        %4494 = vmatpush.bf16.msra.mxu0 %v4477
        %4495 = vmatpush.bf16.msra.mxu0 %v4476
        %4496 = vmatpush.bf16.msra.mxu0 %v4475
        %4497 = vmatpush.bf16.msra.mxu0 %v4474
        %4498 = vmatmul.bf16.gmra.mxu0 %v4424
        %v4499 = vpop.f32.mrf.mxu0
        %v4500 = vadd.f32 %v4441, %v4499
        %v4501 = vpop.f32.mrf.mxu0
        %4502 = vdwg.mxu0
        %v4503 = vld [vmem:[%s511] sm:$0xf]
        %v4504 = vld [vmem:[%s511 + $0x4] sm:$0xf]
        %v4505 = vld [vmem:[%s511 + $0x8] sm:$0xf]
        %v4506 = vld [vmem:[%s511 + $0xc] sm:$0xf]
        %v4507 = vld [vmem:[%s511 + $0x10] sm:$0xf]
        %v4508 = vld [vmem:[%s511 + $0x14] sm:$0xf]
        %v4509 = vld [vmem:[%s511 + $0x18] sm:$0xf]
        %v4510 = vld [vmem:[%s511 + $0x1c] sm:$0xf]
        %v4511 = vld [vmem:[%s511 + $0x20] sm:$0xf]
        %v4512 = vld [vmem:[%s511 + $0x24] sm:$0xf]
        %v4513 = vld [vmem:[%s511 + $0x28] sm:$0xf]
        %v4514 = vld [vmem:[%s511 + $0x2c] sm:$0xf]
        %v4515 = vld [vmem:[%s511 + $0x30] sm:$0xf]
        %v4516 = vld [vmem:[%s511 + $0x34] sm:$0xf]
        %v4517 = vld [vmem:[%s511 + $0x38] sm:$0xf]
        %v4518 = vld [vmem:[%s511 + $0x3c] sm:$0xf]
        %v4519 = vld [vmem:[%s511 + $0x40] sm:$0xf]
        %v4520 = vld [vmem:[%s511 + $0x44] sm:$0xf]
        %v4521 = vld [vmem:[%s511 + $0x48] sm:$0xf]
        %v4522 = vld [vmem:[%s511 + $0x4c] sm:$0xf]
        %v4523 = vld [vmem:[%s511 + $0x50] sm:$0xf]
        %v4524 = vld [vmem:[%s511 + $0x54] sm:$0xf]
        %v4525 = vld [vmem:[%s511 + $0x58] sm:$0xf]
        %v4526 = vld [vmem:[%s511 + $0x5c] sm:$0xf]
        %v4527 = vld [vmem:[%s511 + $0x60] sm:$0xf]
        %v4528 = vld [vmem:[%s511 + $0x64] sm:$0xf]
        %v4529 = vld [vmem:[%s511 + $0x68] sm:$0xf]
        %v4530 = vld [vmem:[%s511 + $0x6c] sm:$0xf]
        %v4531 = vld [vmem:[%s511 + $0x70] sm:$0xf]
        %v4532 = vld [vmem:[%s511 + $0x74] sm:$0xf]
        %v4533 = vld [vmem:[%s511 + $0x78] sm:$0xf]
        %v4534 = vld [vmem:[%s511 + $0x7c] sm:$0xf]
        %v4535 = vld [vmem:[%s511 + $0x80] sm:$0xf]
        %v4536 = vld [vmem:[%s511 + $0x84] sm:$0xf]
        %4537 = vst.msk [vmem:[#allocation3] sm:$0xf] %vm547, %v4503
        %4538 = vst.msk [vmem:[#allocation3 + $0x4] sm:$0xf] %vm547, %v4504
        %4539 = vst.msk [vmem:[#allocation3 + $0x8] sm:$0xf] %vm547, %v4505
        %4540 = vst.msk [vmem:[#allocation3 + $0xc] sm:$0xf] %vm547, %v4506
        %4541 = vst.msk [vmem:[#allocation3 + $0x10] sm:$0xf] %vm547, %v4507
        %4542 = vst.msk [vmem:[#allocation3 + $0x14] sm:$0xf] %vm547, %v4508
        %4543 = vst.msk [vmem:[#allocation3 + $0x18] sm:$0xf] %vm547, %v4509
        %4544 = vst.msk [vmem:[#allocation3 + $0x1c] sm:$0xf] %vm547, %v4510
        %4545 = vst.msk [vmem:[#allocation3 + $0x20] sm:$0xf] %vm547, %v4511
        %4546 = vst.msk [vmem:[#allocation3 + $0x24] sm:$0xf] %vm547, %v4512
        %4547 = vst.msk [vmem:[#allocation3 + $0x28] sm:$0xf] %vm547, %v4513
        %4548 = vst.msk [vmem:[#allocation3 + $0x2c] sm:$0xf] %vm547, %v4514
        %4549 = vst.msk [vmem:[#allocation3 + $0x30] sm:$0xf] %vm547, %v4515
        %4550 = vst.msk [vmem:[#allocation3 + $0x34] sm:$0xf] %vm547, %v4516
        %4551 = vst.msk [vmem:[#allocation3 + $0x38] sm:$0xf] %vm547, %v4517
        %4552 = vst.msk [vmem:[#allocation3 + $0x3c] sm:$0xf] %vm547, %v4518
        %4553 = vst.msk [vmem:[#allocation3 + $0x40] sm:$0xf] %vm547, %v4519
        %4554 = vst.msk [vmem:[#allocation3 + $0x44] sm:$0xf] %vm547, %v4520
        %4555 = vst.msk [vmem:[#allocation3 + $0x48] sm:$0xf] %vm547, %v4521
        %4556 = vst.msk [vmem:[#allocation3 + $0x4c] sm:$0xf] %vm547, %v4522
        %4557 = vst.msk [vmem:[#allocation3 + $0x50] sm:$0xf] %vm547, %v4523
        %4558 = vst.msk [vmem:[#allocation3 + $0x54] sm:$0xf] %vm547, %v4524
        %4559 = vst.msk [vmem:[#allocation3 + $0x58] sm:$0xf] %vm547, %v4525
        %4560 = vst.msk [vmem:[#allocation3 + $0x5c] sm:$0xf] %vm547, %v4526
        %4561 = vst.msk [vmem:[#allocation3 + $0x60] sm:$0xf] %vm547, %v4527
        %4562 = vst.msk [vmem:[#allocation3 + $0x64] sm:$0xf] %vm547, %v4528
        %4563 = vst.msk [vmem:[#allocation3 + $0x68] sm:$0xf] %vm547, %v4529
        %4564 = vst.msk [vmem:[#allocation3 + $0x6c] sm:$0xf] %vm547, %v4530
        %4565 = vst.msk [vmem:[#allocation3 + $0x70] sm:$0xf] %vm547, %v4531
        %4566 = vst.msk [vmem:[#allocation3 + $0x74] sm:$0xf] %vm547, %v4532
        %4567 = vst.msk [vmem:[#allocation3 + $0x78] sm:$0xf] %vm547, %v4533
        %4568 = vst.msk [vmem:[#allocation3 + $0x7c] sm:$0xf] %vm547, %v4534
        %4569 = vst.msk [vmem:[#allocation3 + $0x80] sm:$0xf] %vm547, %v4535
        %4570 = vst.msk [vmem:[#allocation3 + $0x84] sm:$0xf] %vm547, %v4536
        %v4571 = vld [vmem:[%s511] sm:$0xf]
        %v4572 = vld [vmem:[%s511 + $0x4] sm:$0xf]
        %v4573 = vld [vmem:[%s511 + $0x8] sm:$0xf]
        %v4574 = vld [vmem:[%s511 + $0xc] sm:$0xf]
        %v4575 = vld [vmem:[%s511 + $0x10] sm:$0xf]
        %v4576 = vld [vmem:[%s511 + $0x14] sm:$0xf]
        %v4577 = vld [vmem:[%s511 + $0x18] sm:$0xf]
        %v4578 = vld [vmem:[%s511 + $0x1c] sm:$0xf]
        %v4579 = vld [vmem:[%s511 + $0x20] sm:$0xf]
        %v4580 = vld [vmem:[%s511 + $0x24] sm:$0xf]
        %v4581 = vld [vmem:[%s511 + $0x28] sm:$0xf]
        %v4582 = vld [vmem:[%s511 + $0x2c] sm:$0xf]
        %v4583 = vld [vmem:[%s511 + $0x30] sm:$0xf]
        %v4584 = vld [vmem:[%s511 + $0x34] sm:$0xf]
        %v4585 = vld [vmem:[%s511 + $0x38] sm:$0xf]
        %v4586 = vld [vmem:[%s511 + $0x3c] sm:$0xf]
        %v4587 = vld [vmem:[%s511 + $0x40] sm:$0xf]
        %v4588 = vld [vmem:[%s511 + $0x44] sm:$0xf]
        %v4589 = vld [vmem:[%s511 + $0x48] sm:$0xf]
        %v4590 = vld [vmem:[%s511 + $0x4c] sm:$0xf]
        %v4591 = vld [vmem:[%s511 + $0x50] sm:$0xf]
        %v4592 = vld [vmem:[%s511 + $0x54] sm:$0xf]
        %v4593 = vld [vmem:[%s511 + $0x58] sm:$0xf]
        %v4594 = vld [vmem:[%s511 + $0x5c] sm:$0xf]
        %v4595 = vld [vmem:[%s511 + $0x60] sm:$0xf]
        %v4596 = vld [vmem:[%s511 + $0x64] sm:$0xf]
        %v4597 = vld [vmem:[%s511 + $0x68] sm:$0xf]
        %v4598 = vld [vmem:[%s511 + $0x6c] sm:$0xf]
        %v4599 = vld [vmem:[%s511 + $0x70] sm:$0xf]
        %v4600 = vld [vmem:[%s511 + $0x74] sm:$0xf]
        %v4601 = vld [vmem:[%s511 + $0x78] sm:$0xf]
        %v4602 = vld [vmem:[%s511 + $0x7c] sm:$0xf]
        %v4603 = vld [vmem:[%s511 + $0x80] sm:$0xf]
        %v4604 = vld [vmem:[%s511 + $0x84] sm:$0xf]
        %v4605 = vld [vmem:[%s511 + $0x88] sm:$0x1]
        %v4607 = vshrl.u32 %v4571, 16
        %v4609 = vrot.slane %v4607, 4
        %v4610 = vshll.u32 %v4571, 16
        %v4612 = vrot.slane %v4610, 5
        %v4613 = vor.u32 %v4609, %v4612
        %v4614 = vrot.slane %v4613, 4
        %v4616 = vshll.u32 %v4572, 16
        %v4618 = vrot.slane %v4616, 5
        %v4619 = vsel %vm619, %v4614, %v4618
        %v4620 = vshrl.u32 %v4572, 16
        %v4622 = vrot.slane %v4620, 4
        %v4623 = vor.u32 %v4622, %v4618
        %v4624 = vrot.slane %v4623, 4
        %v4626 = vshll.u32 %v4573, 16
        %v4628 = vrot.slane %v4626, 5
        %v4629 = vsel %vm619, %v4624, %v4628
        %v4630 = vshrl.u32 %v4573, 16
        %v4632 = vrot.slane %v4630, 4
        %v4633 = vor.u32 %v4632, %v4628
        %v4634 = vrot.slane %v4633, 4
        %v4636 = vshll.u32 %v4574, 16
        %v4638 = vrot.slane %v4636, 5
        %v4639 = vsel %vm619, %v4634, %v4638
        %v4640 = vshrl.u32 %v4574, 16
        %v4642 = vrot.slane %v4640, 4
        %v4643 = vor.u32 %v4642, %v4638
        %v4644 = vrot.slane %v4643, 4
        %v4646 = vshll.u32 %v4575, 16
        %v4648 = vrot.slane %v4646, 5
        %v4649 = vsel %vm619, %v4644, %v4648
        %v4650 = vshrl.u32 %v4575, 16
        %v4652 = vrot.slane %v4650, 4
        %v4653 = vor.u32 %v4652, %v4648
        %v4654 = vrot.slane %v4653, 4
        %v4656 = vshll.u32 %v4576, 16
        %v4658 = vrot.slane %v4656, 5
        %v4659 = vsel %vm619, %v4654, %v4658
        %v4660 = vshrl.u32 %v4576, 16
        %v4662 = vrot.slane %v4660, 4
        %v4663 = vor.u32 %v4662, %v4658
        %v4664 = vrot.slane %v4663, 4
        %v4666 = vshll.u32 %v4577, 16
        %v4668 = vrot.slane %v4666, 5
        %v4669 = vsel %vm619, %v4664, %v4668
        %v4670 = vshrl.u32 %v4577, 16
        %v4672 = vrot.slane %v4670, 4
        %v4673 = vor.u32 %v4672, %v4668
        %v4674 = vrot.slane %v4673, 4
        %v4676 = vshll.u32 %v4578, 16
        %v4678 = vrot.slane %v4676, 5
        %v4679 = vsel %vm619, %v4674, %v4678
        %v4680 = vshrl.u32 %v4578, 16
        %v4682 = vrot.slane %v4680, 4
        %v4683 = vor.u32 %v4682, %v4678
        %v4684 = vrot.slane %v4683, 4
        %v4686 = vshll.u32 %v4579, 16
        %v4688 = vrot.slane %v4686, 5
        %v4689 = vsel %vm619, %v4684, %v4688
        %v4690 = vshrl.u32 %v4579, 16
        %v4692 = vrot.slane %v4690, 4
        %v4693 = vor.u32 %v4692, %v4688
        %v4694 = vrot.slane %v4693, 4
        %v4696 = vshll.u32 %v4580, 16
        %v4698 = vrot.slane %v4696, 5
        %v4699 = vsel %vm619, %v4694, %v4698
        %v4700 = vshrl.u32 %v4580, 16
        %v4702 = vrot.slane %v4700, 4
        %v4703 = vor.u32 %v4702, %v4698
        %v4704 = vrot.slane %v4703, 4
        %v4706 = vshll.u32 %v4581, 16
        %v4708 = vrot.slane %v4706, 5
        %v4709 = vsel %vm619, %v4704, %v4708
        %v4710 = vshrl.u32 %v4581, 16
        %v4712 = vrot.slane %v4710, 4
        %v4713 = vor.u32 %v4712, %v4708
        %v4714 = vrot.slane %v4713, 4
        %v4716 = vshll.u32 %v4582, 16
        %v4718 = vrot.slane %v4716, 5
        %v4719 = vsel %vm619, %v4714, %v4718
        %v4720 = vshrl.u32 %v4582, 16
        %v4722 = vrot.slane %v4720, 4
        %v4723 = vor.u32 %v4722, %v4718
        %v4724 = vrot.slane %v4723, 4
        %v4726 = vshll.u32 %v4583, 16
        %v4728 = vrot.slane %v4726, 5
        %v4729 = vsel %vm619, %v4724, %v4728
        %v4730 = vshrl.u32 %v4583, 16
        %v4732 = vrot.slane %v4730, 4
        %v4733 = vor.u32 %v4732, %v4728
        %v4734 = vrot.slane %v4733, 4
        %v4736 = vshll.u32 %v4584, 16
        %v4738 = vrot.slane %v4736, 5
        %v4739 = vsel %vm619, %v4734, %v4738
        %v4740 = vshrl.u32 %v4584, 16
        %v4742 = vrot.slane %v4740, 4
        %v4743 = vor.u32 %v4742, %v4738
        %v4744 = vrot.slane %v4743, 4
        %v4746 = vshll.u32 %v4585, 16
        %v4748 = vrot.slane %v4746, 5
        %v4749 = vsel %vm619, %v4744, %v4748
        %v4750 = vshrl.u32 %v4585, 16
        %v4752 = vrot.slane %v4750, 4
        %v4753 = vor.u32 %v4752, %v4748
        %v4754 = vrot.slane %v4753, 4
        %v4756 = vshll.u32 %v4586, 16
        %v4758 = vrot.slane %v4756, 5
        %v4759 = vsel %vm619, %v4754, %v4758
        %v4760 = vshrl.u32 %v4586, 16
        %v4762 = vrot.slane %v4760, 4
        %v4763 = vor.u32 %v4762, %v4758
        %v4764 = vrot.slane %v4763, 4
        %v4766 = vshll.u32 %v4587, 16
        %v4768 = vrot.slane %v4766, 5
        %v4769 = vsel %vm619, %v4764, %v4768
        %v4770 = vshrl.u32 %v4587, 16
        %v4772 = vrot.slane %v4770, 4
        %v4773 = vor.u32 %v4772, %v4768
        %v4774 = vrot.slane %v4773, 4
        %v4776 = vshll.u32 %v4588, 16
        %v4778 = vrot.slane %v4776, 5
        %v4779 = vsel %vm619, %v4774, %v4778
        %v4780 = vshrl.u32 %v4588, 16
        %v4782 = vrot.slane %v4780, 4
        %v4783 = vor.u32 %v4782, %v4778
        %v4784 = vrot.slane %v4783, 4
        %v4786 = vshll.u32 %v4589, 16
        %v4788 = vrot.slane %v4786, 5
        %v4789 = vsel %vm619, %v4784, %v4788
        %v4790 = vshrl.u32 %v4589, 16
        %v4792 = vrot.slane %v4790, 4
        %v4793 = vor.u32 %v4792, %v4788
        %v4794 = vrot.slane %v4793, 4
        %v4796 = vshll.u32 %v4590, 16
        %v4798 = vrot.slane %v4796, 5
        %v4799 = vsel %vm619, %v4794, %v4798
        %v4800 = vshrl.u32 %v4590, 16
        %v4802 = vrot.slane %v4800, 4
        %v4803 = vor.u32 %v4802, %v4798
        %v4804 = vrot.slane %v4803, 4
        %v4806 = vshll.u32 %v4591, 16
        %v4808 = vrot.slane %v4806, 5
        %v4809 = vsel %vm619, %v4804, %v4808
        %v4810 = vshrl.u32 %v4591, 16
        %v4812 = vrot.slane %v4810, 4
        %v4813 = vor.u32 %v4812, %v4808
        %v4814 = vrot.slane %v4813, 4
        %v4816 = vshll.u32 %v4592, 16
        %v4818 = vrot.slane %v4816, 5
        %v4819 = vsel %vm619, %v4814, %v4818
        %v4820 = vshrl.u32 %v4592, 16
        %v4822 = vrot.slane %v4820, 4
        %v4823 = vor.u32 %v4822, %v4818
        %v4824 = vrot.slane %v4823, 4
        %v4826 = vshll.u32 %v4593, 16
        %v4828 = vrot.slane %v4826, 5
        %v4829 = vsel %vm619, %v4824, %v4828
        %v4830 = vshrl.u32 %v4593, 16
        %v4832 = vrot.slane %v4830, 4
        %v4833 = vor.u32 %v4832, %v4828
        %v4834 = vrot.slane %v4833, 4
        %v4836 = vshll.u32 %v4594, 16
        %v4838 = vrot.slane %v4836, 5
        %v4839 = vsel %vm619, %v4834, %v4838
        %v4840 = vshrl.u32 %v4594, 16
        %v4842 = vrot.slane %v4840, 4
        %v4843 = vor.u32 %v4842, %v4838
        %v4844 = vrot.slane %v4843, 4
        %v4846 = vshll.u32 %v4595, 16
        %v4848 = vrot.slane %v4846, 5
        %v4849 = vsel %vm619, %v4844, %v4848
        %v4850 = vshrl.u32 %v4595, 16
        %v4852 = vrot.slane %v4850, 4
        %v4853 = vor.u32 %v4852, %v4848
        %v4854 = vrot.slane %v4853, 4
        %v4856 = vshll.u32 %v4596, 16
        %v4858 = vrot.slane %v4856, 5
        %v4859 = vsel %vm619, %v4854, %v4858
        %v4860 = vshrl.u32 %v4596, 16
        %v4862 = vrot.slane %v4860, 4
        %v4863 = vor.u32 %v4862, %v4858
        %v4864 = vrot.slane %v4863, 4
        %v4866 = vshll.u32 %v4597, 16
        %v4868 = vrot.slane %v4866, 5
        %v4869 = vsel %vm619, %v4864, %v4868
        %v4870 = vshrl.u32 %v4597, 16
        %v4872 = vrot.slane %v4870, 4
        %v4873 = vor.u32 %v4872, %v4868
        %v4874 = vrot.slane %v4873, 4
        %v4876 = vshll.u32 %v4598, 16
        %v4878 = vrot.slane %v4876, 5
        %v4879 = vsel %vm619, %v4874, %v4878
        %v4880 = vshrl.u32 %v4598, 16
        %v4882 = vrot.slane %v4880, 4
        %v4883 = vor.u32 %v4882, %v4878
        %v4884 = vrot.slane %v4883, 4
        %v4886 = vshll.u32 %v4599, 16
        %v4888 = vrot.slane %v4886, 5
        %v4889 = vsel %vm619, %v4884, %v4888
        %v4890 = vshrl.u32 %v4599, 16
        %v4892 = vrot.slane %v4890, 4
        %v4893 = vor.u32 %v4892, %v4888
        %v4894 = vrot.slane %v4893, 4
        %v4896 = vshll.u32 %v4600, 16
        %v4898 = vrot.slane %v4896, 5
        %v4899 = vsel %vm619, %v4894, %v4898
        %v4900 = vshrl.u32 %v4600, 16
        %v4902 = vrot.slane %v4900, 4
        %v4903 = vor.u32 %v4902, %v4898
        %v4904 = vrot.slane %v4903, 4
        %v4906 = vshll.u32 %v4601, 16
        %v4908 = vrot.slane %v4906, 5
        %v4909 = vsel %vm619, %v4904, %v4908
        %v4910 = vshrl.u32 %v4601, 16
        %v4912 = vrot.slane %v4910, 4
        %v4913 = vor.u32 %v4912, %v4908
        %v4914 = vrot.slane %v4913, 4
        %v4916 = vshll.u32 %v4602, 16
        %v4918 = vrot.slane %v4916, 5
        %v4919 = vsel %vm619, %v4914, %v4918
        %v4920 = vshrl.u32 %v4602, 16
        %v4922 = vrot.slane %v4920, 4
        %v4923 = vor.u32 %v4922, %v4918
        %v4924 = vrot.slane %v4923, 4
        %v4926 = vshll.u32 %v4603, 16
        %v4928 = vrot.slane %v4926, 5
        %v4929 = vsel %vm619, %v4924, %v4928
        %v4930 = vshrl.u32 %v4603, 16
        %v4932 = vrot.slane %v4930, 4
        %v4933 = vor.u32 %v4932, %v4928
        %v4934 = vrot.slane %v4933, 4
        %v4936 = vshll.u32 %v4604, 16
        %v4938 = vrot.slane %v4936, 5
        %v4939 = vsel %vm619, %v4934, %v4938
        %v4940 = vshrl.u32 %v4604, 16
        %v4942 = vrot.slane %v4940, 4
        %v4943 = vor.u32 %v4942, %v4938
        %v4944 = vrot.slane %v4943, 4
        %v4946 = vshll.u32 %v4605, 16
        %v4948 = vrot.slane %v4946, 5
        %v4949 = vsel %vm619, %v4944, %v4948
        %4950 = vrot.lane.b32.xlu0 %v4619, 8
        %v4951 = vpop.permute.xlu0 %4950
        %4952 = vrot.lane.b32.xlu0 %v4629, 8
        %v4953 = vpop.permute.xlu0 %4952
        %4954 = vrot.lane.b32.xlu0 %v4639, 8
        %v4955 = vpop.permute.xlu0 %4954
        %4956 = vrot.lane.b32.xlu0 %v4649, 8
        %v4957 = vpop.permute.xlu0 %4956
        %4958 = vrot.lane.b32.xlu0 %v4659, 8
        %v4959 = vpop.permute.xlu0 %4958
        %4960 = vrot.lane.b32.xlu0 %v4669, 8
        %v4961 = vpop.permute.xlu0 %4960
        %4962 = vrot.lane.b32.xlu0 %v4679, 8
        %v4963 = vpop.permute.xlu0 %4962
        %4964 = vrot.lane.b32.xlu0 %v4689, 8
        %v4965 = vpop.permute.xlu0 %4964
        %4966 = vrot.lane.b32.xlu0 %v4699, 8
        %v4967 = vpop.permute.xlu0 %4966
        %4968 = vrot.lane.b32.xlu0 %v4709, 8
        %v4969 = vpop.permute.xlu0 %4968
        %4970 = vrot.lane.b32.xlu0 %v4719, 8
        %v4971 = vpop.permute.xlu0 %4970
        %4972 = vrot.lane.b32.xlu0 %v4729, 8
        %v4973 = vpop.permute.xlu0 %4972
        %4974 = vrot.lane.b32.xlu0 %v4739, 8
        %v4975 = vpop.permute.xlu0 %4974
        %4976 = vrot.lane.b32.xlu0 %v4749, 8
        %v4977 = vpop.permute.xlu0 %4976
        %4978 = vrot.lane.b32.xlu0 %v4759, 8
        %v4979 = vpop.permute.xlu0 %4978
        %4980 = vrot.lane.b32.xlu0 %v4769, 8
        %v4981 = vpop.permute.xlu0 %4980
        %4982 = vrot.lane.b32.xlu0 %v4779, 8
        %v4983 = vpop.permute.xlu0 %4982
        %4984 = vrot.lane.b32.xlu0 %v4789, 8
        %v4985 = vpop.permute.xlu0 %4984
        %4986 = vrot.lane.b32.xlu0 %v4799, 8
        %v4987 = vpop.permute.xlu0 %4986
        %4988 = vrot.lane.b32.xlu0 %v4809, 8
        %v4989 = vpop.permute.xlu0 %4988
        %4990 = vrot.lane.b32.xlu0 %v4819, 8
        %v4991 = vpop.permute.xlu0 %4990
        %4992 = vrot.lane.b32.xlu0 %v4829, 8
        %v4993 = vpop.permute.xlu0 %4992
        %4994 = vrot.lane.b32.xlu0 %v4839, 8
        %v4995 = vpop.permute.xlu0 %4994
        %4996 = vrot.lane.b32.xlu0 %v4849, 8
        %v4997 = vpop.permute.xlu0 %4996
        %4998 = vrot.lane.b32.xlu0 %v4859, 8
        %v4999 = vpop.permute.xlu0 %4998
        %5000 = vrot.lane.b32.xlu0 %v4869, 8
        %v5001 = vpop.permute.xlu0 %5000
        %5002 = vrot.lane.b32.xlu0 %v4879, 8
        %v5003 = vpop.permute.xlu0 %5002
        %5004 = vrot.lane.b32.xlu0 %v4889, 8
        %v5005 = vpop.permute.xlu0 %5004
        %5006 = vrot.lane.b32.xlu0 %v4899, 8
        %v5007 = vpop.permute.xlu0 %5006
        %5008 = vrot.lane.b32.xlu0 %v4909, 8
        %v5009 = vpop.permute.xlu0 %5008
        %5010 = vrot.lane.b32.xlu0 %v4919, 8
        %v5011 = vpop.permute.xlu0 %5010
        %5012 = vrot.lane.b32.xlu0 %v4929, 8
        %v5013 = vpop.permute.xlu0 %5012
        %5014 = vrot.lane.b32.xlu0 %v4939, 8
        %v5015 = vpop.permute.xlu0 %5014
        %5016 = vrot.lane.b32.xlu0 %v4949, 8
        %v5017 = vpop.permute.xlu0 %5016
        %5052 = vst.msk [vmem:[#allocation3] sm:$0xf] %vm1066, %v4951
        %5053 = vst.msk [vmem:[#allocation3 + $0x4] sm:$0xf] %vm1066, %v4953
        %5054 = vst.msk [vmem:[#allocation3 + $0x8] sm:$0xf] %vm1066, %v4955
        %5055 = vst.msk [vmem:[#allocation3 + $0xc] sm:$0xf] %vm1066, %v4957
        %5056 = vst.msk [vmem:[#allocation3 + $0x10] sm:$0xf] %vm1066, %v4959
        %5057 = vst.msk [vmem:[#allocation3 + $0x14] sm:$0xf] %vm1066, %v4961
        %5058 = vst.msk [vmem:[#allocation3 + $0x18] sm:$0xf] %vm1066, %v4963
        %5059 = vst.msk [vmem:[#allocation3 + $0x1c] sm:$0xf] %vm1066, %v4965
        %5060 = vst.msk [vmem:[#allocation3 + $0x20] sm:$0xf] %vm1066, %v4967
        %5061 = vst.msk [vmem:[#allocation3 + $0x24] sm:$0xf] %vm1066, %v4969
        %5062 = vst.msk [vmem:[#allocation3 + $0x28] sm:$0xf] %vm1066, %v4971
        %5063 = vst.msk [vmem:[#allocation3 + $0x2c] sm:$0xf] %vm1066, %v4973
        %5064 = vst.msk [vmem:[#allocation3 + $0x30] sm:$0xf] %vm1066, %v4975
        %5065 = vst.msk [vmem:[#allocation3 + $0x34] sm:$0xf] %vm1066, %v4977
        %5066 = vst.msk [vmem:[#allocation3 + $0x38] sm:$0xf] %vm1066, %v4979
        %5067 = vst.msk [vmem:[#allocation3 + $0x3c] sm:$0xf] %vm1066, %v4981
        %5068 = vst.msk [vmem:[#allocation3 + $0x40] sm:$0xf] %vm1066, %v4983
        %5069 = vst.msk [vmem:[#allocation3 + $0x44] sm:$0xf] %vm1066, %v4985
        %5070 = vst.msk [vmem:[#allocation3 + $0x48] sm:$0xf] %vm1066, %v4987
        %5071 = vst.msk [vmem:[#allocation3 + $0x4c] sm:$0xf] %vm1066, %v4989
        %5072 = vst.msk [vmem:[#allocation3 + $0x50] sm:$0xf] %vm1066, %v4991
        %5073 = vst.msk [vmem:[#allocation3 + $0x54] sm:$0xf] %vm1066, %v4993
        %5074 = vst.msk [vmem:[#allocation3 + $0x58] sm:$0xf] %vm1066, %v4995
        %5075 = vst.msk [vmem:[#allocation3 + $0x5c] sm:$0xf] %vm1066, %v4997
        %5076 = vst.msk [vmem:[#allocation3 + $0x60] sm:$0xf] %vm1066, %v4999
        %5077 = vst.msk [vmem:[#allocation3 + $0x64] sm:$0xf] %vm1066, %v5001
        %5078 = vst.msk [vmem:[#allocation3 + $0x68] sm:$0xf] %vm1066, %v5003
        %5079 = vst.msk [vmem:[#allocation3 + $0x6c] sm:$0xf] %vm1066, %v5005
        %5080 = vst.msk [vmem:[#allocation3 + $0x70] sm:$0xf] %vm1066, %v5007
        %5081 = vst.msk [vmem:[#allocation3 + $0x74] sm:$0xf] %vm1066, %v5009
        %5082 = vst.msk [vmem:[#allocation3 + $0x78] sm:$0xf] %vm1066, %v5011
        %5083 = vst.msk [vmem:[#allocation3 + $0x7c] sm:$0xf] %vm1066, %v5013
        %5084 = vst.msk [vmem:[#allocation3 + $0x80] sm:$0xf] %vm1066, %v5015
        %5085 = vst.msk [vmem:[#allocation3 + $0x84] sm:$0xf] %vm1066, %v5017
        %v5086 = vld [vmem:[%s511] sm:$0xe]
        %v5087 = vld [vmem:[%s511 + $0x4] sm:$0xf]
        %v5088 = vld [vmem:[%s511 + $0x8] sm:$0xf]
        %v5089 = vld [vmem:[%s511 + $0xc] sm:$0xf]
        %v5090 = vld [vmem:[%s511 + $0x10] sm:$0xf]
        %v5091 = vld [vmem:[%s511 + $0x14] sm:$0xf]
        %v5092 = vld [vmem:[%s511 + $0x18] sm:$0xf]
        %v5093 = vld [vmem:[%s511 + $0x1c] sm:$0xf]
        %v5094 = vld [vmem:[%s511 + $0x20] sm:$0xf]
        %v5095 = vld [vmem:[%s511 + $0x24] sm:$0xf]
        %v5096 = vld [vmem:[%s511 + $0x28] sm:$0xf]
        %v5097 = vld [vmem:[%s511 + $0x2c] sm:$0xf]
        %v5098 = vld [vmem:[%s511 + $0x30] sm:$0xf]
        %v5099 = vld [vmem:[%s511 + $0x34] sm:$0xf]
        %v5100 = vld [vmem:[%s511 + $0x38] sm:$0xf]
        %v5101 = vld [vmem:[%s511 + $0x3c] sm:$0xf]
        %v5102 = vld [vmem:[%s511 + $0x40] sm:$0xf]
        %v5103 = vld [vmem:[%s511 + $0x44] sm:$0xf]
        %v5104 = vld [vmem:[%s511 + $0x48] sm:$0xf]
        %v5105 = vld [vmem:[%s511 + $0x4c] sm:$0xf]
        %v5106 = vld [vmem:[%s511 + $0x50] sm:$0xf]
        %v5107 = vld [vmem:[%s511 + $0x54] sm:$0xf]
        %v5108 = vld [vmem:[%s511 + $0x58] sm:$0xf]
        %v5109 = vld [vmem:[%s511 + $0x5c] sm:$0xf]
        %v5110 = vld [vmem:[%s511 + $0x60] sm:$0xf]
        %v5111 = vld [vmem:[%s511 + $0x64] sm:$0xf]
        %v5112 = vld [vmem:[%s511 + $0x68] sm:$0xf]
        %v5113 = vld [vmem:[%s511 + $0x6c] sm:$0xf]
        %v5114 = vld [vmem:[%s511 + $0x70] sm:$0xf]
        %v5115 = vld [vmem:[%s511 + $0x74] sm:$0xf]
        %v5116 = vld [vmem:[%s511 + $0x78] sm:$0xf]
        %v5117 = vld [vmem:[%s511 + $0x7c] sm:$0xf]
        %v5118 = vld [vmem:[%s511 + $0x80] sm:$0xf]
        %v5119 = vld [vmem:[%s511 + $0x84] sm:$0xf]
        %v5120 = vld [vmem:[%s511 + $0x88] sm:$0x1]
        %v5156 = vrot.slane %v5086, 5
        %v5157 = vrot.slane %v5156, 4
        %v5158 = vrot.slane %v5087, 5
        %v5159 = vsel %vm1173, %v5157, %v5158
        %v5160 = vrot.slane %v5158, 4
        %v5161 = vrot.slane %v5088, 5
        %v5162 = vsel %vm1173, %v5160, %v5161
        %v5163 = vrot.slane %v5161, 4
        %v5164 = vrot.slane %v5089, 5
        %v5165 = vsel %vm1173, %v5163, %v5164
        %v5166 = vrot.slane %v5164, 4
        %v5167 = vrot.slane %v5090, 5
        %v5168 = vsel %vm1173, %v5166, %v5167
        %v5169 = vrot.slane %v5167, 4
        %v5170 = vrot.slane %v5091, 5
        %v5171 = vsel %vm1173, %v5169, %v5170
        %v5172 = vrot.slane %v5170, 4
        %v5173 = vrot.slane %v5092, 5
        %v5174 = vsel %vm1173, %v5172, %v5173
        %v5175 = vrot.slane %v5173, 4
        %v5176 = vrot.slane %v5093, 5
        %v5177 = vsel %vm1173, %v5175, %v5176
        %v5178 = vrot.slane %v5176, 4
        %v5179 = vrot.slane %v5094, 5
        %v5180 = vsel %vm1173, %v5178, %v5179
        %v5181 = vrot.slane %v5179, 4
        %v5182 = vrot.slane %v5095, 5
        %v5183 = vsel %vm1173, %v5181, %v5182
        %v5184 = vrot.slane %v5182, 4
        %v5185 = vrot.slane %v5096, 5
        %v5186 = vsel %vm1173, %v5184, %v5185
        %v5187 = vrot.slane %v5185, 4
        %v5188 = vrot.slane %v5097, 5
        %v5189 = vsel %vm1173, %v5187, %v5188
        %v5190 = vrot.slane %v5188, 4
        %v5191 = vrot.slane %v5098, 5
        %v5192 = vsel %vm1173, %v5190, %v5191
        %v5193 = vrot.slane %v5191, 4
        %v5194 = vrot.slane %v5099, 5
        %v5195 = vsel %vm1173, %v5193, %v5194
        %v5196 = vrot.slane %v5194, 4
        %v5197 = vrot.slane %v5100, 5
        %v5198 = vsel %vm1173, %v5196, %v5197
        %v5199 = vrot.slane %v5197, 4
        %v5200 = vrot.slane %v5101, 5
        %v5201 = vsel %vm1173, %v5199, %v5200
        %v5202 = vrot.slane %v5200, 4
        %v5203 = vrot.slane %v5102, 5
        %v5204 = vsel %vm1173, %v5202, %v5203
        %v5205 = vrot.slane %v5203, 4
        %v5206 = vrot.slane %v5103, 5
        %v5207 = vsel %vm1173, %v5205, %v5206
        %v5208 = vrot.slane %v5206, 4
        %v5209 = vrot.slane %v5104, 5
        %v5210 = vsel %vm1173, %v5208, %v5209
        %v5211 = vrot.slane %v5209, 4
        %v5212 = vrot.slane %v5105, 5
        %v5213 = vsel %vm1173, %v5211, %v5212
        %v5214 = vrot.slane %v5212, 4
        %v5215 = vrot.slane %v5106, 5
        %v5216 = vsel %vm1173, %v5214, %v5215
        %v5217 = vrot.slane %v5215, 4
        %v5218 = vrot.slane %v5107, 5
        %v5219 = vsel %vm1173, %v5217, %v5218
        %v5220 = vrot.slane %v5218, 4
        %v5221 = vrot.slane %v5108, 5
        %v5222 = vsel %vm1173, %v5220, %v5221
        %v5223 = vrot.slane %v5221, 4
        %v5224 = vrot.slane %v5109, 5
        %v5225 = vsel %vm1173, %v5223, %v5224
        %v5226 = vrot.slane %v5224, 4
        %v5227 = vrot.slane %v5110, 5
        %v5228 = vsel %vm1173, %v5226, %v5227
        %v5229 = vrot.slane %v5227, 4
        %v5230 = vrot.slane %v5111, 5
        %v5231 = vsel %vm1173, %v5229, %v5230
        %v5232 = vrot.slane %v5230, 4
        %v5233 = vrot.slane %v5112, 5
        %v5234 = vsel %vm1173, %v5232, %v5233
        %v5235 = vrot.slane %v5233, 4
        %v5236 = vrot.slane %v5113, 5
        %v5237 = vsel %vm1173, %v5235, %v5236
        %v5238 = vrot.slane %v5236, 4
        %v5239 = vrot.slane %v5114, 5
        %v5240 = vsel %vm1173, %v5238, %v5239
        %v5241 = vrot.slane %v5239, 4
        %v5242 = vrot.slane %v5115, 5
        %v5243 = vsel %vm1173, %v5241, %v5242
        %v5244 = vrot.slane %v5242, 4
        %v5245 = vrot.slane %v5116, 5
        %v5246 = vsel %vm1173, %v5244, %v5245
        %v5247 = vrot.slane %v5245, 4
        %v5248 = vrot.slane %v5117, 5
        %v5249 = vsel %vm1173, %v5247, %v5248
        %v5250 = vrot.slane %v5248, 4
        %v5251 = vrot.slane %v5118, 5
        %v5252 = vsel %vm1173, %v5250, %v5251
        %v5253 = vrot.slane %v5251, 4
        %v5254 = vrot.slane %v5119, 5
        %v5255 = vsel %vm1173, %v5253, %v5254
        %v5256 = vrot.slane %v5254, 4
        %v5257 = vrot.slane %v5120, 5
        %v5258 = vsel %vm1173, %v5256, %v5257
        %5259 = vrot.lane.b32.xlu0 %v5159, 16
        %v5260 = vpop.permute.xlu0 %5259
        %5261 = vrot.lane.b32.xlu0 %v5162, 16
        %v5262 = vpop.permute.xlu0 %5261
        %5263 = vrot.lane.b32.xlu0 %v5165, 16
        %v5264 = vpop.permute.xlu0 %5263
        %5265 = vrot.lane.b32.xlu0 %v5168, 16
        %v5266 = vpop.permute.xlu0 %5265
        %5267 = vrot.lane.b32.xlu0 %v5171, 16
        %v5268 = vpop.permute.xlu0 %5267
        %5269 = vrot.lane.b32.xlu0 %v5174, 16
        %v5270 = vpop.permute.xlu0 %5269
        %5271 = vrot.lane.b32.xlu0 %v5177, 16
        %v5272 = vpop.permute.xlu0 %5271
        %5273 = vrot.lane.b32.xlu0 %v5180, 16
        %v5274 = vpop.permute.xlu0 %5273
        %5275 = vrot.lane.b32.xlu0 %v5183, 16
        %v5276 = vpop.permute.xlu0 %5275
        %5277 = vrot.lane.b32.xlu0 %v5186, 16
        %v5278 = vpop.permute.xlu0 %5277
        %5279 = vrot.lane.b32.xlu0 %v5189, 16
        %v5280 = vpop.permute.xlu0 %5279
        %5281 = vrot.lane.b32.xlu0 %v5192, 16
        %v5282 = vpop.permute.xlu0 %5281
        %5283 = vrot.lane.b32.xlu0 %v5195, 16
        %v5284 = vpop.permute.xlu0 %5283
        %5285 = vrot.lane.b32.xlu0 %v5198, 16
        %v5286 = vpop.permute.xlu0 %5285
        %5287 = vrot.lane.b32.xlu0 %v5201, 16
        %v5288 = vpop.permute.xlu0 %5287
        %5289 = vrot.lane.b32.xlu0 %v5204, 16
        %v5290 = vpop.permute.xlu0 %5289
        %5291 = vrot.lane.b32.xlu0 %v5207, 16
        %v5292 = vpop.permute.xlu0 %5291
        %5293 = vrot.lane.b32.xlu0 %v5210, 16
        %v5294 = vpop.permute.xlu0 %5293
        %5295 = vrot.lane.b32.xlu0 %v5213, 16
        %v5296 = vpop.permute.xlu0 %5295
        %5297 = vrot.lane.b32.xlu0 %v5216, 16
        %v5298 = vpop.permute.xlu0 %5297
        %5299 = vrot.lane.b32.xlu0 %v5219, 16
        %v5300 = vpop.permute.xlu0 %5299
        %5301 = vrot.lane.b32.xlu0 %v5222, 16
        %v5302 = vpop.permute.xlu0 %5301
        %5303 = vrot.lane.b32.xlu0 %v5225, 16
        %v5304 = vpop.permute.xlu0 %5303
        %5305 = vrot.lane.b32.xlu0 %v5228, 16
        %v5306 = vpop.permute.xlu0 %5305
        %5307 = vrot.lane.b32.xlu0 %v5231, 16
        %v5308 = vpop.permute.xlu0 %5307
        %5309 = vrot.lane.b32.xlu0 %v5234, 16
        %v5310 = vpop.permute.xlu0 %5309
        %5311 = vrot.lane.b32.xlu0 %v5237, 16
        %v5312 = vpop.permute.xlu0 %5311
        %5313 = vrot.lane.b32.xlu0 %v5240, 16
        %v5314 = vpop.permute.xlu0 %5313
        %5315 = vrot.lane.b32.xlu0 %v5243, 16
        %v5316 = vpop.permute.xlu0 %5315
        %5317 = vrot.lane.b32.xlu0 %v5246, 16
        %v5318 = vpop.permute.xlu0 %5317
        %5319 = vrot.lane.b32.xlu0 %v5249, 16
        %v5320 = vpop.permute.xlu0 %5319
        %5321 = vrot.lane.b32.xlu0 %v5252, 16
        %v5322 = vpop.permute.xlu0 %5321
        %5323 = vrot.lane.b32.xlu0 %v5255, 16
        %v5324 = vpop.permute.xlu0 %5323
        %5325 = vrot.lane.b32.xlu0 %v5258, 16
        %v5326 = vpop.permute.xlu0 %5325
        %5361 = vst.msk [vmem:[#allocation3] sm:$0xf] %vm1379, %v5260
        %5362 = vst.msk [vmem:[#allocation3 + $0x4] sm:$0xf] %vm1379, %v5262
        %5363 = vst.msk [vmem:[#allocation3 + $0x8] sm:$0xf] %vm1379, %v5264
        %5364 = vst.msk [vmem:[#allocation3 + $0xc] sm:$0xf] %vm1379, %v5266
        %5365 = vst.msk [vmem:[#allocation3 + $0x10] sm:$0xf] %vm1379, %v5268
        %5366 = vst.msk [vmem:[#allocation3 + $0x14] sm:$0xf] %vm1379, %v5270
        %5367 = vst.msk [vmem:[#allocation3 + $0x18] sm:$0xf] %vm1379, %v5272
        %5368 = vst.msk [vmem:[#allocation3 + $0x1c] sm:$0xf] %vm1379, %v5274
        %5369 = vst.msk [vmem:[#allocation3 + $0x20] sm:$0xf] %vm1379, %v5276
        %5370 = vst.msk [vmem:[#allocation3 + $0x24] sm:$0xf] %vm1379, %v5278
        %5371 = vst.msk [vmem:[#allocation3 + $0x28] sm:$0xf] %vm1379, %v5280
        %5372 = vst.msk [vmem:[#allocation3 + $0x2c] sm:$0xf] %vm1379, %v5282
        %5373 = vst.msk [vmem:[#allocation3 + $0x30] sm:$0xf] %vm1379, %v5284
        %5374 = vst.msk [vmem:[#allocation3 + $0x34] sm:$0xf] %vm1379, %v5286
        %5375 = vst.msk [vmem:[#allocation3 + $0x38] sm:$0xf] %vm1379, %v5288
        %5376 = vst.msk [vmem:[#allocation3 + $0x3c] sm:$0xf] %vm1379, %v5290
        %5377 = vst.msk [vmem:[#allocation3 + $0x40] sm:$0xf] %vm1379, %v5292
        %5378 = vst.msk [vmem:[#allocation3 + $0x44] sm:$0xf] %vm1379, %v5294
        %5379 = vst.msk [vmem:[#allocation3 + $0x48] sm:$0xf] %vm1379, %v5296
        %5380 = vst.msk [vmem:[#allocation3 + $0x4c] sm:$0xf] %vm1379, %v5298
        %5381 = vst.msk [vmem:[#allocation3 + $0x50] sm:$0xf] %vm1379, %v5300
        %5382 = vst.msk [vmem:[#allocation3 + $0x54] sm:$0xf] %vm1379, %v5302
        %5383 = vst.msk [vmem:[#allocation3 + $0x58] sm:$0xf] %vm1379, %v5304
        %5384 = vst.msk [vmem:[#allocation3 + $0x5c] sm:$0xf] %vm1379, %v5306
        %5385 = vst.msk [vmem:[#allocation3 + $0x60] sm:$0xf] %vm1379, %v5308
        %5386 = vst.msk [vmem:[#allocation3 + $0x64] sm:$0xf] %vm1379, %v5310
        %5387 = vst.msk [vmem:[#allocation3 + $0x68] sm:$0xf] %vm1379, %v5312
        %5388 = vst.msk [vmem:[#allocation3 + $0x6c] sm:$0xf] %vm1379, %v5314
        %5389 = vst.msk [vmem:[#allocation3 + $0x70] sm:$0xf] %vm1379, %v5316
        %5390 = vst.msk [vmem:[#allocation3 + $0x74] sm:$0xf] %vm1379, %v5318
        %5391 = vst.msk [vmem:[#allocation3 + $0x78] sm:$0xf] %vm1379, %v5320
        %5392 = vst.msk [vmem:[#allocation3 + $0x7c] sm:$0xf] %vm1379, %v5322
        %5393 = vst.msk [vmem:[#allocation3 + $0x80] sm:$0xf] %vm1379, %v5324
        %5394 = vst.msk [vmem:[#allocation3 + $0x84] sm:$0xf] %vm1379, %v5326
        %v5395 = vld [vmem:[%s511 + $0x8] sm:$0xf]
        %v5396 = vld [vmem:[%s511 + $0xc] sm:$0xf]
        %v5397 = vld [vmem:[%s511 + $0x10] sm:$0xf]
        %v5398 = vld [vmem:[%s511 + $0x14] sm:$0xf]
        %v5399 = vld [vmem:[%s511 + $0x18] sm:$0xf]
        %v5400 = vld [vmem:[%s511 + $0x1c] sm:$0xf]
        %v5401 = vld [vmem:[%s511 + $0x20] sm:$0xf]
        %v5402 = vld [vmem:[%s511 + $0x24] sm:$0xf]
        %v5403 = vld [vmem:[%s511 + $0x28] sm:$0xf]
        %v5404 = vld [vmem:[%s511 + $0x2c] sm:$0xf]
        %v5405 = vld [vmem:[%s511 + $0x30] sm:$0xf]
        %v5406 = vld [vmem:[%s511 + $0x34] sm:$0xf]
        %v5407 = vld [vmem:[%s511 + $0x38] sm:$0xf]
        %v5408 = vld [vmem:[%s511 + $0x3c] sm:$0xf]
        %v5409 = vld [vmem:[%s511 + $0x40] sm:$0xf]
        %v5410 = vld [vmem:[%s511 + $0x44] sm:$0xf]
        %v5411 = vld [vmem:[%s511 + $0x48] sm:$0xf]
        %v5412 = vld [vmem:[%s511 + $0x4c] sm:$0xf]
        %v5413 = vld [vmem:[%s511 + $0x50] sm:$0xf]
        %v5414 = vld [vmem:[%s511 + $0x54] sm:$0xf]
        %v5415 = vld [vmem:[%s511 + $0x58] sm:$0xf]
        %v5416 = vld [vmem:[%s511 + $0x5c] sm:$0xf]
        %v5417 = vld [vmem:[%s511 + $0x60] sm:$0xf]
        %v5418 = vld [vmem:[%s511 + $0x64] sm:$0xf]
        %v5419 = vld [vmem:[%s511 + $0x68] sm:$0xf]
        %v5420 = vld [vmem:[%s511 + $0x6c] sm:$0xf]
        %v5421 = vld [vmem:[%s511 + $0x70] sm:$0xf]
        %v5422 = vld [vmem:[%s511 + $0x74] sm:$0xf]
        %v5423 = vld [vmem:[%s511 + $0x78] sm:$0xf]
        %v5424 = vld [vmem:[%s511 + $0x7c] sm:$0xf]
        %v5425 = vld [vmem:[%s511 + $0x80] sm:$0xf]
        %v5426 = vld [vmem:[%s511 + $0x84] sm:$0xf]
        %v5427 = vld [vmem:[%s511 + $0x88] sm:$0xf]
        %v5428 = vld [vmem:[%s511 + $0x8c] sm:$0xf]
        %v5429 = vld [vmem:[%s511 + $0x90] sm:$0x1]
        %v5431 = vshrl.u32 %v5395, 16
        %v5433 = vrot.slane %v5431, 4
        %v5434 = vshll.u32 %v5395, 16
        %v5436 = vrot.slane %v5434, 5
        %v5437 = vor.u32 %v5433, %v5436
        %v5438 = vrot.slane %v5437, 4
        %v5440 = vshll.u32 %v5396, 16
        %v5442 = vrot.slane %v5440, 5
        %v5443 = vsel %vm619, %v5438, %v5442
        %v5444 = vshrl.u32 %v5396, 16
        %v5446 = vrot.slane %v5444, 4
        %v5447 = vor.u32 %v5446, %v5442
        %v5448 = vrot.slane %v5447, 4
        %v5450 = vshll.u32 %v5397, 16
        %v5452 = vrot.slane %v5450, 5
        %v5453 = vsel %vm619, %v5448, %v5452
        %v5454 = vshrl.u32 %v5397, 16
        %v5456 = vrot.slane %v5454, 4
        %v5457 = vor.u32 %v5456, %v5452
        %v5458 = vrot.slane %v5457, 4
        %v5460 = vshll.u32 %v5398, 16
        %v5462 = vrot.slane %v5460, 5
        %v5463 = vsel %vm619, %v5458, %v5462
        %v5464 = vshrl.u32 %v5398, 16
        %v5466 = vrot.slane %v5464, 4
        %v5467 = vor.u32 %v5466, %v5462
        %v5468 = vrot.slane %v5467, 4
        %v5470 = vshll.u32 %v5399, 16
        %v5472 = vrot.slane %v5470, 5
        %v5473 = vsel %vm619, %v5468, %v5472
        %v5474 = vshrl.u32 %v5399, 16
        %v5476 = vrot.slane %v5474, 4
        %v5477 = vor.u32 %v5476, %v5472
        %v5478 = vrot.slane %v5477, 4
        %v5480 = vshll.u32 %v5400, 16
        %v5482 = vrot.slane %v5480, 5
        %v5483 = vsel %vm619, %v5478, %v5482
        %v5484 = vshrl.u32 %v5400, 16
        %v5486 = vrot.slane %v5484, 4
        %v5487 = vor.u32 %v5486, %v5482
        %v5488 = vrot.slane %v5487, 4
        %v5490 = vshll.u32 %v5401, 16
        %v5492 = vrot.slane %v5490, 5
        %v5493 = vsel %vm619, %v5488, %v5492
        %v5494 = vshrl.u32 %v5401, 16
        %v5496 = vrot.slane %v5494, 4
        %v5497 = vor.u32 %v5496, %v5492
        %v5498 = vrot.slane %v5497, 4
        %v5500 = vshll.u32 %v5402, 16
        %v5502 = vrot.slane %v5500, 5
        %v5503 = vsel %vm619, %v5498, %v5502
        %v5504 = vshrl.u32 %v5402, 16
        %v5506 = vrot.slane %v5504, 4
        %v5507 = vor.u32 %v5506, %v5502
        %v5508 = vrot.slane %v5507, 4
        %v5510 = vshll.u32 %v5403, 16
        %v5512 = vrot.slane %v5510, 5
        %v5513 = vsel %vm619, %v5508, %v5512
        %v5514 = vshrl.u32 %v5403, 16
        %v5516 = vrot.slane %v5514, 4
        %v5517 = vor.u32 %v5516, %v5512
        %v5518 = vrot.slane %v5517, 4
        %v5520 = vshll.u32 %v5404, 16
        %v5522 = vrot.slane %v5520, 5
        %v5523 = vsel %vm619, %v5518, %v5522
        %v5524 = vshrl.u32 %v5404, 16
        %v5526 = vrot.slane %v5524, 4
        %v5527 = vor.u32 %v5526, %v5522
        %v5528 = vrot.slane %v5527, 4
        %v5530 = vshll.u32 %v5405, 16
        %v5532 = vrot.slane %v5530, 5
        %v5533 = vsel %vm619, %v5528, %v5532
        %v5534 = vshrl.u32 %v5405, 16
        %v5536 = vrot.slane %v5534, 4
        %v5537 = vor.u32 %v5536, %v5532
        %v5538 = vrot.slane %v5537, 4
        %v5540 = vshll.u32 %v5406, 16
        %v5542 = vrot.slane %v5540, 5
        %v5543 = vsel %vm619, %v5538, %v5542
        %v5544 = vshrl.u32 %v5406, 16
        %v5546 = vrot.slane %v5544, 4
        %v5547 = vor.u32 %v5546, %v5542
        %v5548 = vrot.slane %v5547, 4
        %v5550 = vshll.u32 %v5407, 16
        %v5552 = vrot.slane %v5550, 5
        %v5553 = vsel %vm619, %v5548, %v5552
        %v5554 = vshrl.u32 %v5407, 16
        %v5556 = vrot.slane %v5554, 4
        %v5557 = vor.u32 %v5556, %v5552
        %v5558 = vrot.slane %v5557, 4
        %v5560 = vshll.u32 %v5408, 16
        %v5562 = vrot.slane %v5560, 5
        %v5563 = vsel %vm619, %v5558, %v5562
        %v5564 = vshrl.u32 %v5408, 16
        %v5566 = vrot.slane %v5564, 4
        %v5567 = vor.u32 %v5566, %v5562
        %v5568 = vrot.slane %v5567, 4
        %v5570 = vshll.u32 %v5409, 16
        %v5572 = vrot.slane %v5570, 5
        %v5573 = vsel %vm619, %v5568, %v5572
        %v5574 = vshrl.u32 %v5409, 16
        %v5576 = vrot.slane %v5574, 4
        %v5577 = vor.u32 %v5576, %v5572
        %v5578 = vrot.slane %v5577, 4
        %v5580 = vshll.u32 %v5410, 16
        %v5582 = vrot.slane %v5580, 5
        %v5583 = vsel %vm619, %v5578, %v5582
        %v5584 = vshrl.u32 %v5410, 16
        %v5586 = vrot.slane %v5584, 4
        %v5587 = vor.u32 %v5586, %v5582
        %v5588 = vrot.slane %v5587, 4
        %v5590 = vshll.u32 %v5411, 16
        %v5592 = vrot.slane %v5590, 5
        %v5593 = vsel %vm619, %v5588, %v5592
        %v5594 = vshrl.u32 %v5411, 16
        %v5596 = vrot.slane %v5594, 4
        %v5597 = vor.u32 %v5596, %v5592
        %v5598 = vrot.slane %v5597, 4
        %v5600 = vshll.u32 %v5412, 16
        %v5602 = vrot.slane %v5600, 5
        %v5603 = vsel %vm619, %v5598, %v5602
        %v5604 = vshrl.u32 %v5412, 16
        %v5606 = vrot.slane %v5604, 4
        %v5607 = vor.u32 %v5606, %v5602
        %v5608 = vrot.slane %v5607, 4
        %v5610 = vshll.u32 %v5413, 16
        %v5612 = vrot.slane %v5610, 5
        %v5613 = vsel %vm619, %v5608, %v5612
        %v5614 = vshrl.u32 %v5413, 16
        %v5616 = vrot.slane %v5614, 4
        %v5617 = vor.u32 %v5616, %v5612
        %v5618 = vrot.slane %v5617, 4
        %v5620 = vshll.u32 %v5414, 16
        %v5622 = vrot.slane %v5620, 5
        %v5623 = vsel %vm619, %v5618, %v5622
        %v5624 = vshrl.u32 %v5414, 16
        %v5626 = vrot.slane %v5624, 4
        %v5627 = vor.u32 %v5626, %v5622
        %v5628 = vrot.slane %v5627, 4
        %v5630 = vshll.u32 %v5415, 16
        %v5632 = vrot.slane %v5630, 5
        %v5633 = vsel %vm619, %v5628, %v5632
        %v5634 = vshrl.u32 %v5415, 16
        %v5636 = vrot.slane %v5634, 4
        %v5637 = vor.u32 %v5636, %v5632
        %v5638 = vrot.slane %v5637, 4
        %v5640 = vshll.u32 %v5416, 16
        %v5642 = vrot.slane %v5640, 5
        %v5643 = vsel %vm619, %v5638, %v5642
        %v5644 = vshrl.u32 %v5416, 16
        %v5646 = vrot.slane %v5644, 4
        %v5647 = vor.u32 %v5646, %v5642
        %v5648 = vrot.slane %v5647, 4
        %v5650 = vshll.u32 %v5417, 16
        %v5652 = vrot.slane %v5650, 5
        %v5653 = vsel %vm619, %v5648, %v5652
        %v5654 = vshrl.u32 %v5417, 16
        %v5656 = vrot.slane %v5654, 4
        %v5657 = vor.u32 %v5656, %v5652
        %v5658 = vrot.slane %v5657, 4
        %v5660 = vshll.u32 %v5418, 16
        %v5662 = vrot.slane %v5660, 5
        %v5663 = vsel %vm619, %v5658, %v5662
        %v5664 = vshrl.u32 %v5418, 16
        %v5666 = vrot.slane %v5664, 4
        %v5667 = vor.u32 %v5666, %v5662
        %v5668 = vrot.slane %v5667, 4
        %v5670 = vshll.u32 %v5419, 16
        %v5672 = vrot.slane %v5670, 5
        %v5673 = vsel %vm619, %v5668, %v5672
        %v5674 = vshrl.u32 %v5419, 16
        %v5676 = vrot.slane %v5674, 4
        %v5677 = vor.u32 %v5676, %v5672
        %v5678 = vrot.slane %v5677, 4
        %v5680 = vshll.u32 %v5420, 16
        %v5682 = vrot.slane %v5680, 5
        %v5683 = vsel %vm619, %v5678, %v5682
        %v5684 = vshrl.u32 %v5420, 16
        %v5686 = vrot.slane %v5684, 4
        %v5687 = vor.u32 %v5686, %v5682
        %v5688 = vrot.slane %v5687, 4
        %v5690 = vshll.u32 %v5421, 16
        %v5692 = vrot.slane %v5690, 5
        %v5693 = vsel %vm619, %v5688, %v5692
        %v5694 = vshrl.u32 %v5421, 16
        %v5696 = vrot.slane %v5694, 4
        %v5697 = vor.u32 %v5696, %v5692
        %v5698 = vrot.slane %v5697, 4
        %v5700 = vshll.u32 %v5422, 16
        %v5702 = vrot.slane %v5700, 5
        %v5703 = vsel %vm619, %v5698, %v5702
        %v5704 = vshrl.u32 %v5422, 16
        %v5706 = vrot.slane %v5704, 4
        %v5707 = vor.u32 %v5706, %v5702
        %v5708 = vrot.slane %v5707, 4
        %v5710 = vshll.u32 %v5423, 16
        %v5712 = vrot.slane %v5710, 5
        %v5713 = vsel %vm619, %v5708, %v5712
        %v5714 = vshrl.u32 %v5423, 16
        %v5716 = vrot.slane %v5714, 4
        %v5717 = vor.u32 %v5716, %v5712
        %v5718 = vrot.slane %v5717, 4
        %v5720 = vshll.u32 %v5424, 16
        %v5722 = vrot.slane %v5720, 5
        %v5723 = vsel %vm619, %v5718, %v5722
        %v5724 = vshrl.u32 %v5424, 16
        %v5726 = vrot.slane %v5724, 4
        %v5727 = vor.u32 %v5726, %v5722
        %v5728 = vrot.slane %v5727, 4
        %v5730 = vshll.u32 %v5425, 16
        %v5732 = vrot.slane %v5730, 5
        %v5733 = vsel %vm619, %v5728, %v5732
        %v5734 = vshrl.u32 %v5425, 16
        %v5736 = vrot.slane %v5734, 4
        %v5737 = vor.u32 %v5736, %v5732
        %v5738 = vrot.slane %v5737, 4
        %v5740 = vshll.u32 %v5426, 16
        %v5742 = vrot.slane %v5740, 5
        %v5743 = vsel %vm619, %v5738, %v5742
        %v5744 = vshrl.u32 %v5426, 16
        %v5746 = vrot.slane %v5744, 4
        %v5747 = vor.u32 %v5746, %v5742
        %v5748 = vrot.slane %v5747, 4
        %v5750 = vshll.u32 %v5427, 16
        %v5752 = vrot.slane %v5750, 5
        %v5753 = vsel %vm619, %v5748, %v5752
        %v5754 = vshrl.u32 %v5427, 16
        %v5756 = vrot.slane %v5754, 4
        %v5757 = vor.u32 %v5756, %v5752
        %v5758 = vrot.slane %v5757, 4
        %v5760 = vshll.u32 %v5428, 16
        %v5762 = vrot.slane %v5760, 5
        %v5763 = vsel %vm619, %v5758, %v5762
        %v5764 = vshrl.u32 %v5428, 16
        %v5766 = vrot.slane %v5764, 4
        %v5767 = vor.u32 %v5766, %v5762
        %v5768 = vrot.slane %v5767, 4
        %v5770 = vshll.u32 %v5429, 16
        %v5772 = vrot.slane %v5770, 5
        %v5773 = vsel %vm619, %v5768, %v5772
        %5774 = vrot.lane.b32.xlu0 %v5443, 24
        %v5775 = vpop.permute.xlu0 %5774
        %5776 = vrot.lane.b32.xlu0 %v5453, 24
        %v5777 = vpop.permute.xlu0 %5776
        %5778 = vrot.lane.b32.xlu0 %v5463, 24
        %v5779 = vpop.permute.xlu0 %5778
        %5780 = vrot.lane.b32.xlu0 %v5473, 24
        %v5781 = vpop.permute.xlu0 %5780
        %5782 = vrot.lane.b32.xlu0 %v5483, 24
        %v5783 = vpop.permute.xlu0 %5782
        %5784 = vrot.lane.b32.xlu0 %v5493, 24
        %v5785 = vpop.permute.xlu0 %5784
        %5786 = vrot.lane.b32.xlu0 %v5503, 24
        %v5787 = vpop.permute.xlu0 %5786
        %5788 = vrot.lane.b32.xlu0 %v5513, 24
        %v5789 = vpop.permute.xlu0 %5788
        %5790 = vrot.lane.b32.xlu0 %v5523, 24
        %v5791 = vpop.permute.xlu0 %5790
        %5792 = vrot.lane.b32.xlu0 %v5533, 24
        %v5793 = vpop.permute.xlu0 %5792
        %5794 = vrot.lane.b32.xlu0 %v5543, 24
        %v5795 = vpop.permute.xlu0 %5794
        %5796 = vrot.lane.b32.xlu0 %v5553, 24
        %v5797 = vpop.permute.xlu0 %5796
        %5798 = vrot.lane.b32.xlu0 %v5563, 24
        %v5799 = vpop.permute.xlu0 %5798
        %5800 = vrot.lane.b32.xlu0 %v5573, 24
        %v5801 = vpop.permute.xlu0 %5800
        %5802 = vrot.lane.b32.xlu0 %v5583, 24
        %v5803 = vpop.permute.xlu0 %5802
        %5804 = vrot.lane.b32.xlu0 %v5593, 24
        %v5805 = vpop.permute.xlu0 %5804
        %5806 = vrot.lane.b32.xlu0 %v5603, 24
        %v5807 = vpop.permute.xlu0 %5806
        %5808 = vrot.lane.b32.xlu0 %v5613, 24
        %v5809 = vpop.permute.xlu0 %5808
        %5810 = vrot.lane.b32.xlu0 %v5623, 24
        %v5811 = vpop.permute.xlu0 %5810
        %5812 = vrot.lane.b32.xlu0 %v5633, 24
        %v5813 = vpop.permute.xlu0 %5812
        %5814 = vrot.lane.b32.xlu0 %v5643, 24
        %v5815 = vpop.permute.xlu0 %5814
        %5816 = vrot.lane.b32.xlu0 %v5653, 24
        %v5817 = vpop.permute.xlu0 %5816
        %5818 = vrot.lane.b32.xlu0 %v5663, 24
        %v5819 = vpop.permute.xlu0 %5818
        %5820 = vrot.lane.b32.xlu0 %v5673, 24
        %v5821 = vpop.permute.xlu0 %5820
        %5822 = vrot.lane.b32.xlu0 %v5683, 24
        %v5823 = vpop.permute.xlu0 %5822
        %5824 = vrot.lane.b32.xlu0 %v5693, 24
        %v5825 = vpop.permute.xlu0 %5824
        %5826 = vrot.lane.b32.xlu0 %v5703, 24
        %v5827 = vpop.permute.xlu0 %5826
        %5828 = vrot.lane.b32.xlu0 %v5713, 24
        %v5829 = vpop.permute.xlu0 %5828
        %5830 = vrot.lane.b32.xlu0 %v5723, 24
        %v5831 = vpop.permute.xlu0 %5830
        %5832 = vrot.lane.b32.xlu0 %v5733, 24
        %v5833 = vpop.permute.xlu0 %5832
        %5834 = vrot.lane.b32.xlu0 %v5743, 24
        %v5835 = vpop.permute.xlu0 %5834
        %5836 = vrot.lane.b32.xlu0 %v5753, 24
        %v5837 = vpop.permute.xlu0 %5836
        %5838 = vrot.lane.b32.xlu0 %v5763, 24
        %v5839 = vpop.permute.xlu0 %5838
        %5840 = vrot.lane.b32.xlu0 %v5773, 24
        %v5841 = vpop.permute.xlu0 %5840
        %5876 = vst.msk [vmem:[#allocation3] sm:$0xf] %vm1895, %v5775
        %5877 = vst.msk [vmem:[#allocation3 + $0x4] sm:$0xf] %vm1895, %v5777
        %5878 = vst.msk [vmem:[#allocation3 + $0x8] sm:$0xf] %vm1895, %v5779
        %5879 = vst.msk [vmem:[#allocation3 + $0xc] sm:$0xf] %vm1895, %v5781
        %5880 = vst.msk [vmem:[#allocation3 + $0x10] sm:$0xf] %vm1895, %v5783
        %5881 = vst.msk [vmem:[#allocation3 + $0x14] sm:$0xf] %vm1895, %v5785
        %5882 = vst.msk [vmem:[#allocation3 + $0x18] sm:$0xf] %vm1895, %v5787
        %5883 = vst.msk [vmem:[#allocation3 + $0x1c] sm:$0xf] %vm1895, %v5789
        %5884 = vst.msk [vmem:[#allocation3 + $0x20] sm:$0xf] %vm1895, %v5791
        %5885 = vst.msk [vmem:[#allocation3 + $0x24] sm:$0xf] %vm1895, %v5793
        %5886 = vst.msk [vmem:[#allocation3 + $0x28] sm:$0xf] %vm1895, %v5795
        %5887 = vst.msk [vmem:[#allocation3 + $0x2c] sm:$0xf] %vm1895, %v5797
        %5888 = vst.msk [vmem:[#allocation3 + $0x30] sm:$0xf] %vm1895, %v5799
        %5889 = vst.msk [vmem:[#allocation3 + $0x34] sm:$0xf] %vm1895, %v5801
        %5890 = vst.msk [vmem:[#allocation3 + $0x38] sm:$0xf] %vm1895, %v5803
        %5891 = vst.msk [vmem:[#allocation3 + $0x3c] sm:$0xf] %vm1895, %v5805
        %5892 = vst.msk [vmem:[#allocation3 + $0x40] sm:$0xf] %vm1895, %v5807
        %5893 = vst.msk [vmem:[#allocation3 + $0x44] sm:$0xf] %vm1895, %v5809
        %5894 = vst.msk [vmem:[#allocation3 + $0x48] sm:$0xf] %vm1895, %v5811
        %5895 = vst.msk [vmem:[#allocation3 + $0x4c] sm:$0xf] %vm1895, %v5813
        %5896 = vst.msk [vmem:[#allocation3 + $0x50] sm:$0xf] %vm1895, %v5815
        %5897 = vst.msk [vmem:[#allocation3 + $0x54] sm:$0xf] %vm1895, %v5817
        %5898 = vst.msk [vmem:[#allocation3 + $0x58] sm:$0xf] %vm1895, %v5819
        %5899 = vst.msk [vmem:[#allocation3 + $0x5c] sm:$0xf] %vm1895, %v5821
        %5900 = vst.msk [vmem:[#allocation3 + $0x60] sm:$0xf] %vm1895, %v5823
        %5901 = vst.msk [vmem:[#allocation3 + $0x64] sm:$0xf] %vm1895, %v5825
        %5902 = vst.msk [vmem:[#allocation3 + $0x68] sm:$0xf] %vm1895, %v5827
        %5903 = vst.msk [vmem:[#allocation3 + $0x6c] sm:$0xf] %vm1895, %v5829
        %5904 = vst.msk [vmem:[#allocation3 + $0x70] sm:$0xf] %vm1895, %v5831
        %5905 = vst.msk [vmem:[#allocation3 + $0x74] sm:$0xf] %vm1895, %v5833
        %5906 = vst.msk [vmem:[#allocation3 + $0x78] sm:$0xf] %vm1895, %v5835
        %5907 = vst.msk [vmem:[#allocation3 + $0x7c] sm:$0xf] %vm1895, %v5837
        %5908 = vst.msk [vmem:[#allocation3 + $0x80] sm:$0xf] %vm1895, %v5839
        %5909 = vst.msk [vmem:[#allocation3 + $0x84] sm:$0xf] %vm1895, %v5841
        %v5910 = vld [vmem:[%s511 + $0x8] sm:$0xe]
        %v5911 = vld [vmem:[%s511 + $0xc] sm:$0xf]
        %v5912 = vld [vmem:[%s511 + $0x10] sm:$0xf]
        %v5913 = vld [vmem:[%s511 + $0x14] sm:$0xf]
        %v5914 = vld [vmem:[%s511 + $0x18] sm:$0xf]
        %v5915 = vld [vmem:[%s511 + $0x1c] sm:$0xf]
        %v5916 = vld [vmem:[%s511 + $0x20] sm:$0xf]
        %v5917 = vld [vmem:[%s511 + $0x24] sm:$0xf]
        %v5918 = vld [vmem:[%s511 + $0x28] sm:$0xf]
        %v5919 = vld [vmem:[%s511 + $0x2c] sm:$0xf]
        %v5920 = vld [vmem:[%s511 + $0x30] sm:$0xf]
        %v5921 = vld [vmem:[%s511 + $0x34] sm:$0xf]
        %v5922 = vld [vmem:[%s511 + $0x38] sm:$0xf]
        %v5923 = vld [vmem:[%s511 + $0x3c] sm:$0xf]
        %v5924 = vld [vmem:[%s511 + $0x40] sm:$0xf]
        %v5925 = vld [vmem:[%s511 + $0x44] sm:$0xf]
        %v5926 = vld [vmem:[%s511 + $0x48] sm:$0xf]
        %v5927 = vld [vmem:[%s511 + $0x4c] sm:$0xf]
        %v5928 = vld [vmem:[%s511 + $0x50] sm:$0xf]
        %v5929 = vld [vmem:[%s511 + $0x54] sm:$0xf]
        %v5930 = vld [vmem:[%s511 + $0x58] sm:$0xf]
        %v5931 = vld [vmem:[%s511 + $0x5c] sm:$0xf]
        %v5932 = vld [vmem:[%s511 + $0x60] sm:$0xf]
        %v5933 = vld [vmem:[%s511 + $0x64] sm:$0xf]
        %v5934 = vld [vmem:[%s511 + $0x68] sm:$0xf]
        %v5935 = vld [vmem:[%s511 + $0x6c] sm:$0xf]
        %v5936 = vld [vmem:[%s511 + $0x70] sm:$0xf]
        %v5937 = vld [vmem:[%s511 + $0x74] sm:$0xf]
        %v5938 = vld [vmem:[%s511 + $0x78] sm:$0xf]
        %v5939 = vld [vmem:[%s511 + $0x7c] sm:$0xf]
        %v5940 = vld [vmem:[%s511 + $0x80] sm:$0xf]
        %v5941 = vld [vmem:[%s511 + $0x84] sm:$0xf]
        %v5942 = vld [vmem:[%s511 + $0x88] sm:$0xf]
        %v5943 = vld [vmem:[%s511 + $0x8c] sm:$0xf]
        %v5944 = vld [vmem:[%s511 + $0x90] sm:$0x1]
        %v5980 = vrot.slane %v5910, 5
        %v5981 = vrot.slane %v5980, 4
        %v5982 = vrot.slane %v5911, 5
        %v5983 = vsel %vm1173, %v5981, %v5982
        %v5984 = vrot.slane %v5982, 4
        %v5985 = vrot.slane %v5912, 5
        %v5986 = vsel %vm1173, %v5984, %v5985
        %v5987 = vrot.slane %v5985, 4
        %v5988 = vrot.slane %v5913, 5
        %v5989 = vsel %vm1173, %v5987, %v5988
        %v5990 = vrot.slane %v5988, 4
        %v5991 = vrot.slane %v5914, 5
        %v5992 = vsel %vm1173, %v5990, %v5991
        %v5993 = vrot.slane %v5991, 4
        %v5994 = vrot.slane %v5915, 5
        %v5995 = vsel %vm1173, %v5993, %v5994
        %v5996 = vrot.slane %v5994, 4
        %v5997 = vrot.slane %v5916, 5
        %v5998 = vsel %vm1173, %v5996, %v5997
        %v5999 = vrot.slane %v5997, 4
        %v6000 = vrot.slane %v5917, 5
        %v6001 = vsel %vm1173, %v5999, %v6000
        %v6002 = vrot.slane %v6000, 4
        %v6003 = vrot.slane %v5918, 5
        %v6004 = vsel %vm1173, %v6002, %v6003
        %v6005 = vrot.slane %v6003, 4
        %v6006 = vrot.slane %v5919, 5
        %v6007 = vsel %vm1173, %v6005, %v6006
        %v6008 = vrot.slane %v6006, 4
        %v6009 = vrot.slane %v5920, 5
        %v6010 = vsel %vm1173, %v6008, %v6009
        %v6011 = vrot.slane %v6009, 4
        %v6012 = vrot.slane %v5921, 5
        %v6013 = vsel %vm1173, %v6011, %v6012
        %v6014 = vrot.slane %v6012, 4
        %v6015 = vrot.slane %v5922, 5
        %v6016 = vsel %vm1173, %v6014, %v6015
        %v6017 = vrot.slane %v6015, 4
        %v6018 = vrot.slane %v5923, 5
        %v6019 = vsel %vm1173, %v6017, %v6018
        %v6020 = vrot.slane %v6018, 4
        %v6021 = vrot.slane %v5924, 5
        %v6022 = vsel %vm1173, %v6020, %v6021
        %v6023 = vrot.slane %v6021, 4
        %v6024 = vrot.slane %v5925, 5
        %v6025 = vsel %vm1173, %v6023, %v6024
        %v6026 = vrot.slane %v6024, 4
        %v6027 = vrot.slane %v5926, 5
        %v6028 = vsel %vm1173, %v6026, %v6027
        %v6029 = vrot.slane %v6027, 4
        %v6030 = vrot.slane %v5927, 5
        %v6031 = vsel %vm1173, %v6029, %v6030
        %v6032 = vrot.slane %v6030, 4
        %v6033 = vrot.slane %v5928, 5
        %v6034 = vsel %vm1173, %v6032, %v6033
        %v6035 = vrot.slane %v6033, 4
        %v6036 = vrot.slane %v5929, 5
        %v6037 = vsel %vm1173, %v6035, %v6036
        %v6038 = vrot.slane %v6036, 4
        %v6039 = vrot.slane %v5930, 5
        %v6040 = vsel %vm1173, %v6038, %v6039
        %v6041 = vrot.slane %v6039, 4
        %v6042 = vrot.slane %v5931, 5
        %v6043 = vsel %vm1173, %v6041, %v6042
        %v6044 = vrot.slane %v6042, 4
        %v6045 = vrot.slane %v5932, 5
        %v6046 = vsel %vm1173, %v6044, %v6045
        %v6047 = vrot.slane %v6045, 4
        %v6048 = vrot.slane %v5933, 5
        %v6049 = vsel %vm1173, %v6047, %v6048
        %v6050 = vrot.slane %v6048, 4
        %v6051 = vrot.slane %v5934, 5
        %v6052 = vsel %vm1173, %v6050, %v6051
        %v6053 = vrot.slane %v6051, 4
        %v6054 = vrot.slane %v5935, 5
        %v6055 = vsel %vm1173, %v6053, %v6054
        %v6056 = vrot.slane %v6054, 4
        %v6057 = vrot.slane %v5936, 5
        %v6058 = vsel %vm1173, %v6056, %v6057
        %v6059 = vrot.slane %v6057, 4
        %v6060 = vrot.slane %v5937, 5
        %v6061 = vsel %vm1173, %v6059, %v6060
        %v6062 = vrot.slane %v6060, 4
        %v6063 = vrot.slane %v5938, 5
        %v6064 = vsel %vm1173, %v6062, %v6063
        %v6065 = vrot.slane %v6063, 4
        %v6066 = vrot.slane %v5939, 5
        %v6067 = vsel %vm1173, %v6065, %v6066
        %v6068 = vrot.slane %v6066, 4
        %v6069 = vrot.slane %v5940, 5
        %v6070 = vsel %vm1173, %v6068, %v6069
        %v6071 = vrot.slane %v6069, 4
        %v6072 = vrot.slane %v5941, 5
        %v6073 = vsel %vm1173, %v6071, %v6072
        %v6074 = vrot.slane %v6072, 4
        %v6075 = vrot.slane %v5942, 5
        %v6076 = vsel %vm1173, %v6074, %v6075
        %v6077 = vrot.slane %v6075, 4
        %v6078 = vrot.slane %v5943, 5
        %v6079 = vsel %vm1173, %v6077, %v6078
        %v6080 = vrot.slane %v6078, 4
        %v6081 = vrot.slane %v5944, 5
        %v6082 = vsel %vm1173, %v6080, %v6081
        %6083 = vrot.lane.b32.xlu0 %v5983, 32
        %v6084 = vpop.permute.xlu0 %6083
        %6085 = vrot.lane.b32.xlu0 %v5986, 32
        %v6086 = vpop.permute.xlu0 %6085
        %6087 = vrot.lane.b32.xlu0 %v5989, 32
        %v6088 = vpop.permute.xlu0 %6087
        %6089 = vrot.lane.b32.xlu0 %v5992, 32
        %v6090 = vpop.permute.xlu0 %6089
        %6091 = vrot.lane.b32.xlu0 %v5995, 32
        %v6092 = vpop.permute.xlu0 %6091
        %6093 = vrot.lane.b32.xlu0 %v5998, 32
        %v6094 = vpop.permute.xlu0 %6093
        %6095 = vrot.lane.b32.xlu0 %v6001, 32
        %v6096 = vpop.permute.xlu0 %6095
        %6097 = vrot.lane.b32.xlu0 %v6004, 32
        %v6098 = vpop.permute.xlu0 %6097
        %6099 = vrot.lane.b32.xlu0 %v6007, 32
        %v6100 = vpop.permute.xlu0 %6099
        %6101 = vrot.lane.b32.xlu0 %v6010, 32
        %v6102 = vpop.permute.xlu0 %6101
        %6103 = vrot.lane.b32.xlu0 %v6013, 32
        %v6104 = vpop.permute.xlu0 %6103
        %6105 = vrot.lane.b32.xlu0 %v6016, 32
        %v6106 = vpop.permute.xlu0 %6105
        %6107 = vrot.lane.b32.xlu0 %v6019, 32
        %v6108 = vpop.permute.xlu0 %6107
        %6109 = vrot.lane.b32.xlu0 %v6022, 32
        %v6110 = vpop.permute.xlu0 %6109
        %6111 = vrot.lane.b32.xlu0 %v6025, 32
        %v6112 = vpop.permute.xlu0 %6111
        %6113 = vrot.lane.b32.xlu0 %v6028, 32
        %v6114 = vpop.permute.xlu0 %6113
        %6115 = vrot.lane.b32.xlu0 %v6031, 32
        %v6116 = vpop.permute.xlu0 %6115
        %6117 = vrot.lane.b32.xlu0 %v6034, 32
        %v6118 = vpop.permute.xlu0 %6117
        %6119 = vrot.lane.b32.xlu0 %v6037, 32
        %v6120 = vpop.permute.xlu0 %6119
        %6121 = vrot.lane.b32.xlu0 %v6040, 32
        %v6122 = vpop.permute.xlu0 %6121
        %6123 = vrot.lane.b32.xlu0 %v6043, 32
        %v6124 = vpop.permute.xlu0 %6123
        %6125 = vrot.lane.b32.xlu0 %v6046, 32
        %v6126 = vpop.permute.xlu0 %6125
        %6127 = vrot.lane.b32.xlu0 %v6049, 32
        %v6128 = vpop.permute.xlu0 %6127
        %6129 = vrot.lane.b32.xlu0 %v6052, 32
        %v6130 = vpop.permute.xlu0 %6129
        %6131 = vrot.lane.b32.xlu0 %v6055, 32
        %v6132 = vpop.permute.xlu0 %6131
        %6133 = vrot.lane.b32.xlu0 %v6058, 32
        %v6134 = vpop.permute.xlu0 %6133
        %6135 = vrot.lane.b32.xlu0 %v6061, 32
        %v6136 = vpop.permute.xlu0 %6135
        %6137 = vrot.lane.b32.xlu0 %v6064, 32
        %v6138 = vpop.permute.xlu0 %6137
        %6139 = vrot.lane.b32.xlu0 %v6067, 32
        %v6140 = vpop.permute.xlu0 %6139
        %6141 = vrot.lane.b32.xlu0 %v6070, 32
        %v6142 = vpop.permute.xlu0 %6141
        %6143 = vrot.lane.b32.xlu0 %v6073, 32
        %v6144 = vpop.permute.xlu0 %6143
        %6145 = vrot.lane.b32.xlu0 %v6076, 32
        %v6146 = vpop.permute.xlu0 %6145
        %6147 = vrot.lane.b32.xlu0 %v6079, 32
        %v6148 = vpop.permute.xlu0 %6147
        %6149 = vrot.lane.b32.xlu0 %v6082, 32
        %v6150 = vpop.permute.xlu0 %6149
        %6185 = vst.msk [vmem:[#allocation3] sm:$0xf] %vm2205, %v6084
        %6186 = vst.msk [vmem:[#allocation3 + $0x4] sm:$0xf] %vm2205, %v6086
        %6187 = vst.msk [vmem:[#allocation3 + $0x8] sm:$0xf] %vm2205, %v6088
        %6188 = vst.msk [vmem:[#allocation3 + $0xc] sm:$0xf] %vm2205, %v6090
        %6189 = vst.msk [vmem:[#allocation3 + $0x10] sm:$0xf] %vm2205, %v6092
        %6190 = vst.msk [vmem:[#allocation3 + $0x14] sm:$0xf] %vm2205, %v6094
        %6191 = vst.msk [vmem:[#allocation3 + $0x18] sm:$0xf] %vm2205, %v6096
        %6192 = vst.msk [vmem:[#allocation3 + $0x1c] sm:$0xf] %vm2205, %v6098
        %6193 = vst.msk [vmem:[#allocation3 + $0x20] sm:$0xf] %vm2205, %v6100
        %6194 = vst.msk [vmem:[#allocation3 + $0x24] sm:$0xf] %vm2205, %v6102
        %6195 = vst.msk [vmem:[#allocation3 + $0x28] sm:$0xf] %vm2205, %v6104
        %6196 = vst.msk [vmem:[#allocation3 + $0x2c] sm:$0xf] %vm2205, %v6106
        %6197 = vst.msk [vmem:[#allocation3 + $0x30] sm:$0xf] %vm2205, %v6108
        %6198 = vst.msk [vmem:[#allocation3 + $0x34] sm:$0xf] %vm2205, %v6110
        %6199 = vst.msk [vmem:[#allocation3 + $0x38] sm:$0xf] %vm2205, %v6112
        %6200 = vst.msk [vmem:[#allocation3 + $0x3c] sm:$0xf] %vm2205, %v6114
        %6201 = vst.msk [vmem:[#allocation3 + $0x40] sm:$0xf] %vm2205, %v6116
        %6202 = vst.msk [vmem:[#allocation3 + $0x44] sm:$0xf] %vm2205, %v6118
        %6203 = vst.msk [vmem:[#allocation3 + $0x48] sm:$0xf] %vm2205, %v6120
        %6204 = vst.msk [vmem:[#allocation3 + $0x4c] sm:$0xf] %vm2205, %v6122
        %6205 = vst.msk [vmem:[#allocation3 + $0x50] sm:$0xf] %vm2205, %v6124
        %6206 = vst.msk [vmem:[#allocation3 + $0x54] sm:$0xf] %vm2205, %v6126
        %6207 = vst.msk [vmem:[#allocation3 + $0x58] sm:$0xf] %vm2205, %v6128
        %6208 = vst.msk [vmem:[#allocation3 + $0x5c] sm:$0xf] %vm2205, %v6130
        %6209 = vst.msk [vmem:[#allocation3 + $0x60] sm:$0xf] %vm2205, %v6132
        %6210 = vst.msk [vmem:[#allocation3 + $0x64] sm:$0xf] %vm2205, %v6134
        %6211 = vst.msk [vmem:[#allocation3 + $0x68] sm:$0xf] %vm2205, %v6136
        %6212 = vst.msk [vmem:[#allocation3 + $0x6c] sm:$0xf] %vm2205, %v6138
        %6213 = vst.msk [vmem:[#allocation3 + $0x70] sm:$0xf] %vm2205, %v6140
        %6214 = vst.msk [vmem:[#allocation3 + $0x74] sm:$0xf] %vm2205, %v6142
        %6215 = vst.msk [vmem:[#allocation3 + $0x78] sm:$0xf] %vm2205, %v6144
        %6216 = vst.msk [vmem:[#allocation3 + $0x7c] sm:$0xf] %vm2205, %v6146
        %6217 = vst.msk [vmem:[#allocation3 + $0x80] sm:$0xf] %vm2205, %v6148
        %6218 = vst.msk [vmem:[#allocation3 + $0x84] sm:$0xf] %vm2205, %v6150
        %v6219 = vld [vmem:[%s511 + $0x8] sm:$0xe]
        %v6220 = vld [vmem:[%s511 + $0xc] sm:$0xf]
        %v6221 = vld [vmem:[%s511 + $0x10] sm:$0xf]
        %v6222 = vld [vmem:[%s511 + $0x14] sm:$0xf]
        %v6223 = vld [vmem:[%s511 + $0x18] sm:$0xf]
        %v6224 = vld [vmem:[%s511 + $0x1c] sm:$0xf]
        %v6225 = vld [vmem:[%s511 + $0x20] sm:$0xf]
        %v6226 = vld [vmem:[%s511 + $0x24] sm:$0xf]
        %v6227 = vld [vmem:[%s511 + $0x28] sm:$0xf]
        %v6228 = vld [vmem:[%s511 + $0x2c] sm:$0xf]
        %v6229 = vld [vmem:[%s511 + $0x30] sm:$0xf]
        %v6230 = vld [vmem:[%s511 + $0x34] sm:$0xf]
        %v6231 = vld [vmem:[%s511 + $0x38] sm:$0xf]
        %v6232 = vld [vmem:[%s511 + $0x3c] sm:$0xf]
        %v6233 = vld [vmem:[%s511 + $0x40] sm:$0xf]
        %v6234 = vld [vmem:[%s511 + $0x44] sm:$0xf]
        %v6235 = vld [vmem:[%s511 + $0x48] sm:$0xf]
        %v6236 = vld [vmem:[%s511 + $0x4c] sm:$0xf]
        %v6237 = vld [vmem:[%s511 + $0x50] sm:$0xf]
        %v6238 = vld [vmem:[%s511 + $0x54] sm:$0xf]
        %v6239 = vld [vmem:[%s511 + $0x58] sm:$0xf]
        %v6240 = vld [vmem:[%s511 + $0x5c] sm:$0xf]
        %v6241 = vld [vmem:[%s511 + $0x60] sm:$0xf]
        %v6242 = vld [vmem:[%s511 + $0x64] sm:$0xf]
        %v6243 = vld [vmem:[%s511 + $0x68] sm:$0xf]
        %v6244 = vld [vmem:[%s511 + $0x6c] sm:$0xf]
        %v6245 = vld [vmem:[%s511 + $0x70] sm:$0xf]
        %v6246 = vld [vmem:[%s511 + $0x74] sm:$0xf]
        %v6247 = vld [vmem:[%s511 + $0x78] sm:$0xf]
        %v6248 = vld [vmem:[%s511 + $0x7c] sm:$0xf]
        %v6249 = vld [vmem:[%s511 + $0x80] sm:$0xf]
        %v6250 = vld [vmem:[%s511 + $0x84] sm:$0xf]
        %v6251 = vld [vmem:[%s511 + $0x88] sm:$0xf]
        %v6252 = vld [vmem:[%s511 + $0x8c] sm:$0xf]
        %v6253 = vld [vmem:[%s511 + $0x90] sm:$0x3]
        %v6255 = vshrl.u32 %v6219, 16
        %v6257 = vrot.slane %v6255, 5
        %v6258 = vshll.u32 %v6219, 16
        %v6260 = vrot.slane %v6258, 6
        %v6261 = vor.u32 %v6257, %v6260
        %v6262 = vrot.slane %v6261, 4
        %v6264 = vshrl.u32 %v6220, 16
        %v6266 = vrot.slane %v6264, 5
        %v6267 = vshll.u32 %v6220, 16
        %v6269 = vrot.slane %v6267, 6
        %v6270 = vor.u32 %v6266, %v6269
        %v6271 = vsel %vm2277, %v6262, %v6270
        %v6272 = vrot.slane %v6270, 4
        %v6274 = vshrl.u32 %v6221, 16
        %v6276 = vrot.slane %v6274, 5
        %v6277 = vshll.u32 %v6221, 16
        %v6279 = vrot.slane %v6277, 6
        %v6280 = vor.u32 %v6276, %v6279
        %v6281 = vsel %vm2277, %v6272, %v6280
        %v6282 = vrot.slane %v6280, 4
        %v6284 = vshrl.u32 %v6222, 16
        %v6286 = vrot.slane %v6284, 5
        %v6287 = vshll.u32 %v6222, 16
        %v6289 = vrot.slane %v6287, 6
        %v6290 = vor.u32 %v6286, %v6289
        %v6291 = vsel %vm2277, %v6282, %v6290
        %v6292 = vrot.slane %v6290, 4
        %v6294 = vshrl.u32 %v6223, 16
        %v6296 = vrot.slane %v6294, 5
        %v6297 = vshll.u32 %v6223, 16
        %v6299 = vrot.slane %v6297, 6
        %v6300 = vor.u32 %v6296, %v6299
        %v6301 = vsel %vm2277, %v6292, %v6300
        %v6302 = vrot.slane %v6300, 4
        %v6304 = vshrl.u32 %v6224, 16
        %v6306 = vrot.slane %v6304, 5
        %v6307 = vshll.u32 %v6224, 16
        %v6309 = vrot.slane %v6307, 6
        %v6310 = vor.u32 %v6306, %v6309
        %v6311 = vsel %vm2277, %v6302, %v6310
        %v6312 = vrot.slane %v6310, 4
        %v6314 = vshrl.u32 %v6225, 16
        %v6316 = vrot.slane %v6314, 5
        %v6317 = vshll.u32 %v6225, 16
        %v6319 = vrot.slane %v6317, 6
        %v6320 = vor.u32 %v6316, %v6319
        %v6321 = vsel %vm2277, %v6312, %v6320
        %v6322 = vrot.slane %v6320, 4
        %v6324 = vshrl.u32 %v6226, 16
        %v6326 = vrot.slane %v6324, 5
        %v6327 = vshll.u32 %v6226, 16
        %v6329 = vrot.slane %v6327, 6
        %v6330 = vor.u32 %v6326, %v6329
        %v6331 = vsel %vm2277, %v6322, %v6330
        %v6332 = vrot.slane %v6330, 4
        %v6334 = vshrl.u32 %v6227, 16
        %v6336 = vrot.slane %v6334, 5
        %v6337 = vshll.u32 %v6227, 16
        %v6339 = vrot.slane %v6337, 6
        %v6340 = vor.u32 %v6336, %v6339
        %v6341 = vsel %vm2277, %v6332, %v6340
        %v6342 = vrot.slane %v6340, 4
        %v6344 = vshrl.u32 %v6228, 16
        %v6346 = vrot.slane %v6344, 5
        %v6347 = vshll.u32 %v6228, 16
        %v6349 = vrot.slane %v6347, 6
        %v6350 = vor.u32 %v6346, %v6349
        %v6351 = vsel %vm2277, %v6342, %v6350
        %v6352 = vrot.slane %v6350, 4
        %v6354 = vshrl.u32 %v6229, 16
        %v6356 = vrot.slane %v6354, 5
        %v6357 = vshll.u32 %v6229, 16
        %v6359 = vrot.slane %v6357, 6
        %v6360 = vor.u32 %v6356, %v6359
        %v6361 = vsel %vm2277, %v6352, %v6360
        %v6362 = vrot.slane %v6360, 4
        %v6364 = vshrl.u32 %v6230, 16
        %v6366 = vrot.slane %v6364, 5
        %v6367 = vshll.u32 %v6230, 16
        %v6369 = vrot.slane %v6367, 6
        %v6370 = vor.u32 %v6366, %v6369
        %v6371 = vsel %vm2277, %v6362, %v6370
        %v6372 = vrot.slane %v6370, 4
        %v6374 = vshrl.u32 %v6231, 16
        %v6376 = vrot.slane %v6374, 5
        %v6377 = vshll.u32 %v6231, 16
        %v6379 = vrot.slane %v6377, 6
        %v6380 = vor.u32 %v6376, %v6379
        %v6381 = vsel %vm2277, %v6372, %v6380
        %v6382 = vrot.slane %v6380, 4
        %v6384 = vshrl.u32 %v6232, 16
        %v6386 = vrot.slane %v6384, 5
        %v6387 = vshll.u32 %v6232, 16
        %v6389 = vrot.slane %v6387, 6
        %v6390 = vor.u32 %v6386, %v6389
        %v6391 = vsel %vm2277, %v6382, %v6390
        %v6392 = vrot.slane %v6390, 4
        %v6394 = vshrl.u32 %v6233, 16
        %v6396 = vrot.slane %v6394, 5
        %v6397 = vshll.u32 %v6233, 16
        %v6399 = vrot.slane %v6397, 6
        %v6400 = vor.u32 %v6396, %v6399
        %v6401 = vsel %vm2277, %v6392, %v6400
        %v6402 = vrot.slane %v6400, 4
        %v6404 = vshrl.u32 %v6234, 16
        %v6406 = vrot.slane %v6404, 5
        %v6407 = vshll.u32 %v6234, 16
        %v6409 = vrot.slane %v6407, 6
        %v6410 = vor.u32 %v6406, %v6409
        %v6411 = vsel %vm2277, %v6402, %v6410
        %v6412 = vrot.slane %v6410, 4
        %v6414 = vshrl.u32 %v6235, 16
        %v6416 = vrot.slane %v6414, 5
        %v6417 = vshll.u32 %v6235, 16
        %v6419 = vrot.slane %v6417, 6
        %v6420 = vor.u32 %v6416, %v6419
        %v6421 = vsel %vm2277, %v6412, %v6420
        %v6422 = vrot.slane %v6420, 4
        %v6424 = vshrl.u32 %v6236, 16
        %v6426 = vrot.slane %v6424, 5
        %v6427 = vshll.u32 %v6236, 16
        %v6429 = vrot.slane %v6427, 6
        %v6430 = vor.u32 %v6426, %v6429
        %v6431 = vsel %vm2277, %v6422, %v6430
        %v6432 = vrot.slane %v6430, 4
        %v6434 = vshrl.u32 %v6237, 16
        %v6436 = vrot.slane %v6434, 5
        %v6437 = vshll.u32 %v6237, 16
        %v6439 = vrot.slane %v6437, 6
        %v6440 = vor.u32 %v6436, %v6439
        %v6441 = vsel %vm2277, %v6432, %v6440
        %v6442 = vrot.slane %v6440, 4
        %v6444 = vshrl.u32 %v6238, 16
        %v6446 = vrot.slane %v6444, 5
        %v6447 = vshll.u32 %v6238, 16
        %v6449 = vrot.slane %v6447, 6
        %v6450 = vor.u32 %v6446, %v6449
        %v6451 = vsel %vm2277, %v6442, %v6450
        %v6452 = vrot.slane %v6450, 4
        %v6454 = vshrl.u32 %v6239, 16
        %v6456 = vrot.slane %v6454, 5
        %v6457 = vshll.u32 %v6239, 16
        %v6459 = vrot.slane %v6457, 6
        %v6460 = vor.u32 %v6456, %v6459
        %v6461 = vsel %vm2277, %v6452, %v6460
        %v6462 = vrot.slane %v6460, 4
        %v6464 = vshrl.u32 %v6240, 16
        %v6466 = vrot.slane %v6464, 5
        %v6467 = vshll.u32 %v6240, 16
        %v6469 = vrot.slane %v6467, 6
        %v6470 = vor.u32 %v6466, %v6469
        %v6471 = vsel %vm2277, %v6462, %v6470
        %v6472 = vrot.slane %v6470, 4
        %v6474 = vshrl.u32 %v6241, 16
        %v6476 = vrot.slane %v6474, 5
        %v6477 = vshll.u32 %v6241, 16
        %v6479 = vrot.slane %v6477, 6
        %v6480 = vor.u32 %v6476, %v6479
        %v6481 = vsel %vm2277, %v6472, %v6480
        %v6482 = vrot.slane %v6480, 4
        %v6484 = vshrl.u32 %v6242, 16
        %v6486 = vrot.slane %v6484, 5
        %v6487 = vshll.u32 %v6242, 16
        %v6489 = vrot.slane %v6487, 6
        %v6490 = vor.u32 %v6486, %v6489
        %v6491 = vsel %vm2277, %v6482, %v6490
        %v6492 = vrot.slane %v6490, 4
        %v6494 = vshrl.u32 %v6243, 16
        %v6496 = vrot.slane %v6494, 5
        %v6497 = vshll.u32 %v6243, 16
        %v6499 = vrot.slane %v6497, 6
        %v6500 = vor.u32 %v6496, %v6499
        %v6501 = vsel %vm2277, %v6492, %v6500
        %v6502 = vrot.slane %v6500, 4
        %v6504 = vshrl.u32 %v6244, 16
        %v6506 = vrot.slane %v6504, 5
        %v6507 = vshll.u32 %v6244, 16
        %v6509 = vrot.slane %v6507, 6
        %v6510 = vor.u32 %v6506, %v6509
        %v6511 = vsel %vm2277, %v6502, %v6510
        %v6512 = vrot.slane %v6510, 4
        %v6514 = vshrl.u32 %v6245, 16
        %v6516 = vrot.slane %v6514, 5
        %v6517 = vshll.u32 %v6245, 16
        %v6519 = vrot.slane %v6517, 6
        %v6520 = vor.u32 %v6516, %v6519
        %v6521 = vsel %vm2277, %v6512, %v6520
        %v6522 = vrot.slane %v6520, 4
        %v6524 = vshrl.u32 %v6246, 16
        %v6526 = vrot.slane %v6524, 5
        %v6527 = vshll.u32 %v6246, 16
        %v6529 = vrot.slane %v6527, 6
        %v6530 = vor.u32 %v6526, %v6529
        %v6531 = vsel %vm2277, %v6522, %v6530
        %v6532 = vrot.slane %v6530, 4
        %v6534 = vshrl.u32 %v6247, 16
        %v6536 = vrot.slane %v6534, 5
        %v6537 = vshll.u32 %v6247, 16
        %v6539 = vrot.slane %v6537, 6
        %v6540 = vor.u32 %v6536, %v6539
        %v6541 = vsel %vm2277, %v6532, %v6540
        %v6542 = vrot.slane %v6540, 4
        %v6544 = vshrl.u32 %v6248, 16
        %v6546 = vrot.slane %v6544, 5
        %v6547 = vshll.u32 %v6248, 16
        %v6549 = vrot.slane %v6547, 6
        %v6550 = vor.u32 %v6546, %v6549
        %v6551 = vsel %vm2277, %v6542, %v6550
        %v6552 = vrot.slane %v6550, 4
        %v6554 = vshrl.u32 %v6249, 16
        %v6556 = vrot.slane %v6554, 5
        %v6557 = vshll.u32 %v6249, 16
        %v6559 = vrot.slane %v6557, 6
        %v6560 = vor.u32 %v6556, %v6559
        %v6561 = vsel %vm2277, %v6552, %v6560
        %v6562 = vrot.slane %v6560, 4
        %v6564 = vshrl.u32 %v6250, 16
        %v6566 = vrot.slane %v6564, 5
        %v6567 = vshll.u32 %v6250, 16
        %v6569 = vrot.slane %v6567, 6
        %v6570 = vor.u32 %v6566, %v6569
        %v6571 = vsel %vm2277, %v6562, %v6570
        %v6572 = vrot.slane %v6570, 4
        %v6574 = vshrl.u32 %v6251, 16
        %v6576 = vrot.slane %v6574, 5
        %v6577 = vshll.u32 %v6251, 16
        %v6579 = vrot.slane %v6577, 6
        %v6580 = vor.u32 %v6576, %v6579
        %v6581 = vsel %vm2277, %v6572, %v6580
        %v6582 = vrot.slane %v6580, 4
        %v6584 = vshrl.u32 %v6252, 16
        %v6586 = vrot.slane %v6584, 5
        %v6587 = vshll.u32 %v6252, 16
        %v6589 = vrot.slane %v6587, 6
        %v6590 = vor.u32 %v6586, %v6589
        %v6591 = vsel %vm2277, %v6582, %v6590
        %v6592 = vrot.slane %v6590, 4
        %v6594 = vshrl.u32 %v6253, 16
        %v6596 = vrot.slane %v6594, 5
        %v6597 = vshll.u32 %v6253, 16
        %v6599 = vrot.slane %v6597, 6
        %v6600 = vor.u32 %v6596, %v6599
        %v6601 = vsel %vm2277, %v6592, %v6600
        %6602 = vrot.lane.b32.xlu0 %v6271, 40
        %v6603 = vpop.permute.xlu0 %6602
        %6604 = vrot.lane.b32.xlu0 %v6281, 40
        %v6605 = vpop.permute.xlu0 %6604
        %6606 = vrot.lane.b32.xlu0 %v6291, 40
        %v6607 = vpop.permute.xlu0 %6606
        %6608 = vrot.lane.b32.xlu0 %v6301, 40
        %v6609 = vpop.permute.xlu0 %6608
        %6610 = vrot.lane.b32.xlu0 %v6311, 40
        %v6611 = vpop.permute.xlu0 %6610
        %6612 = vrot.lane.b32.xlu0 %v6321, 40
        %v6613 = vpop.permute.xlu0 %6612
        %6614 = vrot.lane.b32.xlu0 %v6331, 40
        %v6615 = vpop.permute.xlu0 %6614
        %6616 = vrot.lane.b32.xlu0 %v6341, 40
        %v6617 = vpop.permute.xlu0 %6616
        %6618 = vrot.lane.b32.xlu0 %v6351, 40
        %v6619 = vpop.permute.xlu0 %6618
        %6620 = vrot.lane.b32.xlu0 %v6361, 40
        %v6621 = vpop.permute.xlu0 %6620
        %6622 = vrot.lane.b32.xlu0 %v6371, 40
        %v6623 = vpop.permute.xlu0 %6622
        %6624 = vrot.lane.b32.xlu0 %v6381, 40
        %v6625 = vpop.permute.xlu0 %6624
        %6626 = vrot.lane.b32.xlu0 %v6391, 40
        %v6627 = vpop.permute.xlu0 %6626
        %6628 = vrot.lane.b32.xlu0 %v6401, 40
        %v6629 = vpop.permute.xlu0 %6628
        %6630 = vrot.lane.b32.xlu0 %v6411, 40
        %v6631 = vpop.permute.xlu0 %6630
        %6632 = vrot.lane.b32.xlu0 %v6421, 40
        %v6633 = vpop.permute.xlu0 %6632
        %6634 = vrot.lane.b32.xlu0 %v6431, 40
        %v6635 = vpop.permute.xlu0 %6634
        %6636 = vrot.lane.b32.xlu0 %v6441, 40
        %v6637 = vpop.permute.xlu0 %6636
        %6638 = vrot.lane.b32.xlu0 %v6451, 40
        %v6639 = vpop.permute.xlu0 %6638
        %6640 = vrot.lane.b32.xlu0 %v6461, 40
        %v6641 = vpop.permute.xlu0 %6640
        %6642 = vrot.lane.b32.xlu0 %v6471, 40
        %v6643 = vpop.permute.xlu0 %6642
        %6644 = vrot.lane.b32.xlu0 %v6481, 40
        %v6645 = vpop.permute.xlu0 %6644
        %6646 = vrot.lane.b32.xlu0 %v6491, 40
        %v6647 = vpop.permute.xlu0 %6646
        %6648 = vrot.lane.b32.xlu0 %v6501, 40
        %v6649 = vpop.permute.xlu0 %6648
        %6650 = vrot.lane.b32.xlu0 %v6511, 40
        %v6651 = vpop.permute.xlu0 %6650
        %6652 = vrot.lane.b32.xlu0 %v6521, 40
        %v6653 = vpop.permute.xlu0 %6652
        %6654 = vrot.lane.b32.xlu0 %v6531, 40
        %v6655 = vpop.permute.xlu0 %6654
        %6656 = vrot.lane.b32.xlu0 %v6541, 40
        %v6657 = vpop.permute.xlu0 %6656
        %6658 = vrot.lane.b32.xlu0 %v6551, 40
        %v6659 = vpop.permute.xlu0 %6658
        %6660 = vrot.lane.b32.xlu0 %v6561, 40
        %v6661 = vpop.permute.xlu0 %6660
        %6662 = vrot.lane.b32.xlu0 %v6571, 40
        %v6663 = vpop.permute.xlu0 %6662
        %6664 = vrot.lane.b32.xlu0 %v6581, 40
        %v6665 = vpop.permute.xlu0 %6664
        %6666 = vrot.lane.b32.xlu0 %v6591, 40
        %v6667 = vpop.permute.xlu0 %6666
        %6668 = vrot.lane.b32.xlu0 %v6601, 40
        %v6669 = vpop.permute.xlu0 %6668
        %6704 = vst.msk [vmem:[#allocation3] sm:$0xf] %vm2728, %v6603
        %6705 = vst.msk [vmem:[#allocation3 + $0x4] sm:$0xf] %vm2728, %v6605
        %6706 = vst.msk [vmem:[#allocation3 + $0x8] sm:$0xf] %vm2728, %v6607
        %6707 = vst.msk [vmem:[#allocation3 + $0xc] sm:$0xf] %vm2728, %v6609
        %6708 = vst.msk [vmem:[#allocation3 + $0x10] sm:$0xf] %vm2728, %v6611
        %6709 = vst.msk [vmem:[#allocation3 + $0x14] sm:$0xf] %vm2728, %v6613
        %6710 = vst.msk [vmem:[#allocation3 + $0x18] sm:$0xf] %vm2728, %v6615
        %6711 = vst.msk [vmem:[#allocation3 + $0x1c] sm:$0xf] %vm2728, %v6617
        %6712 = vst.msk [vmem:[#allocation3 + $0x20] sm:$0xf] %vm2728, %v6619
        %6713 = vst.msk [vmem:[#allocation3 + $0x24] sm:$0xf] %vm2728, %v6621
        %6714 = vst.msk [vmem:[#allocation3 + $0x28] sm:$0xf] %vm2728, %v6623
        %6715 = vst.msk [vmem:[#allocation3 + $0x2c] sm:$0xf] %vm2728, %v6625
        %6716 = vst.msk [vmem:[#allocation3 + $0x30] sm:$0xf] %vm2728, %v6627
        %6717 = vst.msk [vmem:[#allocation3 + $0x34] sm:$0xf] %vm2728, %v6629
        %6718 = vst.msk [vmem:[#allocation3 + $0x38] sm:$0xf] %vm2728, %v6631
        %6719 = vst.msk [vmem:[#allocation3 + $0x3c] sm:$0xf] %vm2728, %v6633
        %6720 = vst.msk [vmem:[#allocation3 + $0x40] sm:$0xf] %vm2728, %v6635
        %6721 = vst.msk [vmem:[#allocation3 + $0x44] sm:$0xf] %vm2728, %v6637
        %6722 = vst.msk [vmem:[#allocation3 + $0x48] sm:$0xf] %vm2728, %v6639
        %6723 = vst.msk [vmem:[#allocation3 + $0x4c] sm:$0xf] %vm2728, %v6641
        %6724 = vst.msk [vmem:[#allocation3 + $0x50] sm:$0xf] %vm2728, %v6643
        %6725 = vst.msk [vmem:[#allocation3 + $0x54] sm:$0xf] %vm2728, %v6645
        %6726 = vst.msk [vmem:[#allocation3 + $0x58] sm:$0xf] %vm2728, %v6647
        %6727 = vst.msk [vmem:[#allocation3 + $0x5c] sm:$0xf] %vm2728, %v6649
        %6728 = vst.msk [vmem:[#allocation3 + $0x60] sm:$0xf] %vm2728, %v6651
        %6729 = vst.msk [vmem:[#allocation3 + $0x64] sm:$0xf] %vm2728, %v6653
        %6730 = vst.msk [vmem:[#allocation3 + $0x68] sm:$0xf] %vm2728, %v6655
        %6731 = vst.msk [vmem:[#allocation3 + $0x6c] sm:$0xf] %vm2728, %v6657
        %6732 = vst.msk [vmem:[#allocation3 + $0x70] sm:$0xf] %vm2728, %v6659
        %6733 = vst.msk [vmem:[#allocation3 + $0x74] sm:$0xf] %vm2728, %v6661
        %6734 = vst.msk [vmem:[#allocation3 + $0x78] sm:$0xf] %vm2728, %v6663
        %6735 = vst.msk [vmem:[#allocation3 + $0x7c] sm:$0xf] %vm2728, %v6665
        %6736 = vst.msk [vmem:[#allocation3 + $0x80] sm:$0xf] %vm2728, %v6667
        %6737 = vst.msk [vmem:[#allocation3 + $0x84] sm:$0xf] %vm2728, %v6669
        %v6738 = vld [vmem:[%s511 + $0x10] sm:$0xe]
        %v6739 = vld [vmem:[%s511 + $0x14] sm:$0xf]
        %v6740 = vld [vmem:[%s511 + $0x18] sm:$0xf]
        %v6741 = vld [vmem:[%s511 + $0x1c] sm:$0xf]
        %v6742 = vld [vmem:[%s511 + $0x20] sm:$0xf]
        %v6743 = vld [vmem:[%s511 + $0x24] sm:$0xf]
        %v6744 = vld [vmem:[%s511 + $0x28] sm:$0xf]
        %v6745 = vld [vmem:[%s511 + $0x2c] sm:$0xf]
        %v6746 = vld [vmem:[%s511 + $0x30] sm:$0xf]
        %v6747 = vld [vmem:[%s511 + $0x34] sm:$0xf]
        %v6748 = vld [vmem:[%s511 + $0x38] sm:$0xf]
        %v6749 = vld [vmem:[%s511 + $0x3c] sm:$0xf]
        %v6750 = vld [vmem:[%s511 + $0x40] sm:$0xf]
        %v6751 = vld [vmem:[%s511 + $0x44] sm:$0xf]
        %v6752 = vld [vmem:[%s511 + $0x48] sm:$0xf]
        %v6753 = vld [vmem:[%s511 + $0x4c] sm:$0xf]
        %v6754 = vld [vmem:[%s511 + $0x50] sm:$0xf]
        %v6755 = vld [vmem:[%s511 + $0x54] sm:$0xf]
        %v6756 = vld [vmem:[%s511 + $0x58] sm:$0xf]
        %v6757 = vld [vmem:[%s511 + $0x5c] sm:$0xf]
        %v6758 = vld [vmem:[%s511 + $0x60] sm:$0xf]
        %v6759 = vld [vmem:[%s511 + $0x64] sm:$0xf]
        %v6760 = vld [vmem:[%s511 + $0x68] sm:$0xf]
        %v6761 = vld [vmem:[%s511 + $0x6c] sm:$0xf]
        %v6762 = vld [vmem:[%s511 + $0x70] sm:$0xf]
        %v6763 = vld [vmem:[%s511 + $0x74] sm:$0xf]
        %v6764 = vld [vmem:[%s511 + $0x78] sm:$0xf]
        %v6765 = vld [vmem:[%s511 + $0x7c] sm:$0xf]
        %v6766 = vld [vmem:[%s511 + $0x80] sm:$0xf]
        %v6767 = vld [vmem:[%s511 + $0x84] sm:$0xf]
        %v6768 = vld [vmem:[%s511 + $0x88] sm:$0xf]
        %v6769 = vld [vmem:[%s511 + $0x8c] sm:$0xf]
        %v6770 = vld [vmem:[%s511 + $0x90] sm:$0xf]
        %v6771 = vld [vmem:[%s511 + $0x94] sm:$0xf]
        %v6772 = vld [vmem:[%s511 + $0x98] sm:$0x1]
        %v6808 = vrot.slane %v6738, 5
        %v6809 = vrot.slane %v6808, 4
        %v6810 = vrot.slane %v6739, 5
        %v6811 = vsel %vm1173, %v6809, %v6810
        %v6812 = vrot.slane %v6810, 4
        %v6813 = vrot.slane %v6740, 5
        %v6814 = vsel %vm1173, %v6812, %v6813
        %v6815 = vrot.slane %v6813, 4
        %v6816 = vrot.slane %v6741, 5
        %v6817 = vsel %vm1173, %v6815, %v6816
        %v6818 = vrot.slane %v6816, 4
        %v6819 = vrot.slane %v6742, 5
        %v6820 = vsel %vm1173, %v6818, %v6819
        %v6821 = vrot.slane %v6819, 4
        %v6822 = vrot.slane %v6743, 5
        %v6823 = vsel %vm1173, %v6821, %v6822
        %v6824 = vrot.slane %v6822, 4
        %v6825 = vrot.slane %v6744, 5
        %v6826 = vsel %vm1173, %v6824, %v6825
        %v6827 = vrot.slane %v6825, 4
        %v6828 = vrot.slane %v6745, 5
        %v6829 = vsel %vm1173, %v6827, %v6828
        %v6830 = vrot.slane %v6828, 4
        %v6831 = vrot.slane %v6746, 5
        %v6832 = vsel %vm1173, %v6830, %v6831
        %v6833 = vrot.slane %v6831, 4
        %v6834 = vrot.slane %v6747, 5
        %v6835 = vsel %vm1173, %v6833, %v6834
        %v6836 = vrot.slane %v6834, 4
        %v6837 = vrot.slane %v6748, 5
        %v6838 = vsel %vm1173, %v6836, %v6837
        %v6839 = vrot.slane %v6837, 4
        %v6840 = vrot.slane %v6749, 5
        %v6841 = vsel %vm1173, %v6839, %v6840
        %v6842 = vrot.slane %v6840, 4
        %v6843 = vrot.slane %v6750, 5
        %v6844 = vsel %vm1173, %v6842, %v6843
        %v6845 = vrot.slane %v6843, 4
        %v6846 = vrot.slane %v6751, 5
        %v6847 = vsel %vm1173, %v6845, %v6846
        %v6848 = vrot.slane %v6846, 4
        %v6849 = vrot.slane %v6752, 5
        %v6850 = vsel %vm1173, %v6848, %v6849
        %v6851 = vrot.slane %v6849, 4
        %v6852 = vrot.slane %v6753, 5
        %v6853 = vsel %vm1173, %v6851, %v6852
        %v6854 = vrot.slane %v6852, 4
        %v6855 = vrot.slane %v6754, 5
        %v6856 = vsel %vm1173, %v6854, %v6855
        %v6857 = vrot.slane %v6855, 4
        %v6858 = vrot.slane %v6755, 5
        %v6859 = vsel %vm1173, %v6857, %v6858
        %v6860 = vrot.slane %v6858, 4
        %v6861 = vrot.slane %v6756, 5
        %v6862 = vsel %vm1173, %v6860, %v6861
        %v6863 = vrot.slane %v6861, 4
        %v6864 = vrot.slane %v6757, 5
        %v6865 = vsel %vm1173, %v6863, %v6864
        %v6866 = vrot.slane %v6864, 4
        %v6867 = vrot.slane %v6758, 5
        %v6868 = vsel %vm1173, %v6866, %v6867
        %v6869 = vrot.slane %v6867, 4
        %v6870 = vrot.slane %v6759, 5
        %v6871 = vsel %vm1173, %v6869, %v6870
        %v6872 = vrot.slane %v6870, 4
        %v6873 = vrot.slane %v6760, 5
        %v6874 = vsel %vm1173, %v6872, %v6873
        %v6875 = vrot.slane %v6873, 4
        %v6876 = vrot.slane %v6761, 5
        %v6877 = vsel %vm1173, %v6875, %v6876
        %v6878 = vrot.slane %v6876, 4
        %v6879 = vrot.slane %v6762, 5
        %v6880 = vsel %vm1173, %v6878, %v6879
        %v6881 = vrot.slane %v6879, 4
        %v6882 = vrot.slane %v6763, 5
        %v6883 = vsel %vm1173, %v6881, %v6882
        %v6884 = vrot.slane %v6882, 4
        %v6885 = vrot.slane %v6764, 5
        %v6886 = vsel %vm1173, %v6884, %v6885
        %v6887 = vrot.slane %v6885, 4
        %v6888 = vrot.slane %v6765, 5
        %v6889 = vsel %vm1173, %v6887, %v6888
        %v6890 = vrot.slane %v6888, 4
        %v6891 = vrot.slane %v6766, 5
        %v6892 = vsel %vm1173, %v6890, %v6891
        %v6893 = vrot.slane %v6891, 4
        %v6894 = vrot.slane %v6767, 5
        %v6895 = vsel %vm1173, %v6893, %v6894
        %v6896 = vrot.slane %v6894, 4
        %v6897 = vrot.slane %v6768, 5
        %v6898 = vsel %vm1173, %v6896, %v6897
        %v6899 = vrot.slane %v6897, 4
        %v6900 = vrot.slane %v6769, 5
        %v6901 = vsel %vm1173, %v6899, %v6900
        %v6902 = vrot.slane %v6900, 4
        %v6903 = vrot.slane %v6770, 5
        %v6904 = vsel %vm1173, %v6902, %v6903
        %v6905 = vrot.slane %v6903, 4
        %v6906 = vrot.slane %v6771, 5
        %v6907 = vsel %vm1173, %v6905, %v6906
        %v6908 = vrot.slane %v6906, 4
        %v6909 = vrot.slane %v6772, 5
        %v6910 = vsel %vm1173, %v6908, %v6909
        %6911 = vrot.lane.b32.xlu0 %v6811, 48
        %v6912 = vpop.permute.xlu0 %6911
        %6913 = vrot.lane.b32.xlu0 %v6814, 48
        %v6914 = vpop.permute.xlu0 %6913
        %6915 = vrot.lane.b32.xlu0 %v6817, 48
        %v6916 = vpop.permute.xlu0 %6915
        %6917 = vrot.lane.b32.xlu0 %v6820, 48
        %v6918 = vpop.permute.xlu0 %6917
        %6919 = vrot.lane.b32.xlu0 %v6823, 48
        %v6920 = vpop.permute.xlu0 %6919
        %6921 = vrot.lane.b32.xlu0 %v6826, 48
        %v6922 = vpop.permute.xlu0 %6921
        %6923 = vrot.lane.b32.xlu0 %v6829, 48
        %v6924 = vpop.permute.xlu0 %6923
        %6925 = vrot.lane.b32.xlu0 %v6832, 48
        %v6926 = vpop.permute.xlu0 %6925
        %6927 = vrot.lane.b32.xlu0 %v6835, 48
        %v6928 = vpop.permute.xlu0 %6927
        %6929 = vrot.lane.b32.xlu0 %v6838, 48
        %v6930 = vpop.permute.xlu0 %6929
        %6931 = vrot.lane.b32.xlu0 %v6841, 48
        %v6932 = vpop.permute.xlu0 %6931
        %6933 = vrot.lane.b32.xlu0 %v6844, 48
        %v6934 = vpop.permute.xlu0 %6933
        %6935 = vrot.lane.b32.xlu0 %v6847, 48
        %v6936 = vpop.permute.xlu0 %6935
        %6937 = vrot.lane.b32.xlu0 %v6850, 48
        %v6938 = vpop.permute.xlu0 %6937
        %6939 = vrot.lane.b32.xlu0 %v6853, 48
        %v6940 = vpop.permute.xlu0 %6939
        %6941 = vrot.lane.b32.xlu0 %v6856, 48
        %v6942 = vpop.permute.xlu0 %6941
        %6943 = vrot.lane.b32.xlu0 %v6859, 48
        %v6944 = vpop.permute.xlu0 %6943
        %6945 = vrot.lane.b32.xlu0 %v6862, 48
        %v6946 = vpop.permute.xlu0 %6945
        %6947 = vrot.lane.b32.xlu0 %v6865, 48
        %v6948 = vpop.permute.xlu0 %6947
        %6949 = vrot.lane.b32.xlu0 %v6868, 48
        %v6950 = vpop.permute.xlu0 %6949
        %6951 = vrot.lane.b32.xlu0 %v6871, 48
        %v6952 = vpop.permute.xlu0 %6951
        %6953 = vrot.lane.b32.xlu0 %v6874, 48
        %v6954 = vpop.permute.xlu0 %6953
        %6955 = vrot.lane.b32.xlu0 %v6877, 48
        %v6956 = vpop.permute.xlu0 %6955
        %6957 = vrot.lane.b32.xlu0 %v6880, 48
        %v6958 = vpop.permute.xlu0 %6957
        %6959 = vrot.lane.b32.xlu0 %v6883, 48
        %v6960 = vpop.permute.xlu0 %6959
        %6961 = vrot.lane.b32.xlu0 %v6886, 48
        %v6962 = vpop.permute.xlu0 %6961
        %6963 = vrot.lane.b32.xlu0 %v6889, 48
        %v6964 = vpop.permute.xlu0 %6963
        %6965 = vrot.lane.b32.xlu0 %v6892, 48
        %v6966 = vpop.permute.xlu0 %6965
        %6967 = vrot.lane.b32.xlu0 %v6895, 48
        %v6968 = vpop.permute.xlu0 %6967
        %6969 = vrot.lane.b32.xlu0 %v6898, 48
        %v6970 = vpop.permute.xlu0 %6969
        %6971 = vrot.lane.b32.xlu0 %v6901, 48
        %v6972 = vpop.permute.xlu0 %6971
        %6973 = vrot.lane.b32.xlu0 %v6904, 48
        %v6974 = vpop.permute.xlu0 %6973
        %6975 = vrot.lane.b32.xlu0 %v6907, 48
        %v6976 = vpop.permute.xlu0 %6975
        %6977 = vrot.lane.b32.xlu0 %v6910, 48
        %v6978 = vpop.permute.xlu0 %6977
        %7013 = vst.msk [vmem:[#allocation3] sm:$0xf] %vm3038, %v6912
        %7014 = vst.msk [vmem:[#allocation3 + $0x4] sm:$0xf] %vm3038, %v6914
        %7015 = vst.msk [vmem:[#allocation3 + $0x8] sm:$0xf] %vm3038, %v6916
        %7016 = vst.msk [vmem:[#allocation3 + $0xc] sm:$0xf] %vm3038, %v6918
        %7017 = vst.msk [vmem:[#allocation3 + $0x10] sm:$0xf] %vm3038, %v6920
        %7018 = vst.msk [vmem:[#allocation3 + $0x14] sm:$0xf] %vm3038, %v6922
        %7019 = vst.msk [vmem:[#allocation3 + $0x18] sm:$0xf] %vm3038, %v6924
        %7020 = vst.msk [vmem:[#allocation3 + $0x1c] sm:$0xf] %vm3038, %v6926
        %7021 = vst.msk [vmem:[#allocation3 + $0x20] sm:$0xf] %vm3038, %v6928
        %7022 = vst.msk [vmem:[#allocation3 + $0x24] sm:$0xf] %vm3038, %v6930
        %7023 = vst.msk [vmem:[#allocation3 + $0x28] sm:$0xf] %vm3038, %v6932
        %7024 = vst.msk [vmem:[#allocation3 + $0x2c] sm:$0xf] %vm3038, %v6934
        %7025 = vst.msk [vmem:[#allocation3 + $0x30] sm:$0xf] %vm3038, %v6936
        %7026 = vst.msk [vmem:[#allocation3 + $0x34] sm:$0xf] %vm3038, %v6938
        %7027 = vst.msk [vmem:[#allocation3 + $0x38] sm:$0xf] %vm3038, %v6940
        %7028 = vst.msk [vmem:[#allocation3 + $0x3c] sm:$0xf] %vm3038, %v6942
        %7029 = vst.msk [vmem:[#allocation3 + $0x40] sm:$0xf] %vm3038, %v6944
        %7030 = vst.msk [vmem:[#allocation3 + $0x44] sm:$0xf] %vm3038, %v6946
        %7031 = vst.msk [vmem:[#allocation3 + $0x48] sm:$0xf] %vm3038, %v6948
        %7032 = vst.msk [vmem:[#allocation3 + $0x4c] sm:$0xf] %vm3038, %v6950
        %7033 = vst.msk [vmem:[#allocation3 + $0x50] sm:$0xf] %vm3038, %v6952
        %7034 = vst.msk [vmem:[#allocation3 + $0x54] sm:$0xf] %vm3038, %v6954
        %7035 = vst.msk [vmem:[#allocation3 + $0x58] sm:$0xf] %vm3038, %v6956
        %7036 = vst.msk [vmem:[#allocation3 + $0x5c] sm:$0xf] %vm3038, %v6958
        %7037 = vst.msk [vmem:[#allocation3 + $0x60] sm:$0xf] %vm3038, %v6960
        %7038 = vst.msk [vmem:[#allocation3 + $0x64] sm:$0xf] %vm3038, %v6962
        %7039 = vst.msk [vmem:[#allocation3 + $0x68] sm:$0xf] %vm3038, %v6964
        %7040 = vst.msk [vmem:[#allocation3 + $0x6c] sm:$0xf] %vm3038, %v6966
        %7041 = vst.msk [vmem:[#allocation3 + $0x70] sm:$0xf] %vm3038, %v6968
        %7042 = vst.msk [vmem:[#allocation3 + $0x74] sm:$0xf] %vm3038, %v6970
        %7043 = vst.msk [vmem:[#allocation3 + $0x78] sm:$0xf] %vm3038, %v6972
        %7044 = vst.msk [vmem:[#allocation3 + $0x7c] sm:$0xf] %vm3038, %v6974
        %7045 = vst.msk [vmem:[#allocation3 + $0x80] sm:$0xf] %vm3038, %v6976
        %7046 = vst.msk [vmem:[#allocation3 + $0x84] sm:$0xf] %vm3038, %v6978
        %v7047 = vld [vmem:[%s511 + $0x10] sm:$0xe]
        %v7048 = vld [vmem:[%s511 + $0x14] sm:$0xf]
        %v7049 = vld [vmem:[%s511 + $0x18] sm:$0xf]
        %v7050 = vld [vmem:[%s511 + $0x1c] sm:$0xf]
        %v7051 = vld [vmem:[%s511 + $0x20] sm:$0xf]
        %v7052 = vld [vmem:[%s511 + $0x24] sm:$0xf]
        %v7053 = vld [vmem:[%s511 + $0x28] sm:$0xf]
        %v7054 = vld [vmem:[%s511 + $0x2c] sm:$0xf]
        %v7055 = vld [vmem:[%s511 + $0x30] sm:$0xf]
        %v7056 = vld [vmem:[%s511 + $0x34] sm:$0xf]
        %v7057 = vld [vmem:[%s511 + $0x38] sm:$0xf]
        %v7058 = vld [vmem:[%s511 + $0x3c] sm:$0xf]
        %v7059 = vld [vmem:[%s511 + $0x40] sm:$0xf]
        %v7060 = vld [vmem:[%s511 + $0x44] sm:$0xf]
        %v7061 = vld [vmem:[%s511 + $0x48] sm:$0xf]
        %v7062 = vld [vmem:[%s511 + $0x4c] sm:$0xf]
        %v7063 = vld [vmem:[%s511 + $0x50] sm:$0xf]
        %v7064 = vld [vmem:[%s511 + $0x54] sm:$0xf]
        %v7065 = vld [vmem:[%s511 + $0x58] sm:$0xf]
        %v7066 = vld [vmem:[%s511 + $0x5c] sm:$0xf]
        %v7067 = vld [vmem:[%s511 + $0x60] sm:$0xf]
        %v7068 = vld [vmem:[%s511 + $0x64] sm:$0xf]
        %v7069 = vld [vmem:[%s511 + $0x68] sm:$0xf]
        %v7070 = vld [vmem:[%s511 + $0x6c] sm:$0xf]
        %v7071 = vld [vmem:[%s511 + $0x70] sm:$0xf]
        %v7072 = vld [vmem:[%s511 + $0x74] sm:$0xf]
        %v7073 = vld [vmem:[%s511 + $0x78] sm:$0xf]
        %v7074 = vld [vmem:[%s511 + $0x7c] sm:$0xf]
        %v7075 = vld [vmem:[%s511 + $0x80] sm:$0xf]
        %v7076 = vld [vmem:[%s511 + $0x84] sm:$0xf]
        %v7077 = vld [vmem:[%s511 + $0x88] sm:$0xf]
        %v7078 = vld [vmem:[%s511 + $0x8c] sm:$0xf]
        %v7079 = vld [vmem:[%s511 + $0x90] sm:$0xf]
        %v7080 = vld [vmem:[%s511 + $0x94] sm:$0xf]
        %v7081 = vld [vmem:[%s511 + $0x98] sm:$0x3]
        %v7083 = vshrl.u32 %v7047, 16
        %v7085 = vrot.slane %v7083, 5
        %v7086 = vshll.u32 %v7047, 16
        %v7088 = vrot.slane %v7086, 6
        %v7089 = vor.u32 %v7085, %v7088
        %v7090 = vrot.slane %v7089, 4
        %v7092 = vshrl.u32 %v7048, 16
        %v7094 = vrot.slane %v7092, 5
        %v7095 = vshll.u32 %v7048, 16
        %v7097 = vrot.slane %v7095, 6
        %v7098 = vor.u32 %v7094, %v7097
        %v7099 = vsel %vm2277, %v7090, %v7098
        %v7100 = vrot.slane %v7098, 4
        %v7102 = vshrl.u32 %v7049, 16
        %v7104 = vrot.slane %v7102, 5
        %v7105 = vshll.u32 %v7049, 16
        %v7107 = vrot.slane %v7105, 6
        %v7108 = vor.u32 %v7104, %v7107
        %v7109 = vsel %vm2277, %v7100, %v7108
        %v7110 = vrot.slane %v7108, 4
        %v7112 = vshrl.u32 %v7050, 16
        %v7114 = vrot.slane %v7112, 5
        %v7115 = vshll.u32 %v7050, 16
        %v7117 = vrot.slane %v7115, 6
        %v7118 = vor.u32 %v7114, %v7117
        %v7119 = vsel %vm2277, %v7110, %v7118
        %v7120 = vrot.slane %v7118, 4
        %v7122 = vshrl.u32 %v7051, 16
        %v7124 = vrot.slane %v7122, 5
        %v7125 = vshll.u32 %v7051, 16
        %v7127 = vrot.slane %v7125, 6
        %v7128 = vor.u32 %v7124, %v7127
        %v7129 = vsel %vm2277, %v7120, %v7128
        %v7130 = vrot.slane %v7128, 4
        %v7132 = vshrl.u32 %v7052, 16
        %v7134 = vrot.slane %v7132, 5
        %v7135 = vshll.u32 %v7052, 16
        %v7137 = vrot.slane %v7135, 6
        %v7138 = vor.u32 %v7134, %v7137
        %v7139 = vsel %vm2277, %v7130, %v7138
        %v7140 = vrot.slane %v7138, 4
        %v7142 = vshrl.u32 %v7053, 16
        %v7144 = vrot.slane %v7142, 5
        %v7145 = vshll.u32 %v7053, 16
        %v7147 = vrot.slane %v7145, 6
        %v7148 = vor.u32 %v7144, %v7147
        %v7149 = vsel %vm2277, %v7140, %v7148
        %v7150 = vrot.slane %v7148, 4
        %v7152 = vshrl.u32 %v7054, 16
        %v7154 = vrot.slane %v7152, 5
        %v7155 = vshll.u32 %v7054, 16
        %v7157 = vrot.slane %v7155, 6
        %v7158 = vor.u32 %v7154, %v7157
        %v7159 = vsel %vm2277, %v7150, %v7158
        %v7160 = vrot.slane %v7158, 4
        %v7162 = vshrl.u32 %v7055, 16
        %v7164 = vrot.slane %v7162, 5
        %v7165 = vshll.u32 %v7055, 16
        %v7167 = vrot.slane %v7165, 6
        %v7168 = vor.u32 %v7164, %v7167
        %v7169 = vsel %vm2277, %v7160, %v7168
        %v7170 = vrot.slane %v7168, 4
        %v7172 = vshrl.u32 %v7056, 16
        %v7174 = vrot.slane %v7172, 5
        %v7175 = vshll.u32 %v7056, 16
        %v7177 = vrot.slane %v7175, 6
        %v7178 = vor.u32 %v7174, %v7177
        %v7179 = vsel %vm2277, %v7170, %v7178
        %v7180 = vrot.slane %v7178, 4
        %v7182 = vshrl.u32 %v7057, 16
        %v7184 = vrot.slane %v7182, 5
        %v7185 = vshll.u32 %v7057, 16
        %v7187 = vrot.slane %v7185, 6
        %v7188 = vor.u32 %v7184, %v7187
        %v7189 = vsel %vm2277, %v7180, %v7188
        %v7190 = vrot.slane %v7188, 4
        %v7192 = vshrl.u32 %v7058, 16
        %v7194 = vrot.slane %v7192, 5
        %v7195 = vshll.u32 %v7058, 16
        %v7197 = vrot.slane %v7195, 6
        %v7198 = vor.u32 %v7194, %v7197
        %v7199 = vsel %vm2277, %v7190, %v7198
        %v7200 = vrot.slane %v7198, 4
        %v7202 = vshrl.u32 %v7059, 16
        %v7204 = vrot.slane %v7202, 5
        %v7205 = vshll.u32 %v7059, 16
        %v7207 = vrot.slane %v7205, 6
        %v7208 = vor.u32 %v7204, %v7207
        %v7209 = vsel %vm2277, %v7200, %v7208
        %v7210 = vrot.slane %v7208, 4
        %v7212 = vshrl.u32 %v7060, 16
        %v7214 = vrot.slane %v7212, 5
        %v7215 = vshll.u32 %v7060, 16
        %v7217 = vrot.slane %v7215, 6
        %v7218 = vor.u32 %v7214, %v7217
        %v7219 = vsel %vm2277, %v7210, %v7218
        %v7220 = vrot.slane %v7218, 4
        %v7222 = vshrl.u32 %v7061, 16
        %v7224 = vrot.slane %v7222, 5
        %v7225 = vshll.u32 %v7061, 16
        %v7227 = vrot.slane %v7225, 6
        %v7228 = vor.u32 %v7224, %v7227
        %v7229 = vsel %vm2277, %v7220, %v7228
        %v7230 = vrot.slane %v7228, 4
        %v7232 = vshrl.u32 %v7062, 16
        %v7234 = vrot.slane %v7232, 5
        %v7235 = vshll.u32 %v7062, 16
        %v7237 = vrot.slane %v7235, 6
        %v7238 = vor.u32 %v7234, %v7237
        %v7239 = vsel %vm2277, %v7230, %v7238
        %v7240 = vrot.slane %v7238, 4
        %v7242 = vshrl.u32 %v7063, 16
        %v7244 = vrot.slane %v7242, 5
        %v7245 = vshll.u32 %v7063, 16
        %v7247 = vrot.slane %v7245, 6
        %v7248 = vor.u32 %v7244, %v7247
        %v7249 = vsel %vm2277, %v7240, %v7248
        %v7250 = vrot.slane %v7248, 4
        %v7252 = vshrl.u32 %v7064, 16
        %v7254 = vrot.slane %v7252, 5
        %v7255 = vshll.u32 %v7064, 16
        %v7257 = vrot.slane %v7255, 6
        %v7258 = vor.u32 %v7254, %v7257
        %v7259 = vsel %vm2277, %v7250, %v7258
        %v7260 = vrot.slane %v7258, 4
        %v7262 = vshrl.u32 %v7065, 16
        %v7264 = vrot.slane %v7262, 5
        %v7265 = vshll.u32 %v7065, 16
        %v7267 = vrot.slane %v7265, 6
        %v7268 = vor.u32 %v7264, %v7267
        %v7269 = vsel %vm2277, %v7260, %v7268
        %v7270 = vrot.slane %v7268, 4
        %v7272 = vshrl.u32 %v7066, 16
        %v7274 = vrot.slane %v7272, 5
        %v7275 = vshll.u32 %v7066, 16
        %v7277 = vrot.slane %v7275, 6
        %v7278 = vor.u32 %v7274, %v7277
        %v7279 = vsel %vm2277, %v7270, %v7278
        %v7280 = vrot.slane %v7278, 4
        %v7282 = vshrl.u32 %v7067, 16
        %v7284 = vrot.slane %v7282, 5
        %v7285 = vshll.u32 %v7067, 16
        %v7287 = vrot.slane %v7285, 6
        %v7288 = vor.u32 %v7284, %v7287
        %v7289 = vsel %vm2277, %v7280, %v7288
        %v7290 = vrot.slane %v7288, 4
        %v7292 = vshrl.u32 %v7068, 16
        %v7294 = vrot.slane %v7292, 5
        %v7295 = vshll.u32 %v7068, 16
        %v7297 = vrot.slane %v7295, 6
        %v7298 = vor.u32 %v7294, %v7297
        %v7299 = vsel %vm2277, %v7290, %v7298
        %v7300 = vrot.slane %v7298, 4
        %v7302 = vshrl.u32 %v7069, 16
        %v7304 = vrot.slane %v7302, 5
        %v7305 = vshll.u32 %v7069, 16
        %v7307 = vrot.slane %v7305, 6
        %v7308 = vor.u32 %v7304, %v7307
        %v7309 = vsel %vm2277, %v7300, %v7308
        %v7310 = vrot.slane %v7308, 4
        %v7312 = vshrl.u32 %v7070, 16
        %v7314 = vrot.slane %v7312, 5
        %v7315 = vshll.u32 %v7070, 16
        %v7317 = vrot.slane %v7315, 6
        %v7318 = vor.u32 %v7314, %v7317
        %v7319 = vsel %vm2277, %v7310, %v7318
        %v7320 = vrot.slane %v7318, 4
        %v7322 = vshrl.u32 %v7071, 16
        %v7324 = vrot.slane %v7322, 5
        %v7325 = vshll.u32 %v7071, 16
        %v7327 = vrot.slane %v7325, 6
        %v7328 = vor.u32 %v7324, %v7327
        %v7329 = vsel %vm2277, %v7320, %v7328
        %v7330 = vrot.slane %v7328, 4
        %v7332 = vshrl.u32 %v7072, 16
        %v7334 = vrot.slane %v7332, 5
        %v7335 = vshll.u32 %v7072, 16
        %v7337 = vrot.slane %v7335, 6
        %v7338 = vor.u32 %v7334, %v7337
        %v7339 = vsel %vm2277, %v7330, %v7338
        %v7340 = vrot.slane %v7338, 4
        %v7342 = vshrl.u32 %v7073, 16
        %v7344 = vrot.slane %v7342, 5
        %v7345 = vshll.u32 %v7073, 16
        %v7347 = vrot.slane %v7345, 6
        %v7348 = vor.u32 %v7344, %v7347
        %v7349 = vsel %vm2277, %v7340, %v7348
        %v7350 = vrot.slane %v7348, 4
        %v7352 = vshrl.u32 %v7074, 16
        %v7354 = vrot.slane %v7352, 5
        %v7355 = vshll.u32 %v7074, 16
        %v7357 = vrot.slane %v7355, 6
        %v7358 = vor.u32 %v7354, %v7357
        %v7359 = vsel %vm2277, %v7350, %v7358
        %v7360 = vrot.slane %v7358, 4
        %v7362 = vshrl.u32 %v7075, 16
        %v7364 = vrot.slane %v7362, 5
        %v7365 = vshll.u32 %v7075, 16
        %v7367 = vrot.slane %v7365, 6
        %v7368 = vor.u32 %v7364, %v7367
        %v7369 = vsel %vm2277, %v7360, %v7368
        %v7370 = vrot.slane %v7368, 4
        %v7372 = vshrl.u32 %v7076, 16
        %v7374 = vrot.slane %v7372, 5
        %v7375 = vshll.u32 %v7076, 16
        %v7377 = vrot.slane %v7375, 6
        %v7378 = vor.u32 %v7374, %v7377
        %v7379 = vsel %vm2277, %v7370, %v7378
        %v7380 = vrot.slane %v7378, 4
        %v7382 = vshrl.u32 %v7077, 16
        %v7384 = vrot.slane %v7382, 5
        %v7385 = vshll.u32 %v7077, 16
        %v7387 = vrot.slane %v7385, 6
        %v7388 = vor.u32 %v7384, %v7387
        %v7389 = vsel %vm2277, %v7380, %v7388
        %v7390 = vrot.slane %v7388, 4
        %v7392 = vshrl.u32 %v7078, 16
        %v7394 = vrot.slane %v7392, 5
        %v7395 = vshll.u32 %v7078, 16
        %v7397 = vrot.slane %v7395, 6
        %v7398 = vor.u32 %v7394, %v7397
        %v7399 = vsel %vm2277, %v7390, %v7398
        %v7400 = vrot.slane %v7398, 4
        %v7402 = vshrl.u32 %v7079, 16
        %v7404 = vrot.slane %v7402, 5
        %v7405 = vshll.u32 %v7079, 16
        %v7407 = vrot.slane %v7405, 6
        %v7408 = vor.u32 %v7404, %v7407
        %v7409 = vsel %vm2277, %v7400, %v7408
        %v7410 = vrot.slane %v7408, 4
        %v7412 = vshrl.u32 %v7080, 16
        %v7414 = vrot.slane %v7412, 5
        %v7415 = vshll.u32 %v7080, 16
        %v7417 = vrot.slane %v7415, 6
        %v7418 = vor.u32 %v7414, %v7417
        %v7419 = vsel %vm2277, %v7410, %v7418
        %v7420 = vrot.slane %v7418, 4
        %v7422 = vshrl.u32 %v7081, 16
        %v7424 = vrot.slane %v7422, 5
        %v7425 = vshll.u32 %v7081, 16
        %v7427 = vrot.slane %v7425, 6
        %v7428 = vor.u32 %v7424, %v7427
        %v7429 = vsel %vm2277, %v7420, %v7428
        %7430 = vrot.lane.b32.xlu0 %v7099, 56
        %v7431 = vpop.permute.xlu0 %7430
        %7432 = vrot.lane.b32.xlu0 %v7109, 56
        %v7433 = vpop.permute.xlu0 %7432
        %7434 = vrot.lane.b32.xlu0 %v7119, 56
        %v7435 = vpop.permute.xlu0 %7434
        %7436 = vrot.lane.b32.xlu0 %v7129, 56
        %v7437 = vpop.permute.xlu0 %7436
        %7438 = vrot.lane.b32.xlu0 %v7139, 56
        %v7439 = vpop.permute.xlu0 %7438
        %7440 = vrot.lane.b32.xlu0 %v7149, 56
        %v7441 = vpop.permute.xlu0 %7440
        %7442 = vrot.lane.b32.xlu0 %v7159, 56
        %v7443 = vpop.permute.xlu0 %7442
        %7444 = vrot.lane.b32.xlu0 %v7169, 56
        %v7445 = vpop.permute.xlu0 %7444
        %7446 = vrot.lane.b32.xlu0 %v7179, 56
        %v7447 = vpop.permute.xlu0 %7446
        %7448 = vrot.lane.b32.xlu0 %v7189, 56
        %v7449 = vpop.permute.xlu0 %7448
        %7450 = vrot.lane.b32.xlu0 %v7199, 56
        %v7451 = vpop.permute.xlu0 %7450
        %7452 = vrot.lane.b32.xlu0 %v7209, 56
        %v7453 = vpop.permute.xlu0 %7452
        %7454 = vrot.lane.b32.xlu0 %v7219, 56
        %v7455 = vpop.permute.xlu0 %7454
        %7456 = vrot.lane.b32.xlu0 %v7229, 56
        %v7457 = vpop.permute.xlu0 %7456
        %7458 = vrot.lane.b32.xlu0 %v7239, 56
        %v7459 = vpop.permute.xlu0 %7458
        %7460 = vrot.lane.b32.xlu0 %v7249, 56
        %v7461 = vpop.permute.xlu0 %7460
        %7462 = vrot.lane.b32.xlu0 %v7259, 56
        %v7463 = vpop.permute.xlu0 %7462
        %7464 = vrot.lane.b32.xlu0 %v7269, 56
        %v7465 = vpop.permute.xlu0 %7464
        %7466 = vrot.lane.b32.xlu0 %v7279, 56
        %v7467 = vpop.permute.xlu0 %7466
        %7468 = vrot.lane.b32.xlu0 %v7289, 56
        %v7469 = vpop.permute.xlu0 %7468
        %7470 = vrot.lane.b32.xlu0 %v7299, 56
        %v7471 = vpop.permute.xlu0 %7470
        %7472 = vrot.lane.b32.xlu0 %v7309, 56
        %v7473 = vpop.permute.xlu0 %7472
        %7474 = vrot.lane.b32.xlu0 %v7319, 56
        %v7475 = vpop.permute.xlu0 %7474
        %7476 = vrot.lane.b32.xlu0 %v7329, 56
        %v7477 = vpop.permute.xlu0 %7476
        %7478 = vrot.lane.b32.xlu0 %v7339, 56
        %v7479 = vpop.permute.xlu0 %7478
        %7480 = vrot.lane.b32.xlu0 %v7349, 56
        %v7481 = vpop.permute.xlu0 %7480
        %7482 = vrot.lane.b32.xlu0 %v7359, 56
        %v7483 = vpop.permute.xlu0 %7482
        %7484 = vrot.lane.b32.xlu0 %v7369, 56
        %v7485 = vpop.permute.xlu0 %7484
        %7486 = vrot.lane.b32.xlu0 %v7379, 56
        %v7487 = vpop.permute.xlu0 %7486
        %7488 = vrot.lane.b32.xlu0 %v7389, 56
        %v7489 = vpop.permute.xlu0 %7488
        %7490 = vrot.lane.b32.xlu0 %v7399, 56
        %v7491 = vpop.permute.xlu0 %7490
        %7492 = vrot.lane.b32.xlu0 %v7409, 56
        %v7493 = vpop.permute.xlu0 %7492
        %7494 = vrot.lane.b32.xlu0 %v7419, 56
        %v7495 = vpop.permute.xlu0 %7494
        %7496 = vrot.lane.b32.xlu0 %v7429, 56
        %v7497 = vpop.permute.xlu0 %7496
        %7532 = vst.msk [vmem:[#allocation3] sm:$0xf] %vm3558, %v7431
        %7533 = vst.msk [vmem:[#allocation3 + $0x4] sm:$0xf] %vm3558, %v7433
        %7534 = vst.msk [vmem:[#allocation3 + $0x8] sm:$0xf] %vm3558, %v7435
        %7535 = vst.msk [vmem:[#allocation3 + $0xc] sm:$0xf] %vm3558, %v7437
        %7536 = vst.msk [vmem:[#allocation3 + $0x10] sm:$0xf] %vm3558, %v7439
        %7537 = vst.msk [vmem:[#allocation3 + $0x14] sm:$0xf] %vm3558, %v7441
        %7538 = vst.msk [vmem:[#allocation3 + $0x18] sm:$0xf] %vm3558, %v7443
        %7539 = vst.msk [vmem:[#allocation3 + $0x1c] sm:$0xf] %vm3558, %v7445
        %7540 = vst.msk [vmem:[#allocation3 + $0x20] sm:$0xf] %vm3558, %v7447
        %7541 = vst.msk [vmem:[#allocation3 + $0x24] sm:$0xf] %vm3558, %v7449
        %7542 = vst.msk [vmem:[#allocation3 + $0x28] sm:$0xf] %vm3558, %v7451
        %7543 = vst.msk [vmem:[#allocation3 + $0x2c] sm:$0xf] %vm3558, %v7453
        %7544 = vst.msk [vmem:[#allocation3 + $0x30] sm:$0xf] %vm3558, %v7455
        %7545 = vst.msk [vmem:[#allocation3 + $0x34] sm:$0xf] %vm3558, %v7457
        %7546 = vst.msk [vmem:[#allocation3 + $0x38] sm:$0xf] %vm3558, %v7459
        %7547 = vst.msk [vmem:[#allocation3 + $0x3c] sm:$0xf] %vm3558, %v7461
        %7548 = vst.msk [vmem:[#allocation3 + $0x40] sm:$0xf] %vm3558, %v7463
        %7549 = vst.msk [vmem:[#allocation3 + $0x44] sm:$0xf] %vm3558, %v7465
        %7550 = vst.msk [vmem:[#allocation3 + $0x48] sm:$0xf] %vm3558, %v7467
        %7551 = vst.msk [vmem:[#allocation3 + $0x4c] sm:$0xf] %vm3558, %v7469
        %7552 = vst.msk [vmem:[#allocation3 + $0x50] sm:$0xf] %vm3558, %v7471
        %7553 = vst.msk [vmem:[#allocation3 + $0x54] sm:$0xf] %vm3558, %v7473
        %7554 = vst.msk [vmem:[#allocation3 + $0x58] sm:$0xf] %vm3558, %v7475
        %7555 = vst.msk [vmem:[#allocation3 + $0x5c] sm:$0xf] %vm3558, %v7477
        %7556 = vst.msk [vmem:[#allocation3 + $0x60] sm:$0xf] %vm3558, %v7479
        %7557 = vst.msk [vmem:[#allocation3 + $0x64] sm:$0xf] %vm3558, %v7481
        %7558 = vst.msk [vmem:[#allocation3 + $0x68] sm:$0xf] %vm3558, %v7483
        %7559 = vst.msk [vmem:[#allocation3 + $0x6c] sm:$0xf] %vm3558, %v7485
        %7560 = vst.msk [vmem:[#allocation3 + $0x70] sm:$0xf] %vm3558, %v7487
        %7561 = vst.msk [vmem:[#allocation3 + $0x74] sm:$0xf] %vm3558, %v7489
        %7562 = vst.msk [vmem:[#allocation3 + $0x78] sm:$0xf] %vm3558, %v7491
        %7563 = vst.msk [vmem:[#allocation3 + $0x7c] sm:$0xf] %vm3558, %v7493
        %7564 = vst.msk [vmem:[#allocation3 + $0x80] sm:$0xf] %vm3558, %v7495
        %7565 = vst.msk [vmem:[#allocation3 + $0x84] sm:$0xf] %vm3558, %v7497
        %v7566 = vld [vmem:[%s511 + $0x10] sm:$0xc]
        %v7567 = vld [vmem:[%s511 + $0x14] sm:$0xf]
        %v7568 = vld [vmem:[%s511 + $0x18] sm:$0xf]
        %v7569 = vld [vmem:[%s511 + $0x1c] sm:$0xf]
        %v7570 = vld [vmem:[%s511 + $0x20] sm:$0xf]
        %v7571 = vld [vmem:[%s511 + $0x24] sm:$0xf]
        %v7572 = vld [vmem:[%s511 + $0x28] sm:$0xf]
        %v7573 = vld [vmem:[%s511 + $0x2c] sm:$0xf]
        %v7574 = vld [vmem:[%s511 + $0x30] sm:$0xf]
        %v7575 = vld [vmem:[%s511 + $0x34] sm:$0xf]
        %v7576 = vld [vmem:[%s511 + $0x38] sm:$0xf]
        %v7577 = vld [vmem:[%s511 + $0x3c] sm:$0xf]
        %v7578 = vld [vmem:[%s511 + $0x40] sm:$0xf]
        %v7579 = vld [vmem:[%s511 + $0x44] sm:$0xf]
        %v7580 = vld [vmem:[%s511 + $0x48] sm:$0xf]
        %v7581 = vld [vmem:[%s511 + $0x4c] sm:$0xf]
        %v7582 = vld [vmem:[%s511 + $0x50] sm:$0xf]
        %v7583 = vld [vmem:[%s511 + $0x54] sm:$0xf]
        %v7584 = vld [vmem:[%s511 + $0x58] sm:$0xf]
        %v7585 = vld [vmem:[%s511 + $0x5c] sm:$0xf]
        %v7586 = vld [vmem:[%s511 + $0x60] sm:$0xf]
        %v7587 = vld [vmem:[%s511 + $0x64] sm:$0xf]
        %v7588 = vld [vmem:[%s511 + $0x68] sm:$0xf]
        %v7589 = vld [vmem:[%s511 + $0x6c] sm:$0xf]
        %v7590 = vld [vmem:[%s511 + $0x70] sm:$0xf]
        %v7591 = vld [vmem:[%s511 + $0x74] sm:$0xf]
        %v7592 = vld [vmem:[%s511 + $0x78] sm:$0xf]
        %v7593 = vld [vmem:[%s511 + $0x7c] sm:$0xf]
        %v7594 = vld [vmem:[%s511 + $0x80] sm:$0xf]
        %v7595 = vld [vmem:[%s511 + $0x84] sm:$0xf]
        %v7596 = vld [vmem:[%s511 + $0x88] sm:$0xf]
        %v7597 = vld [vmem:[%s511 + $0x8c] sm:$0xf]
        %v7598 = vld [vmem:[%s511 + $0x90] sm:$0xf]
        %v7599 = vld [vmem:[%s511 + $0x94] sm:$0xf]
        %v7600 = vld [vmem:[%s511 + $0x98] sm:$0x3]
        %v7636 = vrot.slane %v7566, 6
        %v7637 = vrot.slane %v7636, 4
        %v7638 = vrot.slane %v7567, 6
        %v7639 = vsel %vm3665, %v7637, %v7638
        %v7640 = vrot.slane %v7638, 4
        %v7641 = vrot.slane %v7568, 6
        %v7642 = vsel %vm3665, %v7640, %v7641
        %v7643 = vrot.slane %v7641, 4
        %v7644 = vrot.slane %v7569, 6
        %v7645 = vsel %vm3665, %v7643, %v7644
        %v7646 = vrot.slane %v7644, 4
        %v7647 = vrot.slane %v7570, 6
        %v7648 = vsel %vm3665, %v7646, %v7647
        %v7649 = vrot.slane %v7647, 4
        %v7650 = vrot.slane %v7571, 6
        %v7651 = vsel %vm3665, %v7649, %v7650
        %v7652 = vrot.slane %v7650, 4
        %v7653 = vrot.slane %v7572, 6
        %v7654 = vsel %vm3665, %v7652, %v7653
        %v7655 = vrot.slane %v7653, 4
        %v7656 = vrot.slane %v7573, 6
        %v7657 = vsel %vm3665, %v7655, %v7656
        %v7658 = vrot.slane %v7656, 4
        %v7659 = vrot.slane %v7574, 6
        %v7660 = vsel %vm3665, %v7658, %v7659
        %v7661 = vrot.slane %v7659, 4
        %v7662 = vrot.slane %v7575, 6
        %v7663 = vsel %vm3665, %v7661, %v7662
        %v7664 = vrot.slane %v7662, 4
        %v7665 = vrot.slane %v7576, 6
        %v7666 = vsel %vm3665, %v7664, %v7665
        %v7667 = vrot.slane %v7665, 4
        %v7668 = vrot.slane %v7577, 6
        %v7669 = vsel %vm3665, %v7667, %v7668
        %v7670 = vrot.slane %v7668, 4
        %v7671 = vrot.slane %v7578, 6
        %v7672 = vsel %vm3665, %v7670, %v7671
        %v7673 = vrot.slane %v7671, 4
        %v7674 = vrot.slane %v7579, 6
        %v7675 = vsel %vm3665, %v7673, %v7674
        %v7676 = vrot.slane %v7674, 4
        %v7677 = vrot.slane %v7580, 6
        %v7678 = vsel %vm3665, %v7676, %v7677
        %v7679 = vrot.slane %v7677, 4
        %v7680 = vrot.slane %v7581, 6
        %v7681 = vsel %vm3665, %v7679, %v7680
        %v7682 = vrot.slane %v7680, 4
        %v7683 = vrot.slane %v7582, 6
        %v7684 = vsel %vm3665, %v7682, %v7683
        %v7685 = vrot.slane %v7683, 4
        %v7686 = vrot.slane %v7583, 6
        %v7687 = vsel %vm3665, %v7685, %v7686
        %v7688 = vrot.slane %v7686, 4
        %v7689 = vrot.slane %v7584, 6
        %v7690 = vsel %vm3665, %v7688, %v7689
        %v7691 = vrot.slane %v7689, 4
        %v7692 = vrot.slane %v7585, 6
        %v7693 = vsel %vm3665, %v7691, %v7692
        %v7694 = vrot.slane %v7692, 4
        %v7695 = vrot.slane %v7586, 6
        %v7696 = vsel %vm3665, %v7694, %v7695
        %v7697 = vrot.slane %v7695, 4
        %v7698 = vrot.slane %v7587, 6
        %v7699 = vsel %vm3665, %v7697, %v7698
        %v7700 = vrot.slane %v7698, 4
        %v7701 = vrot.slane %v7588, 6
        %v7702 = vsel %vm3665, %v7700, %v7701
        %v7703 = vrot.slane %v7701, 4
        %v7704 = vrot.slane %v7589, 6
        %v7705 = vsel %vm3665, %v7703, %v7704
        %v7706 = vrot.slane %v7704, 4
        %v7707 = vrot.slane %v7590, 6
        %v7708 = vsel %vm3665, %v7706, %v7707
        %v7709 = vrot.slane %v7707, 4
        %v7710 = vrot.slane %v7591, 6
        %v7711 = vsel %vm3665, %v7709, %v7710
        %v7712 = vrot.slane %v7710, 4
        %v7713 = vrot.slane %v7592, 6
        %v7714 = vsel %vm3665, %v7712, %v7713
        %v7715 = vrot.slane %v7713, 4
        %v7716 = vrot.slane %v7593, 6
        %v7717 = vsel %vm3665, %v7715, %v7716
        %v7718 = vrot.slane %v7716, 4
        %v7719 = vrot.slane %v7594, 6
        %v7720 = vsel %vm3665, %v7718, %v7719
        %v7721 = vrot.slane %v7719, 4
        %v7722 = vrot.slane %v7595, 6
        %v7723 = vsel %vm3665, %v7721, %v7722
        %v7724 = vrot.slane %v7722, 4
        %v7725 = vrot.slane %v7596, 6
        %v7726 = vsel %vm3665, %v7724, %v7725
        %v7727 = vrot.slane %v7725, 4
        %v7728 = vrot.slane %v7597, 6
        %v7729 = vsel %vm3665, %v7727, %v7728
        %v7730 = vrot.slane %v7728, 4
        %v7731 = vrot.slane %v7598, 6
        %v7732 = vsel %vm3665, %v7730, %v7731
        %v7733 = vrot.slane %v7731, 4
        %v7734 = vrot.slane %v7599, 6
        %v7735 = vsel %vm3665, %v7733, %v7734
        %v7736 = vrot.slane %v7734, 4
        %v7737 = vrot.slane %v7600, 6
        %v7738 = vsel %vm3665, %v7736, %v7737
        %7739 = vrot.lane.b32.xlu0 %v7639, 64
        %v7740 = vpop.permute.xlu0 %7739
        %7741 = vrot.lane.b32.xlu0 %v7642, 64
        %v7742 = vpop.permute.xlu0 %7741
        %7743 = vrot.lane.b32.xlu0 %v7645, 64
        %v7744 = vpop.permute.xlu0 %7743
        %7745 = vrot.lane.b32.xlu0 %v7648, 64
        %v7746 = vpop.permute.xlu0 %7745
        %7747 = vrot.lane.b32.xlu0 %v7651, 64
        %v7748 = vpop.permute.xlu0 %7747
        %7749 = vrot.lane.b32.xlu0 %v7654, 64
        %v7750 = vpop.permute.xlu0 %7749
        %7751 = vrot.lane.b32.xlu0 %v7657, 64
        %v7752 = vpop.permute.xlu0 %7751
        %7753 = vrot.lane.b32.xlu0 %v7660, 64
        %v7754 = vpop.permute.xlu0 %7753
        %7755 = vrot.lane.b32.xlu0 %v7663, 64
        %v7756 = vpop.permute.xlu0 %7755
        %7757 = vrot.lane.b32.xlu0 %v7666, 64
        %v7758 = vpop.permute.xlu0 %7757
        %7759 = vrot.lane.b32.xlu0 %v7669, 64
        %v7760 = vpop.permute.xlu0 %7759
        %7761 = vrot.lane.b32.xlu0 %v7672, 64
        %v7762 = vpop.permute.xlu0 %7761
        %7763 = vrot.lane.b32.xlu0 %v7675, 64
        %v7764 = vpop.permute.xlu0 %7763
        %7765 = vrot.lane.b32.xlu0 %v7678, 64
        %v7766 = vpop.permute.xlu0 %7765
        %7767 = vrot.lane.b32.xlu0 %v7681, 64
        %v7768 = vpop.permute.xlu0 %7767
        %7769 = vrot.lane.b32.xlu0 %v7684, 64
        %v7770 = vpop.permute.xlu0 %7769
        %7771 = vrot.lane.b32.xlu0 %v7687, 64
        %v7772 = vpop.permute.xlu0 %7771
        %7773 = vrot.lane.b32.xlu0 %v7690, 64
        %v7774 = vpop.permute.xlu0 %7773
        %7775 = vrot.lane.b32.xlu0 %v7693, 64
        %v7776 = vpop.permute.xlu0 %7775
        %7777 = vrot.lane.b32.xlu0 %v7696, 64
        %v7778 = vpop.permute.xlu0 %7777
        %7779 = vrot.lane.b32.xlu0 %v7699, 64
        %v7780 = vpop.permute.xlu0 %7779
        %7781 = vrot.lane.b32.xlu0 %v7702, 64
        %v7782 = vpop.permute.xlu0 %7781
        %7783 = vrot.lane.b32.xlu0 %v7705, 64
        %v7784 = vpop.permute.xlu0 %7783
        %7785 = vrot.lane.b32.xlu0 %v7708, 64
        %v7786 = vpop.permute.xlu0 %7785
        %7787 = vrot.lane.b32.xlu0 %v7711, 64
        %v7788 = vpop.permute.xlu0 %7787
        %7789 = vrot.lane.b32.xlu0 %v7714, 64
        %v7790 = vpop.permute.xlu0 %7789
        %7791 = vrot.lane.b32.xlu0 %v7717, 64
        %v7792 = vpop.permute.xlu0 %7791
        %7793 = vrot.lane.b32.xlu0 %v7720, 64
        %v7794 = vpop.permute.xlu0 %7793
        %7795 = vrot.lane.b32.xlu0 %v7723, 64
        %v7796 = vpop.permute.xlu0 %7795
        %7797 = vrot.lane.b32.xlu0 %v7726, 64
        %v7798 = vpop.permute.xlu0 %7797
        %7799 = vrot.lane.b32.xlu0 %v7729, 64
        %v7800 = vpop.permute.xlu0 %7799
        %7801 = vrot.lane.b32.xlu0 %v7732, 64
        %v7802 = vpop.permute.xlu0 %7801
        %7803 = vrot.lane.b32.xlu0 %v7735, 64
        %v7804 = vpop.permute.xlu0 %7803
        %7805 = vrot.lane.b32.xlu0 %v7738, 64
        %v7806 = vpop.permute.xlu0 %7805
        %7841 = vst.msk [vmem:[#allocation3] sm:$0xf] %vm3871, %v7740
        %7842 = vst.msk [vmem:[#allocation3 + $0x4] sm:$0xf] %vm3871, %v7742
        %7843 = vst.msk [vmem:[#allocation3 + $0x8] sm:$0xf] %vm3871, %v7744
        %7844 = vst.msk [vmem:[#allocation3 + $0xc] sm:$0xf] %vm3871, %v7746
        %7845 = vst.msk [vmem:[#allocation3 + $0x10] sm:$0xf] %vm3871, %v7748
        %7846 = vst.msk [vmem:[#allocation3 + $0x14] sm:$0xf] %vm3871, %v7750
        %7847 = vst.msk [vmem:[#allocation3 + $0x18] sm:$0xf] %vm3871, %v7752
        %7848 = vst.msk [vmem:[#allocation3 + $0x1c] sm:$0xf] %vm3871, %v7754
        %7849 = vst.msk [vmem:[#allocation3 + $0x20] sm:$0xf] %vm3871, %v7756
        %7850 = vst.msk [vmem:[#allocation3 + $0x24] sm:$0xf] %vm3871, %v7758
        %7851 = vst.msk [vmem:[#allocation3 + $0x28] sm:$0xf] %vm3871, %v7760
        %7852 = vst.msk [vmem:[#allocation3 + $0x2c] sm:$0xf] %vm3871, %v7762
        %7853 = vst.msk [vmem:[#allocation3 + $0x30] sm:$0xf] %vm3871, %v7764
        %7854 = vst.msk [vmem:[#allocation3 + $0x34] sm:$0xf] %vm3871, %v7766
        %7855 = vst.msk [vmem:[#allocation3 + $0x38] sm:$0xf] %vm3871, %v7768
        %7856 = vst.msk [vmem:[#allocation3 + $0x3c] sm:$0xf] %vm3871, %v7770
        %7857 = vst.msk [vmem:[#allocation3 + $0x40] sm:$0xf] %vm3871, %v7772
        %7858 = vst.msk [vmem:[#allocation3 + $0x44] sm:$0xf] %vm3871, %v7774
        %7859 = vst.msk [vmem:[#allocation3 + $0x48] sm:$0xf] %vm3871, %v7776
        %7860 = vst.msk [vmem:[#allocation3 + $0x4c] sm:$0xf] %vm3871, %v7778
        %7861 = vst.msk [vmem:[#allocation3 + $0x50] sm:$0xf] %vm3871, %v7780
        %7862 = vst.msk [vmem:[#allocation3 + $0x54] sm:$0xf] %vm3871, %v7782
        %7863 = vst.msk [vmem:[#allocation3 + $0x58] sm:$0xf] %vm3871, %v7784
        %7864 = vst.msk [vmem:[#allocation3 + $0x5c] sm:$0xf] %vm3871, %v7786
        %7865 = vst.msk [vmem:[#allocation3 + $0x60] sm:$0xf] %vm3871, %v7788
        %7866 = vst.msk [vmem:[#allocation3 + $0x64] sm:$0xf] %vm3871, %v7790
        %7867 = vst.msk [vmem:[#allocation3 + $0x68] sm:$0xf] %vm3871, %v7792
        %7868 = vst.msk [vmem:[#allocation3 + $0x6c] sm:$0xf] %vm3871, %v7794
        %7869 = vst.msk [vmem:[#allocation3 + $0x70] sm:$0xf] %vm3871, %v7796
        %7870 = vst.msk [vmem:[#allocation3 + $0x74] sm:$0xf] %vm3871, %v7798
        %7871 = vst.msk [vmem:[#allocation3 + $0x78] sm:$0xf] %vm3871, %v7800
        %7872 = vst.msk [vmem:[#allocation3 + $0x7c] sm:$0xf] %vm3871, %v7802
        %7873 = vst.msk [vmem:[#allocation3 + $0x80] sm:$0xf] %vm3871, %v7804
        %7874 = vst.msk [vmem:[#allocation3 + $0x84] sm:$0xf] %vm3871, %v7806
        %v7875 = vld [vmem:[#allocation3] sm:$0xf]
        %v7876 = vld [vmem:[#allocation3 + $0x4] sm:$0xf]
        %v7877 = vld [vmem:[#allocation3 + $0x8] sm:$0xf]
        %v7878 = vld [vmem:[#allocation3 + $0xc] sm:$0xf]
        %v7879 = vld [vmem:[#allocation3 + $0x10] sm:$0xf]
        %v7880 = vld [vmem:[#allocation3 + $0x14] sm:$0xf]
        %v7881 = vld [vmem:[#allocation3 + $0x18] sm:$0xf]
        %v7882 = vld [vmem:[#allocation3 + $0x1c] sm:$0xf]
        %v7883 = vld [vmem:[#allocation3 + $0x20] sm:$0xf]
        %v7884 = vld [vmem:[#allocation3 + $0x24] sm:$0xf]
        %v7885 = vld [vmem:[#allocation3 + $0x28] sm:$0xf]
        %v7886 = vld [vmem:[#allocation3 + $0x2c] sm:$0xf]
        %v7887 = vld [vmem:[#allocation3 + $0x30] sm:$0xf]
        %v7888 = vld [vmem:[#allocation3 + $0x34] sm:$0xf]
        %v7889 = vld [vmem:[#allocation3 + $0x38] sm:$0xf]
        %v7890 = vld [vmem:[#allocation3 + $0x3c] sm:$0xf]
        %v7891 = vld [vmem:[#allocation3 + $0x40] sm:$0xf]
        %v7892 = vld [vmem:[#allocation3 + $0x44] sm:$0xf]
        %v7893 = vld [vmem:[#allocation3 + $0x48] sm:$0xf]
        %v7894 = vld [vmem:[#allocation3 + $0x4c] sm:$0xf]
        %v7895 = vld [vmem:[#allocation3 + $0x50] sm:$0xf]
        %v7896 = vld [vmem:[#allocation3 + $0x54] sm:$0xf]
        %v7897 = vld [vmem:[#allocation3 + $0x58] sm:$0xf]
        %v7898 = vld [vmem:[#allocation3 + $0x5c] sm:$0xf]
        %v7899 = vld [vmem:[#allocation3 + $0x60] sm:$0xf]
        %v7900 = vld [vmem:[#allocation3 + $0x64] sm:$0xf]
        %v7901 = vld [vmem:[#allocation3 + $0x68] sm:$0xf]
        %v7902 = vld [vmem:[#allocation3 + $0x6c] sm:$0xf]
        %v7903 = vld [vmem:[#allocation3 + $0x70] sm:$0xf]
        %v7904 = vld [vmem:[#allocation3 + $0x74] sm:$0xf]
        %v7905 = vld [vmem:[#allocation3 + $0x78] sm:$0xf]
        %v7906 = vld [vmem:[#allocation3 + $0x7c] sm:$0xf]
        %v7907 = vld [vmem:[#allocation3 + $0x80] sm:$0xf]
        %v7908 = vld [vmem:[#allocation3 + $0x84] sm:$0xf]
        %v7909 = vld [vmem:[%s6] sm:$0xf]
        %v7910 = vld [vmem:[%s6 + $0x4] sm:$0xf]
        %v7911 = vld [vmem:[%s6 + $0x8] sm:$0xf]
        %v7912 = vld [vmem:[%s6 + $0xc] sm:$0xf]
        %v7913 = vld [vmem:[%s6 + $0x10] sm:$0xf]
        %v7914 = vld [vmem:[%s6 + $0x14] sm:$0xf]
        %v7915 = vld [vmem:[%s6 + $0x18] sm:$0xf]
        %v7916 = vld [vmem:[%s6 + $0x1c] sm:$0xf]
        %v7917 = vld [vmem:[%s6 + $0x20] sm:$0xf]
        %v7918 = vld [vmem:[%s7] sm:$0x1]
        %v7920 = vperm.slane %v7918, 0
        %v7956 = vunpack.c.l.b16 %v7875
        %v7957 = vunpack.c.l.b16 %v7876
        %v7958 = vunpack.c.l.b16 %v7877
        %v7959 = vunpack.c.l.b16 %v7878
        %v7960 = vunpack.c.l.b16 %v7879
        %v7961 = vunpack.c.l.b16 %v7880
        %v7962 = vunpack.c.l.b16 %v7881
        %v7963 = vunpack.c.l.b16 %v7882
        %v7964 = vunpack.c.l.b16 %v7883
        %v7965 = vunpack.c.l.b16 %v7884
        %v7966 = vunpack.c.l.b16 %v7885
        %v7967 = vunpack.c.l.b16 %v7886
        %v7968 = vunpack.c.l.b16 %v7887
        %v7969 = vunpack.c.l.b16 %v7888
        %v7970 = vunpack.c.l.b16 %v7889
        %v7971 = vunpack.c.l.b16 %v7890
        %v7972 = vunpack.c.l.b16 %v7891
        %v7973 = vunpack.c.l.b16 %v7892
        %v7974 = vunpack.c.l.b16 %v7893
        %v7975 = vunpack.c.l.b16 %v7894
        %v7976 = vunpack.c.l.b16 %v7895
        %v7977 = vunpack.c.l.b16 %v7896
        %v7978 = vunpack.c.l.b16 %v7897
        %v7979 = vunpack.c.l.b16 %v7898
        %v7980 = vunpack.c.l.b16 %v7899
        %v7981 = vunpack.c.l.b16 %v7900
        %v7982 = vunpack.c.l.b16 %v7901
        %v7983 = vunpack.c.l.b16 %v7902
        %v7984 = vunpack.c.l.b16 %v7903
        %v7985 = vunpack.c.l.b16 %v7904
        %v7986 = vunpack.c.l.b16 %v7905
        %v7987 = vunpack.c.l.b16 %v7906
        %v7988 = vunpack.c.l.b16 %v7907
        %v7989 = vunpack.c.l.b16 %v7908
        %v7990 = vpack.c.b16 %v7957, %v7956
        %v7991 = vpack.c.b16 %v7959, %v7958
        %v7992 = vpack.c.b16 %v7961, %v7960
        %v7993 = vpack.c.b16 %v7963, %v7962
        %v7994 = vpack.c.b16 %v7965, %v7964
        %v7995 = vpack.c.b16 %v7967, %v7966
        %v7996 = vpack.c.b16 %v7969, %v7968
        %v7997 = vpack.c.b16 %v7971, %v7970
        %v7998 = vpack.c.b16 %v7973, %v7972
        %v7999 = vpack.c.b16 %v7975, %v7974
        %v8000 = vpack.c.b16 %v7977, %v7976
        %v8001 = vpack.c.b16 %v7979, %v7978
        %v8002 = vpack.c.b16 %v7981, %v7980
        %v8003 = vpack.c.b16 %v7983, %v7982
        %v8004 = vpack.c.b16 %v7985, %v7984
        %v8005 = vpack.c.b16 %v7987, %v7986
        %v8006 = vpack.c.b16 %v7989, %v7988
        %v8016 = vunpack.c.l.b16 %v7909
        %v8017 = vunpack.c.l.b16 %v7910
        %v8018 = vunpack.c.l.b16 %v7911
        %v8019 = vunpack.c.l.b16 %v7912
        %v8020 = vunpack.c.l.b16 %v7913
        %v8021 = vunpack.c.l.b16 %v7914
        %v8022 = vunpack.c.l.b16 %v7915
        %v8023 = vunpack.c.l.b16 %v7916
        %v8024 = vunpack.c.l.b16 %v7917
        %v8025 = vpack.c.b16 %v8017, %v8016
        %v8026 = vpack.c.b16 %v8019, %v8018
        %v8027 = vpack.c.b16 %v8021, %v8020
        %v8028 = vpack.c.b16 %v8023, %v8022
        %v8029 = vpack.c.b16 %v8024, %v8024
        %v8035 = vsel %vm4065, %v7990, 0
        %v8038 = vsel %vm4065, %v7991, 0
        %v8041 = vsel %vm4065, %v7992, 0
        %v8044 = vsel %vm4065, %v7993, 0
        %v8047 = vsel %vm4065, %v7994, 0
        %v8050 = vsel %vm4065, %v7995, 0
        %v8053 = vsel %vm4065, %v7996, 0
        %v8056 = vsel %vm4065, %v7997, 0
        %v8059 = vsel %vm4065, %v7998, 0
        %v8062 = vsel %vm4065, %v7999, 0
        %v8065 = vsel %vm4065, %v8000, 0
        %v8068 = vsel %vm4065, %v8001, 0
        %v8071 = vsel %vm4065, %v8002, 0
        %v8074 = vsel %vm4065, %v8003, 0
        %v8077 = vsel %vm4065, %v8004, 0
        %v8080 = vsel %vm4065, %v8005, 0
        %v8083 = vsel %vm4065, %v8006, 0
        %v8086 = vsel %vm4117, %v8029, 0
        %8088 = vmatpush.bf16.msra.mxu0 0
        %8089 = vmatpush.bf16.msra.mxu0 0
        %8090 = vmatpush.bf16.msra.mxu0 0
        %8091 = vmatpush.bf16.msra.mxu0 %v8086
        %8092 = vmatpush.bf16.msra.mxu0 %v8028
        %8093 = vmatpush.bf16.msra.mxu0 %v8027
        %8094 = vmatpush.bf16.msra.mxu0 %v8026
        %8095 = vmatpush.bf16.msra.mxu0 %v8025
        %8096 = vmatmul.bf16.gmra.mxu0 %v8035
        %v8097 = vpop.f32.mrf.mxu0
        %v8098 = vadd.f32 %v7920, %v8097
        %v8099 = vpop.f32.mrf.mxu0
        %v8100 = vadd.f32 %v7920, %v8099
        %8101 = vmatmul.bf16.gmra.mxu0 %v8038
        %v8102 = vpop.f32.mrf.mxu0
        %v8103 = vadd.f32 %v7920, %v8102
        %v8104 = vpop.f32.mrf.mxu0
        %v8105 = vadd.f32 %v7920, %v8104
        %8106 = vmatmul.bf16.gmra.mxu0 %v8041
        %v8107 = vpop.f32.mrf.mxu0
        %v8108 = vadd.f32 %v7920, %v8107
        %v8109 = vpop.f32.mrf.mxu0
        %v8110 = vadd.f32 %v7920, %v8109
        %8111 = vmatmul.bf16.gmra.mxu0 %v8044
        %v8112 = vpop.f32.mrf.mxu0
        %v8113 = vadd.f32 %v7920, %v8112
        %v8114 = vpop.f32.mrf.mxu0
        %v8115 = vadd.f32 %v7920, %v8114
        %8116 = vmatmul.bf16.gmra.mxu0 %v8047
        %v8117 = vpop.f32.mrf.mxu0
        %v8118 = vadd.f32 %v7920, %v8117
        %v8119 = vpop.f32.mrf.mxu0
        %v8120 = vadd.f32 %v7920, %v8119
        %8121 = vmatmul.bf16.gmra.mxu0 %v8050
        %v8122 = vpop.f32.mrf.mxu0
        %v8123 = vadd.f32 %v7920, %v8122
        %v8124 = vpop.f32.mrf.mxu0
        %v8125 = vadd.f32 %v7920, %v8124
        %8126 = vmatmul.bf16.gmra.mxu0 %v8053
        %v8127 = vpop.f32.mrf.mxu0
        %v8128 = vadd.f32 %v7920, %v8127
        %v8129 = vpop.f32.mrf.mxu0
        %v8130 = vadd.f32 %v7920, %v8129
        %8131 = vmatmul.bf16.gmra.mxu0 %v8056
        %v8132 = vpop.f32.mrf.mxu0
        %v8133 = vadd.f32 %v7920, %v8132
        %v8134 = vpop.f32.mrf.mxu0
        %v8135 = vadd.f32 %v7920, %v8134
        %8136 = vmatmul.bf16.gmra.mxu0 %v8059
        %v8137 = vpop.f32.mrf.mxu0
        %v8138 = vadd.f32 %v7920, %v8137
        %v8139 = vpop.f32.mrf.mxu0
        %v8140 = vadd.f32 %v7920, %v8139
        %8141 = vmatmul.bf16.gmra.mxu0 %v8062
        %v8142 = vpop.f32.mrf.mxu0
        %v8143 = vadd.f32 %v7920, %v8142
        %v8144 = vpop.f32.mrf.mxu0
        %v8145 = vadd.f32 %v7920, %v8144
        %8146 = vmatmul.bf16.gmra.mxu0 %v8065
        %v8147 = vpop.f32.mrf.mxu0
        %v8148 = vadd.f32 %v7920, %v8147
        %v8149 = vpop.f32.mrf.mxu0
        %v8150 = vadd.f32 %v7920, %v8149
        %8151 = vmatmul.bf16.gmra.mxu0 %v8068
        %v8152 = vpop.f32.mrf.mxu0
        %v8153 = vadd.f32 %v7920, %v8152
        %v8154 = vpop.f32.mrf.mxu0
        %v8155 = vadd.f32 %v7920, %v8154
        %8156 = vmatmul.bf16.gmra.mxu0 %v8071
        %v8157 = vpop.f32.mrf.mxu0
        %v8158 = vadd.f32 %v7920, %v8157
        %v8159 = vpop.f32.mrf.mxu0
        %v8160 = vadd.f32 %v7920, %v8159
        %8161 = vmatmul.bf16.gmra.mxu0 %v8074
        %v8162 = vpop.f32.mrf.mxu0
        %v8163 = vadd.f32 %v7920, %v8162
        %v8164 = vpop.f32.mrf.mxu0
        %v8165 = vadd.f32 %v7920, %v8164
        %8166 = vmatmul.bf16.gmra.mxu0 %v8077
        %v8167 = vpop.f32.mrf.mxu0
        %v8168 = vadd.f32 %v7920, %v8167
        %v8169 = vpop.f32.mrf.mxu0
        %v8170 = vadd.f32 %v7920, %v8169
        %8171 = vmatmul.bf16.gmra.mxu0 %v8080
        %v8172 = vpop.f32.mrf.mxu0
        %v8173 = vadd.f32 %v7920, %v8172
        %v8174 = vpop.f32.mrf.mxu0
        %v8175 = vadd.f32 %v7920, %v8174
        %8176 = vmatmul.bf16.gmra.mxu0 %v8083
        %v8177 = vpop.f32.mrf.mxu0
        %v8178 = vadd.f32 %v7920, %v8177
        %v8179 = vpop.f32.mrf.mxu0
        %v8180 = vadd.f32 %v7920, %v8179
        %8181 = vdwg.mxu0
        %v8182 = vmax.f32 %v8098, 0.0
        %v8183 = vmax.f32 %v8100, 0.0
        %v8184 = vmax.f32 %v8103, 0.0
        %v8185 = vmax.f32 %v8105, 0.0
        %v8186 = vmax.f32 %v8108, 0.0
        %v8187 = vmax.f32 %v8110, 0.0
        %v8188 = vmax.f32 %v8113, 0.0
        %v8189 = vmax.f32 %v8115, 0.0
        %v8190 = vmax.f32 %v8118, 0.0
        %v8191 = vmax.f32 %v8120, 0.0
        %v8192 = vmax.f32 %v8123, 0.0
        %v8193 = vmax.f32 %v8125, 0.0
        %v8194 = vmax.f32 %v8128, 0.0
        %v8195 = vmax.f32 %v8130, 0.0
        %v8196 = vmax.f32 %v8133, 0.0
        %v8197 = vmax.f32 %v8135, 0.0
        %v8198 = vmax.f32 %v8138, 0.0
        %v8199 = vmax.f32 %v8140, 0.0
        %v8200 = vmax.f32 %v8143, 0.0
        %v8201 = vmax.f32 %v8145, 0.0
        %v8202 = vmax.f32 %v8148, 0.0
        %v8203 = vmax.f32 %v8150, 0.0
        %v8204 = vmax.f32 %v8153, 0.0
        %v8205 = vmax.f32 %v8155, 0.0
        %v8206 = vmax.f32 %v8158, 0.0
        %v8207 = vmax.f32 %v8160, 0.0
        %v8208 = vmax.f32 %v8163, 0.0
        %v8209 = vmax.f32 %v8165, 0.0
        %v8210 = vmax.f32 %v8168, 0.0
        %v8211 = vmax.f32 %v8170, 0.0
        %v8212 = vmax.f32 %v8173, 0.0
        %v8213 = vmax.f32 %v8175, 0.0
        %v8214 = vmax.f32 %v8178, 0.0
        %v8215 = vmax.f32 %v8180, 0.0
        %v8216 = vpack.c.bf16 %v8183, %v8182
        %v8217 = vpack.c.bf16 %v8185, %v8184
        %v8218 = vpack.c.bf16 %v8187, %v8186
        %v8219 = vpack.c.bf16 %v8189, %v8188
        %v8220 = vpack.c.bf16 %v8191, %v8190
        %v8221 = vpack.c.bf16 %v8193, %v8192
        %v8222 = vpack.c.bf16 %v8195, %v8194
        %v8223 = vpack.c.bf16 %v8197, %v8196
        %v8224 = vpack.c.bf16 %v8199, %v8198
        %v8225 = vpack.c.bf16 %v8201, %v8200
        %v8226 = vpack.c.bf16 %v8203, %v8202
        %v8227 = vpack.c.bf16 %v8205, %v8204
        %v8228 = vpack.c.bf16 %v8207, %v8206
        %v8229 = vpack.c.bf16 %v8209, %v8208
        %v8230 = vpack.c.bf16 %v8211, %v8210
        %v8231 = vpack.c.bf16 %v8213, %v8212
        %v8232 = vpack.c.bf16 %v8215, %v8214
        %8233 = vmatpush.bf16.msra.mxu0 %v8223
        %8234 = vmatpush.bf16.msra.mxu0 %v8222
        %8235 = vmatpush.bf16.msra.mxu0 %v8221
        %8236 = vmatpush.bf16.msra.mxu0 %v8220
        %8237 = vmatpush.bf16.msra.mxu0 %v8219
        %8238 = vmatpush.bf16.msra.mxu0 %v8218
        %8239 = vmatpush.bf16.msra.mxu0 %v8217
        %8240 = vmatpush.bf16.msra.mxu0 %v8216
        %8241 = vmatmul.bf16.gmra.mxu0 %v4361
        %v8242 = vpop.f32.mrf.mxu0
        %v8243 = vadd.f32 0.0, %v8242
        %v8244 = vpop.f32.mrf.mxu0
        %8245 = vdwg.mxu0
        %8246 = vmatpush.bf16.msra.mxu0 %v8231
        %8247 = vmatpush.bf16.msra.mxu0 %v8230
        %8248 = vmatpush.bf16.msra.mxu0 %v8229
        %8249 = vmatpush.bf16.msra.mxu0 %v8228
        %8250 = vmatpush.bf16.msra.mxu0 %v8227
        %8251 = vmatpush.bf16.msra.mxu0 %v8226
        %8252 = vmatpush.bf16.msra.mxu0 %v8225
        %8253 = vmatpush.bf16.msra.mxu0 %v8224
        %8254 = vmatmul.bf16.gmra.mxu0 %v4362
        %v8255 = vpop.f32.mrf.mxu0
        %v8256 = vadd.f32 %v8243, %v8255
        %v8257 = vpop.f32.mrf.mxu0
        %8258 = vdwg.mxu0
        %8259 = vmatpush.bf16.msra.mxu0 0
        %8260 = vmatpush.bf16.msra.mxu0 0
        %8261 = vmatpush.bf16.msra.mxu0 0
        %8262 = vmatpush.bf16.msra.mxu0 0
        %8263 = vmatpush.bf16.msra.mxu0 0
        %8264 = vmatpush.bf16.msra.mxu0 0
        %8265 = vmatpush.bf16.msra.mxu0 0
        %8266 = vmatpush.bf16.msra.mxu0 %v8232
        %8267 = vmatmul.bf16.gmra.mxu0 %v4383
        %v8268 = vpop.f32.mrf.mxu0
        %v8269 = vadd.f32 %v8256, %v8268
        %v8270 = vpop.f32.mrf.mxu0
        %8271 = vdwg.mxu0
        %v8272 = vpack.c.bf16 %v8269, %v8269
        %v8273 = vld [vmem:[%s8] sm:$0xf]
        %v8274 = vld [vmem:[%s8 + $0x4] sm:$0xf]
        %v8275 = vld [vmem:[%s8 + $0x8] sm:$0xf]
        %v8276 = vld [vmem:[%s8 + $0xc] sm:$0xf]
        %v8277 = vld [vmem:[%s8 + $0x10] sm:$0xf]
        %v8278 = vld [vmem:[%s8 + $0x14] sm:$0xf]
        %v8279 = vld [vmem:[%s8 + $0x18] sm:$0xf]
        %v8280 = vld [vmem:[%s8 + $0x1c] sm:$0xf]
        %v8281 = vld [vmem:[%s8 + $0x20] sm:$0xf]
        %v8282 = vld [vmem:[%s8 + $0x24] sm:$0xf]
        %v8283 = vld [vmem:[%s8 + $0x28] sm:$0xf]
        %v8284 = vld [vmem:[%s8 + $0x2c] sm:$0xf]
        %v8285 = vld [vmem:[%s8 + $0x30] sm:$0xf]
        %v8286 = vld [vmem:[%s8 + $0x34] sm:$0xf]
        %v8287 = vld [vmem:[%s8 + $0x38] sm:$0xf]
        %v8288 = vld [vmem:[%s8 + $0x3c] sm:$0xf]
        %v8289 = vld [vmem:[%s9] sm:$0x1]
        %v8306 = vunpack.c.l.b16 %v8273
        %v8307 = vunpack.c.l.b16 %v8274
        %v8308 = vunpack.c.l.b16 %v8275
        %v8309 = vunpack.c.l.b16 %v8276
        %v8310 = vunpack.c.l.b16 %v8277
        %v8311 = vunpack.c.l.b16 %v8278
        %v8312 = vunpack.c.l.b16 %v8279
        %v8313 = vunpack.c.l.b16 %v8280
        %v8314 = vunpack.c.l.b16 %v8281
        %v8315 = vunpack.c.l.b16 %v8282
        %v8316 = vunpack.c.l.b16 %v8283
        %v8317 = vunpack.c.l.b16 %v8284
        %v8318 = vunpack.c.l.b16 %v8285
        %v8319 = vunpack.c.l.b16 %v8286
        %v8320 = vunpack.c.l.b16 %v8287
        %v8321 = vunpack.c.l.b16 %v8288
        %v8322 = vpack.c.b16 %v8307, %v8306
        %v8323 = vpack.c.b16 %v8309, %v8308
        %v8324 = vpack.c.b16 %v8311, %v8310
        %v8325 = vpack.c.b16 %v8313, %v8312
        %v8326 = vpack.c.b16 %v8315, %v8314
        %v8327 = vpack.c.b16 %v8317, %v8316
        %v8328 = vpack.c.b16 %v8319, %v8318
        %v8329 = vpack.c.b16 %v8321, %v8320
        %8338 = vmatpush.bf16.msra.mxu0 %v8329
        %8339 = vmatpush.bf16.msra.mxu0 %v8328
        %8340 = vmatpush.bf16.msra.mxu0 %v8327
        %8341 = vmatpush.bf16.msra.mxu0 %v8326
        %8342 = vmatpush.bf16.msra.mxu0 %v8325
        %8343 = vmatpush.bf16.msra.mxu0 %v8324
        %8344 = vmatpush.bf16.msra.mxu0 %v8323
        %8345 = vmatpush.bf16.msra.mxu0 %v8322
        %8346 = vmatmul.bf16.gmra.mxu0 %v8272
        %v8347 = vpop.f32.mrf.mxu0
        %v8348 = vadd.f32 %v8289, %v8347
        %v8349 = vpop.f32.mrf.mxu0
        %8350 = vdwg.mxu0
        %v8351 = vpack.c.bf16 %v4500, %v4500
        %v8352 = vld [vmem:[%s10] sm:$0xf]
        %v8353 = vld [vmem:[%s10 + $0x4] sm:$0xf]
        %v8354 = vld [vmem:[%s10 + $0x8] sm:$0xf]
        %v8355 = vld [vmem:[%s10 + $0xc] sm:$0xf]
        %v8356 = vld [vmem:[%s10 + $0x10] sm:$0xf]
        %v8357 = vld [vmem:[%s10 + $0x14] sm:$0xf]
        %v8358 = vld [vmem:[%s10 + $0x18] sm:$0xf]
        %v8359 = vld [vmem:[%s10 + $0x1c] sm:$0xf]
        %v8360 = vld [vmem:[%s10 + $0x20] sm:$0xf]
        %v8361 = vld [vmem:[%s10 + $0x24] sm:$0xf]
        %v8362 = vld [vmem:[%s10 + $0x28] sm:$0xf]
        %v8363 = vld [vmem:[%s10 + $0x2c] sm:$0xf]
        %v8364 = vld [vmem:[%s10 + $0x30] sm:$0xf]
        %v8365 = vld [vmem:[%s10 + $0x34] sm:$0xf]
        %v8366 = vld [vmem:[%s10 + $0x38] sm:$0xf]
        %v8367 = vld [vmem:[%s10 + $0x3c] sm:$0xf]
        %v8368 = vpack.c.bf16 %v8348, %v8348
        %v8369 = vld [vmem:[%s11] sm:$0xf]
        %v8370 = vld [vmem:[%s11 + $0x4] sm:$0xf]
        %v8371 = vld [vmem:[%s11 + $0x8] sm:$0xf]
        %v8372 = vld [vmem:[%s11 + $0xc] sm:$0xf]
        %v8373 = vld [vmem:[%s11 + $0x10] sm:$0xf]
        %v8374 = vld [vmem:[%s11 + $0x14] sm:$0xf]
        %v8375 = vld [vmem:[%s11 + $0x18] sm:$0xf]
        %v8376 = vld [vmem:[%s11 + $0x1c] sm:$0xf]
        %v8377 = vld [vmem:[%s11 + $0x20] sm:$0xf]
        %v8378 = vld [vmem:[%s11 + $0x24] sm:$0xf]
        %v8379 = vld [vmem:[%s11 + $0x28] sm:$0xf]
        %v8380 = vld [vmem:[%s11 + $0x2c] sm:$0xf]
        %v8381 = vld [vmem:[%s11 + $0x30] sm:$0xf]
        %v8382 = vld [vmem:[%s11 + $0x34] sm:$0xf]
        %v8383 = vld [vmem:[%s11 + $0x38] sm:$0xf]
        %v8384 = vld [vmem:[%s11 + $0x3c] sm:$0xf]
        %v8401 = vunpack.c.l.b16 %v8369
        %v8402 = vunpack.c.l.b16 %v8370
        %v8403 = vunpack.c.l.b16 %v8371
        %v8404 = vunpack.c.l.b16 %v8372
        %v8405 = vunpack.c.l.b16 %v8373
        %v8406 = vunpack.c.l.b16 %v8374
        %v8407 = vunpack.c.l.b16 %v8375
        %v8408 = vunpack.c.l.b16 %v8376
        %v8409 = vunpack.c.l.b16 %v8377
        %v8410 = vunpack.c.l.b16 %v8378
        %v8411 = vunpack.c.l.b16 %v8379
        %v8412 = vunpack.c.l.b16 %v8380
        %v8413 = vunpack.c.l.b16 %v8381
        %v8414 = vunpack.c.l.b16 %v8382
        %v8415 = vunpack.c.l.b16 %v8383
        %v8416 = vunpack.c.l.b16 %v8384
        %v8417 = vpack.c.b16 %v8402, %v8401
        %v8418 = vpack.c.b16 %v8404, %v8403
        %v8419 = vpack.c.b16 %v8406, %v8405
        %v8420 = vpack.c.b16 %v8408, %v8407
        %v8421 = vpack.c.b16 %v8410, %v8409
        %v8422 = vpack.c.b16 %v8412, %v8411
        %v8423 = vpack.c.b16 %v8414, %v8413
        %v8424 = vpack.c.b16 %v8416, %v8415
        %8433 = vmatpush.bf16.msra.mxu0 %v8424
        %8434 = vmatpush.bf16.msra.mxu0 %v8423
        %8435 = vmatpush.bf16.msra.mxu0 %v8422
        %8436 = vmatpush.bf16.msra.mxu0 %v8421
        %8437 = vmatpush.bf16.msra.mxu0 %v8420
        %8438 = vmatpush.bf16.msra.mxu0 %v8419
        %8439 = vmatpush.bf16.msra.mxu0 %v8418
        %8440 = vmatpush.bf16.msra.mxu0 %v8417
        %8441 = vmatmul.bf16.gmra.mxu0 %v8368
        %v8442 = vpop.f32.mrf.mxu0
        %v8443 = vadd.f32 0.0, %v8442
        %v8444 = vpop.f32.mrf.mxu0
        %8445 = vdwg.mxu0
        %v8462 = vunpack.c.l.b16 %v8352
        %v8463 = vunpack.c.l.b16 %v8353
        %v8464 = vunpack.c.l.b16 %v8354
        %v8465 = vunpack.c.l.b16 %v8355
        %v8466 = vunpack.c.l.b16 %v8356
        %v8467 = vunpack.c.l.b16 %v8357
        %v8468 = vunpack.c.l.b16 %v8358
        %v8469 = vunpack.c.l.b16 %v8359
        %v8470 = vunpack.c.l.b16 %v8360
        %v8471 = vunpack.c.l.b16 %v8361
        %v8472 = vunpack.c.l.b16 %v8362
        %v8473 = vunpack.c.l.b16 %v8363
        %v8474 = vunpack.c.l.b16 %v8364
        %v8475 = vunpack.c.l.b16 %v8365
        %v8476 = vunpack.c.l.b16 %v8366
        %v8477 = vunpack.c.l.b16 %v8367
        %v8478 = vpack.c.b16 %v8463, %v8462
        %v8479 = vpack.c.b16 %v8465, %v8464
        %v8480 = vpack.c.b16 %v8467, %v8466
        %v8481 = vpack.c.b16 %v8469, %v8468
        %v8482 = vpack.c.b16 %v8471, %v8470
        %v8483 = vpack.c.b16 %v8473, %v8472
        %v8484 = vpack.c.b16 %v8475, %v8474
        %v8485 = vpack.c.b16 %v8477, %v8476
        %8494 = vmatpush.bf16.msra.mxu0 %v8485
        %8495 = vmatpush.bf16.msra.mxu0 %v8484
        %8496 = vmatpush.bf16.msra.mxu0 %v8483
        %8497 = vmatpush.bf16.msra.mxu0 %v8482
        %8498 = vmatpush.bf16.msra.mxu0 %v8481
        %8499 = vmatpush.bf16.msra.mxu0 %v8480
        %8500 = vmatpush.bf16.msra.mxu0 %v8479
        %8501 = vmatpush.bf16.msra.mxu0 %v8478
        %8502 = vmatmul.bf16.gmra.mxu0 %v8351
        %v8503 = vpop.f32.mrf.mxu0
        %v8504 = vadd.f32 %v8443, %v8503
        %v8505 = vpop.f32.mrf.mxu0
        %8506 = vdwg.mxu0
        %v8507 = vld [vmem:[%s12] sm:$0x1]
        %v8508 = vadd.f32 %v8504, %v8507
        %v8509 = vmax.f32 %v8508, 0.0
        %v8510 = vpack.c.bf16 %v8509, %v8509
        %v8511 = vld [vmem:[%s13] sm:$0xf]
        %v8512 = vld [vmem:[%s13 + $0x4] sm:$0xf]
        %v8513 = vld [vmem:[%s13 + $0x8] sm:$0xf]
        %v8514 = vld [vmem:[%s13 + $0xc] sm:$0xf]
        %v8515 = vld [vmem:[%s13 + $0x10] sm:$0xf]
        %v8516 = vld [vmem:[%s13 + $0x14] sm:$0xf]
        %v8517 = vld [vmem:[%s13 + $0x18] sm:$0xf]
        %v8518 = vld [vmem:[%s13 + $0x1c] sm:$0xf]
        %v8519 = vld [vmem:[%s13 + $0x20] sm:$0xf]
        %v8520 = vld [vmem:[%s13 + $0x24] sm:$0xf]
        %v8521 = vld [vmem:[%s13 + $0x28] sm:$0xf]
        %v8522 = vld [vmem:[%s13 + $0x2c] sm:$0xf]
        %v8523 = vld [vmem:[%s13 + $0x30] sm:$0xf]
        %v8524 = vld [vmem:[%s13 + $0x34] sm:$0xf]
        %v8525 = vld [vmem:[%s13 + $0x38] sm:$0xf]
        %v8526 = vld [vmem:[%s13 + $0x3c] sm:$0xf]
        %v8527 = vld [vmem:[%s14] sm:$0x1]
        %v8544 = vunpack.c.l.b16 %v8511
        %v8545 = vunpack.c.l.b16 %v8512
        %v8546 = vunpack.c.l.b16 %v8513
        %v8547 = vunpack.c.l.b16 %v8514
        %v8548 = vunpack.c.l.b16 %v8515
        %v8549 = vunpack.c.l.b16 %v8516
        %v8550 = vunpack.c.l.b16 %v8517
        %v8551 = vunpack.c.l.b16 %v8518
        %v8552 = vunpack.c.l.b16 %v8519
        %v8553 = vunpack.c.l.b16 %v8520
        %v8554 = vunpack.c.l.b16 %v8521
        %v8555 = vunpack.c.l.b16 %v8522
        %v8556 = vunpack.c.l.b16 %v8523
        %v8557 = vunpack.c.l.b16 %v8524
        %v8558 = vunpack.c.l.b16 %v8525
        %v8559 = vunpack.c.l.b16 %v8526
        %v8560 = vpack.c.b16 %v8545, %v8544
        %v8561 = vpack.c.b16 %v8547, %v8546
        %v8562 = vpack.c.b16 %v8549, %v8548
        %v8563 = vpack.c.b16 %v8551, %v8550
        %v8564 = vpack.c.b16 %v8553, %v8552
        %v8565 = vpack.c.b16 %v8555, %v8554
        %v8566 = vpack.c.b16 %v8557, %v8556
        %v8567 = vpack.c.b16 %v8559, %v8558
        %8576 = vmatpush.bf16.msra.mxu0 %v8567
        %8577 = vmatpush.bf16.msra.mxu0 %v8566
        %8578 = vmatpush.bf16.msra.mxu0 %v8565
        %8579 = vmatpush.bf16.msra.mxu0 %v8564
        %8580 = vmatpush.bf16.msra.mxu0 %v8563
        %8581 = vmatpush.bf16.msra.mxu0 %v8562
        %8582 = vmatpush.bf16.msra.mxu0 %v8561
        %8583 = vmatpush.bf16.msra.mxu0 %v8560
        %8584 = vmatmul.bf16.gmra.mxu0 %v8510
        %v8585 = vpop.f32.mrf.mxu0
        %v8586 = vadd.f32 %v8527, %v8585
        %v8587 = vpop.f32.mrf.mxu0
        %8588 = vdwg.mxu0
        %8589 = vst [vmem:[%s501] sm:$0x1] %v8586
        %s8590 = sand.u32 %s362, 1
        %s8591 = scalar_lea.sflag [#allocation5], %s8590
        %s8592 = sand.u32 %s362, 1
        %s8593 = scalar_lea.vmem [#allocation4], %s8592
        // Predicated region
        $region81: #{joint_model_onnx_forward.1} parent=79 // pred_check
          %p8594 = pneg %p372
        $region82: #{joint_model_onnx_forward.1} parent=79 // pred_check_branch
          %8596 = sbr.rel (%p8594) target = $region84
        $region83: #{joint_model_onnx_forward.1} parent=79 // pred_region
          %8598 = vsyncadd %s8591, 0
          %s8599 = scalar_lea.hbm %s15, %s29
          %s8601 = sshll.u32 %s8593, 4
          %s8602 = int_to_ptr.vmem [resolvable:$true] %s8601
          %s8603 = sshll.u32 %s8599, 4
          %s8604 = int_to_ptr.hbm [resolvable:$true] %s8603
          %8606 = dma.vmem_to_hbm [thread:$0]  %s8602, 16, %s8604, %s8591
        $region84: #{joint_model_onnx_forward.1} parent=79 // pred_fallthru
          _
      $region80: #{joint_model_onnx_forward.1} parent=5 // pred_fallthru
        _
      %p8607 = scmp.le.s32.totalorder 2, %s24
      // Predicated region
      $region85: #{joint_model_onnx_forward.1} parent=5 // pred_check
        %p8608 = pneg %p8607
      $region86: #{joint_model_onnx_forward.1} parent=5 // pred_check_branch
        %8610 = sbr.rel (%p8608) target = $region88
      $region87: #{joint_model_onnx_forward.1} parent=5 // pred_region
        %s8611 = ssub.s32 %s24, 2
        // Predicated region
        $region89: #{joint_model_onnx_forward.1} parent=87 // pred_check
          %p8612 = pneg %p378
        $region90: #{joint_model_onnx_forward.1} parent=87 // pred_check_branch
          %8614 = sbr.rel (%p8612) target = $region92
        $region91: #{joint_model_onnx_forward.1} parent=87 // pred_region
          %s8615 = sand.u32 %s363, 1
          %s8616 = scalar_lea.sflag [#allocation5], %s8615
          %s8617 = sand.u32 %s363, 1
          %s8618 = scalar_lea.vmem [#allocation4], %s8617
          %8620 = dma.done %s8616, 16
        $region92: #{joint_model_onnx_forward.1} parent=87 // pred_fallthru
          _
      $region88: #{joint_model_onnx_forward.1} parent=5 // pred_fallthru
        _
    $region6: #{joint_model_onnx_forward.1} parent=1 // loop_footer
      %s28 = sadd.s32 1, %s24
    $region7: #{joint_model_onnx_forward.1} parent=1 // loop_footer_branch
      %23 = sbr.rel target = $region3
    $region8: #{joint_model_onnx_forward.1} parent=1 // loop_exit
      _
    %8621 = vsyncpa [#allocation5], 1
    %s8622 = scalar_lea.sflag [#allocation5], 1
    %8623 = vsyncpa %s8622, 1

</llo_original>
